<compile_context>
chip_gen: v6e
topology: v6e:2x2x1
jax: 0.10.0
libtpu: 0.0.40
codegen_flags: <defaults>
</compile_context>

<pallas_src>
import jax
import jax.numpy as jnp
from jax import lax
from jax.experimental import pallas as pl
from jax.experimental.pallas import tpu as pltpu


def _round_up(x, m):
    return (x + m - 1) // m * m


def _make_kernel(H, W, C, Cp, Wpad, BASE):
    """Build the per-image kernel (closure over static geometry)."""
    L = H * Wpad                            # rows of the flattened conv accumulator
    Ntot = BASE + (H + 2) * Wpad + 8        # scratch rows (+slack keeps tap reads in-bounds)

    # Flattened-scratch layout (identical for xp and mid):
    #   scratch[BASE + (h+1)*Wpad + w, c] = value at image position (h, w), channel c
    #   rows [0, BASE+Wpad) and [BASE+(H+1)*Wpad, Ntot) are zero (top/bottom halo),
    #   columns w >= W of every staged row are zero (right halo / alignment pad,
    #   which also provides the *left* halo of the following row after flattening).

    def conv3x3_acc(src_ref, w_ref):
        # out[h*Wpad + w] = sum_{kh,kw} src[(BASE-1) + kh*Wpad + kw + h*Wpad + w] @ W[kh,kw]
        # 9 K=Cp matmuls accumulated in f32 -- no im2col slab materialization.
        acc = None
        for kh in range(3):
            for kw in range(3):
                start = BASE - 1 + kh * Wpad + kw          # static offset
                lhs = src_ref[pl.ds(start, L), :]          # (L, Cp) bf16
                d = jnp.dot(lhs, w_ref[kh * 3 + kw],
                            preferred_element_type=jnp.float32)
                acc = d if acc is None else acc + d
        return acc                                         # (L, Cp) f32

    def stage(dst_ref, rows_flat_bf16):
        # Aligned stores only: zero halo blocks, then one full interior store
        # whose offset (BASE + Wpad) is a multiple of 8.
        dst_ref[pl.ds(0, BASE + Wpad), :] = jnp.zeros((BASE + Wpad, Cp), dst_ref.dtype)
        dst_ref[pl.ds(BASE + (H + 1) * Wpad, Wpad + 8), :] = (
            jnp.zeros((Wpad + 8, Cp), dst_ref.dtype))
        dst_ref[pl.ds(BASE + Wpad, L), :] = rows_flat_bf16

    def kernel(x_ref, w1_ref, w2_ref, b1_ref, b2_ref, out_ref, xp_ref, mid_ref):
        # ---- stage input: in-kernel cast f32->bf16, channel pad, width pad ----
        xb = x_ref[...].astype(jnp.bfloat16)                       # (H, W, C)
        if Cp > C:
            xb = jnp.concatenate(
                [xb, jnp.zeros((H, W, Cp - C), jnp.bfloat16)], axis=-1)
        xb = jnp.concatenate(
            [xb, jnp.zeros((H, Wpad - W, Cp), jnp.bfloat16)], axis=1)  # (H, Wpad, Cp)
        stage(xp_ref, xb.reshape(L, Cp))                            # layout-free reshape

        # ---- conv1 (9 accumulated MXU matmuls) + bn1 bias + relu ----
        acc1 = conv3x3_acc(xp_ref, w1_ref)
        act1 = jnp.maximum(acc1 + b1_ref[...], 0.0)
        # zero the junk / halo columns (w >= W) with a VPU select (no masked stores)
        col = lax.broadcasted_iota(jnp.int32, (1, Wpad, 1), 1)
        act1 = jnp.where(col < W, act1.reshape(H, Wpad, Cp), 0.0).reshape(L, Cp)
        stage(mid_ref, act1.astype(jnp.bfloat16))

        # ---- conv2 + bn2 bias + fused identity residual + relu ----
        acc2 = conv3x3_acc(mid_ref, w2_ref)
        resid = xp_ref[pl.ds(BASE + Wpad, L), :].astype(jnp.float32)   # aligned load
        out = jnp.maximum(acc2 + b2_ref[...] + resid, 0.0)
        out_ref[...] = out.reshape(H, Wpad, Cp)[:, :W, :].astype(out_ref.dtype)

    return kernel, Ntot


def basic_block_pallas(x, w1, w2, bn1, bn2, eps=1e-5,
                       out_dtype=jnp.bfloat16, slice_output=True):
    """x: (B, H, W, C) NHWC f32; w1/w2: (Cout, Cin, 3, 3) PyTorch layout.
    bn1/bn2: (gamma, beta, running_mean, running_var), each (C,). Eval-mode BN.
    Output is bf16 (padded to Cp channels if slice_output=False, for chained blocks)."""
    B, H, W, Cin = x.shape
    Cout = w1.shape[0]
    assert Cin == Cout and w1.shape[2:] == (3, 3), "identity residual path only"
    # TODO(synk): stride > 1, dilation > 1 and the optional `downsample` branch of
    # BasicBlock are not implemented (module defaults: stride=1, dilation=1, None).
    Cp = _round_up(Cout, 128)                  # lane-dense channel dim
    Wpad = _round_up(W + 2, 8)                 # padded row stride (sublane aligned)
    BASE = 8                                   # lead-in rows -> aligned interior stores

    def fold(bn):
        gamma, beta, mean, var = bn
        scale = (gamma / jnp.sqrt(var + eps)).astype(jnp.float32)
        bias = (beta - mean * scale).astype(jnp.float32)
        return scale, bias

    def pack(w, scale):                        # -> (9, Cp, Cp) bf16, BN scale folded
        ws = w.astype(jnp.float32) * scale[:, None, None, None]
        ws = jnp.transpose(ws, (2, 3, 1, 0))   # (kh, kw, Cin, Cout)
        ws = jnp.pad(ws, ((0, 0), (0, 0), (0, Cp - Cin), (0, Cp - Cout)))
        return ws.reshape(9, Cp, Cp).astype(jnp.bfloat16)

    s1, b1 = fold(bn1)
    s2, b2 = fold(bn2)
    w1p, w2p = pack(w1, s1), pack(w2, s2)
    b1p = jnp.pad(b1.reshape(1, -1), ((0, 0), (0, Cp - Cout)))
    b2p = jnp.pad(b2.reshape(1, -1), ((0, 0), (0, Cp - Cout)))

    kernel, Ntot = _make_kernel(H, W, Cin, Cp, Wpad, BASE)

    # TODO(synk): for very large H*W, add a second grid axis tiling H into row blocks
    # with a 1-row halo (more pipeline stages / v7x core balance); for Cp=512 blocks,
    # single-buffer the grid-invariant weight specs (pipeline_mode=pl.Buffered(1)).
    out = pl.pallas_call(
        kernel,
        out_shape=jax.ShapeDtypeStruct((B, H, W, Cp), out_dtype),
        grid=(B,),
        in_specs=[
            pl.BlockSpec((None, H, W, Cin), lambda b: (b, 0, 0, 0)),   # raw f32 input
            pl.BlockSpec((9, Cp, Cp), lambda b: (0, 0, 0)),
            pl.BlockSpec((9, Cp, Cp), lambda b: (0, 0, 0)),
            pl.BlockSpec((1, Cp), lambda b: (0, 0)),
            pl.BlockSpec((1, Cp), lambda b: (0, 0)),
        ],
        out_specs=pl.BlockSpec((None, H, W, Cp), lambda b: (b, 0, 0, 0)),
        scratch_shapes=[pltpu.VMEM((Ntot, Cp), jnp.bfloat16),   # staged padded input
                        pltpu.VMEM((Ntot, Cp), jnp.bfloat16)],  # staged conv1 activation
        compiler_params=pltpu.CompilerParams(
            dimension_semantics=("parallel",),
            vmem_limit_bytes=48 * 1024 * 1024),
    )(x.astype(jnp.float32), w1p, w2p, b1p, b2p)

    if slice_output:
        out = out[..., :Cout]       # for chained blocks, pass slice_output=False instead
    return out


# ---------------------------- pure-JAX references ----------------------------
def _conv(a, w):
    return lax.conv_general_dilated(
        a, jnp.transpose(w, (2, 3, 1, 0)),               # HWIO
        window_strides=(1, 1), padding=((1, 1), (1, 1)),
        dimension_numbers=("NHWC", "HWIO", "NHWC"),
        precision=lax.Precision.HIGHEST)


def basic_block_ref_f32(x, w1, w2, bn1, bn2, eps=1e-5):
    def bn(a, p):
        gamma, beta, mean, var = p
        return (a - mean) / jnp.sqrt(var + eps) * gamma + beta
    out = jax.nn.relu(bn(_conv(x, w1), bn1))
    out = bn(_conv(out, w2), bn2)
    return jax.nn.relu(out + x)


def basic_block_ref_bf16(x, w1, w2, bn1, bn2, eps=1e-5):
    # Numerics-matched reference: bf16 MXU inputs, f32 accumulation, BN scale folded
    # into weights before the bf16 cast, bf16 intermediate / residual / output.
    def fold(bn):
        gamma, beta, mean, var = bn
        scale = gamma / jnp.sqrt(var + eps)
        return scale, beta - mean * scale
    s1, b1 = fold(bn1)
    s2, b2 = fold(bn2)
    rnd = lambda a: a.astype(jnp.bfloat16).astype(jnp.float32)
    w1s = rnd(w1 * s1[:, None, None, None])
    w2s = rnd(w2 * s2[:, None, None, None])
    xb = rnd(x)
    h = rnd(jax.nn.relu(_conv(xb, w1s) + b1))
    out = jax.nn.relu(_conv(h, w2s) + b2 + xb)
    return rnd(out)


if __name__ == "__main__":
    key = jax.random.PRNGKey(0)
    B, H, W, C = 2, 16, 16, 8            # inplanes = planes = 8, stride = 1

    ks = jax.random.split(key, 11)
    x  = jax.random.normal(ks[0], (B, H, W, C), jnp.float32)
    w1 = jax.random.normal(ks[1], (C, C, 3, 3), jnp.float32) * 0.1
    w2 = jax.random.normal(ks[2], (C, C, 3, 3), jnp.float32) * 0.1
    bn1 = (jax.random.normal(ks[3], (C,)) * 0.1 + 1.0,               # gamma
           jax.random.normal(ks[4], (C,)) * 0.1,                     # beta
           jax.random.normal(ks[5], (C,)) * 0.1,                     # running_mean
           jax.nn.softplus(jax.random.normal(ks[6], (C,))) + 0.5)    # running_var
    bn2 = (jax.random.normal(ks[7], (C,)) * 0.1 + 1.0,
           jax.random.normal(ks[8], (C,)) * 0.1,
           jax.random.normal(ks[9], (C,)) * 0.1,
           jax.nn.softplus(jax.random.normal(ks[10], (C,))) + 0.5)

    out = jax.block_until_ready(basic_block_pallas(x, w1, w2, bn1, bn2))
    assert out.shape == (B, H, W, C) and out.dtype == jnp.bfloat16
    out_f32 = out.astype(jnp.float32)

    ref_m = basic_block_ref_bf16(x, w1, w2, bn1, bn2)    # matches kernel numerics
    ref_f = basic_block_ref_f32(x, w1, w2, bn1, bn2)     # exact f32 semantics
    err_m = float(jnp.max(jnp.abs(out_f32 - ref_m)))
    err_f = float(jnp.max(jnp.abs(out_f32 - ref_f)))
    assert jnp.allclose(out_f32, ref_m, atol=1e-2, rtol=1e-2), f"matched-ref err {err_m}"
    assert jnp.allclose(out_f32, ref_f, atol=1e-1, rtol=1e-1), f"f32-ref err {err_f}"

    print("KERNEL_OK")
</pallas_src>

<mosaic_0001>
module attributes {stable_mosaic.version = 11 : i64} {
  func.func @kernel(%arg0: i32, %arg1: memref<1x16x16x8xf32, #tpu.memory_space<vmem>>, %arg2: memref<9x128x128xbf16, #tpu.memory_space<vmem>>, %arg3: memref<9x128x128xbf16, #tpu.memory_space<vmem>>, %arg4: memref<1x128xf32, #tpu.memory_space<vmem>>, %arg5: memref<1x128xf32, #tpu.memory_space<vmem>>, %arg6: memref<1x16x16x128xbf16, #tpu.memory_space<vmem>>, %arg7: memref<448x128xbf16, #tpu.memory_space<vmem>>, %arg8: memref<448x128xbf16, #tpu.memory_space<vmem>>) attributes {dimension_semantics = [#tpu.dimension_semantics<parallel>], iteration_bounds = array<i64: 2>, scalar_prefetch = 0 : i64, scratch_operands = 2 : i64, tpu.core_type = #tpu.core_type<tc>, window_params = [{transform_indices = @transform_0, window_bounds = array<i64: 1, 16, 16, 8>}, {pipeline_mode = #tpu.pipeline_mode<synchronous>, transform_indices = @transform_1, window_bounds = array<i64: 9, 128, 128>}, {pipeline_mode = #tpu.pipeline_mode<synchronous>, transform_indices = @transform_2, window_bounds = array<i64: 9, 128, 128>}, {pipeline_mode = #tpu.pipeline_mode<synchronous>, transform_indices = @transform_3, window_bounds = array<i64: 1, 128>}, {pipeline_mode = #tpu.pipeline_mode<synchronous>, transform_indices = @transform_4, window_bounds = array<i64: 1, 128>}, {transform_indices = @transform_5, window_bounds = array<i64: 1, 16, 16, 128>}]} {
    %c0 = arith.constant 0 : index
    %c0_0 = arith.constant 0 : index
    %c0_1 = arith.constant 0 : index
    %c0_2 = arith.constant 0 : index
    %0 = vector.load %arg1[%c0, %c0_0, %c0_1, %c0_2] : memref<1x16x16x8xf32, #tpu.memory_space<vmem>>, vector<1x16x16x8xf32>
    %1 = vector.shape_cast %0 : vector<1x16x16x8xf32> to vector<16x16x8xf32>
    %2 = arith.truncf %1 : vector<16x16x8xf32> to vector<16x16x8xbf16>
    %cst = arith.constant 0.000000e+00 : bf16
    %3 = vector.broadcast %cst : bf16 to vector<16x16x120xbf16>
    %4 = tpu.concatenate %2, %3 in 2 : vector<16x16x8xbf16>, vector<16x16x120xbf16> -> vector<16x16x128xbf16>
    %cst_3 = arith.constant 0.000000e+00 : bf16
    %5 = vector.broadcast %cst_3 : bf16 to vector<16x8x128xbf16>
    %6 = tpu.concatenate %4, %5 in 1 : vector<16x16x128xbf16>, vector<16x8x128xbf16> -> vector<16x24x128xbf16>
    %7 = vector.shape_cast %6 : vector<16x24x128xbf16> to vector<384x128xbf16>
    %cst_4 = arith.constant 0.000000e+00 : bf16
    %8 = vector.broadcast %cst_4 : bf16 to vector<32x128xbf16>
    %c0_5 = arith.constant 0 : index
    %c0_6 = arith.constant 0 : index
    %9 = vector.load %arg7[%c0_5, %c0_6] : memref<448x128xbf16, #tpu.memory_space<vmem>>, vector<32x128xbf16>
    tpu.vector_store %arg7[%c0_5, %c0_6], %8 {strides = array<i32>} : memref<448x128xbf16, #tpu.memory_space<vmem>>, vector<32x128xbf16>,
    %cst_7 = arith.constant 0.000000e+00 : bf16
    %10 = vector.broadcast %cst_7 : bf16 to vector<32x128xbf16>
    %c416 = arith.constant 416 : index
    %c0_8 = arith.constant 0 : index
    %11 = vector.load %arg7[%c416, %c0_8] : memref<448x128xbf16, #tpu.memory_space<vmem>>, vector<32x128xbf16>
    tpu.vector_store %arg7[%c416, %c0_8], %10 {strides = array<i32>} : memref<448x128xbf16, #tpu.memory_space<vmem>>, vector<32x128xbf16>,
    %c32 = arith.constant 32 : index
    %c0_9 = arith.constant 0 : index
    %12 = vector.load %arg7[%c32, %c0_9] : memref<448x128xbf16, #tpu.memory_space<vmem>>, vector<384x128xbf16>
    tpu.vector_store %arg7[%c32, %c0_9], %7 {strides = array<i32>} : memref<448x128xbf16, #tpu.memory_space<vmem>>, vector<384x128xbf16>,
    %c7 = arith.constant 7 : index
    %c0_10 = arith.constant 0 : index
    %13 = vector.load %arg7[%c7, %c0_10] : memref<448x128xbf16, #tpu.memory_space<vmem>>, vector<384x128xbf16>
    %c0_11 = arith.constant 0 : index
    %c0_12 = arith.constant 0 : index
    %c0_13 = arith.constant 0 : index
    %14 = vector.load %arg2[%c0_11, %c0_12, %c0_13] : memref<9x128x128xbf16, #tpu.memory_space<vmem>>, vector<1x128x128xbf16>
    %15 = vector.shape_cast %14 : vector<1x128x128xbf16> to vector<128x128xbf16>
    %cst_14 = arith.constant dense<0.000000e+00> : vector<384x128xf32>
    %16 = tpu.matmul %13, %15, %cst_14 {dimension_numbers = #tpu.dot_dimension_numbers<[1], [0], [0], [1], [0, 0, 1, 1], [], []>} : vector<384x128xbf16>, vector<128x128xbf16>, vector<384x128xf32> -> vector<384x128xf32>
    %c8 = arith.constant 8 : index
    %c0_15 = arith.constant 0 : index
    %17 = vector.load %arg7[%c8, %c0_15] : memref<448x128xbf16, #tpu.memory_space<vmem>>, vector<384x128xbf16>
    %c1 = arith.constant 1 : index
    %c0_16 = arith.constant 0 : index
    %c0_17 = arith.constant 0 : index
    %18 = vector.load %arg2[%c1, %c0_16, %c0_17] : memref<9x128x128xbf16, #tpu.memory_space<vmem>>, vector<1x128x128xbf16>
    %19 = vector.shape_cast %18 : vector<1x128x128xbf16> to vector<128x128xbf16>
    %cst_18 = arith.constant dense<0.000000e+00> : vector<384x128xf32>
    %20 = tpu.matmul %17, %19, %cst_18 {dimension_numbers = #tpu.dot_dimension_numbers<[1], [0], [0], [1], [0, 0, 1, 1], [], []>} : vector<384x128xbf16>, vector<128x128xbf16>, vector<384x128xf32> -> vector<384x128xf32>
    %21 = arith.addf %16, %20 : vector<384x128xf32>
    %c9 = arith.constant 9 : index
    %c0_19 = arith.constant 0 : index
    %22 = vector.load %arg7[%c9, %c0_19] : memref<448x128xbf16, #tpu.memory_space<vmem>>, vector<384x128xbf16>
    %c2 = arith.constant 2 : index
    %c0_20 = arith.constant 0 : index
    %c0_21 = arith.constant 0 : index
    %23 = vector.load %arg2[%c2, %c0_20, %c0_21] : memref<9x128x128xbf16, #tpu.memory_space<vmem>>, vector<1x128x128xbf16>
    %24 = vector.shape_cast %23 : vector<1x128x128xbf16> to vector<128x128xbf16>
    %cst_22 = arith.constant dense<0.000000e+00> : vector<384x128xf32>
    %25 = tpu.matmul %22, %24, %cst_22 {dimension_numbers = #tpu.dot_dimension_numbers<[1], [0], [0], [1], [0, 0, 1, 1], [], []>} : vector<384x128xbf16>, vector<128x128xbf16>, vector<384x128xf32> -> vector<384x128xf32>
    %26 = arith.addf %21, %25 : vector<384x128xf32>
    %c31 = arith.constant 31 : index
    %c0_23 = arith.constant 0 : index
    %27 = vector.load %arg7[%c31, %c0_23] : memref<448x128xbf16, #tpu.memory_space<vmem>>, vector<384x128xbf16>
    %c3 = arith.constant 3 : index
    %c0_24 = arith.constant 0 : index
    %c0_25 = arith.constant 0 : index
    %28 = vector.load %arg2[%c3, %c0_24, %c0_25] : memref<9x128x128xbf16, #tpu.memory_space<vmem>>, vector<1x128x128xbf16>
    %29 = vector.shape_cast %28 : vector<1x128x128xbf16> to vector<128x128xbf16>
    %cst_26 = arith.constant dense<0.000000e+00> : vector<384x128xf32>
    %30 = tpu.matmul %27, %29, %cst_26 {dimension_numbers = #tpu.dot_dimension_numbers<[1], [0], [0], [1], [0, 0, 1, 1], [], []>} : vector<384x128xbf16>, vector<128x128xbf16>, vector<384x128xf32> -> vector<384x128xf32>
    %31 = arith.addf %26, %30 : vector<384x128xf32>
    %c32_27 = arith.constant 32 : index
    %c0_28 = arith.constant 0 : index
    %32 = vector.load %arg7[%c32_27, %c0_28] : memref<448x128xbf16, #tpu.memory_space<vmem>>, vector<384x128xbf16>
    %c4 = arith.constant 4 : index
    %c0_29 = arith.constant 0 : index
    %c0_30 = arith.constant 0 : index
    %33 = vector.load %arg2[%c4, %c0_29, %c0_30] : memref<9x128x128xbf16, #tpu.memory_space<vmem>>, vector<1x128x128xbf16>
    %34 = vector.shape_cast %33 : vector<1x128x128xbf16> to vector<128x128xbf16>
    %cst_31 = arith.constant dense<0.000000e+00> : vector<384x128xf32>
    %35 = tpu.matmul %32, %34, %cst_31 {dimension_numbers = #tpu.dot_dimension_numbers<[1], [0], [0], [1], [0, 0, 1, 1], [], []>} : vector<384x128xbf16>, vector<128x128xbf16>, vector<384x128xf32> -> vector<384x128xf32>
    %36 = arith.addf %31, %35 : vector<384x128xf32>
    %c33 = arith.constant 33 : index
    %c0_32 = arith.constant 0 : index
    %37 = vector.load %arg7[%c33, %c0_32] : memref<448x128xbf16, #tpu.memory_space<vmem>>, vector<384x128xbf16>
    %c5 = arith.constant 5 : index
    %c0_33 = arith.constant 0 : index
    %c0_34 = arith.constant 0 : index
    %38 = vector.load %arg2[%c5, %c0_33, %c0_34] : memref<9x128x128xbf16, #tpu.memory_space<vmem>>, vector<1x128x128xbf16>
    %39 = vector.shape_cast %38 : vector<1x128x128xbf16> to vector<128x128xbf16>
    %cst_35 = arith.constant dense<0.000000e+00> : vector<384x128xf32>
    %40 = tpu.matmul %37, %39, %cst_35 {dimension_numbers = #tpu.dot_dimension_numbers<[1], [0], [0], [1], [0, 0, 1, 1], [], []>} : vector<384x128xbf16>, vector<128x128xbf16>, vector<384x128xf32> -> vector<384x128xf32>
    %41 = arith.addf %36, %40 : vector<384x128xf32>
    %c55 = arith.constant 55 : index
    %c0_36 = arith.constant 0 : index
    %42 = vector.load %arg7[%c55, %c0_36] : memref<448x128xbf16, #tpu.memory_space<vmem>>, vector<384x128xbf16>
    %c6 = arith.constant 6 : index
    %c0_37 = arith.constant 0 : index
    %c0_38 = arith.constant 0 : index
    %43 = vector.load %arg2[%c6, %c0_37, %c0_38] : memref<9x128x128xbf16, #tpu.memory_space<vmem>>, vector<1x128x128xbf16>
    %44 = vector.shape_cast %43 : vector<1x128x128xbf16> to vector<128x128xbf16>
    %cst_39 = arith.constant dense<0.000000e+00> : vector<384x128xf32>
    %45 = tpu.matmul %42, %44, %cst_39 {dimension_numbers = #tpu.dot_dimension_numbers<[1], [0], [0], [1], [0, 0, 1, 1], [], []>} : vector<384x128xbf16>, vector<128x128xbf16>, vector<384x128xf32> -> vector<384x128xf32>
    %46 = arith.addf %41, %45 : vector<384x128xf32>
    %c56 = arith.constant 56 : index
    %c0_40 = arith.constant 0 : index
    %47 = vector.load %arg7[%c56, %c0_40] : memref<448x128xbf16, #tpu.memory_space<vmem>>, vector<384x128xbf16>
    %c7_41 = arith.constant 7 : index
    %c0_42 = arith.constant 0 : index
    %c0_43 = arith.constant 0 : index
    %48 = vector.load %arg2[%c7_41, %c0_42, %c0_43] : memref<9x128x128xbf16, #tpu.memory_space<vmem>>, vector<1x128x128xbf16>
    %49 = vector.shape_cast %48 : vector<1x128x128xbf16> to vector<128x128xbf16>
    %cst_44 = arith.constant dense<0.000000e+00> : vector<384x128xf32>
    %50 = tpu.matmul %47, %49, %cst_44 {dimension_numbers = #tpu.dot_dimension_numbers<[1], [0], [0], [1], [0, 0, 1, 1], [], []>} : vector<384x128xbf16>, vector<128x128xbf16>, vector<384x128xf32> -> vector<384x128xf32>
    %51 = arith.addf %46, %50 : vector<384x128xf32>
    %c57 = arith.constant 57 : index
    %c0_45 = arith.constant 0 : index
    %52 = vector.load %arg7[%c57, %c0_45] : memref<448x128xbf16, #tpu.memory_space<vmem>>, vector<384x128xbf16>
    %c8_46 = arith.constant 8 : index
    %c0_47 = arith.constant 0 : index
    %c0_48 = arith.constant 0 : index
    %53 = vector.load %arg2[%c8_46, %c0_47, %c0_48] : memref<9x128x128xbf16, #tpu.memory_space<vmem>>, vector<1x128x128xbf16>
    %54 = vector.shape_cast %53 : vector<1x128x128xbf16> to vector<128x128xbf16>
    %cst_49 = arith.constant dense<0.000000e+00> : vector<384x128xf32>
    %55 = tpu.matmul %52, %54, %cst_49 {dimension_numbers = #tpu.dot_dimension_numbers<[1], [0], [0], [1], [0, 0, 1, 1], [], []>} : vector<384x128xbf16>, vector<128x128xbf16>, vector<384x128xf32> -> vector<384x128xf32>
    %56 = arith.addf %51, %55 : vector<384x128xf32>
    %c0_50 = arith.constant 0 : index
    %c0_51 = arith.constant 0 : index
    %57 = vector.load %arg4[%c0_50, %c0_51] : memref<1x128xf32, #tpu.memory_space<vmem>>, vector<1x128xf32>
    %58 = vector.broadcast %57 : vector<1x128xf32> to vector<384x128xf32>
    %59 = arith.addf %56, %58 : vector<384x128xf32>
    %cst_52 = arith.constant 0.000000e+00 : f32
    %60 = vector.broadcast %cst_52 : f32 to vector<384x128xf32>
    %61 = arith.maximumf %59, %60 : vector<384x128xf32>
    %62 = tpu.iota {dimensions = array<i32: 1>} : vector<1x24x1xi32>
    %c16_i32 = arith.constant 16 : i32
    %63 = vector.broadcast %c16_i32 : i32 to vector<1x24x1xi32>
    %64 = arith.cmpi slt, %62, %63 : vector<1x24x1xi32>
    %65 = vector.shape_cast %61 : vector<384x128xf32> to vector<16x24x128xf32>
    %cst_53 = arith.constant 0.000000e+00 : f32
    %66 = vector.shape_cast %64 : vector<1x24x1xi1> to vector<1x24x1xi1>
    %67 = vector.broadcast %66 : vector<1x24x1xi1> to vector<16x24x128xi1>
    %68 = vector.broadcast %cst_53 : f32 to vector<16x24x128xf32>
    %69 = arith.select %67, %65, %68 : vector<16x24x128xi1>, vector<16x24x128xf32>
    %70 = vector.shape_cast %69 : vector<16x24x128xf32> to vector<384x128xf32>
    %71 = arith.truncf %70 : vector<384x128xf32> to vector<384x128xbf16>
    %cst_54 = arith.constant 0.000000e+00 : bf16
    %72 = vector.broadcast %cst_54 : bf16 to vector<32x128xbf16>
    %c0_55 = arith.constant 0 : index
    %c0_56 = arith.constant 0 : index
    %73 = vector.load %arg8[%c0_55, %c0_56] : memref<448x128xbf16, #tpu.memory_space<vmem>>, vector<32x128xbf16>
    tpu.vector_store %arg8[%c0_55, %c0_56], %72 {strides = array<i32>} : memref<448x128xbf16, #tpu.memory_space<vmem>>, vector<32x128xbf16>,
    %cst_57 = arith.constant 0.000000e+00 : bf16
    %74 = vector.broadcast %cst_57 : bf16 to vector<32x128xbf16>
    %c416_58 = arith.constant 416 : index
    %c0_59 = arith.constant 0 : index
    %75 = vector.load %arg8[%c416_58, %c0_59] : memref<448x128xbf16, #tpu.memory_space<vmem>>, vector<32x128xbf16>
    tpu.vector_store %arg8[%c416_58, %c0_59], %74 {strides = array<i32>} : memref<448x128xbf16, #tpu.memory_space<vmem>>, vector<32x128xbf16>,
    %c32_60 = arith.constant 32 : index
    %c0_61 = arith.constant 0 : index
    %76 = vector.load %arg8[%c32_60, %c0_61] : memref<448x128xbf16, #tpu.memory_space<vmem>>, vector<384x128xbf16>
    tpu.vector_store %arg8[%c32_60, %c0_61], %71 {strides = array<i32>} : memref<448x128xbf16, #tpu.memory_space<vmem>>, vector<384x128xbf16>,
    %c7_62 = arith.constant 7 : index
    %c0_63 = arith.constant 0 : index
    %77 = vector.load %arg8[%c7_62, %c0_63] : memref<448x128xbf16, #tpu.memory_space<vmem>>, vector<384x128xbf16>
    %c0_64 = arith.constant 0 : index
    %c0_65 = arith.constant 0 : index
    %c0_66 = arith.constant 0 : index
    %78 = vector.load %arg3[%c0_64, %c0_65, %c0_66] : memref<9x128x128xbf16, #tpu.memory_space<vmem>>, vector<1x128x128xbf16>
    %79 = vector.shape_cast %78 : vector<1x128x128xbf16> to vector<128x128xbf16>
    %cst_67 = arith.constant dense<0.000000e+00> : vector<384x128xf32>
    %80 = tpu.matmul %77, %79, %cst_67 {dimension_numbers = #tpu.dot_dimension_numbers<[1], [0], [0], [1], [0, 0, 1, 1], [], []>} : vector<384x128xbf16>, vector<128x128xbf16>, vector<384x128xf32> -> vector<384x128xf32>
    %c8_68 = arith.constant 8 : index
    %c0_69 = arith.constant 0 : index
    %81 = vector.load %arg8[%c8_68, %c0_69] : memref<448x128xbf16, #tpu.memory_space<vmem>>, vector<384x128xbf16>
    %c1_70 = arith.constant 1 : index
    %c0_71 = arith.constant 0 : index
    %c0_72 = arith.constant 0 : index
    %82 = vector.load %arg3[%c1_70, %c0_71, %c0_72] : memref<9x128x128xbf16, #tpu.memory_space<vmem>>, vector<1x128x128xbf16>
    %83 = vector.shape_cast %82 : vector<1x128x128xbf16> to vector<128x128xbf16>
    %cst_73 = arith.constant dense<0.000000e+00> : vector<384x128xf32>
    %84 = tpu.matmul %81, %83, %cst_73 {dimension_numbers = #tpu.dot_dimension_numbers<[1], [0], [0], [1], [0, 0, 1, 1], [], []>} : vector<384x128xbf16>, vector<128x128xbf16>, vector<384x128xf32> -> vector<384x128xf32>
    %85 = arith.addf %80, %84 : vector<384x128xf32>
    %c9_74 = arith.constant 9 : index
    %c0_75 = arith.constant 0 : index
    %86 = vector.load %arg8[%c9_74, %c0_75] : memref<448x128xbf16, #tpu.memory_space<vmem>>, vector<384x128xbf16>
    %c2_76 = arith.constant 2 : index
    %c0_77 = arith.constant 0 : index
    %c0_78 = arith.constant 0 : index
    %87 = vector.load %arg3[%c2_76, %c0_77, %c0_78] : memref<9x128x128xbf16, #tpu.memory_space<vmem>>, vector<1x128x128xbf16>
    %88 = vector.shape_cast %87 : vector<1x128x128xbf16> to vector<128x128xbf16>
    %cst_79 = arith.constant dense<0.000000e+00> : vector<384x128xf32>
    %89 = tpu.matmul %86, %88, %cst_79 {dimension_numbers = #tpu.dot_dimension_numbers<[1], [0], [0], [1], [0, 0, 1, 1], [], []>} : vector<384x128xbf16>, vector<128x128xbf16>, vector<384x128xf32> -> vector<384x128xf32>
    %90 = arith.addf %85, %89 : vector<384x128xf32>
    %c31_80 = arith.constant 31 : index
    %c0_81 = arith.constant 0 : index
    %91 = vector.load %arg8[%c31_80, %c0_81] : memref<448x128xbf16, #tpu.memory_space<vmem>>, vector<384x128xbf16>
    %c3_82 = arith.constant 3 : index
    %c0_83 = arith.constant 0 : index
    %c0_84 = arith.constant 0 : index
    %92 = vector.load %arg3[%c3_82, %c0_83, %c0_84] : memref<9x128x128xbf16, #tpu.memory_space<vmem>>, vector<1x128x128xbf16>
    %93 = vector.shape_cast %92 : vector<1x128x128xbf16> to vector<128x128xbf16>
    %cst_85 = arith.constant dense<0.000000e+00> : vector<384x128xf32>
    %94 = tpu.matmul %91, %93, %cst_85 {dimension_numbers = #tpu.dot_dimension_numbers<[1], [0], [0], [1], [0, 0, 1, 1], [], []>} : vector<384x128xbf16>, vector<128x128xbf16>, vector<384x128xf32> -> vector<384x128xf32>
    %95 = arith.addf %90, %94 : vector<384x128xf32>
    %c32_86 = arith.constant 32 : index
    %c0_87 = arith.constant 0 : index
    %96 = vector.load %arg8[%c32_86, %c0_87] : memref<448x128xbf16, #tpu.memory_space<vmem>>, vector<384x128xbf16>
    %c4_88 = arith.constant 4 : index
    %c0_89 = arith.constant 0 : index
    %c0_90 = arith.constant 0 : index
    %97 = vector.load %arg3[%c4_88, %c0_89, %c0_90] : memref<9x128x128xbf16, #tpu.memory_space<vmem>>, vector<1x128x128xbf16>
    %98 = vector.shape_cast %97 : vector<1x128x128xbf16> to vector<128x128xbf16>
    %cst_91 = arith.constant dense<0.000000e+00> : vector<384x128xf32>
    %99 = tpu.matmul %96, %98, %cst_91 {dimension_numbers = #tpu.dot_dimension_numbers<[1], [0], [0], [1], [0, 0, 1, 1], [], []>} : vector<384x128xbf16>, vector<128x128xbf16>, vector<384x128xf32> -> vector<384x128xf32>
    %100 = arith.addf %95, %99 : vector<384x128xf32>
    %c33_92 = arith.constant 33 : index
    %c0_93 = arith.constant 0 : index
    %101 = vector.load %arg8[%c33_92, %c0_93] : memref<448x128xbf16, #tpu.memory_space<vmem>>, vector<384x128xbf16>
    %c5_94 = arith.constant 5 : index
    %c0_95 = arith.constant 0 : index
    %c0_96 = arith.constant 0 : index
    %102 = vector.load %arg3[%c5_94, %c0_95, %c0_96] : memref<9x128x128xbf16, #tpu.memory_space<vmem>>, vector<1x128x128xbf16>
    %103 = vector.shape_cast %102 : vector<1x128x128xbf16> to vector<128x128xbf16>
    %cst_97 = arith.constant dense<0.000000e+00> : vector<384x128xf32>
    %104 = tpu.matmul %101, %103, %cst_97 {dimension_numbers = #tpu.dot_dimension_numbers<[1], [0], [0], [1], [0, 0, 1, 1], [], []>} : vector<384x128xbf16>, vector<128x128xbf16>, vector<384x128xf32> -> vector<384x128xf32>
    %105 = arith.addf %100, %104 : vector<384x128xf32>
    %c55_98 = arith.constant 55 : index
    %c0_99 = arith.constant 0 : index
    %106 = vector.load %arg8[%c55_98, %c0_99] : memref<448x128xbf16, #tpu.memory_space<vmem>>, vector<384x128xbf16>
    %c6_100 = arith.constant 6 : index
    %c0_101 = arith.constant 0 : index
    %c0_102 = arith.constant 0 : index
    %107 = vector.load %arg3[%c6_100, %c0_101, %c0_102] : memref<9x128x128xbf16, #tpu.memory_space<vmem>>, vector<1x128x128xbf16>
    %108 = vector.shape_cast %107 : vector<1x128x128xbf16> to vector<128x128xbf16>
    %cst_103 = arith.constant dense<0.000000e+00> : vector<384x128xf32>
    %109 = tpu.matmul %106, %108, %cst_103 {dimension_numbers = #tpu.dot_dimension_numbers<[1], [0], [0], [1], [0, 0, 1, 1], [], []>} : vector<384x128xbf16>, vector<128x128xbf16>, vector<384x128xf32> -> vector<384x128xf32>
    %110 = arith.addf %105, %109 : vector<384x128xf32>
    %c56_104 = arith.constant 56 : index
    %c0_105 = arith.constant 0 : index
    %111 = vector.load %arg8[%c56_104, %c0_105] : memref<448x128xbf16, #tpu.memory_space<vmem>>, vector<384x128xbf16>
    %c7_106 = arith.constant 7 : index
    %c0_107 = arith.constant 0 : index
    %c0_108 = arith.constant 0 : index
    %112 = vector.load %arg3[%c7_106, %c0_107, %c0_108] : memref<9x128x128xbf16, #tpu.memory_space<vmem>>, vector<1x128x128xbf16>
    %113 = vector.shape_cast %112 : vector<1x128x128xbf16> to vector<128x128xbf16>
    %cst_109 = arith.constant dense<0.000000e+00> : vector<384x128xf32>
    %114 = tpu.matmul %111, %113, %cst_109 {dimension_numbers = #tpu.dot_dimension_numbers<[1], [0], [0], [1], [0, 0, 1, 1], [], []>} : vector<384x128xbf16>, vector<128x128xbf16>, vector<384x128xf32> -> vector<384x128xf32>
    %115 = arith.addf %110, %114 : vector<384x128xf32>
    %c57_110 = arith.constant 57 : index
    %c0_111 = arith.constant 0 : index
    %116 = vector.load %arg8[%c57_110, %c0_111] : memref<448x128xbf16, #tpu.memory_space<vmem>>, vector<384x128xbf16>
    %c8_112 = arith.constant 8 : index
    %c0_113 = arith.constant 0 : index
    %c0_114 = arith.constant 0 : index
    %117 = vector.load %arg3[%c8_112, %c0_113, %c0_114] : memref<9x128x128xbf16, #tpu.memory_space<vmem>>, vector<1x128x128xbf16>
    %118 = vector.shape_cast %117 : vector<1x128x128xbf16> to vector<128x128xbf16>
    %cst_115 = arith.constant dense<0.000000e+00> : vector<384x128xf32>
    %119 = tpu.matmul %116, %118, %cst_115 {dimension_numbers = #tpu.dot_dimension_numbers<[1], [0], [0], [1], [0, 0, 1, 1], [], []>} : vector<384x128xbf16>, vector<128x128xbf16>, vector<384x128xf32> -> vector<384x128xf32>
    %120 = arith.addf %115, %119 : vector<384x128xf32>
    %c32_116 = arith.constant 32 : index
    %c0_117 = arith.constant 0 : index
    %121 = vector.load %arg7[%c32_116, %c0_117] : memref<448x128xbf16, #tpu.memory_space<vmem>>, vector<384x128xbf16>
    %122 = arith.extf %121 : vector<384x128xbf16> to vector<384x128xf32>
    %c0_118 = arith.constant 0 : index
    %c0_119 = arith.constant 0 : index
    %123 = vector.load %arg5[%c0_118, %c0_119] : memref<1x128xf32, #tpu.memory_space<vmem>>, vector<1x128xf32>
    %124 = vector.broadcast %123 : vector<1x128xf32> to vector<384x128xf32>
    %125 = arith.addf %120, %124 : vector<384x128xf32>
    %126 = arith.addf %125, %122 : vector<384x128xf32>
    %cst_120 = arith.constant 0.000000e+00 : f32
    %127 = vector.broadcast %cst_120 : f32 to vector<384x128xf32>
    %128 = arith.maximumf %126, %127 : vector<384x128xf32>
    %129 = vector.shape_cast %128 : vector<384x128xf32> to vector<16x24x128xf32>
    %130 = vector.extract_strided_slice %129 {offsets = [0, 0, 0], sizes = [16, 16, 128], strides = [1, 1, 1]} : vector<16x24x128xf32> to vector<16x16x128xf32>
    %131 = arith.truncf %130 : vector<16x16x128xf32> to vector<16x16x128xbf16>
    %c0_121 = arith.constant 0 : index
    %c0_122 = arith.constant 0 : index
    %c0_123 = arith.constant 0 : index
    %c0_124 = arith.constant 0 : index
    %132 = vector.load %arg6[%c0_121, %c0_122, %c0_123, %c0_124] : memref<1x16x16x128xbf16, #tpu.memory_space<vmem>>, vector<1x16x16x128xbf16>
    %133 = vector.shape_cast %132 : vector<1x16x16x128xbf16> to vector<16x16x128xbf16>
    %134 = vector.shape_cast %131 : vector<16x16x128xbf16> to vector<1x16x16x128xbf16>
    tpu.vector_store %arg6[%c0_121, %c0_122, %c0_123, %c0_124], %134 {strides = array<i32>} : memref<1x16x16x128xbf16, #tpu.memory_space<vmem>>, vector<1x16x16x128xbf16>,
    return
  }
  func.func @transform_0(%arg0: i32) -> (i32, i32, i32, i32) {
    %c0_i32 = arith.constant 0 : i32
    %c0_i32_0 = arith.constant 0 : i32
    %c0_i32_1 = arith.constant 0 : i32
    %c0_i32_2 = arith.constant 0 : i32
    return %arg0, %c0_i32, %c0_i32_0, %c0_i32_1 : i32, i32, i32, i32
  }
  func.func @transform_1(%arg0: i32) -> (i32, i32, i32) {
    %c0_i32 = arith.constant 0 : i32
    %c0_i32_0 = arith.constant 0 : i32
    %c0_i32_1 = arith.constant 0 : i32
    %c0_i32_2 = arith.constant 0 : i32
    return %c0_i32, %c0_i32_0, %c0_i32_1 : i32, i32, i32
  }
  func.func @transform_2(%arg0: i32) -> (i32, i32, i32) {
    %c0_i32 = arith.constant 0 : i32
    %c0_i32_0 = arith.constant 0 : i32
    %c0_i32_1 = arith.constant 0 : i32
    %c0_i32_2 = arith.constant 0 : i32
    return %c0_i32, %c0_i32_0, %c0_i32_1 : i32, i32, i32
  }
  func.func @transform_3(%arg0: i32) -> (i32, i32) {
    %c0_i32 = arith.constant 0 : i32
    %c0_i32_0 = arith.constant 0 : i32
    %c0_i32_1 = arith.constant 0 : i32
    return %c0_i32, %c0_i32_0 : i32, i32
  }
  func.func @transform_4(%arg0: i32) -> (i32, i32) {
    %c0_i32 = arith.constant 0 : i32
    %c0_i32_0 = arith.constant 0 : i32
    %c0_i32_1 = arith.constant 0 : i32
    return %c0_i32, %c0_i32_0 : i32, i32
  }
  func.func @transform_5(%arg0: i32) -> (i32, i32, i32, i32) {
    %c0_i32 = arith.constant 0 : i32
    %c0_i32_0 = arith.constant 0 : i32
    %c0_i32_1 = arith.constant 0 : i32
    %c0_i32_2 = arith.constant 0 : i32
    return %arg0, %c0_i32, %c0_i32_0, %c0_i32_1 : i32, i32, i32, i32
  }
}

</mosaic_0001>

<llo_original>
// kernel: tpu_custom_call.1
$region0: #{tpu_custom_call.1}
  #allocation0 [shape = 'u32[]', space=smem, size = 0x4, offset = 0x4, fixed_abs, tag = 'smem constant byte address 0x4 - core index']
  #allocation1 [shape = 'u32[144,128]{1,0:T(1,128)}', space=vmem, size = 0x12000, scoped, tag = 'internal scratch']
  #allocation2 [shape = 'bf16[448,128]{1,0:T(8,128)(2,1)}', space=vmem, size = 0x1c000, scoped, tag = 'scratch operand']
  #allocation3 [shape = 'bf16[448,128]{1,0:T(8,128)(2,1)}', space=vmem, size = 0x1c000, scoped, tag = 'scratch operand']
  %s0 = inlined_call_operand.vmem [shape: f32[2,16,16,8], index: 0, kind: input, shape index: {}]
  %s1 = inlined_call_operand.vmem [shape: bf16[9,128,128], index: 1, kind: input, shape index: {}]
  %s2 = inlined_call_operand.hbm [shape: bf16[9,128,128], index: 2, kind: input, shape index: {}]
  %s3 = inlined_call_operand.vmem [shape: f32[1,128], index: 3, kind: input, shape index: {}]
  %s4 = inlined_call_operand.vmem [shape: f32[1,128], index: 4, kind: input, shape index: {}]
  %s5 = inlined_call_operand.hbm [shape: bf16[2,16,16,128], index: 5, kind: output, shape index: {}]
  %s6 = sld [smem:[#allocation0]]
  $region57: #{tpu_custom_call.1} parent=0
    _
  %s8 = ssub.s32 1, %s6
  %s9 = scalar_select 0, %s8, %s6
  $region1: #{tpu_custom_call.1} parent=0
    #allocation4 [shape = 'u8[294912]{0}', space=vmem, size = 0x48000, scoped, tag = 'input window, operand 2, single buffered']
    #allocation5 [shape = 's32[2]{0}', space=sflag, size = 0x8, scoped, tag = 'scoped memory for tpu_custom_call.1']
    #allocation6 [shape = 's32[2]{0}', space=sflag, size = 0x8, scoped, tag = 'scoped memory for tpu_custom_call.1']
    #allocation7 [shape = 'u8[131072]{0}', space=vmem, size = 0x20000, scoped, tag = 'output window, operand 0']
    %10 = vsyncpa [#allocation5], 0
    %11 = vsyncpa [#allocation6], 0
    %s12 = scalar_lea.sflag [#allocation6], 1
    %13 = vsyncpa %s12, 0
    loop: start=0, step=1, limit=4
    $region2: #{tpu_custom_call.1} parent=1 // loop_pre_header
      _
    $region3: #{tpu_custom_call.1} parent=1 // loop_header
      %s15 = sphi 0, %s19
      %p16 = scmp.ge.s32.totalorder %s15, 4
      %s25 = sphi 0, %s27
      %s28 = sphi 0, %s25
      %s29 = sphi 0, %s28
      %s45 = sphi 0, %s29
      %s49 = sphi 0, %s49
      %s51 = sphi 0, %s49
      %s52 = sphi 0, %s51
      %s66 = sphi 0, %s52
      %s70 = sphi 0, %s70
      %s72 = sphi 0, %s70
      %s73 = sphi 0, %s72
      %s87 = sphi 0, %s73
      %s91 = sphi 0, %s91
      %s93 = sphi 0, %s91
      %s94 = sphi 0, %s93
      %s108 = sphi 0, %s94
      %s112 = sphi 0, %s112
      %s114 = sphi 0, %s112
      %s115 = sphi 0, %s114
      %s129 = sphi 0, %s115
      %s135 = sphi 0, %s137
      %s138 = sphi 0, %s135
      %s139 = sphi 0, %s138
      %s155 = sphi 0, %s139
    $region4: #{tpu_custom_call.1} parent=1 // loop_header_branch
      %18 = sbr.rel (%p16) target = $region8
    $region5: #{tpu_custom_call.1} parent=1 // loop_body
      %s20 = ssub.s32 %s15, 1
      %s21 = ssub.s32 %s15, 2
      %s22 = sadd.s32 %s15, 1
      %s23 = ssub.s32 %s15, %s22
      %p24 = scmp.eq.s32.totalorder %s23, 0
      %s26 = sadd.s32 %s25, 1
      %s27 = scalar_select %p24, %s25, %s26
      %p30 = pneg %p24
      %p31 = scmp.eq.s32.totalorder %s15, 1
      %p32 = por %p30, %p31
      %p33 = scmp.ne.s32.totalorder %s25, %s28
      %p34 = scmp.eq.s32.totalorder %s15, 0
      %p35 = por %p33, %p34
      %p36 = scmp.ne.s32.totalorder %s25, %s28
      %p37 = scmp.eq.s32.totalorder %s20, 1
      %p38 = por %p36, %p37
      %p39 = scmp.ne.s32.totalorder %s28, %s29
      %p40 = scmp.eq.s32.totalorder %s20, 0
      %p41 = por %p39, %p40
      %p42 = scmp.ne.s32.totalorder %s28, %s29
      %p43 = scmp.eq.s32.totalorder %s21, 1
      %p44 = por %p42, %p43
      %p46 = scmp.ne.s32.totalorder %s29, %s45
      %p47 = scmp.eq.s32.totalorder %s21, 0
      %p48 = por %p46, %p47
      %s50 = sadd.s32 %s49, 1
      %p53 = scmp.eq.s32.totalorder %s15, 1
      %p54 = scmp.ne.s32.totalorder %s49, %s51
      %p55 = scmp.eq.s32.totalorder %s15, 0
      %p56 = por %p54, %p55
      %p57 = scmp.ne.s32.totalorder %s49, %s51
      %p58 = scmp.eq.s32.totalorder %s20, 1
      %p59 = por %p57, %p58
      %p60 = scmp.ne.s32.totalorder %s51, %s52
      %p61 = scmp.eq.s32.totalorder %s20, 0
      %p62 = por %p60, %p61
      %p63 = scmp.ne.s32.totalorder %s51, %s52
      %p64 = scmp.eq.s32.totalorder %s21, 1
      %p65 = por %p63, %p64
      %p67 = scmp.ne.s32.totalorder %s52, %s66
      %p68 = scmp.eq.s32.totalorder %s21, 0
      %p69 = por %p67, %p68
      %s71 = sadd.s32 %s70, 1
      %p74 = scmp.eq.s32.totalorder %s15, 1
      %p75 = scmp.ne.s32.totalorder %s70, %s72
      %p76 = scmp.eq.s32.totalorder %s15, 0
      %p77 = por %p75, %p76
      %p78 = scmp.ne.s32.totalorder %s70, %s72
      %p79 = scmp.eq.s32.totalorder %s20, 1
      %p80 = por %p78, %p79
      %p81 = scmp.ne.s32.totalorder %s72, %s73
      %p82 = scmp.eq.s32.totalorder %s20, 0
      %p83 = por %p81, %p82
      %p84 = scmp.ne.s32.totalorder %s72, %s73
      %p85 = scmp.eq.s32.totalorder %s21, 1
      %p86 = por %p84, %p85
      %p88 = scmp.ne.s32.totalorder %s73, %s87
      %p89 = scmp.eq.s32.totalorder %s21, 0
      %p90 = por %p88, %p89
      %s92 = sadd.s32 %s91, 1
      %p95 = scmp.eq.s32.totalorder %s15, 1
      %p96 = scmp.ne.s32.totalorder %s91, %s93
      %p97 = scmp.eq.s32.totalorder %s15, 0
      %p98 = por %p96, %p97
      %p99 = scmp.ne.s32.totalorder %s91, %s93
      %p100 = scmp.eq.s32.totalorder %s20, 1
      %p101 = por %p99, %p100
      %p102 = scmp.ne.s32.totalorder %s93, %s94
      %p103 = scmp.eq.s32.totalorder %s20, 0
      %p104 = por %p102, %p103
      %p105 = scmp.ne.s32.totalorder %s93, %s94
      %p106 = scmp.eq.s32.totalorder %s21, 1
      %p107 = por %p105, %p106
      %p109 = scmp.ne.s32.totalorder %s94, %s108
      %p110 = scmp.eq.s32.totalorder %s21, 0
      %p111 = por %p109, %p110
      %s113 = sadd.s32 %s112, 1
      %p116 = scmp.eq.s32.totalorder %s15, 1
      %p117 = scmp.ne.s32.totalorder %s112, %s114
      %p118 = scmp.eq.s32.totalorder %s15, 0
      %p119 = por %p117, %p118
      %p120 = scmp.ne.s32.totalorder %s112, %s114
      %p121 = scmp.eq.s32.totalorder %s20, 1
      %p122 = por %p120, %p121
      %p123 = scmp.ne.s32.totalorder %s114, %s115
      %p124 = scmp.eq.s32.totalorder %s20, 0
      %p125 = por %p123, %p124
      %p126 = scmp.ne.s32.totalorder %s114, %s115
      %p127 = scmp.eq.s32.totalorder %s21, 1
      %p128 = por %p126, %p127
      %p130 = scmp.ne.s32.totalorder %s115, %s129
      %p131 = scmp.eq.s32.totalorder %s21, 0
      %p132 = por %p130, %p131
      %s133 = ssub.s32 %s15, %s22
      %p134 = scmp.eq.s32.totalorder %s133, 0
      %s136 = sadd.s32 %s135, 1
      %s137 = scalar_select %p134, %s135, %s136
      %p140 = pneg %p134
      %p141 = scmp.eq.s32.totalorder %s15, 1
      %p142 = por %p140, %p141
      %p143 = scmp.ne.s32.totalorder %s135, %s138
      %p144 = scmp.eq.s32.totalorder %s15, 0
      %p145 = por %p143, %p144
      %p146 = scmp.ne.s32.totalorder %s135, %s138
      %p147 = scmp.eq.s32.totalorder %s20, 1
      %p148 = por %p146, %p147
      %p149 = scmp.ne.s32.totalorder %s138, %s139
      %p150 = scmp.eq.s32.totalorder %s20, 0
      %p151 = por %p149, %p150
      %p152 = scmp.ne.s32.totalorder %s138, %s139
      %p153 = scmp.eq.s32.totalorder %s21, 1
      %p154 = por %p152, %p153
      %p156 = scmp.ne.s32.totalorder %s139, %s155
      %p157 = scmp.eq.s32.totalorder %s21, 0
      %p158 = por %p156, %p157
      %p159 = scmp.le.s32.totalorder 1, %s15
      %p160 = scmp.lt.s32.totalorder %s15, 3
      %p161 = pnand %p159, %p160
      %p162 = pneg %p161
      // Predicated region
      $region9: #{tpu_custom_call.1} parent=5 // pred_check
        _
      $region10: #{tpu_custom_call.1} parent=5 // pred_check_branch
        %164 = sbr.rel (%p161) target = $region12
      $region11: #{tpu_custom_call.1} parent=5 // pred_region
        %s165 = ssub.s32 %s15, 1
        // Predicated region
        $region13: #{tpu_custom_call.1} parent=11 // pred_check
          %p166 = pneg %p62
        $region14: #{tpu_custom_call.1} parent=11 // pred_check_branch
          %168 = sbr.rel (%p166) target = $region16
        $region15: #{tpu_custom_call.1} parent=11 // pred_region
          _
        $region16: #{tpu_custom_call.1} parent=11 // pred_fallthru
          _
        // Predicated region
        $region17: #{tpu_custom_call.1} parent=11 // pred_check
          %p169 = pneg %p83
        $region18: #{tpu_custom_call.1} parent=11 // pred_check_branch
          %171 = sbr.rel (%p169) target = $region20
        $region19: #{tpu_custom_call.1} parent=11 // pred_region
          %s173 = ssub.s32 9216, 9216
          %174 = vsyncadd [#allocation5], %s173
          %s175 = sshll.u32 [#allocation4], 4
          %s176 = int_to_ptr.vmem [resolvable:$true] %s175
          %181 = dma.hbm_to_vmem [thread:$0]  %s2, 9216, %s176, [#allocation5], 64, 64, 4
        $region20: #{tpu_custom_call.1} parent=11 // pred_fallthru
          _
        // Predicated region
        $region21: #{tpu_custom_call.1} parent=11 // pred_check
          %p182 = pneg %p104
        $region22: #{tpu_custom_call.1} parent=11 // pred_check_branch
          %184 = sbr.rel (%p182) target = $region24
        $region23: #{tpu_custom_call.1} parent=11 // pred_region
          _
        $region24: #{tpu_custom_call.1} parent=11 // pred_fallthru
          _
        // Predicated region
        $region25: #{tpu_custom_call.1} parent=11 // pred_check
          %p185 = pneg %p125
        $region26: #{tpu_custom_call.1} parent=11 // pred_check_branch
          %187 = sbr.rel (%p185) target = $region28
        $region27: #{tpu_custom_call.1} parent=11 // pred_region
          _
        $region28: #{tpu_custom_call.1} parent=11 // pred_fallthru
          _
      $region12: #{tpu_custom_call.1} parent=5 // pred_fallthru
        _
      %p188 = scmp.lt.s32.totalorder %s15, 2
      // Predicated region
      $region29: #{tpu_custom_call.1} parent=5 // pred_check
        %p189 = pneg %p188
      $region30: #{tpu_custom_call.1} parent=5 // pred_check_branch
        %191 = sbr.rel (%p189) target = $region32
      $region31: #{tpu_custom_call.1} parent=5 // pred_region
        // Predicated region
        $region33: #{tpu_custom_call.1} parent=31 // pred_check
          %p192 = pneg %p35
        $region34: #{tpu_custom_call.1} parent=31 // pred_check_branch
          %194 = sbr.rel (%p192) target = $region36
        $region35: #{tpu_custom_call.1} parent=31 // pred_region
          %p195 = scmp.lt.s32.totalorder %s15, 1
          %s196 = scalar_select %p195, %s15, 1
          %s197 = smul.addr %s196, 32
          %s198 = smul.addr %s197, 8
          %s199 = scalar_lea.vmem %s0, %s198
        $region36: #{tpu_custom_call.1} parent=31 // pred_fallthru
          _
      $region32: #{tpu_custom_call.1} parent=5 // pred_fallthru
        _
      %p200 = scmp.le.s32.totalorder 1, %s15
      %p201 = scmp.lt.s32.totalorder %s15, 3
      %p202 = pnand %p200, %p201
      %p203 = pneg %p202
      // Predicated region
      $region37: #{tpu_custom_call.1} parent=5 // pred_check
        _
      $region38: #{tpu_custom_call.1} parent=5 // pred_check_branch
        %205 = sbr.rel (%p202) target = $region40
      $region39: #{tpu_custom_call.1} parent=5 // pred_region
        %s206 = ssub.s32 %s15, 1
        // Predicated region
        $region41: #{tpu_custom_call.1} parent=39 // pred_check
          %p207 = pneg %p83
        $region42: #{tpu_custom_call.1} parent=39 // pred_check_branch
          %209 = sbr.rel (%p207) target = $region44
        $region43: #{tpu_custom_call.1} parent=39 // pred_region
          %210 = dma.done [#allocation5], 9216
        $region44: #{tpu_custom_call.1} parent=39 // pred_fallthru
          _
        %p211 = scmp.lt.s32.totalorder %s20, 1
        %s212 = scalar_select %p211, %s20, 1
        %s213 = smul.addr %s212, 32
        %s214 = smul.addr %s213, 8
        %s215 = scalar_lea.vmem %s0, %s214
        %p216 = pneg %p41
        %p217 = pneg %p38
        %p218 = pneg %p62
        %p219 = pneg %p59
        %p220 = pneg %p83
        %p221 = pneg %p80
        %p222 = pneg %p104
        %p223 = pneg %p101
        %p224 = pneg %p125
        %p225 = pneg %p122
        %p226 = pneg %p151
        %p227 = pneg %p148
        %s228 = sand.u32 %s138, 1
        %s229 = scalar_lea.sflag [#allocation6], %s228
        %s230 = sand.u32 %s138, 1
        %s231 = smul.addr %s230, 128
        %s232 = scalar_lea.vmem [#allocation7], %s231
        %p233 = scmp.lt.s32.totalorder %s20, 1
        %s234 = scalar_select %p233, %s20, 1
        %s235 = smul.addr %s234, 32
        %s236 = smul.addr %s235, 8
        %s237 = scalar_lea.vmem %s0, %s236
        %v239 = vld [vmem:[%s237] sm:$0xff]
        %v240 = vld [vmem:[%s237 + $0x8] sm:$0xff]
        %v241 = vld [vmem:[%s237 + $0x10] sm:$0xff]
        %v242 = vld [vmem:[%s237 + $0x18] sm:$0xff]
        %v243 = vld [vmem:[%s237 + $0x20] sm:$0xff]
        %v244 = vld [vmem:[%s237 + $0x28] sm:$0xff]
        %v245 = vld [vmem:[%s237 + $0x30] sm:$0xff]
        %v246 = vld [vmem:[%s237 + $0x38] sm:$0xff]
        %v247 = vld [vmem:[%s237 + $0x40] sm:$0xff]
        %v248 = vld [vmem:[%s237 + $0x48] sm:$0xff]
        %v249 = vld [vmem:[%s237 + $0x50] sm:$0xff]
        %v250 = vld [vmem:[%s237 + $0x58] sm:$0xff]
        %v251 = vld [vmem:[%s237 + $0x60] sm:$0xff]
        %v252 = vld [vmem:[%s237 + $0x68] sm:$0xff]
        %v253 = vld [vmem:[%s237 + $0x70] sm:$0xff]
        %v254 = vld [vmem:[%s237 + $0x78] sm:$0xff]
        %v255 = vld [vmem:[%s237 + $0x80] sm:$0xff]
        %v256 = vld [vmem:[%s237 + $0x88] sm:$0xff]
        %v257 = vld [vmem:[%s237 + $0x90] sm:$0xff]
        %v258 = vld [vmem:[%s237 + $0x98] sm:$0xff]
        %v259 = vld [vmem:[%s237 + $0xa0] sm:$0xff]
        %v260 = vld [vmem:[%s237 + $0xa8] sm:$0xff]
        %v261 = vld [vmem:[%s237 + $0xb0] sm:$0xff]
        %v262 = vld [vmem:[%s237 + $0xb8] sm:$0xff]
        %v263 = vld [vmem:[%s237 + $0xc0] sm:$0xff]
        %v264 = vld [vmem:[%s237 + $0xc8] sm:$0xff]
        %v265 = vld [vmem:[%s237 + $0xd0] sm:$0xff]
        %v266 = vld [vmem:[%s237 + $0xd8] sm:$0xff]
        %v267 = vld [vmem:[%s237 + $0xe0] sm:$0xff]
        %v268 = vld [vmem:[%s237 + $0xe8] sm:$0xff]
        %v269 = vld [vmem:[%s237 + $0xf0] sm:$0xff]
        %v270 = vld [vmem:[%s237 + $0xf8] sm:$0xff]
        %v271 = vpack.c.bf16 %v240, %v239
        %v272 = vpack.c.bf16 %v242, %v241
        %v273 = vpack.c.bf16 %v244, %v243
        %v274 = vpack.c.bf16 %v246, %v245
        %v275 = vpack.c.bf16 %v248, %v247
        %v276 = vpack.c.bf16 %v250, %v249
        %v277 = vpack.c.bf16 %v252, %v251
        %v278 = vpack.c.bf16 %v254, %v253
        %v279 = vpack.c.bf16 %v256, %v255
        %v280 = vpack.c.bf16 %v258, %v257
        %v281 = vpack.c.bf16 %v260, %v259
        %v282 = vpack.c.bf16 %v262, %v261
        %v283 = vpack.c.bf16 %v264, %v263
        %v284 = vpack.c.bf16 %v266, %v265
        %v285 = vpack.c.bf16 %v268, %v267
        %v286 = vpack.c.bf16 %v270, %v269
        %vm287 = vcmask 64512
        %v290 = vsel %vm287, %v271, 0
        %v292 = vsel %vm287, %v272, 0
        %v294 = vsel %vm287, %v273, 0
        %v296 = vsel %vm287, %v274, 0
        %v298 = vsel %vm287, %v275, 0
        %v300 = vsel %vm287, %v276, 0
        %v302 = vsel %vm287, %v277, 0
        %v304 = vsel %vm287, %v278, 0
        %v306 = vsel %vm287, %v279, 0
        %v308 = vsel %vm287, %v280, 0
        %v310 = vsel %vm287, %v281, 0
        %v312 = vsel %vm287, %v282, 0
        %v314 = vsel %vm287, %v283, 0
        %v316 = vsel %vm287, %v284, 0
        %v318 = vsel %vm287, %v285, 0
        %v320 = vsel %vm287, %v286, 0
        %v338 = vunpack.c.l.b16 %v290
        %v339 = vunpack.c.h.b16 %v290
        %v340 = vunpack.c.l.b16 0
        %v341 = vunpack.c.l.b16 %v292
        %v342 = vunpack.c.h.b16 %v292
        %v343 = vunpack.c.l.b16 %v294
        %v344 = vunpack.c.h.b16 %v294
        %v345 = vunpack.c.l.b16 %v296
        %v346 = vunpack.c.h.b16 %v296
        %v347 = vunpack.c.l.b16 %v298
        %v348 = vunpack.c.h.b16 %v298
        %v349 = vunpack.c.l.b16 %v300
        %v350 = vunpack.c.h.b16 %v300
        %v351 = vunpack.c.l.b16 %v302
        %v352 = vunpack.c.h.b16 %v302
        %v353 = vunpack.c.l.b16 %v304
        %v354 = vunpack.c.h.b16 %v304
        %v355 = vunpack.c.l.b16 %v306
        %v356 = vunpack.c.h.b16 %v306
        %v357 = vunpack.c.l.b16 %v308
        %v358 = vunpack.c.h.b16 %v308
        %v359 = vunpack.c.l.b16 %v310
        %v360 = vunpack.c.h.b16 %v310
        %v361 = vunpack.c.l.b16 %v312
        %v362 = vunpack.c.h.b16 %v312
        %v363 = vunpack.c.l.b16 %v314
        %v364 = vunpack.c.h.b16 %v314
        %v365 = vunpack.c.l.b16 %v316
        %v366 = vunpack.c.h.b16 %v316
        %v367 = vunpack.c.l.b16 %v318
        %v368 = vunpack.c.h.b16 %v318
        %v369 = vunpack.c.l.b16 %v320
        %v370 = vunpack.c.h.b16 %v320
        %v371 = vpack.c.b16 %v338, %v338
        %v372 = vpack.c.b16 %v339, %v339
        %v373 = vpack.c.b16 %v340, %v340
        %v374 = vpack.c.b16 %v341, %v341
        %v375 = vpack.c.b16 %v342, %v342
        %v376 = vpack.c.b16 %v343, %v343
        %v377 = vpack.c.b16 %v344, %v344
        %v378 = vpack.c.b16 %v345, %v345
        %v379 = vpack.c.b16 %v346, %v346
        %v380 = vpack.c.b16 %v347, %v347
        %v381 = vpack.c.b16 %v348, %v348
        %v382 = vpack.c.b16 %v349, %v349
        %v383 = vpack.c.b16 %v350, %v350
        %v384 = vpack.c.b16 %v351, %v351
        %v385 = vpack.c.b16 %v352, %v352
        %v386 = vpack.c.b16 %v353, %v353
        %v387 = vpack.c.b16 %v354, %v354
        %v388 = vpack.c.b16 %v355, %v355
        %v389 = vpack.c.b16 %v356, %v356
        %v390 = vpack.c.b16 %v357, %v357
        %v391 = vpack.c.b16 %v358, %v358
        %v392 = vpack.c.b16 %v359, %v359
        %v393 = vpack.c.b16 %v360, %v360
        %v394 = vpack.c.b16 %v361, %v361
        %v395 = vpack.c.b16 %v362, %v362
        %v396 = vpack.c.b16 %v363, %v363
        %v397 = vpack.c.b16 %v364, %v364
        %v398 = vpack.c.b16 %v365, %v365
        %v399 = vpack.c.b16 %v366, %v366
        %v400 = vpack.c.b16 %v367, %v367
        %v401 = vpack.c.b16 %v368, %v368
        %v402 = vpack.c.b16 %v369, %v369
        %v403 = vpack.c.b16 %v370, %v370
        %437 = vst [vmem:[#allocation2] sm:$0xf] 0
        %438 = vst [vmem:[#allocation2 + $0x4] sm:$0xf] 0
        %439 = vst [vmem:[#allocation2 + $0x8] sm:$0xf] 0
        %440 = vst [vmem:[#allocation2 + $0xc] sm:$0xf] 0
        %441 = vst [vmem:[#allocation2 + $0xd0] sm:$0xf] 0
        %442 = vst [vmem:[#allocation2 + $0xd4] sm:$0xf] 0
        %443 = vst [vmem:[#allocation2 + $0xd8] sm:$0xf] 0
        %444 = vst [vmem:[#allocation2 + $0xdc] sm:$0xf] 0
        %445 = vst [vmem:[#allocation2 + $0x10] sm:$0xf] %v371
        %446 = vst [vmem:[#allocation2 + $0x14] sm:$0xf] %v372
        %447 = vst [vmem:[#allocation2 + $0x18] sm:$0xf] %v373
        %448 = vst [vmem:[#allocation2 + $0x1c] sm:$0xf] %v374
        %449 = vst [vmem:[#allocation2 + $0x20] sm:$0xf] %v375
        %450 = vst [vmem:[#allocation2 + $0x24] sm:$0xf] %v373
        %451 = vst [vmem:[#allocation2 + $0x28] sm:$0xf] %v376
        %452 = vst [vmem:[#allocation2 + $0x2c] sm:$0xf] %v377
        %453 = vst [vmem:[#allocation2 + $0x30] sm:$0xf] %v373
        %454 = vst [vmem:[#allocation2 + $0x34] sm:$0xf] %v378
        %455 = vst [vmem:[#allocation2 + $0x38] sm:$0xf] %v379
        %456 = vst [vmem:[#allocation2 + $0x3c] sm:$0xf] %v373
        %457 = vst [vmem:[#allocation2 + $0x40] sm:$0xf] %v380
        %458 = vst [vmem:[#allocation2 + $0x44] sm:$0xf] %v381
        %459 = vst [vmem:[#allocation2 + $0x48] sm:$0xf] %v373
        %460 = vst [vmem:[#allocation2 + $0x4c] sm:$0xf] %v382
        %461 = vst [vmem:[#allocation2 + $0x50] sm:$0xf] %v383
        %462 = vst [vmem:[#allocation2 + $0x54] sm:$0xf] %v373
        %463 = vst [vmem:[#allocation2 + $0x58] sm:$0xf] %v384
        %464 = vst [vmem:[#allocation2 + $0x5c] sm:$0xf] %v385
        %465 = vst [vmem:[#allocation2 + $0x60] sm:$0xf] %v373
        %466 = vst [vmem:[#allocation2 + $0x64] sm:$0xf] %v386
        %467 = vst [vmem:[#allocation2 + $0x68] sm:$0xf] %v387
        %468 = vst [vmem:[#allocation2 + $0x6c] sm:$0xf] %v373
        %469 = vst [vmem:[#allocation2 + $0x70] sm:$0xf] %v388
        %470 = vst [vmem:[#allocation2 + $0x74] sm:$0xf] %v389
        %471 = vst [vmem:[#allocation2 + $0x78] sm:$0xf] %v373
        %472 = vst [vmem:[#allocation2 + $0x7c] sm:$0xf] %v390
        %473 = vst [vmem:[#allocation2 + $0x80] sm:$0xf] %v391
        %474 = vst [vmem:[#allocation2 + $0x84] sm:$0xf] %v373
        %475 = vst [vmem:[#allocation2 + $0x88] sm:$0xf] %v392
        %476 = vst [vmem:[#allocation2 + $0x8c] sm:$0xf] %v393
        %477 = vst [vmem:[#allocation2 + $0x90] sm:$0xf] %v373
        %478 = vst [vmem:[#allocation2 + $0x94] sm:$0xf] %v394
        %479 = vst [vmem:[#allocation2 + $0x98] sm:$0xf] %v395
        %480 = vst [vmem:[#allocation2 + $0x9c] sm:$0xf] %v373
        %481 = vst [vmem:[#allocation2 + $0xa0] sm:$0xf] %v396
        %482 = vst [vmem:[#allocation2 + $0xa4] sm:$0xf] %v397
        %483 = vst [vmem:[#allocation2 + $0xa8] sm:$0xf] %v373
        %484 = vst [vmem:[#allocation2 + $0xac] sm:$0xf] %v398
        %485 = vst [vmem:[#allocation2 + $0xb0] sm:$0xf] %v399
        %486 = vst [vmem:[#allocation2 + $0xb4] sm:$0xf] %v373
        %487 = vst [vmem:[#allocation2 + $0xb8] sm:$0xf] %v400
        %488 = vst [vmem:[#allocation2 + $0xbc] sm:$0xf] %v401
        %489 = vst [vmem:[#allocation2 + $0xc0] sm:$0xf] %v373
        %490 = vst [vmem:[#allocation2 + $0xc4] sm:$0xf] %v402
        %491 = vst [vmem:[#allocation2 + $0xc8] sm:$0xf] %v403
        %492 = vst [vmem:[#allocation2 + $0xcc] sm:$0xf] %v373
        %v493 = vld [vmem:[#allocation2] sm:$0x8]
        %v494 = vld [vmem:[#allocation2 + $0x4] sm:$0xf]
        %v495 = vld [vmem:[#allocation2 + $0x8] sm:$0xf]
        %v496 = vld [vmem:[#allocation2 + $0xc] sm:$0xf]
        %v497 = vld [vmem:[#allocation2 + $0x10] sm:$0xf]
        %v498 = vld [vmem:[#allocation2 + $0x14] sm:$0xf]
        %v499 = vld [vmem:[#allocation2 + $0x18] sm:$0xf]
        %v500 = vld [vmem:[#allocation2 + $0x1c] sm:$0xf]
        %v501 = vld [vmem:[#allocation2 + $0x20] sm:$0xf]
        %v502 = vld [vmem:[#allocation2 + $0x24] sm:$0xf]
        %v503 = vld [vmem:[#allocation2 + $0x28] sm:$0xf]
        %v504 = vld [vmem:[#allocation2 + $0x2c] sm:$0xf]
        %v505 = vld [vmem:[#allocation2 + $0x30] sm:$0xf]
        %v506 = vld [vmem:[#allocation2 + $0x34] sm:$0xf]
        %v507 = vld [vmem:[#allocation2 + $0x38] sm:$0xf]
        %v508 = vld [vmem:[#allocation2 + $0x3c] sm:$0xf]
        %v509 = vld [vmem:[#allocation2 + $0x40] sm:$0xf]
        %v510 = vld [vmem:[#allocation2 + $0x44] sm:$0xf]
        %v511 = vld [vmem:[#allocation2 + $0x48] sm:$0xf]
        %v512 = vld [vmem:[#allocation2 + $0x4c] sm:$0xf]
        %v513 = vld [vmem:[#allocation2 + $0x50] sm:$0xf]
        %v514 = vld [vmem:[#allocation2 + $0x54] sm:$0xf]
        %v515 = vld [vmem:[#allocation2 + $0x58] sm:$0xf]
        %v516 = vld [vmem:[#allocation2 + $0x5c] sm:$0xf]
        %v517 = vld [vmem:[#allocation2 + $0x60] sm:$0xf]
        %v518 = vld [vmem:[#allocation2 + $0x64] sm:$0xf]
        %v519 = vld [vmem:[#allocation2 + $0x68] sm:$0xf]
        %v520 = vld [vmem:[#allocation2 + $0x6c] sm:$0xf]
        %v521 = vld [vmem:[#allocation2 + $0x70] sm:$0xf]
        %v522 = vld [vmem:[#allocation2 + $0x74] sm:$0xf]
        %v523 = vld [vmem:[#allocation2 + $0x78] sm:$0xf]
        %v524 = vld [vmem:[#allocation2 + $0x7c] sm:$0xf]
        %v525 = vld [vmem:[#allocation2 + $0x80] sm:$0xf]
        %v526 = vld [vmem:[#allocation2 + $0x84] sm:$0xf]
        %v527 = vld [vmem:[#allocation2 + $0x88] sm:$0xf]
        %v528 = vld [vmem:[#allocation2 + $0x8c] sm:$0xf]
        %v529 = vld [vmem:[#allocation2 + $0x90] sm:$0xf]
        %v530 = vld [vmem:[#allocation2 + $0x94] sm:$0xf]
        %v531 = vld [vmem:[#allocation2 + $0x98] sm:$0xf]
        %v532 = vld [vmem:[#allocation2 + $0x9c] sm:$0xf]
        %v533 = vld [vmem:[#allocation2 + $0xa0] sm:$0xf]
        %v534 = vld [vmem:[#allocation2 + $0xa4] sm:$0xf]
        %v535 = vld [vmem:[#allocation2 + $0xa8] sm:$0xf]
        %v536 = vld [vmem:[#allocation2 + $0xac] sm:$0xf]
        %v537 = vld [vmem:[#allocation2 + $0xb0] sm:$0xf]
        %v538 = vld [vmem:[#allocation2 + $0xb4] sm:$0xf]
        %v539 = vld [vmem:[#allocation2 + $0xb8] sm:$0xf]
        %v540 = vld [vmem:[#allocation2 + $0xbc] sm:$0xf]
        %v541 = vld [vmem:[#allocation2 + $0xc0] sm:$0xf]
        %v542 = vld [vmem:[%s1] sm:$0xf]
        %v543 = vld [vmem:[%s1 + $0x4] sm:$0xf]
        %v544 = vld [vmem:[%s1 + $0x8] sm:$0xf]
        %v545 = vld [vmem:[%s1 + $0xc] sm:$0xf]
        %v546 = vld [vmem:[%s1 + $0x10] sm:$0xf]
        %v547 = vld [vmem:[%s1 + $0x14] sm:$0xf]
        %v548 = vld [vmem:[%s1 + $0x18] sm:$0xf]
        %v549 = vld [vmem:[%s1 + $0x1c] sm:$0xf]
        %v550 = vld [vmem:[%s1 + $0x20] sm:$0xf]
        %v551 = vld [vmem:[%s1 + $0x24] sm:$0xf]
        %v552 = vld [vmem:[%s1 + $0x28] sm:$0xf]
        %v553 = vld [vmem:[%s1 + $0x2c] sm:$0xf]
        %v554 = vld [vmem:[%s1 + $0x30] sm:$0xf]
        %v555 = vld [vmem:[%s1 + $0x34] sm:$0xf]
        %v556 = vld [vmem:[%s1 + $0x38] sm:$0xf]
        %v557 = vld [vmem:[%s1 + $0x3c] sm:$0xf]
        %s558 = scalar_lea.vmem %s1, 64
        %v559 = vld [vmem:[%s558] sm:$0xf]
        %v560 = vld [vmem:[%s558 + $0x4] sm:$0xf]
        %v561 = vld [vmem:[%s558 + $0x8] sm:$0xf]
        %v562 = vld [vmem:[%s558 + $0xc] sm:$0xf]
        %v563 = vld [vmem:[%s558 + $0x10] sm:$0xf]
        %v564 = vld [vmem:[%s558 + $0x14] sm:$0xf]
        %v565 = vld [vmem:[%s558 + $0x18] sm:$0xf]
        %v566 = vld [vmem:[%s558 + $0x1c] sm:$0xf]
        %v567 = vld [vmem:[%s558 + $0x20] sm:$0xf]
        %v568 = vld [vmem:[%s558 + $0x24] sm:$0xf]
        %v569 = vld [vmem:[%s558 + $0x28] sm:$0xf]
        %v570 = vld [vmem:[%s558 + $0x2c] sm:$0xf]
        %v571 = vld [vmem:[%s558 + $0x30] sm:$0xf]
        %v572 = vld [vmem:[%s558 + $0x34] sm:$0xf]
        %v573 = vld [vmem:[%s558 + $0x38] sm:$0xf]
        %v574 = vld [vmem:[%s558 + $0x3c] sm:$0xf]
        %v623 = vunpack.c.l.b16 %v494
        %v624 = vunpack.c.l.b16 %v495
        %v625 = vunpack.c.l.b16 %v496
        %v626 = vunpack.c.l.b16 %v497
        %v627 = vunpack.c.l.b16 %v498
        %v628 = vunpack.c.l.b16 %v499
        %v629 = vunpack.c.l.b16 %v500
        %v630 = vunpack.c.l.b16 %v501
        %v631 = vunpack.c.l.b16 %v502
        %v632 = vunpack.c.l.b16 %v503
        %v633 = vunpack.c.l.b16 %v504
        %v634 = vunpack.c.l.b16 %v505
        %v635 = vunpack.c.l.b16 %v506
        %v636 = vunpack.c.l.b16 %v507
        %v637 = vunpack.c.l.b16 %v508
        %v638 = vunpack.c.l.b16 %v509
        %v639 = vunpack.c.l.b16 %v510
        %v640 = vunpack.c.l.b16 %v511
        %v641 = vunpack.c.l.b16 %v512
        %v642 = vunpack.c.l.b16 %v513
        %v643 = vunpack.c.l.b16 %v514
        %v644 = vunpack.c.l.b16 %v515
        %v645 = vunpack.c.l.b16 %v516
        %v646 = vunpack.c.l.b16 %v517
        %v647 = vunpack.c.l.b16 %v518
        %v648 = vunpack.c.l.b16 %v519
        %v649 = vunpack.c.l.b16 %v520
        %v650 = vunpack.c.l.b16 %v521
        %v651 = vunpack.c.l.b16 %v522
        %v652 = vunpack.c.l.b16 %v523
        %v653 = vunpack.c.l.b16 %v524
        %v654 = vunpack.c.l.b16 %v525
        %v655 = vunpack.c.l.b16 %v526
        %v656 = vunpack.c.l.b16 %v527
        %v657 = vunpack.c.l.b16 %v528
        %v658 = vunpack.c.l.b16 %v529
        %v659 = vunpack.c.l.b16 %v530
        %v660 = vunpack.c.l.b16 %v531
        %v661 = vunpack.c.l.b16 %v532
        %v662 = vunpack.c.l.b16 %v533
        %v663 = vunpack.c.l.b16 %v534
        %v664 = vunpack.c.l.b16 %v535
        %v665 = vunpack.c.l.b16 %v536
        %v666 = vunpack.c.l.b16 %v537
        %v667 = vunpack.c.l.b16 %v538
        %v668 = vunpack.c.l.b16 %v539
        %v669 = vunpack.c.l.b16 %v540
        %v670 = vunpack.c.l.b16 %v541
        %v671 = vpack.c.b16 %v624, %v623
        %v672 = vpack.c.b16 %v626, %v625
        %v673 = vpack.c.b16 %v628, %v627
        %v674 = vpack.c.b16 %v630, %v629
        %v675 = vpack.c.b16 %v632, %v631
        %v676 = vpack.c.b16 %v634, %v633
        %v677 = vpack.c.b16 %v636, %v635
        %v678 = vpack.c.b16 %v638, %v637
        %v679 = vpack.c.b16 %v640, %v639
        %v680 = vpack.c.b16 %v642, %v641
        %v681 = vpack.c.b16 %v644, %v643
        %v682 = vpack.c.b16 %v646, %v645
        %v683 = vpack.c.b16 %v648, %v647
        %v684 = vpack.c.b16 %v650, %v649
        %v685 = vpack.c.b16 %v652, %v651
        %v686 = vpack.c.b16 %v654, %v653
        %v687 = vpack.c.b16 %v656, %v655
        %v688 = vpack.c.b16 %v658, %v657
        %v689 = vpack.c.b16 %v660, %v659
        %v690 = vpack.c.b16 %v662, %v661
        %v691 = vpack.c.b16 %v664, %v663
        %v692 = vpack.c.b16 %v666, %v665
        %v693 = vpack.c.b16 %v668, %v667
        %v694 = vpack.c.b16 %v670, %v669
        %v735 = vunpack.c.l.b16 %v559
        %v736 = vunpack.c.l.b16 %v560
        %v737 = vunpack.c.l.b16 %v561
        %v738 = vunpack.c.l.b16 %v562
        %v739 = vunpack.c.l.b16 %v563
        %v740 = vunpack.c.l.b16 %v564
        %v741 = vunpack.c.l.b16 %v565
        %v742 = vunpack.c.l.b16 %v566
        %v743 = vunpack.c.l.b16 %v567
        %v744 = vunpack.c.l.b16 %v568
        %v745 = vunpack.c.l.b16 %v569
        %v746 = vunpack.c.l.b16 %v570
        %v747 = vunpack.c.l.b16 %v571
        %v748 = vunpack.c.l.b16 %v572
        %v749 = vunpack.c.l.b16 %v573
        %v750 = vunpack.c.l.b16 %v574
        %v751 = vpack.c.b16 %v736, %v735
        %v752 = vpack.c.b16 %v738, %v737
        %v753 = vpack.c.b16 %v740, %v739
        %v754 = vpack.c.b16 %v742, %v741
        %v755 = vpack.c.b16 %v744, %v743
        %v756 = vpack.c.b16 %v746, %v745
        %v757 = vpack.c.b16 %v748, %v747
        %v758 = vpack.c.b16 %v750, %v749
        %767 = vmatprep.subr.bf16.mxu0 0
        %768 = vmatpush1.bf16.msra.mxu0 %v758
        %769 = vmatprep.subr.bf16.mxu0 0
        %770 = vmatpush1.bf16.msra.mxu0 %v757
        %771 = vmatprep.subr.bf16.mxu0 0
        %772 = vmatpush1.bf16.msra.mxu0 %v756
        %773 = vmatprep.subr.bf16.mxu0 0
        %774 = vmatpush1.bf16.msra.mxu0 %v755
        %775 = vmatprep.subr.bf16.mxu0 0
        %776 = vmatpush1.bf16.msra.mxu0 %v754
        %777 = vmatprep.subr.bf16.mxu0 0
        %778 = vmatpush1.bf16.msra.mxu0 %v753
        %779 = vmatprep.subr.bf16.mxu0 0
        %780 = vmatpush1.bf16.msra.mxu0 %v752
        %781 = vmatprep.subr.bf16.mxu0 0
        %782 = vmatpush1.bf16.msra.mxu0 %v751
        %783 = vmatprep.subr.bf16.mxu0 0
        %784 = vmatpush2.bf16.msra.mxu0 0
        %785 = vmatprep.subr.bf16.mxu0 0
        %786 = vmatpush2.bf16.msra.mxu0 0
        %787 = vmatprep.subr.bf16.mxu0 0
        %788 = vmatpush2.bf16.msra.mxu0 0
        %789 = vmatprep.subr.bf16.mxu0 0
        %790 = vmatpush2.bf16.msra.mxu0 0
        %791 = vmatprep.subr.bf16.mxu0 0
        %792 = vmatpush2.bf16.msra.mxu0 0
        %793 = vmatprep.subr.bf16.mxu0 0
        %794 = vmatpush2.bf16.msra.mxu0 0
        %795 = vmatprep.subr.bf16.mxu0 0
        %796 = vmatpush2.bf16.msra.mxu0 0
        %797 = vmatprep.subr.bf16.mxu0 0
        %798 = vmatpush2.bf16.msra.mxu0 0
        %799 = vmatprep.mubr.bf16.mxu0 0
        %800 = vmatmul.mubr.bf16.gmra.mxu0 %v671
        %v801 = vpop.f32.mrf.mxu0
        %v802 = vadd.f32 0.0, %v801
        %v803 = vpop.f32.mrf.mxu0
        %v804 = vpop.f32.mrf.mxu0
        %v805 = vadd.f32 0.0, %v804
        %v806 = vpop.f32.mrf.mxu0
        %807 = vmatprep.mubr.bf16.mxu0 0
        %808 = vmatmul.mubr.bf16.gmra.mxu0 %v672
        %v809 = vpop.f32.mrf.mxu0
        %v810 = vadd.f32 0.0, %v809
        %v811 = vpop.f32.mrf.mxu0
        %v812 = vpop.f32.mrf.mxu0
        %v813 = vadd.f32 0.0, %v812
        %v814 = vpop.f32.mrf.mxu0
        %815 = vmatprep.mubr.bf16.mxu0 0
        %816 = vmatmul.mubr.bf16.gmra.mxu0 %v673
        %v817 = vpop.f32.mrf.mxu0
        %v818 = vadd.f32 0.0, %v817
        %v819 = vpop.f32.mrf.mxu0
        %v820 = vpop.f32.mrf.mxu0
        %v821 = vadd.f32 0.0, %v820
        %v822 = vpop.f32.mrf.mxu0
        %823 = vmatprep.mubr.bf16.mxu0 0
        %824 = vmatmul.mubr.bf16.gmra.mxu0 %v674
        %v825 = vpop.f32.mrf.mxu0
        %v826 = vadd.f32 0.0, %v825
        %v827 = vpop.f32.mrf.mxu0
        %v828 = vpop.f32.mrf.mxu0
        %v829 = vadd.f32 0.0, %v828
        %v830 = vpop.f32.mrf.mxu0
        %831 = vmatprep.mubr.bf16.mxu0 0
        %832 = vmatmul.mubr.bf16.gmra.mxu0 %v675
        %v833 = vpop.f32.mrf.mxu0
        %v834 = vadd.f32 0.0, %v833
        %v835 = vpop.f32.mrf.mxu0
        %v836 = vpop.f32.mrf.mxu0
        %v837 = vadd.f32 0.0, %v836
        %v838 = vpop.f32.mrf.mxu0
        %839 = vmatprep.mubr.bf16.mxu0 0
        %840 = vmatmul.mubr.bf16.gmra.mxu0 %v676
        %v841 = vpop.f32.mrf.mxu0
        %v842 = vadd.f32 0.0, %v841
        %v843 = vpop.f32.mrf.mxu0
        %v844 = vpop.f32.mrf.mxu0
        %v845 = vadd.f32 0.0, %v844
        %v846 = vpop.f32.mrf.mxu0
        %847 = vmatprep.mubr.bf16.mxu0 0
        %848 = vmatmul.mubr.bf16.gmra.mxu0 %v677
        %v849 = vpop.f32.mrf.mxu0
        %v850 = vadd.f32 0.0, %v849
        %v851 = vpop.f32.mrf.mxu0
        %v852 = vpop.f32.mrf.mxu0
        %v853 = vadd.f32 0.0, %v852
        %v854 = vpop.f32.mrf.mxu0
        %855 = vmatprep.mubr.bf16.mxu0 0
        %856 = vmatmul.mubr.bf16.gmra.mxu0 %v678
        %v857 = vpop.f32.mrf.mxu0
        %v858 = vadd.f32 0.0, %v857
        %v859 = vpop.f32.mrf.mxu0
        %v860 = vpop.f32.mrf.mxu0
        %v861 = vadd.f32 0.0, %v860
        %v862 = vpop.f32.mrf.mxu0
        %863 = vmatprep.mubr.bf16.mxu0 0
        %864 = vmatmul.mubr.bf16.gmra.mxu0 %v679
        %v865 = vpop.f32.mrf.mxu0
        %v866 = vadd.f32 0.0, %v865
        %v867 = vpop.f32.mrf.mxu0
        %v868 = vpop.f32.mrf.mxu0
        %v869 = vadd.f32 0.0, %v868
        %v870 = vpop.f32.mrf.mxu0
        %871 = vmatprep.mubr.bf16.mxu0 0
        %872 = vmatmul.mubr.bf16.gmra.mxu0 %v680
        %v873 = vpop.f32.mrf.mxu0
        %v874 = vadd.f32 0.0, %v873
        %v875 = vpop.f32.mrf.mxu0
        %v876 = vpop.f32.mrf.mxu0
        %v877 = vadd.f32 0.0, %v876
        %v878 = vpop.f32.mrf.mxu0
        %879 = vmatprep.mubr.bf16.mxu0 0
        %880 = vmatmul.mubr.bf16.gmra.mxu0 %v681
        %v881 = vpop.f32.mrf.mxu0
        %v882 = vadd.f32 0.0, %v881
        %v883 = vpop.f32.mrf.mxu0
        %v884 = vpop.f32.mrf.mxu0
        %v885 = vadd.f32 0.0, %v884
        %v886 = vpop.f32.mrf.mxu0
        %887 = vmatprep.mubr.bf16.mxu0 0
        %888 = vmatmul.mubr.bf16.gmra.mxu0 %v682
        %v889 = vpop.f32.mrf.mxu0
        %v890 = vadd.f32 0.0, %v889
        %v891 = vpop.f32.mrf.mxu0
        %v892 = vpop.f32.mrf.mxu0
        %v893 = vadd.f32 0.0, %v892
        %v894 = vpop.f32.mrf.mxu0
        %895 = vmatprep.mubr.bf16.mxu0 0
        %896 = vmatmul.mubr.bf16.gmra.mxu0 %v683
        %v897 = vpop.f32.mrf.mxu0
        %v898 = vadd.f32 0.0, %v897
        %v899 = vpop.f32.mrf.mxu0
        %v900 = vpop.f32.mrf.mxu0
        %v901 = vadd.f32 0.0, %v900
        %v902 = vpop.f32.mrf.mxu0
        %903 = vmatprep.mubr.bf16.mxu0 0
        %904 = vmatmul.mubr.bf16.gmra.mxu0 %v684
        %v905 = vpop.f32.mrf.mxu0
        %v906 = vadd.f32 0.0, %v905
        %v907 = vpop.f32.mrf.mxu0
        %v908 = vpop.f32.mrf.mxu0
        %v909 = vadd.f32 0.0, %v908
        %v910 = vpop.f32.mrf.mxu0
        %911 = vmatprep.mubr.bf16.mxu0 0
        %912 = vmatmul.mubr.bf16.gmra.mxu0 %v685
        %v913 = vpop.f32.mrf.mxu0
        %v914 = vadd.f32 0.0, %v913
        %v915 = vpop.f32.mrf.mxu0
        %v916 = vpop.f32.mrf.mxu0
        %v917 = vadd.f32 0.0, %v916
        %v918 = vpop.f32.mrf.mxu0
        %919 = vmatprep.mubr.bf16.mxu0 0
        %920 = vmatmul.mubr.bf16.gmra.mxu0 %v686
        %v921 = vpop.f32.mrf.mxu0
        %v922 = vadd.f32 0.0, %v921
        %v923 = vpop.f32.mrf.mxu0
        %v924 = vpop.f32.mrf.mxu0
        %v925 = vadd.f32 0.0, %v924
        %v926 = vpop.f32.mrf.mxu0
        %927 = vmatprep.mubr.bf16.mxu0 0
        %928 = vmatmul.mubr.bf16.gmra.mxu0 %v687
        %v929 = vpop.f32.mrf.mxu0
        %v930 = vadd.f32 0.0, %v929
        %v931 = vpop.f32.mrf.mxu0
        %v932 = vpop.f32.mrf.mxu0
        %v933 = vadd.f32 0.0, %v932
        %v934 = vpop.f32.mrf.mxu0
        %935 = vmatprep.mubr.bf16.mxu0 0
        %936 = vmatmul.mubr.bf16.gmra.mxu0 %v688
        %v937 = vpop.f32.mrf.mxu0
        %v938 = vadd.f32 0.0, %v937
        %v939 = vpop.f32.mrf.mxu0
        %v940 = vpop.f32.mrf.mxu0
        %v941 = vadd.f32 0.0, %v940
        %v942 = vpop.f32.mrf.mxu0
        %943 = vmatprep.mubr.bf16.mxu0 0
        %944 = vmatmul.mubr.bf16.gmra.mxu0 %v689
        %v945 = vpop.f32.mrf.mxu0
        %v946 = vadd.f32 0.0, %v945
        %v947 = vpop.f32.mrf.mxu0
        %v948 = vpop.f32.mrf.mxu0
        %v949 = vadd.f32 0.0, %v948
        %v950 = vpop.f32.mrf.mxu0
        %951 = vmatprep.mubr.bf16.mxu0 0
        %952 = vmatmul.mubr.bf16.gmra.mxu0 %v690
        %v953 = vpop.f32.mrf.mxu0
        %v954 = vadd.f32 0.0, %v953
        %v955 = vpop.f32.mrf.mxu0
        %v956 = vpop.f32.mrf.mxu0
        %v957 = vadd.f32 0.0, %v956
        %v958 = vpop.f32.mrf.mxu0
        %959 = vmatprep.mubr.bf16.mxu0 0
        %960 = vmatmul.mubr.bf16.gmra.mxu0 %v691
        %v961 = vpop.f32.mrf.mxu0
        %v962 = vadd.f32 0.0, %v961
        %v963 = vpop.f32.mrf.mxu0
        %v964 = vpop.f32.mrf.mxu0
        %v965 = vadd.f32 0.0, %v964
        %v966 = vpop.f32.mrf.mxu0
        %967 = vmatprep.mubr.bf16.mxu0 0
        %968 = vmatmul.mubr.bf16.gmra.mxu0 %v692
        %v969 = vpop.f32.mrf.mxu0
        %v970 = vadd.f32 0.0, %v969
        %v971 = vpop.f32.mrf.mxu0
        %v972 = vpop.f32.mrf.mxu0
        %v973 = vadd.f32 0.0, %v972
        %v974 = vpop.f32.mrf.mxu0
        %975 = vmatprep.mubr.bf16.mxu0 0
        %976 = vmatmul.mubr.bf16.gmra.mxu0 %v693
        %v977 = vpop.f32.mrf.mxu0
        %v978 = vadd.f32 0.0, %v977
        %v979 = vpop.f32.mrf.mxu0
        %v980 = vpop.f32.mrf.mxu0
        %v981 = vadd.f32 0.0, %v980
        %v982 = vpop.f32.mrf.mxu0
        %983 = vmatprep.mubr.bf16.mxu0 0
        %984 = vmatmul.mubr.bf16.gmra.mxu0 %v694
        %v985 = vpop.f32.mrf.mxu0
        %v986 = vadd.f32 0.0, %v985
        %v987 = vpop.f32.mrf.mxu0
        %v988 = vpop.f32.mrf.mxu0
        %v989 = vadd.f32 0.0, %v988
        %v990 = vpop.f32.mrf.mxu0
        %991 = vdwg.mxu0
        %v993 = vunpack.c.l.b16 %v493
        %v994 = vpack.c.b16 %v623, %v993
        %v995 = vpack.c.b16 %v625, %v624
        %v996 = vpack.c.b16 %v627, %v626
        %v997 = vpack.c.b16 %v629, %v628
        %v998 = vpack.c.b16 %v631, %v630
        %v999 = vpack.c.b16 %v633, %v632
        %v1000 = vpack.c.b16 %v635, %v634
        %v1001 = vpack.c.b16 %v637, %v636
        %v1002 = vpack.c.b16 %v639, %v638
        %v1003 = vpack.c.b16 %v641, %v640
        %v1004 = vpack.c.b16 %v643, %v642
        %v1005 = vpack.c.b16 %v645, %v644
        %v1006 = vpack.c.b16 %v647, %v646
        %v1007 = vpack.c.b16 %v649, %v648
        %v1008 = vpack.c.b16 %v651, %v650
        %v1009 = vpack.c.b16 %v653, %v652
        %v1010 = vpack.c.b16 %v655, %v654
        %v1011 = vpack.c.b16 %v657, %v656
        %v1012 = vpack.c.b16 %v659, %v658
        %v1013 = vpack.c.b16 %v661, %v660
        %v1014 = vpack.c.b16 %v663, %v662
        %v1015 = vpack.c.b16 %v665, %v664
        %v1016 = vpack.c.b16 %v667, %v666
        %v1017 = vpack.c.b16 %v669, %v668
        %v1018 = vpack.c.b16 %v670, %v670
        %vm1019 = vsmask.f32 4352
        %v1021 = vshrl.u32 %v994, 16
        %v1023 = vrot.slane %v1021, 3
        %v1024 = vshll.u32 %v994, 16
        %v1026 = vrot.slane %v1024, 4
        %v1027 = vor.u32 %v1023, %v1026
        %v1029 = vshrl.u32 %v995, 16
        %v1031 = vrot.slane %v1029, 3
        %v1032 = vshll.u32 %v995, 16
        %v1034 = vrot.slane %v1032, 4
        %v1035 = vor.u32 %v1031, %v1034
        %v1036 = vsel %vm1019, %v1027, %v1035
        %v1038 = vshrl.u32 %v996, 16
        %v1040 = vrot.slane %v1038, 3
        %v1041 = vshll.u32 %v996, 16
        %v1043 = vrot.slane %v1041, 4
        %v1044 = vor.u32 %v1040, %v1043
        %v1045 = vsel %vm1019, %v1035, %v1044
        %v1047 = vshrl.u32 %v997, 16
        %v1049 = vrot.slane %v1047, 3
        %v1050 = vshll.u32 %v997, 16
        %v1052 = vrot.slane %v1050, 4
        %v1053 = vor.u32 %v1049, %v1052
        %v1054 = vsel %vm1019, %v1044, %v1053
        %v1056 = vshrl.u32 %v998, 16
        %v1058 = vrot.slane %v1056, 3
        %v1059 = vshll.u32 %v998, 16
        %v1061 = vrot.slane %v1059, 4
        %v1062 = vor.u32 %v1058, %v1061
        %v1063 = vsel %vm1019, %v1053, %v1062
        %v1065 = vshrl.u32 %v999, 16
        %v1067 = vrot.slane %v1065, 3
        %v1068 = vshll.u32 %v999, 16
        %v1070 = vrot.slane %v1068, 4
        %v1071 = vor.u32 %v1067, %v1070
        %v1072 = vsel %vm1019, %v1062, %v1071
        %v1074 = vshrl.u32 %v1000, 16
        %v1076 = vrot.slane %v1074, 3
        %v1077 = vshll.u32 %v1000, 16
        %v1079 = vrot.slane %v1077, 4
        %v1080 = vor.u32 %v1076, %v1079
        %v1081 = vsel %vm1019, %v1071, %v1080
        %v1083 = vshrl.u32 %v1001, 16
        %v1085 = vrot.slane %v1083, 3
        %v1086 = vshll.u32 %v1001, 16
        %v1088 = vrot.slane %v1086, 4
        %v1089 = vor.u32 %v1085, %v1088
        %v1090 = vsel %vm1019, %v1080, %v1089
        %v1092 = vshrl.u32 %v1002, 16
        %v1094 = vrot.slane %v1092, 3
        %v1095 = vshll.u32 %v1002, 16
        %v1097 = vrot.slane %v1095, 4
        %v1098 = vor.u32 %v1094, %v1097
        %v1099 = vsel %vm1019, %v1089, %v1098
        %v1101 = vshrl.u32 %v1003, 16
        %v1103 = vrot.slane %v1101, 3
        %v1104 = vshll.u32 %v1003, 16
        %v1106 = vrot.slane %v1104, 4
        %v1107 = vor.u32 %v1103, %v1106
        %v1108 = vsel %vm1019, %v1098, %v1107
        %v1110 = vshrl.u32 %v1004, 16
        %v1112 = vrot.slane %v1110, 3
        %v1113 = vshll.u32 %v1004, 16
        %v1115 = vrot.slane %v1113, 4
        %v1116 = vor.u32 %v1112, %v1115
        %v1117 = vsel %vm1019, %v1107, %v1116
        %v1119 = vshrl.u32 %v1005, 16
        %v1121 = vrot.slane %v1119, 3
        %v1122 = vshll.u32 %v1005, 16
        %v1124 = vrot.slane %v1122, 4
        %v1125 = vor.u32 %v1121, %v1124
        %v1126 = vsel %vm1019, %v1116, %v1125
        %v1128 = vshrl.u32 %v1006, 16
        %v1130 = vrot.slane %v1128, 3
        %v1131 = vshll.u32 %v1006, 16
        %v1133 = vrot.slane %v1131, 4
        %v1134 = vor.u32 %v1130, %v1133
        %v1135 = vsel %vm1019, %v1125, %v1134
        %v1137 = vshrl.u32 %v1007, 16
        %v1139 = vrot.slane %v1137, 3
        %v1140 = vshll.u32 %v1007, 16
        %v1142 = vrot.slane %v1140, 4
        %v1143 = vor.u32 %v1139, %v1142
        %v1144 = vsel %vm1019, %v1134, %v1143
        %v1146 = vshrl.u32 %v1008, 16
        %v1148 = vrot.slane %v1146, 3
        %v1149 = vshll.u32 %v1008, 16
        %v1151 = vrot.slane %v1149, 4
        %v1152 = vor.u32 %v1148, %v1151
        %v1153 = vsel %vm1019, %v1143, %v1152
        %v1155 = vshrl.u32 %v1009, 16
        %v1157 = vrot.slane %v1155, 3
        %v1158 = vshll.u32 %v1009, 16
        %v1160 = vrot.slane %v1158, 4
        %v1161 = vor.u32 %v1157, %v1160
        %v1162 = vsel %vm1019, %v1152, %v1161
        %v1164 = vshrl.u32 %v1010, 16
        %v1166 = vrot.slane %v1164, 3
        %v1167 = vshll.u32 %v1010, 16
        %v1169 = vrot.slane %v1167, 4
        %v1170 = vor.u32 %v1166, %v1169
        %v1171 = vsel %vm1019, %v1161, %v1170
        %v1173 = vshrl.u32 %v1011, 16
        %v1175 = vrot.slane %v1173, 3
        %v1176 = vshll.u32 %v1011, 16
        %v1178 = vrot.slane %v1176, 4
        %v1179 = vor.u32 %v1175, %v1178
        %v1180 = vsel %vm1019, %v1170, %v1179
        %v1182 = vshrl.u32 %v1012, 16
        %v1184 = vrot.slane %v1182, 3
        %v1185 = vshll.u32 %v1012, 16
        %v1187 = vrot.slane %v1185, 4
        %v1188 = vor.u32 %v1184, %v1187
        %v1189 = vsel %vm1019, %v1179, %v1188
        %v1191 = vshrl.u32 %v1013, 16
        %v1193 = vrot.slane %v1191, 3
        %v1194 = vshll.u32 %v1013, 16
        %v1196 = vrot.slane %v1194, 4
        %v1197 = vor.u32 %v1193, %v1196
        %v1198 = vsel %vm1019, %v1188, %v1197
        %v1200 = vshrl.u32 %v1014, 16
        %v1202 = vrot.slane %v1200, 3
        %v1203 = vshll.u32 %v1014, 16
        %v1205 = vrot.slane %v1203, 4
        %v1206 = vor.u32 %v1202, %v1205
        %v1207 = vsel %vm1019, %v1197, %v1206
        %v1209 = vshrl.u32 %v1015, 16
        %v1211 = vrot.slane %v1209, 3
        %v1212 = vshll.u32 %v1015, 16
        %v1214 = vrot.slane %v1212, 4
        %v1215 = vor.u32 %v1211, %v1214
        %v1216 = vsel %vm1019, %v1206, %v1215
        %v1218 = vshrl.u32 %v1016, 16
        %v1220 = vrot.slane %v1218, 3
        %v1221 = vshll.u32 %v1016, 16
        %v1223 = vrot.slane %v1221, 4
        %v1224 = vor.u32 %v1220, %v1223
        %v1225 = vsel %vm1019, %v1215, %v1224
        %v1227 = vshrl.u32 %v1017, 16
        %v1229 = vrot.slane %v1227, 3
        %v1230 = vshll.u32 %v1017, 16
        %v1232 = vrot.slane %v1230, 4
        %v1233 = vor.u32 %v1229, %v1232
        %v1234 = vsel %vm1019, %v1224, %v1233
        %v1236 = vshrl.u32 %v1018, 16
        %v1238 = vrot.slane %v1236, 3
        %v1239 = vshll.u32 %v1018, 16
        %v1241 = vrot.slane %v1239, 4
        %v1242 = vor.u32 %v1238, %v1241
        %v1243 = vsel %vm1019, %v1233, %v1242
        %v1284 = vunpack.c.l.b16 %v542
        %v1285 = vunpack.c.l.b16 %v543
        %v1286 = vunpack.c.l.b16 %v544
        %v1287 = vunpack.c.l.b16 %v545
        %v1288 = vunpack.c.l.b16 %v546
        %v1289 = vunpack.c.l.b16 %v547
        %v1290 = vunpack.c.l.b16 %v548
        %v1291 = vunpack.c.l.b16 %v549
        %v1292 = vunpack.c.l.b16 %v550
        %v1293 = vunpack.c.l.b16 %v551
        %v1294 = vunpack.c.l.b16 %v552
        %v1295 = vunpack.c.l.b16 %v553
        %v1296 = vunpack.c.l.b16 %v554
        %v1297 = vunpack.c.l.b16 %v555
        %v1298 = vunpack.c.l.b16 %v556
        %v1299 = vunpack.c.l.b16 %v557
        %v1300 = vpack.c.b16 %v1285, %v1284
        %v1301 = vpack.c.b16 %v1287, %v1286
        %v1302 = vpack.c.b16 %v1289, %v1288
        %v1303 = vpack.c.b16 %v1291, %v1290
        %v1304 = vpack.c.b16 %v1293, %v1292
        %v1305 = vpack.c.b16 %v1295, %v1294
        %v1306 = vpack.c.b16 %v1297, %v1296
        %v1307 = vpack.c.b16 %v1299, %v1298
        %1316 = vmatprep.subr.bf16.mxu0 0
        %1317 = vmatpush1.bf16.msra.mxu0 %v1307
        %1318 = vmatprep.subr.bf16.mxu0 0
        %1319 = vmatpush1.bf16.msra.mxu0 %v1306
        %1320 = vmatprep.subr.bf16.mxu0 0
        %1321 = vmatpush1.bf16.msra.mxu0 %v1305
        %1322 = vmatprep.subr.bf16.mxu0 0
        %1323 = vmatpush1.bf16.msra.mxu0 %v1304
        %1324 = vmatprep.subr.bf16.mxu0 0
        %1325 = vmatpush1.bf16.msra.mxu0 %v1303
        %1326 = vmatprep.subr.bf16.mxu0 0
        %1327 = vmatpush1.bf16.msra.mxu0 %v1302
        %1328 = vmatprep.subr.bf16.mxu0 0
        %1329 = vmatpush1.bf16.msra.mxu0 %v1301
        %1330 = vmatprep.subr.bf16.mxu0 0
        %1331 = vmatpush1.bf16.msra.mxu0 %v1300
        %1332 = vmatprep.subr.bf16.mxu0 0
        %1333 = vmatpush2.bf16.msra.mxu0 0
        %1334 = vmatprep.subr.bf16.mxu0 0
        %1335 = vmatpush2.bf16.msra.mxu0 0
        %1336 = vmatprep.subr.bf16.mxu0 0
        %1337 = vmatpush2.bf16.msra.mxu0 0
        %1338 = vmatprep.subr.bf16.mxu0 0
        %1339 = vmatpush2.bf16.msra.mxu0 0
        %1340 = vmatprep.subr.bf16.mxu0 0
        %1341 = vmatpush2.bf16.msra.mxu0 0
        %1342 = vmatprep.subr.bf16.mxu0 0
        %1343 = vmatpush2.bf16.msra.mxu0 0
        %1344 = vmatprep.subr.bf16.mxu0 0
        %1345 = vmatpush2.bf16.msra.mxu0 0
        %1346 = vmatprep.subr.bf16.mxu0 0
        %1347 = vmatpush2.bf16.msra.mxu0 0
        %1348 = vmatprep.mubr.bf16.mxu0 0
        %1349 = vmatmul.mubr.bf16.gmra.mxu0 %v1036
        %v1350 = vpop.f32.mrf.mxu0
        %v1351 = vadd.f32 %v802, %v1350
        %v1352 = vpop.f32.mrf.mxu0
        %v1353 = vpop.f32.mrf.mxu0
        %v1354 = vadd.f32 %v805, %v1353
        %v1355 = vpop.f32.mrf.mxu0
        %1356 = vmatprep.mubr.bf16.mxu0 0
        %1357 = vmatmul.mubr.bf16.gmra.mxu0 %v1045
        %v1358 = vpop.f32.mrf.mxu0
        %v1359 = vadd.f32 %v810, %v1358
        %v1360 = vpop.f32.mrf.mxu0
        %v1361 = vpop.f32.mrf.mxu0
        %v1362 = vadd.f32 %v813, %v1361
        %v1363 = vpop.f32.mrf.mxu0
        %1364 = vmatprep.mubr.bf16.mxu0 0
        %1365 = vmatmul.mubr.bf16.gmra.mxu0 %v1054
        %v1366 = vpop.f32.mrf.mxu0
        %v1367 = vadd.f32 %v818, %v1366
        %v1368 = vpop.f32.mrf.mxu0
        %v1369 = vpop.f32.mrf.mxu0
        %v1370 = vadd.f32 %v821, %v1369
        %v1371 = vpop.f32.mrf.mxu0
        %1372 = vmatprep.mubr.bf16.mxu0 0
        %1373 = vmatmul.mubr.bf16.gmra.mxu0 %v1063
        %v1374 = vpop.f32.mrf.mxu0
        %v1375 = vadd.f32 %v826, %v1374
        %v1376 = vpop.f32.mrf.mxu0
        %v1377 = vpop.f32.mrf.mxu0
        %v1378 = vadd.f32 %v829, %v1377
        %v1379 = vpop.f32.mrf.mxu0
        %1380 = vmatprep.mubr.bf16.mxu0 0
        %1381 = vmatmul.mubr.bf16.gmra.mxu0 %v1072
        %v1382 = vpop.f32.mrf.mxu0
        %v1383 = vadd.f32 %v834, %v1382
        %v1384 = vpop.f32.mrf.mxu0
        %v1385 = vpop.f32.mrf.mxu0
        %v1386 = vadd.f32 %v837, %v1385
        %v1387 = vpop.f32.mrf.mxu0
        %1388 = vmatprep.mubr.bf16.mxu0 0
        %1389 = vmatmul.mubr.bf16.gmra.mxu0 %v1081
        %v1390 = vpop.f32.mrf.mxu0
        %v1391 = vadd.f32 %v842, %v1390
        %v1392 = vpop.f32.mrf.mxu0
        %v1393 = vpop.f32.mrf.mxu0
        %v1394 = vadd.f32 %v845, %v1393
        %v1395 = vpop.f32.mrf.mxu0
        %1396 = vmatprep.mubr.bf16.mxu0 0
        %1397 = vmatmul.mubr.bf16.gmra.mxu0 %v1090
        %v1398 = vpop.f32.mrf.mxu0
        %v1399 = vadd.f32 %v850, %v1398
        %v1400 = vpop.f32.mrf.mxu0
        %v1401 = vpop.f32.mrf.mxu0
        %v1402 = vadd.f32 %v853, %v1401
        %v1403 = vpop.f32.mrf.mxu0
        %1404 = vmatprep.mubr.bf16.mxu0 0
        %1405 = vmatmul.mubr.bf16.gmra.mxu0 %v1099
        %v1406 = vpop.f32.mrf.mxu0
        %v1407 = vadd.f32 %v858, %v1406
        %v1408 = vpop.f32.mrf.mxu0
        %v1409 = vpop.f32.mrf.mxu0
        %v1410 = vadd.f32 %v861, %v1409
        %v1411 = vpop.f32.mrf.mxu0
        %1412 = vmatprep.mubr.bf16.mxu0 0
        %1413 = vmatmul.mubr.bf16.gmra.mxu0 %v1108
        %v1414 = vpop.f32.mrf.mxu0
        %v1415 = vadd.f32 %v866, %v1414
        %v1416 = vpop.f32.mrf.mxu0
        %v1417 = vpop.f32.mrf.mxu0
        %v1418 = vadd.f32 %v869, %v1417
        %v1419 = vpop.f32.mrf.mxu0
        %1420 = vmatprep.mubr.bf16.mxu0 0
        %1421 = vmatmul.mubr.bf16.gmra.mxu0 %v1117
        %v1422 = vpop.f32.mrf.mxu0
        %v1423 = vadd.f32 %v874, %v1422
        %v1424 = vpop.f32.mrf.mxu0
        %v1425 = vpop.f32.mrf.mxu0
        %v1426 = vadd.f32 %v877, %v1425
        %v1427 = vpop.f32.mrf.mxu0
        %1428 = vmatprep.mubr.bf16.mxu0 0
        %1429 = vmatmul.mubr.bf16.gmra.mxu0 %v1126
        %v1430 = vpop.f32.mrf.mxu0
        %v1431 = vadd.f32 %v882, %v1430
        %v1432 = vpop.f32.mrf.mxu0
        %v1433 = vpop.f32.mrf.mxu0
        %v1434 = vadd.f32 %v885, %v1433
        %v1435 = vpop.f32.mrf.mxu0
        %1436 = vmatprep.mubr.bf16.mxu0 0
        %1437 = vmatmul.mubr.bf16.gmra.mxu0 %v1135
        %v1438 = vpop.f32.mrf.mxu0
        %v1439 = vadd.f32 %v890, %v1438
        %v1440 = vpop.f32.mrf.mxu0
        %v1441 = vpop.f32.mrf.mxu0
        %v1442 = vadd.f32 %v893, %v1441
        %v1443 = vpop.f32.mrf.mxu0
        %1444 = vmatprep.mubr.bf16.mxu0 0
        %1445 = vmatmul.mubr.bf16.gmra.mxu0 %v1144
        %v1446 = vpop.f32.mrf.mxu0
        %v1447 = vadd.f32 %v898, %v1446
        %v1448 = vpop.f32.mrf.mxu0
        %v1449 = vpop.f32.mrf.mxu0
        %v1450 = vadd.f32 %v901, %v1449
        %v1451 = vpop.f32.mrf.mxu0
        %1452 = vmatprep.mubr.bf16.mxu0 0
        %1453 = vmatmul.mubr.bf16.gmra.mxu0 %v1153
        %v1454 = vpop.f32.mrf.mxu0
        %v1455 = vadd.f32 %v906, %v1454
        %v1456 = vpop.f32.mrf.mxu0
        %v1457 = vpop.f32.mrf.mxu0
        %v1458 = vadd.f32 %v909, %v1457
        %v1459 = vpop.f32.mrf.mxu0
        %1460 = vmatprep.mubr.bf16.mxu0 0
        %1461 = vmatmul.mubr.bf16.gmra.mxu0 %v1162
        %v1462 = vpop.f32.mrf.mxu0
        %v1463 = vadd.f32 %v914, %v1462
        %v1464 = vpop.f32.mrf.mxu0
        %v1465 = vpop.f32.mrf.mxu0
        %v1466 = vadd.f32 %v917, %v1465
        %v1467 = vpop.f32.mrf.mxu0
        %1468 = vmatprep.mubr.bf16.mxu0 0
        %1469 = vmatmul.mubr.bf16.gmra.mxu0 %v1171
        %v1470 = vpop.f32.mrf.mxu0
        %v1471 = vadd.f32 %v922, %v1470
        %v1472 = vpop.f32.mrf.mxu0
        %v1473 = vpop.f32.mrf.mxu0
        %v1474 = vadd.f32 %v925, %v1473
        %v1475 = vpop.f32.mrf.mxu0
        %1476 = vmatprep.mubr.bf16.mxu0 0
        %1477 = vmatmul.mubr.bf16.gmra.mxu0 %v1180
        %v1478 = vpop.f32.mrf.mxu0
        %v1479 = vadd.f32 %v930, %v1478
        %v1480 = vpop.f32.mrf.mxu0
        %v1481 = vpop.f32.mrf.mxu0
        %v1482 = vadd.f32 %v933, %v1481
        %v1483 = vpop.f32.mrf.mxu0
        %1484 = vmatprep.mubr.bf16.mxu0 0
        %1485 = vmatmul.mubr.bf16.gmra.mxu0 %v1189
        %v1486 = vpop.f32.mrf.mxu0
        %v1487 = vadd.f32 %v938, %v1486
        %v1488 = vpop.f32.mrf.mxu0
        %v1489 = vpop.f32.mrf.mxu0
        %v1490 = vadd.f32 %v941, %v1489
        %v1491 = vpop.f32.mrf.mxu0
        %1492 = vmatprep.mubr.bf16.mxu0 0
        %1493 = vmatmul.mubr.bf16.gmra.mxu0 %v1198
        %v1494 = vpop.f32.mrf.mxu0
        %v1495 = vadd.f32 %v946, %v1494
        %v1496 = vpop.f32.mrf.mxu0
        %v1497 = vpop.f32.mrf.mxu0
        %v1498 = vadd.f32 %v949, %v1497
        %v1499 = vpop.f32.mrf.mxu0
        %1500 = vmatprep.mubr.bf16.mxu0 0
        %1501 = vmatmul.mubr.bf16.gmra.mxu0 %v1207
        %v1502 = vpop.f32.mrf.mxu0
        %v1503 = vadd.f32 %v954, %v1502
        %v1504 = vpop.f32.mrf.mxu0
        %v1505 = vpop.f32.mrf.mxu0
        %v1506 = vadd.f32 %v957, %v1505
        %v1507 = vpop.f32.mrf.mxu0
        %1508 = vmatprep.mubr.bf16.mxu0 0
        %1509 = vmatmul.mubr.bf16.gmra.mxu0 %v1216
        %v1510 = vpop.f32.mrf.mxu0
        %v1511 = vadd.f32 %v962, %v1510
        %v1512 = vpop.f32.mrf.mxu0
        %v1513 = vpop.f32.mrf.mxu0
        %v1514 = vadd.f32 %v965, %v1513
        %v1515 = vpop.f32.mrf.mxu0
        %1516 = vmatprep.mubr.bf16.mxu0 0
        %1517 = vmatmul.mubr.bf16.gmra.mxu0 %v1225
        %v1518 = vpop.f32.mrf.mxu0
        %v1519 = vadd.f32 %v970, %v1518
        %v1520 = vpop.f32.mrf.mxu0
        %v1521 = vpop.f32.mrf.mxu0
        %v1522 = vadd.f32 %v973, %v1521
        %v1523 = vpop.f32.mrf.mxu0
        %1524 = vmatprep.mubr.bf16.mxu0 0
        %1525 = vmatmul.mubr.bf16.gmra.mxu0 %v1234
        %v1526 = vpop.f32.mrf.mxu0
        %v1527 = vadd.f32 %v978, %v1526
        %v1528 = vpop.f32.mrf.mxu0
        %v1529 = vpop.f32.mrf.mxu0
        %v1530 = vadd.f32 %v981, %v1529
        %v1531 = vpop.f32.mrf.mxu0
        %1532 = vmatprep.mubr.bf16.mxu0 0
        %1533 = vmatmul.mubr.bf16.gmra.mxu0 %v1243
        %v1534 = vpop.f32.mrf.mxu0
        %v1535 = vadd.f32 %v986, %v1534
        %v1536 = vpop.f32.mrf.mxu0
        %v1537 = vpop.f32.mrf.mxu0
        %v1538 = vadd.f32 %v989, %v1537
        %v1539 = vpop.f32.mrf.mxu0
        %1540 = vdwg.mxu0
        %v1541 = vld [vmem:[#allocation2 + $0x4] sm:$0xf]
        %v1542 = vld [vmem:[#allocation2 + $0x8] sm:$0xf]
        %v1543 = vld [vmem:[#allocation2 + $0xc] sm:$0xf]
        %v1544 = vld [vmem:[#allocation2 + $0x10] sm:$0xf]
        %v1545 = vld [vmem:[#allocation2 + $0x14] sm:$0xf]
        %v1546 = vld [vmem:[#allocation2 + $0x18] sm:$0xf]
        %v1547 = vld [vmem:[#allocation2 + $0x1c] sm:$0xf]
        %v1548 = vld [vmem:[#allocation2 + $0x20] sm:$0xf]
        %v1549 = vld [vmem:[#allocation2 + $0x24] sm:$0xf]
        %v1550 = vld [vmem:[#allocation2 + $0x28] sm:$0xf]
        %v1551 = vld [vmem:[#allocation2 + $0x2c] sm:$0xf]
        %v1552 = vld [vmem:[#allocation2 + $0x30] sm:$0xf]
        %v1553 = vld [vmem:[#allocation2 + $0x34] sm:$0xf]
        %v1554 = vld [vmem:[#allocation2 + $0x38] sm:$0xf]
        %v1555 = vld [vmem:[#allocation2 + $0x3c] sm:$0xf]
        %v1556 = vld [vmem:[#allocation2 + $0x40] sm:$0xf]
        %v1557 = vld [vmem:[#allocation2 + $0x44] sm:$0xf]
        %v1558 = vld [vmem:[#allocation2 + $0x48] sm:$0xf]
        %v1559 = vld [vmem:[#allocation2 + $0x4c] sm:$0xf]
        %v1560 = vld [vmem:[#allocation2 + $0x50] sm:$0xf]
        %v1561 = vld [vmem:[#allocation2 + $0x54] sm:$0xf]
        %v1562 = vld [vmem:[#allocation2 + $0x58] sm:$0xf]
        %v1563 = vld [vmem:[#allocation2 + $0x5c] sm:$0xf]
        %v1564 = vld [vmem:[#allocation2 + $0x60] sm:$0xf]
        %v1565 = vld [vmem:[#allocation2 + $0x64] sm:$0xf]
        %v1566 = vld [vmem:[#allocation2 + $0x68] sm:$0xf]
        %v1567 = vld [vmem:[#allocation2 + $0x6c] sm:$0xf]
        %v1568 = vld [vmem:[#allocation2 + $0x70] sm:$0xf]
        %v1569 = vld [vmem:[#allocation2 + $0x74] sm:$0xf]
        %v1570 = vld [vmem:[#allocation2 + $0x78] sm:$0xf]
        %v1571 = vld [vmem:[#allocation2 + $0x7c] sm:$0xf]
        %v1572 = vld [vmem:[#allocation2 + $0x80] sm:$0xf]
        %v1573 = vld [vmem:[#allocation2 + $0x84] sm:$0xf]
        %v1574 = vld [vmem:[#allocation2 + $0x88] sm:$0xf]
        %v1575 = vld [vmem:[#allocation2 + $0x8c] sm:$0xf]
        %v1576 = vld [vmem:[#allocation2 + $0x90] sm:$0xf]
        %v1577 = vld [vmem:[#allocation2 + $0x94] sm:$0xf]
        %v1578 = vld [vmem:[#allocation2 + $0x98] sm:$0xf]
        %v1579 = vld [vmem:[#allocation2 + $0x9c] sm:$0xf]
        %v1580 = vld [vmem:[#allocation2 + $0xa0] sm:$0xf]
        %v1581 = vld [vmem:[#allocation2 + $0xa4] sm:$0xf]
        %v1582 = vld [vmem:[#allocation2 + $0xa8] sm:$0xf]
        %v1583 = vld [vmem:[#allocation2 + $0xac] sm:$0xf]
        %v1584 = vld [vmem:[#allocation2 + $0xb0] sm:$0xf]
        %v1585 = vld [vmem:[#allocation2 + $0xb4] sm:$0xf]
        %v1586 = vld [vmem:[#allocation2 + $0xb8] sm:$0xf]
        %v1587 = vld [vmem:[#allocation2 + $0xbc] sm:$0xf]
        %v1588 = vld [vmem:[#allocation2 + $0xc0] sm:$0xf]
        %v1589 = vld [vmem:[#allocation2 + $0xc4] sm:$0x1]
        %s1590 = scalar_lea.vmem %s1, 128
        %v1591 = vld [vmem:[%s1590] sm:$0xf]
        %v1592 = vld [vmem:[%s1590 + $0x4] sm:$0xf]
        %v1593 = vld [vmem:[%s1590 + $0x8] sm:$0xf]
        %v1594 = vld [vmem:[%s1590 + $0xc] sm:$0xf]
        %v1595 = vld [vmem:[%s1590 + $0x10] sm:$0xf]
        %v1596 = vld [vmem:[%s1590 + $0x14] sm:$0xf]
        %v1597 = vld [vmem:[%s1590 + $0x18] sm:$0xf]
        %v1598 = vld [vmem:[%s1590 + $0x1c] sm:$0xf]
        %v1599 = vld [vmem:[%s1590 + $0x20] sm:$0xf]
        %v1600 = vld [vmem:[%s1590 + $0x24] sm:$0xf]
        %v1601 = vld [vmem:[%s1590 + $0x28] sm:$0xf]
        %v1602 = vld [vmem:[%s1590 + $0x2c] sm:$0xf]
        %v1603 = vld [vmem:[%s1590 + $0x30] sm:$0xf]
        %v1604 = vld [vmem:[%s1590 + $0x34] sm:$0xf]
        %v1605 = vld [vmem:[%s1590 + $0x38] sm:$0xf]
        %v1606 = vld [vmem:[%s1590 + $0x3c] sm:$0xf]
        %v1656 = vunpack.c.l.b16 %v1541
        %v1657 = vunpack.c.l.b16 %v1542
        %v1658 = vunpack.c.l.b16 %v1543
        %v1659 = vunpack.c.l.b16 %v1544
        %v1660 = vunpack.c.l.b16 %v1545
        %v1661 = vunpack.c.l.b16 %v1546
        %v1662 = vunpack.c.l.b16 %v1547
        %v1663 = vunpack.c.l.b16 %v1548
        %v1664 = vunpack.c.l.b16 %v1549
        %v1665 = vunpack.c.l.b16 %v1550
        %v1666 = vunpack.c.l.b16 %v1551
        %v1667 = vunpack.c.l.b16 %v1552
        %v1668 = vunpack.c.l.b16 %v1553
        %v1669 = vunpack.c.l.b16 %v1554
        %v1670 = vunpack.c.l.b16 %v1555
        %v1671 = vunpack.c.l.b16 %v1556
        %v1672 = vunpack.c.l.b16 %v1557
        %v1673 = vunpack.c.l.b16 %v1558
        %v1674 = vunpack.c.l.b16 %v1559
        %v1675 = vunpack.c.l.b16 %v1560
        %v1676 = vunpack.c.l.b16 %v1561
        %v1677 = vunpack.c.l.b16 %v1562
        %v1678 = vunpack.c.l.b16 %v1563
        %v1679 = vunpack.c.l.b16 %v1564
        %v1680 = vunpack.c.l.b16 %v1565
        %v1681 = vunpack.c.l.b16 %v1566
        %v1682 = vunpack.c.l.b16 %v1567
        %v1683 = vunpack.c.l.b16 %v1568
        %v1684 = vunpack.c.l.b16 %v1569
        %v1685 = vunpack.c.l.b16 %v1570
        %v1686 = vunpack.c.l.b16 %v1571
        %v1687 = vunpack.c.l.b16 %v1572
        %v1688 = vunpack.c.l.b16 %v1573
        %v1689 = vunpack.c.l.b16 %v1574
        %v1690 = vunpack.c.l.b16 %v1575
        %v1691 = vunpack.c.l.b16 %v1576
        %v1692 = vunpack.c.l.b16 %v1577
        %v1693 = vunpack.c.l.b16 %v1578
        %v1694 = vunpack.c.l.b16 %v1579
        %v1695 = vunpack.c.l.b16 %v1580
        %v1696 = vunpack.c.l.b16 %v1581
        %v1697 = vunpack.c.l.b16 %v1582
        %v1698 = vunpack.c.l.b16 %v1583
        %v1699 = vunpack.c.l.b16 %v1584
        %v1700 = vunpack.c.l.b16 %v1585
        %v1701 = vunpack.c.l.b16 %v1586
        %v1702 = vunpack.c.l.b16 %v1587
        %v1703 = vunpack.c.l.b16 %v1588
        %v1704 = vunpack.c.l.b16 %v1589
        %v1705 = vpack.c.b16 %v1657, %v1656
        %v1706 = vpack.c.b16 %v1659, %v1658
        %v1707 = vpack.c.b16 %v1661, %v1660
        %v1708 = vpack.c.b16 %v1663, %v1662
        %v1709 = vpack.c.b16 %v1665, %v1664
        %v1710 = vpack.c.b16 %v1667, %v1666
        %v1711 = vpack.c.b16 %v1669, %v1668
        %v1712 = vpack.c.b16 %v1671, %v1670
        %v1713 = vpack.c.b16 %v1673, %v1672
        %v1714 = vpack.c.b16 %v1675, %v1674
        %v1715 = vpack.c.b16 %v1677, %v1676
        %v1716 = vpack.c.b16 %v1679, %v1678
        %v1717 = vpack.c.b16 %v1681, %v1680
        %v1718 = vpack.c.b16 %v1683, %v1682
        %v1719 = vpack.c.b16 %v1685, %v1684
        %v1720 = vpack.c.b16 %v1687, %v1686
        %v1721 = vpack.c.b16 %v1689, %v1688
        %v1722 = vpack.c.b16 %v1691, %v1690
        %v1723 = vpack.c.b16 %v1693, %v1692
        %v1724 = vpack.c.b16 %v1695, %v1694
        %v1725 = vpack.c.b16 %v1697, %v1696
        %v1726 = vpack.c.b16 %v1699, %v1698
        %v1727 = vpack.c.b16 %v1701, %v1700
        %v1728 = vpack.c.b16 %v1703, %v1702
        %v1729 = vpack.c.b16 %v1704, %v1704
        %vm1730 = vsmask.f32 7424
        %v1732 = vshrl.u32 %v1705, 16
        %v1734 = vshll.u32 %v1705, 16
        %v1736 = vrot.slane %v1734, 1
        %v1737 = vor.u32 %v1732, %v1736
        %v1739 = vshll.u32 %v1706, 16
        %v1741 = vrot.slane %v1739, 1
        %v1742 = vsel %vm1730, %v1737, %v1741
        %v1743 = vshrl.u32 %v1706, 16
        %v1745 = vor.u32 %v1743, %v1741
        %v1747 = vshll.u32 %v1707, 16
        %v1749 = vrot.slane %v1747, 1
        %v1750 = vsel %vm1730, %v1745, %v1749
        %v1751 = vshrl.u32 %v1707, 16
        %v1753 = vor.u32 %v1751, %v1749
        %v1755 = vshll.u32 %v1708, 16
        %v1757 = vrot.slane %v1755, 1
        %v1758 = vsel %vm1730, %v1753, %v1757
        %v1759 = vshrl.u32 %v1708, 16
        %v1761 = vor.u32 %v1759, %v1757
        %v1763 = vshll.u32 %v1709, 16
        %v1765 = vrot.slane %v1763, 1
        %v1766 = vsel %vm1730, %v1761, %v1765
        %v1767 = vshrl.u32 %v1709, 16
        %v1769 = vor.u32 %v1767, %v1765
        %v1771 = vshll.u32 %v1710, 16
        %v1773 = vrot.slane %v1771, 1
        %v1774 = vsel %vm1730, %v1769, %v1773
        %v1775 = vshrl.u32 %v1710, 16
        %v1777 = vor.u32 %v1775, %v1773
        %v1779 = vshll.u32 %v1711, 16
        %v1781 = vrot.slane %v1779, 1
        %v1782 = vsel %vm1730, %v1777, %v1781
        %v1783 = vshrl.u32 %v1711, 16
        %v1785 = vor.u32 %v1783, %v1781
        %v1787 = vshll.u32 %v1712, 16
        %v1789 = vrot.slane %v1787, 1
        %v1790 = vsel %vm1730, %v1785, %v1789
        %v1791 = vshrl.u32 %v1712, 16
        %v1793 = vor.u32 %v1791, %v1789
        %v1795 = vshll.u32 %v1713, 16
        %v1797 = vrot.slane %v1795, 1
        %v1798 = vsel %vm1730, %v1793, %v1797
        %v1799 = vshrl.u32 %v1713, 16
        %v1801 = vor.u32 %v1799, %v1797
        %v1803 = vshll.u32 %v1714, 16
        %v1805 = vrot.slane %v1803, 1
        %v1806 = vsel %vm1730, %v1801, %v1805
        %v1807 = vshrl.u32 %v1714, 16
        %v1809 = vor.u32 %v1807, %v1805
        %v1811 = vshll.u32 %v1715, 16
        %v1813 = vrot.slane %v1811, 1
        %v1814 = vsel %vm1730, %v1809, %v1813
        %v1815 = vshrl.u32 %v1715, 16
        %v1817 = vor.u32 %v1815, %v1813
        %v1819 = vshll.u32 %v1716, 16
        %v1821 = vrot.slane %v1819, 1
        %v1822 = vsel %vm1730, %v1817, %v1821
        %v1823 = vshrl.u32 %v1716, 16
        %v1825 = vor.u32 %v1823, %v1821
        %v1827 = vshll.u32 %v1717, 16
        %v1829 = vrot.slane %v1827, 1
        %v1830 = vsel %vm1730, %v1825, %v1829
        %v1831 = vshrl.u32 %v1717, 16
        %v1833 = vor.u32 %v1831, %v1829
        %v1835 = vshll.u32 %v1718, 16
        %v1837 = vrot.slane %v1835, 1
        %v1838 = vsel %vm1730, %v1833, %v1837
        %v1839 = vshrl.u32 %v1718, 16
        %v1841 = vor.u32 %v1839, %v1837
        %v1843 = vshll.u32 %v1719, 16
        %v1845 = vrot.slane %v1843, 1
        %v1846 = vsel %vm1730, %v1841, %v1845
        %v1847 = vshrl.u32 %v1719, 16
        %v1849 = vor.u32 %v1847, %v1845
        %v1851 = vshll.u32 %v1720, 16
        %v1853 = vrot.slane %v1851, 1
        %v1854 = vsel %vm1730, %v1849, %v1853
        %v1855 = vshrl.u32 %v1720, 16
        %v1857 = vor.u32 %v1855, %v1853
        %v1859 = vshll.u32 %v1721, 16
        %v1861 = vrot.slane %v1859, 1
        %v1862 = vsel %vm1730, %v1857, %v1861
        %v1863 = vshrl.u32 %v1721, 16
        %v1865 = vor.u32 %v1863, %v1861
        %v1867 = vshll.u32 %v1722, 16
        %v1869 = vrot.slane %v1867, 1
        %v1870 = vsel %vm1730, %v1865, %v1869
        %v1871 = vshrl.u32 %v1722, 16
        %v1873 = vor.u32 %v1871, %v1869
        %v1875 = vshll.u32 %v1723, 16
        %v1877 = vrot.slane %v1875, 1
        %v1878 = vsel %vm1730, %v1873, %v1877
        %v1879 = vshrl.u32 %v1723, 16
        %v1881 = vor.u32 %v1879, %v1877
        %v1883 = vshll.u32 %v1724, 16
        %v1885 = vrot.slane %v1883, 1
        %v1886 = vsel %vm1730, %v1881, %v1885
        %v1887 = vshrl.u32 %v1724, 16
        %v1889 = vor.u32 %v1887, %v1885
        %v1891 = vshll.u32 %v1725, 16
        %v1893 = vrot.slane %v1891, 1
        %v1894 = vsel %vm1730, %v1889, %v1893
        %v1895 = vshrl.u32 %v1725, 16
        %v1897 = vor.u32 %v1895, %v1893
        %v1899 = vshll.u32 %v1726, 16
        %v1901 = vrot.slane %v1899, 1
        %v1902 = vsel %vm1730, %v1897, %v1901
        %v1903 = vshrl.u32 %v1726, 16
        %v1905 = vor.u32 %v1903, %v1901
        %v1907 = vshll.u32 %v1727, 16
        %v1909 = vrot.slane %v1907, 1
        %v1910 = vsel %vm1730, %v1905, %v1909
        %v1911 = vshrl.u32 %v1727, 16
        %v1913 = vor.u32 %v1911, %v1909
        %v1915 = vshll.u32 %v1728, 16
        %v1917 = vrot.slane %v1915, 1
        %v1918 = vsel %vm1730, %v1913, %v1917
        %v1919 = vshrl.u32 %v1728, 16
        %v1921 = vor.u32 %v1919, %v1917
        %v1923 = vshll.u32 %v1729, 16
        %v1925 = vrot.slane %v1923, 1
        %v1926 = vsel %vm1730, %v1921, %v1925
        %v1967 = vunpack.c.l.b16 %v1591
        %v1968 = vunpack.c.l.b16 %v1592
        %v1969 = vunpack.c.l.b16 %v1593
        %v1970 = vunpack.c.l.b16 %v1594
        %v1971 = vunpack.c.l.b16 %v1595
        %v1972 = vunpack.c.l.b16 %v1596
        %v1973 = vunpack.c.l.b16 %v1597
        %v1974 = vunpack.c.l.b16 %v1598
        %v1975 = vunpack.c.l.b16 %v1599
        %v1976 = vunpack.c.l.b16 %v1600
        %v1977 = vunpack.c.l.b16 %v1601
        %v1978 = vunpack.c.l.b16 %v1602
        %v1979 = vunpack.c.l.b16 %v1603
        %v1980 = vunpack.c.l.b16 %v1604
        %v1981 = vunpack.c.l.b16 %v1605
        %v1982 = vunpack.c.l.b16 %v1606
        %v1983 = vpack.c.b16 %v1968, %v1967
        %v1984 = vpack.c.b16 %v1970, %v1969
        %v1985 = vpack.c.b16 %v1972, %v1971
        %v1986 = vpack.c.b16 %v1974, %v1973
        %v1987 = vpack.c.b16 %v1976, %v1975
        %v1988 = vpack.c.b16 %v1978, %v1977
        %v1989 = vpack.c.b16 %v1980, %v1979
        %v1990 = vpack.c.b16 %v1982, %v1981
        %1999 = vmatprep.subr.bf16.mxu0 0
        %2000 = vmatpush1.bf16.msra.mxu0 %v1990
        %2001 = vmatprep.subr.bf16.mxu0 0
        %2002 = vmatpush1.bf16.msra.mxu0 %v1989
        %2003 = vmatprep.subr.bf16.mxu0 0
        %2004 = vmatpush1.bf16.msra.mxu0 %v1988
        %2005 = vmatprep.subr.bf16.mxu0 0
        %2006 = vmatpush1.bf16.msra.mxu0 %v1987
        %2007 = vmatprep.subr.bf16.mxu0 0
        %2008 = vmatpush1.bf16.msra.mxu0 %v1986
        %2009 = vmatprep.subr.bf16.mxu0 0
        %2010 = vmatpush1.bf16.msra.mxu0 %v1985
        %2011 = vmatprep.subr.bf16.mxu0 0
        %2012 = vmatpush1.bf16.msra.mxu0 %v1984
        %2013 = vmatprep.subr.bf16.mxu0 0
        %2014 = vmatpush1.bf16.msra.mxu0 %v1983
        %2015 = vmatprep.subr.bf16.mxu0 0
        %2016 = vmatpush2.bf16.msra.mxu0 0
        %2017 = vmatprep.subr.bf16.mxu0 0
        %2018 = vmatpush2.bf16.msra.mxu0 0
        %2019 = vmatprep.subr.bf16.mxu0 0
        %2020 = vmatpush2.bf16.msra.mxu0 0
        %2021 = vmatprep.subr.bf16.mxu0 0
        %2022 = vmatpush2.bf16.msra.mxu0 0
        %2023 = vmatprep.subr.bf16.mxu0 0
        %2024 = vmatpush2.bf16.msra.mxu0 0
        %2025 = vmatprep.subr.bf16.mxu0 0
        %2026 = vmatpush2.bf16.msra.mxu0 0
        %2027 = vmatprep.subr.bf16.mxu0 0
        %2028 = vmatpush2.bf16.msra.mxu0 0
        %2029 = vmatprep.subr.bf16.mxu0 0
        %2030 = vmatpush2.bf16.msra.mxu0 0
        %2031 = vmatprep.mubr.bf16.mxu0 0
        %2032 = vmatmul.mubr.bf16.gmra.mxu0 %v1742
        %v2033 = vpop.f32.mrf.mxu0
        %v2034 = vadd.f32 0.0, %v2033
        %v2035 = vpop.f32.mrf.mxu0
        %v2036 = vpop.f32.mrf.mxu0
        %v2037 = vadd.f32 0.0, %v2036
        %v2038 = vpop.f32.mrf.mxu0
        %2039 = vmatprep.mubr.bf16.mxu0 0
        %2040 = vmatmul.mubr.bf16.gmra.mxu0 %v1750
        %v2041 = vpop.f32.mrf.mxu0
        %v2042 = vadd.f32 0.0, %v2041
        %v2043 = vpop.f32.mrf.mxu0
        %v2044 = vpop.f32.mrf.mxu0
        %v2045 = vadd.f32 0.0, %v2044
        %v2046 = vpop.f32.mrf.mxu0
        %2047 = vmatprep.mubr.bf16.mxu0 0
        %2048 = vmatmul.mubr.bf16.gmra.mxu0 %v1758
        %v2049 = vpop.f32.mrf.mxu0
        %v2050 = vadd.f32 0.0, %v2049
        %v2051 = vpop.f32.mrf.mxu0
        %v2052 = vpop.f32.mrf.mxu0
        %v2053 = vadd.f32 0.0, %v2052
        %v2054 = vpop.f32.mrf.mxu0
        %2055 = vmatprep.mubr.bf16.mxu0 0
        %2056 = vmatmul.mubr.bf16.gmra.mxu0 %v1766
        %v2057 = vpop.f32.mrf.mxu0
        %v2058 = vadd.f32 0.0, %v2057
        %v2059 = vpop.f32.mrf.mxu0
        %v2060 = vpop.f32.mrf.mxu0
        %v2061 = vadd.f32 0.0, %v2060
        %v2062 = vpop.f32.mrf.mxu0
        %2063 = vmatprep.mubr.bf16.mxu0 0
        %2064 = vmatmul.mubr.bf16.gmra.mxu0 %v1774
        %v2065 = vpop.f32.mrf.mxu0
        %v2066 = vadd.f32 0.0, %v2065
        %v2067 = vpop.f32.mrf.mxu0
        %v2068 = vpop.f32.mrf.mxu0
        %v2069 = vadd.f32 0.0, %v2068
        %v2070 = vpop.f32.mrf.mxu0
        %2071 = vmatprep.mubr.bf16.mxu0 0
        %2072 = vmatmul.mubr.bf16.gmra.mxu0 %v1782
        %v2073 = vpop.f32.mrf.mxu0
        %v2074 = vadd.f32 0.0, %v2073
        %v2075 = vpop.f32.mrf.mxu0
        %v2076 = vpop.f32.mrf.mxu0
        %v2077 = vadd.f32 0.0, %v2076
        %v2078 = vpop.f32.mrf.mxu0
        %2079 = vmatprep.mubr.bf16.mxu0 0
        %2080 = vmatmul.mubr.bf16.gmra.mxu0 %v1790
        %v2081 = vpop.f32.mrf.mxu0
        %v2082 = vadd.f32 0.0, %v2081
        %v2083 = vpop.f32.mrf.mxu0
        %v2084 = vpop.f32.mrf.mxu0
        %v2085 = vadd.f32 0.0, %v2084
        %v2086 = vpop.f32.mrf.mxu0
        %2087 = vmatprep.mubr.bf16.mxu0 0
        %2088 = vmatmul.mubr.bf16.gmra.mxu0 %v1798
        %v2089 = vpop.f32.mrf.mxu0
        %v2090 = vadd.f32 0.0, %v2089
        %v2091 = vpop.f32.mrf.mxu0
        %v2092 = vpop.f32.mrf.mxu0
        %v2093 = vadd.f32 0.0, %v2092
        %v2094 = vpop.f32.mrf.mxu0
        %2095 = vmatprep.mubr.bf16.mxu0 0
        %2096 = vmatmul.mubr.bf16.gmra.mxu0 %v1806
        %v2097 = vpop.f32.mrf.mxu0
        %v2098 = vadd.f32 0.0, %v2097
        %v2099 = vpop.f32.mrf.mxu0
        %v2100 = vpop.f32.mrf.mxu0
        %v2101 = vadd.f32 0.0, %v2100
        %v2102 = vpop.f32.mrf.mxu0
        %2103 = vmatprep.mubr.bf16.mxu0 0
        %2104 = vmatmul.mubr.bf16.gmra.mxu0 %v1814
        %v2105 = vpop.f32.mrf.mxu0
        %v2106 = vadd.f32 0.0, %v2105
        %v2107 = vpop.f32.mrf.mxu0
        %v2108 = vpop.f32.mrf.mxu0
        %v2109 = vadd.f32 0.0, %v2108
        %v2110 = vpop.f32.mrf.mxu0
        %2111 = vmatprep.mubr.bf16.mxu0 0
        %2112 = vmatmul.mubr.bf16.gmra.mxu0 %v1822
        %v2113 = vpop.f32.mrf.mxu0
        %v2114 = vadd.f32 0.0, %v2113
        %v2115 = vpop.f32.mrf.mxu0
        %v2116 = vpop.f32.mrf.mxu0
        %v2117 = vadd.f32 0.0, %v2116
        %v2118 = vpop.f32.mrf.mxu0
        %2119 = vmatprep.mubr.bf16.mxu0 0
        %2120 = vmatmul.mubr.bf16.gmra.mxu0 %v1830
        %v2121 = vpop.f32.mrf.mxu0
        %v2122 = vadd.f32 0.0, %v2121
        %v2123 = vpop.f32.mrf.mxu0
        %v2124 = vpop.f32.mrf.mxu0
        %v2125 = vadd.f32 0.0, %v2124
        %v2126 = vpop.f32.mrf.mxu0
        %2127 = vmatprep.mubr.bf16.mxu0 0
        %2128 = vmatmul.mubr.bf16.gmra.mxu0 %v1838
        %v2129 = vpop.f32.mrf.mxu0
        %v2130 = vadd.f32 0.0, %v2129
        %v2131 = vpop.f32.mrf.mxu0
        %v2132 = vpop.f32.mrf.mxu0
        %v2133 = vadd.f32 0.0, %v2132
        %v2134 = vpop.f32.mrf.mxu0
        %2135 = vmatprep.mubr.bf16.mxu0 0
        %2136 = vmatmul.mubr.bf16.gmra.mxu0 %v1846
        %v2137 = vpop.f32.mrf.mxu0
        %v2138 = vadd.f32 0.0, %v2137
        %v2139 = vpop.f32.mrf.mxu0
        %v2140 = vpop.f32.mrf.mxu0
        %v2141 = vadd.f32 0.0, %v2140
        %v2142 = vpop.f32.mrf.mxu0
        %2143 = vmatprep.mubr.bf16.mxu0 0
        %2144 = vmatmul.mubr.bf16.gmra.mxu0 %v1854
        %v2145 = vpop.f32.mrf.mxu0
        %v2146 = vadd.f32 0.0, %v2145
        %v2147 = vpop.f32.mrf.mxu0
        %v2148 = vpop.f32.mrf.mxu0
        %v2149 = vadd.f32 0.0, %v2148
        %v2150 = vpop.f32.mrf.mxu0
        %2151 = vmatprep.mubr.bf16.mxu0 0
        %2152 = vmatmul.mubr.bf16.gmra.mxu0 %v1862
        %v2153 = vpop.f32.mrf.mxu0
        %v2154 = vadd.f32 0.0, %v2153
        %v2155 = vpop.f32.mrf.mxu0
        %v2156 = vpop.f32.mrf.mxu0
        %v2157 = vadd.f32 0.0, %v2156
        %v2158 = vpop.f32.mrf.mxu0
        %2159 = vmatprep.mubr.bf16.mxu0 0
        %2160 = vmatmul.mubr.bf16.gmra.mxu0 %v1870
        %v2161 = vpop.f32.mrf.mxu0
        %v2162 = vadd.f32 0.0, %v2161
        %v2163 = vpop.f32.mrf.mxu0
        %v2164 = vpop.f32.mrf.mxu0
        %v2165 = vadd.f32 0.0, %v2164
        %v2166 = vpop.f32.mrf.mxu0
        %2167 = vmatprep.mubr.bf16.mxu0 0
        %2168 = vmatmul.mubr.bf16.gmra.mxu0 %v1878
        %v2169 = vpop.f32.mrf.mxu0
        %v2170 = vadd.f32 0.0, %v2169
        %v2171 = vpop.f32.mrf.mxu0
        %v2172 = vpop.f32.mrf.mxu0
        %v2173 = vadd.f32 0.0, %v2172
        %v2174 = vpop.f32.mrf.mxu0
        %2175 = vmatprep.mubr.bf16.mxu0 0
        %2176 = vmatmul.mubr.bf16.gmra.mxu0 %v1886
        %v2177 = vpop.f32.mrf.mxu0
        %v2178 = vadd.f32 0.0, %v2177
        %v2179 = vpop.f32.mrf.mxu0
        %v2180 = vpop.f32.mrf.mxu0
        %v2181 = vadd.f32 0.0, %v2180
        %v2182 = vpop.f32.mrf.mxu0
        %2183 = vmatprep.mubr.bf16.mxu0 0
        %2184 = vmatmul.mubr.bf16.gmra.mxu0 %v1894
        %v2185 = vpop.f32.mrf.mxu0
        %v2186 = vadd.f32 0.0, %v2185
        %v2187 = vpop.f32.mrf.mxu0
        %v2188 = vpop.f32.mrf.mxu0
        %v2189 = vadd.f32 0.0, %v2188
        %v2190 = vpop.f32.mrf.mxu0
        %2191 = vmatprep.mubr.bf16.mxu0 0
        %2192 = vmatmul.mubr.bf16.gmra.mxu0 %v1902
        %v2193 = vpop.f32.mrf.mxu0
        %v2194 = vadd.f32 0.0, %v2193
        %v2195 = vpop.f32.mrf.mxu0
        %v2196 = vpop.f32.mrf.mxu0
        %v2197 = vadd.f32 0.0, %v2196
        %v2198 = vpop.f32.mrf.mxu0
        %2199 = vmatprep.mubr.bf16.mxu0 0
        %2200 = vmatmul.mubr.bf16.gmra.mxu0 %v1910
        %v2201 = vpop.f32.mrf.mxu0
        %v2202 = vadd.f32 0.0, %v2201
        %v2203 = vpop.f32.mrf.mxu0
        %v2204 = vpop.f32.mrf.mxu0
        %v2205 = vadd.f32 0.0, %v2204
        %v2206 = vpop.f32.mrf.mxu0
        %2207 = vmatprep.mubr.bf16.mxu0 0
        %2208 = vmatmul.mubr.bf16.gmra.mxu0 %v1918
        %v2209 = vpop.f32.mrf.mxu0
        %v2210 = vadd.f32 0.0, %v2209
        %v2211 = vpop.f32.mrf.mxu0
        %v2212 = vpop.f32.mrf.mxu0
        %v2213 = vadd.f32 0.0, %v2212
        %v2214 = vpop.f32.mrf.mxu0
        %2215 = vmatprep.mubr.bf16.mxu0 0
        %2216 = vmatmul.mubr.bf16.gmra.mxu0 %v1926
        %v2217 = vpop.f32.mrf.mxu0
        %v2218 = vadd.f32 0.0, %v2217
        %v2219 = vpop.f32.mrf.mxu0
        %v2220 = vpop.f32.mrf.mxu0
        %v2221 = vadd.f32 0.0, %v2220
        %v2222 = vpop.f32.mrf.mxu0
        %2223 = vdwg.mxu0
        %v2224 = vadd.f32 %v1351, %v2034
        %v2225 = vadd.f32 %v1354, %v2037
        %v2226 = vadd.f32 %v1359, %v2042
        %v2227 = vadd.f32 %v1362, %v2045
        %v2228 = vadd.f32 %v1367, %v2050
        %v2229 = vadd.f32 %v1370, %v2053
        %v2230 = vadd.f32 %v1375, %v2058
        %v2231 = vadd.f32 %v1378, %v2061
        %v2232 = vadd.f32 %v1383, %v2066
        %v2233 = vadd.f32 %v1386, %v2069
        %v2234 = vadd.f32 %v1391, %v2074
        %v2235 = vadd.f32 %v1394, %v2077
        %v2236 = vadd.f32 %v1399, %v2082
        %v2237 = vadd.f32 %v1402, %v2085
        %v2238 = vadd.f32 %v1407, %v2090
        %v2239 = vadd.f32 %v1410, %v2093
        %v2240 = vadd.f32 %v1415, %v2098
        %v2241 = vadd.f32 %v1418, %v2101
        %v2242 = vadd.f32 %v1423, %v2106
        %v2243 = vadd.f32 %v1426, %v2109
        %v2244 = vadd.f32 %v1431, %v2114
        %v2245 = vadd.f32 %v1434, %v2117
        %v2246 = vadd.f32 %v1439, %v2122
        %v2247 = vadd.f32 %v1442, %v2125
        %v2248 = vadd.f32 %v1447, %v2130
        %v2249 = vadd.f32 %v1450, %v2133
        %v2250 = vadd.f32 %v1455, %v2138
        %v2251 = vadd.f32 %v1458, %v2141
        %v2252 = vadd.f32 %v1463, %v2146
        %v2253 = vadd.f32 %v1466, %v2149
        %v2254 = vadd.f32 %v1471, %v2154
        %v2255 = vadd.f32 %v1474, %v2157
        %v2256 = vadd.f32 %v1479, %v2162
        %v2257 = vadd.f32 %v1482, %v2165
        %v2258 = vadd.f32 %v1487, %v2170
        %v2259 = vadd.f32 %v1490, %v2173
        %v2260 = vadd.f32 %v1495, %v2178
        %v2261 = vadd.f32 %v1498, %v2181
        %v2262 = vadd.f32 %v1503, %v2186
        %v2263 = vadd.f32 %v1506, %v2189
        %v2264 = vadd.f32 %v1511, %v2194
        %v2265 = vadd.f32 %v1514, %v2197
        %v2266 = vadd.f32 %v1519, %v2202
        %v2267 = vadd.f32 %v1522, %v2205
        %v2268 = vadd.f32 %v1527, %v2210
        %v2269 = vadd.f32 %v1530, %v2213
        %v2270 = vadd.f32 %v1535, %v2218
        %v2271 = vadd.f32 %v1538, %v2221
        %v2272 = vld [vmem:[#allocation2 + $0xc] sm:$0x8]
        %v2273 = vld [vmem:[#allocation2 + $0x10] sm:$0xf]
        %v2274 = vld [vmem:[#allocation2 + $0x14] sm:$0xf]
        %v2275 = vld [vmem:[#allocation2 + $0x18] sm:$0xf]
        %v2276 = vld [vmem:[#allocation2 + $0x1c] sm:$0xf]
        %v2277 = vld [vmem:[#allocation2 + $0x20] sm:$0xf]
        %v2278 = vld [vmem:[#allocation2 + $0x24] sm:$0xf]
        %v2279 = vld [vmem:[#allocation2 + $0x28] sm:$0xf]
        %v2280 = vld [vmem:[#allocation2 + $0x2c] sm:$0xf]
        %v2281 = vld [vmem:[#allocation2 + $0x30] sm:$0xf]
        %v2282 = vld [vmem:[#allocation2 + $0x34] sm:$0xf]
        %v2283 = vld [vmem:[#allocation2 + $0x38] sm:$0xf]
        %v2284 = vld [vmem:[#allocation2 + $0x3c] sm:$0xf]
        %v2285 = vld [vmem:[#allocation2 + $0x40] sm:$0xf]
        %v2286 = vld [vmem:[#allocation2 + $0x44] sm:$0xf]
        %v2287 = vld [vmem:[#allocation2 + $0x48] sm:$0xf]
        %v2288 = vld [vmem:[#allocation2 + $0x4c] sm:$0xf]
        %v2289 = vld [vmem:[#allocation2 + $0x50] sm:$0xf]
        %v2290 = vld [vmem:[#allocation2 + $0x54] sm:$0xf]
        %v2291 = vld [vmem:[#allocation2 + $0x58] sm:$0xf]
        %v2292 = vld [vmem:[#allocation2 + $0x5c] sm:$0xf]
        %v2293 = vld [vmem:[#allocation2 + $0x60] sm:$0xf]
        %v2294 = vld [vmem:[#allocation2 + $0x64] sm:$0xf]
        %v2295 = vld [vmem:[#allocation2 + $0x68] sm:$0xf]
        %v2296 = vld [vmem:[#allocation2 + $0x6c] sm:$0xf]
        %v2297 = vld [vmem:[#allocation2 + $0x70] sm:$0xf]
        %v2298 = vld [vmem:[#allocation2 + $0x74] sm:$0xf]
        %v2299 = vld [vmem:[#allocation2 + $0x78] sm:$0xf]
        %v2300 = vld [vmem:[#allocation2 + $0x7c] sm:$0xf]
        %v2301 = vld [vmem:[#allocation2 + $0x80] sm:$0xf]
        %v2302 = vld [vmem:[#allocation2 + $0x84] sm:$0xf]
        %v2303 = vld [vmem:[#allocation2 + $0x88] sm:$0xf]
        %v2304 = vld [vmem:[#allocation2 + $0x8c] sm:$0xf]
        %v2305 = vld [vmem:[#allocation2 + $0x90] sm:$0xf]
        %v2306 = vld [vmem:[#allocation2 + $0x94] sm:$0xf]
        %v2307 = vld [vmem:[#allocation2 + $0x98] sm:$0xf]
        %v2308 = vld [vmem:[#allocation2 + $0x9c] sm:$0xf]
        %v2309 = vld [vmem:[#allocation2 + $0xa0] sm:$0xf]
        %v2310 = vld [vmem:[#allocation2 + $0xa4] sm:$0xf]
        %v2311 = vld [vmem:[#allocation2 + $0xa8] sm:$0xf]
        %v2312 = vld [vmem:[#allocation2 + $0xac] sm:$0xf]
        %v2313 = vld [vmem:[#allocation2 + $0xb0] sm:$0xf]
        %v2314 = vld [vmem:[#allocation2 + $0xb4] sm:$0xf]
        %v2315 = vld [vmem:[#allocation2 + $0xb8] sm:$0xf]
        %v2316 = vld [vmem:[#allocation2 + $0xbc] sm:$0xf]
        %v2317 = vld [vmem:[#allocation2 + $0xc0] sm:$0xf]
        %v2318 = vld [vmem:[#allocation2 + $0xc4] sm:$0xf]
        %v2319 = vld [vmem:[#allocation2 + $0xc8] sm:$0xf]
        %v2320 = vld [vmem:[#allocation2 + $0xcc] sm:$0xf]
        %s2321 = scalar_lea.vmem %s1, 192
        %v2322 = vld [vmem:[%s2321] sm:$0xf]
        %v2323 = vld [vmem:[%s2321 + $0x4] sm:$0xf]
        %v2324 = vld [vmem:[%s2321 + $0x8] sm:$0xf]
        %v2325 = vld [vmem:[%s2321 + $0xc] sm:$0xf]
        %v2326 = vld [vmem:[%s2321 + $0x10] sm:$0xf]
        %v2327 = vld [vmem:[%s2321 + $0x14] sm:$0xf]
        %v2328 = vld [vmem:[%s2321 + $0x18] sm:$0xf]
        %v2329 = vld [vmem:[%s2321 + $0x1c] sm:$0xf]
        %v2330 = vld [vmem:[%s2321 + $0x20] sm:$0xf]
        %v2331 = vld [vmem:[%s2321 + $0x24] sm:$0xf]
        %v2332 = vld [vmem:[%s2321 + $0x28] sm:$0xf]
        %v2333 = vld [vmem:[%s2321 + $0x2c] sm:$0xf]
        %v2334 = vld [vmem:[%s2321 + $0x30] sm:$0xf]
        %v2335 = vld [vmem:[%s2321 + $0x34] sm:$0xf]
        %v2336 = vld [vmem:[%s2321 + $0x38] sm:$0xf]
        %v2337 = vld [vmem:[%s2321 + $0x3c] sm:$0xf]
        %v2387 = vunpack.c.l.b16 %v2272
        %v2388 = vunpack.c.l.b16 %v2273
        %v2389 = vunpack.c.l.b16 %v2274
        %v2390 = vunpack.c.l.b16 %v2275
        %v2391 = vunpack.c.l.b16 %v2276
        %v2392 = vunpack.c.l.b16 %v2277
        %v2393 = vunpack.c.l.b16 %v2278
        %v2394 = vunpack.c.l.b16 %v2279
        %v2395 = vunpack.c.l.b16 %v2280
        %v2396 = vunpack.c.l.b16 %v2281
        %v2397 = vunpack.c.l.b16 %v2282
        %v2398 = vunpack.c.l.b16 %v2283
        %v2399 = vunpack.c.l.b16 %v2284
        %v2400 = vunpack.c.l.b16 %v2285
        %v2401 = vunpack.c.l.b16 %v2286
        %v2402 = vunpack.c.l.b16 %v2287
        %v2403 = vunpack.c.l.b16 %v2288
        %v2404 = vunpack.c.l.b16 %v2289
        %v2405 = vunpack.c.l.b16 %v2290
        %v2406 = vunpack.c.l.b16 %v2291
        %v2407 = vunpack.c.l.b16 %v2292
        %v2408 = vunpack.c.l.b16 %v2293
        %v2409 = vunpack.c.l.b16 %v2294
        %v2410 = vunpack.c.l.b16 %v2295
        %v2411 = vunpack.c.l.b16 %v2296
        %v2412 = vunpack.c.l.b16 %v2297
        %v2413 = vunpack.c.l.b16 %v2298
        %v2414 = vunpack.c.l.b16 %v2299
        %v2415 = vunpack.c.l.b16 %v2300
        %v2416 = vunpack.c.l.b16 %v2301
        %v2417 = vunpack.c.l.b16 %v2302
        %v2418 = vunpack.c.l.b16 %v2303
        %v2419 = vunpack.c.l.b16 %v2304
        %v2420 = vunpack.c.l.b16 %v2305
        %v2421 = vunpack.c.l.b16 %v2306
        %v2422 = vunpack.c.l.b16 %v2307
        %v2423 = vunpack.c.l.b16 %v2308
        %v2424 = vunpack.c.l.b16 %v2309
        %v2425 = vunpack.c.l.b16 %v2310
        %v2426 = vunpack.c.l.b16 %v2311
        %v2427 = vunpack.c.l.b16 %v2312
        %v2428 = vunpack.c.l.b16 %v2313
        %v2429 = vunpack.c.l.b16 %v2314
        %v2430 = vunpack.c.l.b16 %v2315
        %v2431 = vunpack.c.l.b16 %v2316
        %v2432 = vunpack.c.l.b16 %v2317
        %v2433 = vunpack.c.l.b16 %v2318
        %v2434 = vunpack.c.l.b16 %v2319
        %v2435 = vunpack.c.l.b16 %v2320
        %v2436 = vpack.c.b16 %v2388, %v2387
        %v2437 = vpack.c.b16 %v2390, %v2389
        %v2438 = vpack.c.b16 %v2392, %v2391
        %v2439 = vpack.c.b16 %v2394, %v2393
        %v2440 = vpack.c.b16 %v2396, %v2395
        %v2441 = vpack.c.b16 %v2398, %v2397
        %v2442 = vpack.c.b16 %v2400, %v2399
        %v2443 = vpack.c.b16 %v2402, %v2401
        %v2444 = vpack.c.b16 %v2404, %v2403
        %v2445 = vpack.c.b16 %v2406, %v2405
        %v2446 = vpack.c.b16 %v2408, %v2407
        %v2447 = vpack.c.b16 %v2410, %v2409
        %v2448 = vpack.c.b16 %v2412, %v2411
        %v2449 = vpack.c.b16 %v2414, %v2413
        %v2450 = vpack.c.b16 %v2416, %v2415
        %v2451 = vpack.c.b16 %v2418, %v2417
        %v2452 = vpack.c.b16 %v2420, %v2419
        %v2453 = vpack.c.b16 %v2422, %v2421
        %v2454 = vpack.c.b16 %v2424, %v2423
        %v2455 = vpack.c.b16 %v2426, %v2425
        %v2456 = vpack.c.b16 %v2428, %v2427
        %v2457 = vpack.c.b16 %v2430, %v2429
        %v2458 = vpack.c.b16 %v2432, %v2431
        %v2459 = vpack.c.b16 %v2434, %v2433
        %v2460 = vpack.c.b16 %v2435, %v2435
        %v2462 = vshrl.u32 %v2436, 16
        %v2464 = vrot.slane %v2462, 3
        %v2465 = vshll.u32 %v2436, 16
        %v2467 = vrot.slane %v2465, 4
        %v2468 = vor.u32 %v2464, %v2467
        %v2470 = vshrl.u32 %v2437, 16
        %v2472 = vrot.slane %v2470, 3
        %v2473 = vshll.u32 %v2437, 16
        %v2475 = vrot.slane %v2473, 4
        %v2476 = vor.u32 %v2472, %v2475
        %v2477 = vsel %vm1019, %v2468, %v2476
        %v2479 = vshrl.u32 %v2438, 16
        %v2481 = vrot.slane %v2479, 3
        %v2482 = vshll.u32 %v2438, 16
        %v2484 = vrot.slane %v2482, 4
        %v2485 = vor.u32 %v2481, %v2484
        %v2486 = vsel %vm1019, %v2476, %v2485
        %v2488 = vshrl.u32 %v2439, 16
        %v2490 = vrot.slane %v2488, 3
        %v2491 = vshll.u32 %v2439, 16
        %v2493 = vrot.slane %v2491, 4
        %v2494 = vor.u32 %v2490, %v2493
        %v2495 = vsel %vm1019, %v2485, %v2494
        %v2497 = vshrl.u32 %v2440, 16
        %v2499 = vrot.slane %v2497, 3
        %v2500 = vshll.u32 %v2440, 16
        %v2502 = vrot.slane %v2500, 4
        %v2503 = vor.u32 %v2499, %v2502
        %v2504 = vsel %vm1019, %v2494, %v2503
        %v2506 = vshrl.u32 %v2441, 16
        %v2508 = vrot.slane %v2506, 3
        %v2509 = vshll.u32 %v2441, 16
        %v2511 = vrot.slane %v2509, 4
        %v2512 = vor.u32 %v2508, %v2511
        %v2513 = vsel %vm1019, %v2503, %v2512
        %v2515 = vshrl.u32 %v2442, 16
        %v2517 = vrot.slane %v2515, 3
        %v2518 = vshll.u32 %v2442, 16
        %v2520 = vrot.slane %v2518, 4
        %v2521 = vor.u32 %v2517, %v2520
        %v2522 = vsel %vm1019, %v2512, %v2521
        %v2524 = vshrl.u32 %v2443, 16
        %v2526 = vrot.slane %v2524, 3
        %v2527 = vshll.u32 %v2443, 16
        %v2529 = vrot.slane %v2527, 4
        %v2530 = vor.u32 %v2526, %v2529
        %v2531 = vsel %vm1019, %v2521, %v2530
        %v2533 = vshrl.u32 %v2444, 16
        %v2535 = vrot.slane %v2533, 3
        %v2536 = vshll.u32 %v2444, 16
        %v2538 = vrot.slane %v2536, 4
        %v2539 = vor.u32 %v2535, %v2538
        %v2540 = vsel %vm1019, %v2530, %v2539
        %v2542 = vshrl.u32 %v2445, 16
        %v2544 = vrot.slane %v2542, 3
        %v2545 = vshll.u32 %v2445, 16
        %v2547 = vrot.slane %v2545, 4
        %v2548 = vor.u32 %v2544, %v2547
        %v2549 = vsel %vm1019, %v2539, %v2548
        %v2551 = vshrl.u32 %v2446, 16
        %v2553 = vrot.slane %v2551, 3
        %v2554 = vshll.u32 %v2446, 16
        %v2556 = vrot.slane %v2554, 4
        %v2557 = vor.u32 %v2553, %v2556
        %v2558 = vsel %vm1019, %v2548, %v2557
        %v2560 = vshrl.u32 %v2447, 16
        %v2562 = vrot.slane %v2560, 3
        %v2563 = vshll.u32 %v2447, 16
        %v2565 = vrot.slane %v2563, 4
        %v2566 = vor.u32 %v2562, %v2565
        %v2567 = vsel %vm1019, %v2557, %v2566
        %v2569 = vshrl.u32 %v2448, 16
        %v2571 = vrot.slane %v2569, 3
        %v2572 = vshll.u32 %v2448, 16
        %v2574 = vrot.slane %v2572, 4
        %v2575 = vor.u32 %v2571, %v2574
        %v2576 = vsel %vm1019, %v2566, %v2575
        %v2578 = vshrl.u32 %v2449, 16
        %v2580 = vrot.slane %v2578, 3
        %v2581 = vshll.u32 %v2449, 16
        %v2583 = vrot.slane %v2581, 4
        %v2584 = vor.u32 %v2580, %v2583
        %v2585 = vsel %vm1019, %v2575, %v2584
        %v2587 = vshrl.u32 %v2450, 16
        %v2589 = vrot.slane %v2587, 3
        %v2590 = vshll.u32 %v2450, 16
        %v2592 = vrot.slane %v2590, 4
        %v2593 = vor.u32 %v2589, %v2592
        %v2594 = vsel %vm1019, %v2584, %v2593
        %v2596 = vshrl.u32 %v2451, 16
        %v2598 = vrot.slane %v2596, 3
        %v2599 = vshll.u32 %v2451, 16
        %v2601 = vrot.slane %v2599, 4
        %v2602 = vor.u32 %v2598, %v2601
        %v2603 = vsel %vm1019, %v2593, %v2602
        %v2605 = vshrl.u32 %v2452, 16
        %v2607 = vrot.slane %v2605, 3
        %v2608 = vshll.u32 %v2452, 16
        %v2610 = vrot.slane %v2608, 4
        %v2611 = vor.u32 %v2607, %v2610
        %v2612 = vsel %vm1019, %v2602, %v2611
        %v2614 = vshrl.u32 %v2453, 16
        %v2616 = vrot.slane %v2614, 3
        %v2617 = vshll.u32 %v2453, 16
        %v2619 = vrot.slane %v2617, 4
        %v2620 = vor.u32 %v2616, %v2619
        %v2621 = vsel %vm1019, %v2611, %v2620
        %v2623 = vshrl.u32 %v2454, 16
        %v2625 = vrot.slane %v2623, 3
        %v2626 = vshll.u32 %v2454, 16
        %v2628 = vrot.slane %v2626, 4
        %v2629 = vor.u32 %v2625, %v2628
        %v2630 = vsel %vm1019, %v2620, %v2629
        %v2632 = vshrl.u32 %v2455, 16
        %v2634 = vrot.slane %v2632, 3
        %v2635 = vshll.u32 %v2455, 16
        %v2637 = vrot.slane %v2635, 4
        %v2638 = vor.u32 %v2634, %v2637
        %v2639 = vsel %vm1019, %v2629, %v2638
        %v2641 = vshrl.u32 %v2456, 16
        %v2643 = vrot.slane %v2641, 3
        %v2644 = vshll.u32 %v2456, 16
        %v2646 = vrot.slane %v2644, 4
        %v2647 = vor.u32 %v2643, %v2646
        %v2648 = vsel %vm1019, %v2638, %v2647
        %v2650 = vshrl.u32 %v2457, 16
        %v2652 = vrot.slane %v2650, 3
        %v2653 = vshll.u32 %v2457, 16
        %v2655 = vrot.slane %v2653, 4
        %v2656 = vor.u32 %v2652, %v2655
        %v2657 = vsel %vm1019, %v2647, %v2656
        %v2659 = vshrl.u32 %v2458, 16
        %v2661 = vrot.slane %v2659, 3
        %v2662 = vshll.u32 %v2458, 16
        %v2664 = vrot.slane %v2662, 4
        %v2665 = vor.u32 %v2661, %v2664
        %v2666 = vsel %vm1019, %v2656, %v2665
        %v2668 = vshrl.u32 %v2459, 16
        %v2670 = vrot.slane %v2668, 3
        %v2671 = vshll.u32 %v2459, 16
        %v2673 = vrot.slane %v2671, 4
        %v2674 = vor.u32 %v2670, %v2673
        %v2675 = vsel %vm1019, %v2665, %v2674
        %v2677 = vshrl.u32 %v2460, 16
        %v2679 = vrot.slane %v2677, 3
        %v2680 = vshll.u32 %v2460, 16
        %v2682 = vrot.slane %v2680, 4
        %v2683 = vor.u32 %v2679, %v2682
        %v2684 = vsel %vm1019, %v2674, %v2683
        %v2725 = vunpack.c.l.b16 %v2322
        %v2726 = vunpack.c.l.b16 %v2323
        %v2727 = vunpack.c.l.b16 %v2324
        %v2728 = vunpack.c.l.b16 %v2325
        %v2729 = vunpack.c.l.b16 %v2326
        %v2730 = vunpack.c.l.b16 %v2327
        %v2731 = vunpack.c.l.b16 %v2328
        %v2732 = vunpack.c.l.b16 %v2329
        %v2733 = vunpack.c.l.b16 %v2330
        %v2734 = vunpack.c.l.b16 %v2331
        %v2735 = vunpack.c.l.b16 %v2332
        %v2736 = vunpack.c.l.b16 %v2333
        %v2737 = vunpack.c.l.b16 %v2334
        %v2738 = vunpack.c.l.b16 %v2335
        %v2739 = vunpack.c.l.b16 %v2336
        %v2740 = vunpack.c.l.b16 %v2337
        %v2741 = vpack.c.b16 %v2726, %v2725
        %v2742 = vpack.c.b16 %v2728, %v2727
        %v2743 = vpack.c.b16 %v2730, %v2729
        %v2744 = vpack.c.b16 %v2732, %v2731
        %v2745 = vpack.c.b16 %v2734, %v2733
        %v2746 = vpack.c.b16 %v2736, %v2735
        %v2747 = vpack.c.b16 %v2738, %v2737
        %v2748 = vpack.c.b16 %v2740, %v2739
        %2757 = vmatprep.subr.bf16.mxu0 0
        %2758 = vmatpush1.bf16.msra.mxu0 %v2748
        %2759 = vmatprep.subr.bf16.mxu0 0
        %2760 = vmatpush1.bf16.msra.mxu0 %v2747
        %2761 = vmatprep.subr.bf16.mxu0 0
        %2762 = vmatpush1.bf16.msra.mxu0 %v2746
        %2763 = vmatprep.subr.bf16.mxu0 0
        %2764 = vmatpush1.bf16.msra.mxu0 %v2745
        %2765 = vmatprep.subr.bf16.mxu0 0
        %2766 = vmatpush1.bf16.msra.mxu0 %v2744
        %2767 = vmatprep.subr.bf16.mxu0 0
        %2768 = vmatpush1.bf16.msra.mxu0 %v2743
        %2769 = vmatprep.subr.bf16.mxu0 0
        %2770 = vmatpush1.bf16.msra.mxu0 %v2742
        %2771 = vmatprep.subr.bf16.mxu0 0
        %2772 = vmatpush1.bf16.msra.mxu0 %v2741
        %2773 = vmatprep.subr.bf16.mxu0 0
        %2774 = vmatpush2.bf16.msra.mxu0 0
        %2775 = vmatprep.subr.bf16.mxu0 0
        %2776 = vmatpush2.bf16.msra.mxu0 0
        %2777 = vmatprep.subr.bf16.mxu0 0
        %2778 = vmatpush2.bf16.msra.mxu0 0
        %2779 = vmatprep.subr.bf16.mxu0 0
        %2780 = vmatpush2.bf16.msra.mxu0 0
        %2781 = vmatprep.subr.bf16.mxu0 0
        %2782 = vmatpush2.bf16.msra.mxu0 0
        %2783 = vmatprep.subr.bf16.mxu0 0
        %2784 = vmatpush2.bf16.msra.mxu0 0
        %2785 = vmatprep.subr.bf16.mxu0 0
        %2786 = vmatpush2.bf16.msra.mxu0 0
        %2787 = vmatprep.subr.bf16.mxu0 0
        %2788 = vmatpush2.bf16.msra.mxu0 0
        %2789 = vmatprep.mubr.bf16.mxu0 0
        %2790 = vmatmul.mubr.bf16.gmra.mxu0 %v2477
        %v2791 = vpop.f32.mrf.mxu0
        %v2792 = vadd.f32 0.0, %v2791
        %v2793 = vpop.f32.mrf.mxu0
        %v2794 = vpop.f32.mrf.mxu0
        %v2795 = vadd.f32 0.0, %v2794
        %v2796 = vpop.f32.mrf.mxu0
        %2797 = vmatprep.mubr.bf16.mxu0 0
        %2798 = vmatmul.mubr.bf16.gmra.mxu0 %v2486
        %v2799 = vpop.f32.mrf.mxu0
        %v2800 = vadd.f32 0.0, %v2799
        %v2801 = vpop.f32.mrf.mxu0
        %v2802 = vpop.f32.mrf.mxu0
        %v2803 = vadd.f32 0.0, %v2802
        %v2804 = vpop.f32.mrf.mxu0
        %2805 = vmatprep.mubr.bf16.mxu0 0
        %2806 = vmatmul.mubr.bf16.gmra.mxu0 %v2495
        %v2807 = vpop.f32.mrf.mxu0
        %v2808 = vadd.f32 0.0, %v2807
        %v2809 = vpop.f32.mrf.mxu0
        %v2810 = vpop.f32.mrf.mxu0
        %v2811 = vadd.f32 0.0, %v2810
        %v2812 = vpop.f32.mrf.mxu0
        %2813 = vmatprep.mubr.bf16.mxu0 0
        %2814 = vmatmul.mubr.bf16.gmra.mxu0 %v2504
        %v2815 = vpop.f32.mrf.mxu0
        %v2816 = vadd.f32 0.0, %v2815
        %v2817 = vpop.f32.mrf.mxu0
        %v2818 = vpop.f32.mrf.mxu0
        %v2819 = vadd.f32 0.0, %v2818
        %v2820 = vpop.f32.mrf.mxu0
        %2821 = vmatprep.mubr.bf16.mxu0 0
        %2822 = vmatmul.mubr.bf16.gmra.mxu0 %v2513
        %v2823 = vpop.f32.mrf.mxu0
        %v2824 = vadd.f32 0.0, %v2823
        %v2825 = vpop.f32.mrf.mxu0
        %v2826 = vpop.f32.mrf.mxu0
        %v2827 = vadd.f32 0.0, %v2826
        %v2828 = vpop.f32.mrf.mxu0
        %2829 = vmatprep.mubr.bf16.mxu0 0
        %2830 = vmatmul.mubr.bf16.gmra.mxu0 %v2522
        %v2831 = vpop.f32.mrf.mxu0
        %v2832 = vadd.f32 0.0, %v2831
        %v2833 = vpop.f32.mrf.mxu0
        %v2834 = vpop.f32.mrf.mxu0
        %v2835 = vadd.f32 0.0, %v2834
        %v2836 = vpop.f32.mrf.mxu0
        %2837 = vmatprep.mubr.bf16.mxu0 0
        %2838 = vmatmul.mubr.bf16.gmra.mxu0 %v2531
        %v2839 = vpop.f32.mrf.mxu0
        %v2840 = vadd.f32 0.0, %v2839
        %v2841 = vpop.f32.mrf.mxu0
        %v2842 = vpop.f32.mrf.mxu0
        %v2843 = vadd.f32 0.0, %v2842
        %v2844 = vpop.f32.mrf.mxu0
        %2845 = vmatprep.mubr.bf16.mxu0 0
        %2846 = vmatmul.mubr.bf16.gmra.mxu0 %v2540
        %v2847 = vpop.f32.mrf.mxu0
        %v2848 = vadd.f32 0.0, %v2847
        %v2849 = vpop.f32.mrf.mxu0
        %v2850 = vpop.f32.mrf.mxu0
        %v2851 = vadd.f32 0.0, %v2850
        %v2852 = vpop.f32.mrf.mxu0
        %2853 = vmatprep.mubr.bf16.mxu0 0
        %2854 = vmatmul.mubr.bf16.gmra.mxu0 %v2549
        %v2855 = vpop.f32.mrf.mxu0
        %v2856 = vadd.f32 0.0, %v2855
        %v2857 = vpop.f32.mrf.mxu0
        %v2858 = vpop.f32.mrf.mxu0
        %v2859 = vadd.f32 0.0, %v2858
        %v2860 = vpop.f32.mrf.mxu0
        %2861 = vmatprep.mubr.bf16.mxu0 0
        %2862 = vmatmul.mubr.bf16.gmra.mxu0 %v2558
        %v2863 = vpop.f32.mrf.mxu0
        %v2864 = vadd.f32 0.0, %v2863
        %v2865 = vpop.f32.mrf.mxu0
        %v2866 = vpop.f32.mrf.mxu0
        %v2867 = vadd.f32 0.0, %v2866
        %v2868 = vpop.f32.mrf.mxu0
        %2869 = vmatprep.mubr.bf16.mxu0 0
        %2870 = vmatmul.mubr.bf16.gmra.mxu0 %v2567
        %v2871 = vpop.f32.mrf.mxu0
        %v2872 = vadd.f32 0.0, %v2871
        %v2873 = vpop.f32.mrf.mxu0
        %v2874 = vpop.f32.mrf.mxu0
        %v2875 = vadd.f32 0.0, %v2874
        %v2876 = vpop.f32.mrf.mxu0
        %2877 = vmatprep.mubr.bf16.mxu0 0
        %2878 = vmatmul.mubr.bf16.gmra.mxu0 %v2576
        %v2879 = vpop.f32.mrf.mxu0
        %v2880 = vadd.f32 0.0, %v2879
        %v2881 = vpop.f32.mrf.mxu0
        %v2882 = vpop.f32.mrf.mxu0
        %v2883 = vadd.f32 0.0, %v2882
        %v2884 = vpop.f32.mrf.mxu0
        %2885 = vmatprep.mubr.bf16.mxu0 0
        %2886 = vmatmul.mubr.bf16.gmra.mxu0 %v2585
        %v2887 = vpop.f32.mrf.mxu0
        %v2888 = vadd.f32 0.0, %v2887
        %v2889 = vpop.f32.mrf.mxu0
        %v2890 = vpop.f32.mrf.mxu0
        %v2891 = vadd.f32 0.0, %v2890
        %v2892 = vpop.f32.mrf.mxu0
        %2893 = vmatprep.mubr.bf16.mxu0 0
        %2894 = vmatmul.mubr.bf16.gmra.mxu0 %v2594
        %v2895 = vpop.f32.mrf.mxu0
        %v2896 = vadd.f32 0.0, %v2895
        %v2897 = vpop.f32.mrf.mxu0
        %v2898 = vpop.f32.mrf.mxu0
        %v2899 = vadd.f32 0.0, %v2898
        %v2900 = vpop.f32.mrf.mxu0
        %2901 = vmatprep.mubr.bf16.mxu0 0
        %2902 = vmatmul.mubr.bf16.gmra.mxu0 %v2603
        %v2903 = vpop.f32.mrf.mxu0
        %v2904 = vadd.f32 0.0, %v2903
        %v2905 = vpop.f32.mrf.mxu0
        %v2906 = vpop.f32.mrf.mxu0
        %v2907 = vadd.f32 0.0, %v2906
        %v2908 = vpop.f32.mrf.mxu0
        %2909 = vmatprep.mubr.bf16.mxu0 0
        %2910 = vmatmul.mubr.bf16.gmra.mxu0 %v2612
        %v2911 = vpop.f32.mrf.mxu0
        %v2912 = vadd.f32 0.0, %v2911
        %v2913 = vpop.f32.mrf.mxu0
        %v2914 = vpop.f32.mrf.mxu0
        %v2915 = vadd.f32 0.0, %v2914
        %v2916 = vpop.f32.mrf.mxu0
        %2917 = vmatprep.mubr.bf16.mxu0 0
        %2918 = vmatmul.mubr.bf16.gmra.mxu0 %v2621
        %v2919 = vpop.f32.mrf.mxu0
        %v2920 = vadd.f32 0.0, %v2919
        %v2921 = vpop.f32.mrf.mxu0
        %v2922 = vpop.f32.mrf.mxu0
        %v2923 = vadd.f32 0.0, %v2922
        %v2924 = vpop.f32.mrf.mxu0
        %2925 = vmatprep.mubr.bf16.mxu0 0
        %2926 = vmatmul.mubr.bf16.gmra.mxu0 %v2630
        %v2927 = vpop.f32.mrf.mxu0
        %v2928 = vadd.f32 0.0, %v2927
        %v2929 = vpop.f32.mrf.mxu0
        %v2930 = vpop.f32.mrf.mxu0
        %v2931 = vadd.f32 0.0, %v2930
        %v2932 = vpop.f32.mrf.mxu0
        %2933 = vmatprep.mubr.bf16.mxu0 0
        %2934 = vmatmul.mubr.bf16.gmra.mxu0 %v2639
        %v2935 = vpop.f32.mrf.mxu0
        %v2936 = vadd.f32 0.0, %v2935
        %v2937 = vpop.f32.mrf.mxu0
        %v2938 = vpop.f32.mrf.mxu0
        %v2939 = vadd.f32 0.0, %v2938
        %v2940 = vpop.f32.mrf.mxu0
        %2941 = vmatprep.mubr.bf16.mxu0 0
        %2942 = vmatmul.mubr.bf16.gmra.mxu0 %v2648
        %v2943 = vpop.f32.mrf.mxu0
        %v2944 = vadd.f32 0.0, %v2943
        %v2945 = vpop.f32.mrf.mxu0
        %v2946 = vpop.f32.mrf.mxu0
        %v2947 = vadd.f32 0.0, %v2946
        %v2948 = vpop.f32.mrf.mxu0
        %2949 = vmatprep.mubr.bf16.mxu0 0
        %2950 = vmatmul.mubr.bf16.gmra.mxu0 %v2657
        %v2951 = vpop.f32.mrf.mxu0
        %v2952 = vadd.f32 0.0, %v2951
        %v2953 = vpop.f32.mrf.mxu0
        %v2954 = vpop.f32.mrf.mxu0
        %v2955 = vadd.f32 0.0, %v2954
        %v2956 = vpop.f32.mrf.mxu0
        %2957 = vmatprep.mubr.bf16.mxu0 0
        %2958 = vmatmul.mubr.bf16.gmra.mxu0 %v2666
        %v2959 = vpop.f32.mrf.mxu0
        %v2960 = vadd.f32 0.0, %v2959
        %v2961 = vpop.f32.mrf.mxu0
        %v2962 = vpop.f32.mrf.mxu0
        %v2963 = vadd.f32 0.0, %v2962
        %v2964 = vpop.f32.mrf.mxu0
        %2965 = vmatprep.mubr.bf16.mxu0 0
        %2966 = vmatmul.mubr.bf16.gmra.mxu0 %v2675
        %v2967 = vpop.f32.mrf.mxu0
        %v2968 = vadd.f32 0.0, %v2967
        %v2969 = vpop.f32.mrf.mxu0
        %v2970 = vpop.f32.mrf.mxu0
        %v2971 = vadd.f32 0.0, %v2970
        %v2972 = vpop.f32.mrf.mxu0
        %2973 = vmatprep.mubr.bf16.mxu0 0
        %2974 = vmatmul.mubr.bf16.gmra.mxu0 %v2684
        %v2975 = vpop.f32.mrf.mxu0
        %v2976 = vadd.f32 0.0, %v2975
        %v2977 = vpop.f32.mrf.mxu0
        %v2978 = vpop.f32.mrf.mxu0
        %v2979 = vadd.f32 0.0, %v2978
        %v2980 = vpop.f32.mrf.mxu0
        %2981 = vdwg.mxu0
        %v2982 = vadd.f32 %v2224, %v2792
        %v2983 = vadd.f32 %v2225, %v2795
        %v2984 = vadd.f32 %v2226, %v2800
        %v2985 = vadd.f32 %v2227, %v2803
        %v2986 = vadd.f32 %v2228, %v2808
        %v2987 = vadd.f32 %v2229, %v2811
        %v2988 = vadd.f32 %v2230, %v2816
        %v2989 = vadd.f32 %v2231, %v2819
        %v2990 = vadd.f32 %v2232, %v2824
        %v2991 = vadd.f32 %v2233, %v2827
        %v2992 = vadd.f32 %v2234, %v2832
        %v2993 = vadd.f32 %v2235, %v2835
        %v2994 = vadd.f32 %v2236, %v2840
        %v2995 = vadd.f32 %v2237, %v2843
        %v2996 = vadd.f32 %v2238, %v2848
        %v2997 = vadd.f32 %v2239, %v2851
        %v2998 = vadd.f32 %v2240, %v2856
        %v2999 = vadd.f32 %v2241, %v2859
        %v3000 = vadd.f32 %v2242, %v2864
        %v3001 = vadd.f32 %v2243, %v2867
        %v3002 = vadd.f32 %v2244, %v2872
        %v3003 = vadd.f32 %v2245, %v2875
        %v3004 = vadd.f32 %v2246, %v2880
        %v3005 = vadd.f32 %v2247, %v2883
        %v3006 = vadd.f32 %v2248, %v2888
        %v3007 = vadd.f32 %v2249, %v2891
        %v3008 = vadd.f32 %v2250, %v2896
        %v3009 = vadd.f32 %v2251, %v2899
        %v3010 = vadd.f32 %v2252, %v2904
        %v3011 = vadd.f32 %v2253, %v2907
        %v3012 = vadd.f32 %v2254, %v2912
        %v3013 = vadd.f32 %v2255, %v2915
        %v3014 = vadd.f32 %v2256, %v2920
        %v3015 = vadd.f32 %v2257, %v2923
        %v3016 = vadd.f32 %v2258, %v2928
        %v3017 = vadd.f32 %v2259, %v2931
        %v3018 = vadd.f32 %v2260, %v2936
        %v3019 = vadd.f32 %v2261, %v2939
        %v3020 = vadd.f32 %v2262, %v2944
        %v3021 = vadd.f32 %v2263, %v2947
        %v3022 = vadd.f32 %v2264, %v2952
        %v3023 = vadd.f32 %v2265, %v2955
        %v3024 = vadd.f32 %v2266, %v2960
        %v3025 = vadd.f32 %v2267, %v2963
        %v3026 = vadd.f32 %v2268, %v2968
        %v3027 = vadd.f32 %v2269, %v2971
        %v3028 = vadd.f32 %v2270, %v2976
        %v3029 = vadd.f32 %v2271, %v2979
        %s3030 = scalar_lea.vmem %s1, 256
        %v3031 = vld [vmem:[%s3030] sm:$0xf]
        %v3032 = vld [vmem:[%s3030 + $0x4] sm:$0xf]
        %v3033 = vld [vmem:[%s3030 + $0x8] sm:$0xf]
        %v3034 = vld [vmem:[%s3030 + $0xc] sm:$0xf]
        %v3035 = vld [vmem:[%s3030 + $0x10] sm:$0xf]
        %v3036 = vld [vmem:[%s3030 + $0x14] sm:$0xf]
        %v3037 = vld [vmem:[%s3030 + $0x18] sm:$0xf]
        %v3038 = vld [vmem:[%s3030 + $0x1c] sm:$0xf]
        %v3039 = vld [vmem:[%s3030 + $0x20] sm:$0xf]
        %v3040 = vld [vmem:[%s3030 + $0x24] sm:$0xf]
        %v3041 = vld [vmem:[%s3030 + $0x28] sm:$0xf]
        %v3042 = vld [vmem:[%s3030 + $0x2c] sm:$0xf]
        %v3043 = vld [vmem:[%s3030 + $0x30] sm:$0xf]
        %v3044 = vld [vmem:[%s3030 + $0x34] sm:$0xf]
        %v3045 = vld [vmem:[%s3030 + $0x38] sm:$0xf]
        %v3046 = vld [vmem:[%s3030 + $0x3c] sm:$0xf]
        %v3047 = vpack.c.b16 %v2389, %v2388
        %v3048 = vpack.c.b16 %v2391, %v2390
        %v3049 = vpack.c.b16 %v2393, %v2392
        %v3050 = vpack.c.b16 %v2395, %v2394
        %v3051 = vpack.c.b16 %v2397, %v2396
        %v3052 = vpack.c.b16 %v2399, %v2398
        %v3053 = vpack.c.b16 %v2401, %v2400
        %v3054 = vpack.c.b16 %v2403, %v2402
        %v3055 = vpack.c.b16 %v2405, %v2404
        %v3056 = vpack.c.b16 %v2407, %v2406
        %v3057 = vpack.c.b16 %v2409, %v2408
        %v3058 = vpack.c.b16 %v2411, %v2410
        %v3059 = vpack.c.b16 %v2413, %v2412
        %v3060 = vpack.c.b16 %v2415, %v2414
        %v3061 = vpack.c.b16 %v2417, %v2416
        %v3062 = vpack.c.b16 %v2419, %v2418
        %v3063 = vpack.c.b16 %v2421, %v2420
        %v3064 = vpack.c.b16 %v2423, %v2422
        %v3065 = vpack.c.b16 %v2425, %v2424
        %v3066 = vpack.c.b16 %v2427, %v2426
        %v3067 = vpack.c.b16 %v2429, %v2428
        %v3068 = vpack.c.b16 %v2431, %v2430
        %v3069 = vpack.c.b16 %v2433, %v2432
        %v3070 = vpack.c.b16 %v2435, %v2434
        %v3111 = vunpack.c.l.b16 %v3031
        %v3112 = vunpack.c.l.b16 %v3032
        %v3113 = vunpack.c.l.b16 %v3033
        %v3114 = vunpack.c.l.b16 %v3034
        %v3115 = vunpack.c.l.b16 %v3035
        %v3116 = vunpack.c.l.b16 %v3036
        %v3117 = vunpack.c.l.b16 %v3037
        %v3118 = vunpack.c.l.b16 %v3038
        %v3119 = vunpack.c.l.b16 %v3039
        %v3120 = vunpack.c.l.b16 %v3040
        %v3121 = vunpack.c.l.b16 %v3041
        %v3122 = vunpack.c.l.b16 %v3042
        %v3123 = vunpack.c.l.b16 %v3043
        %v3124 = vunpack.c.l.b16 %v3044
        %v3125 = vunpack.c.l.b16 %v3045
        %v3126 = vunpack.c.l.b16 %v3046
        %v3127 = vpack.c.b16 %v3112, %v3111
        %v3128 = vpack.c.b16 %v3114, %v3113
        %v3129 = vpack.c.b16 %v3116, %v3115
        %v3130 = vpack.c.b16 %v3118, %v3117
        %v3131 = vpack.c.b16 %v3120, %v3119
        %v3132 = vpack.c.b16 %v3122, %v3121
        %v3133 = vpack.c.b16 %v3124, %v3123
        %v3134 = vpack.c.b16 %v3126, %v3125
        %3143 = vmatprep.subr.bf16.mxu0 0
        %3144 = vmatpush1.bf16.msra.mxu0 %v3134
        %3145 = vmatprep.subr.bf16.mxu0 0
        %3146 = vmatpush1.bf16.msra.mxu0 %v3133
        %3147 = vmatprep.subr.bf16.mxu0 0
        %3148 = vmatpush1.bf16.msra.mxu0 %v3132
        %3149 = vmatprep.subr.bf16.mxu0 0
        %3150 = vmatpush1.bf16.msra.mxu0 %v3131
        %3151 = vmatprep.subr.bf16.mxu0 0
        %3152 = vmatpush1.bf16.msra.mxu0 %v3130
        %3153 = vmatprep.subr.bf16.mxu0 0
        %3154 = vmatpush1.bf16.msra.mxu0 %v3129
        %3155 = vmatprep.subr.bf16.mxu0 0
        %3156 = vmatpush1.bf16.msra.mxu0 %v3128
        %3157 = vmatprep.subr.bf16.mxu0 0
        %3158 = vmatpush1.bf16.msra.mxu0 %v3127
        %3159 = vmatprep.subr.bf16.mxu0 0
        %3160 = vmatpush2.bf16.msra.mxu0 0
        %3161 = vmatprep.subr.bf16.mxu0 0
        %3162 = vmatpush2.bf16.msra.mxu0 0
        %3163 = vmatprep.subr.bf16.mxu0 0
        %3164 = vmatpush2.bf16.msra.mxu0 0
        %3165 = vmatprep.subr.bf16.mxu0 0
        %3166 = vmatpush2.bf16.msra.mxu0 0
        %3167 = vmatprep.subr.bf16.mxu0 0
        %3168 = vmatpush2.bf16.msra.mxu0 0
        %3169 = vmatprep.subr.bf16.mxu0 0
        %3170 = vmatpush2.bf16.msra.mxu0 0
        %3171 = vmatprep.subr.bf16.mxu0 0
        %3172 = vmatpush2.bf16.msra.mxu0 0
        %3173 = vmatprep.subr.bf16.mxu0 0
        %3174 = vmatpush2.bf16.msra.mxu0 0
        %3175 = vmatprep.mubr.bf16.mxu0 0
        %3176 = vmatmul.mubr.bf16.gmra.mxu0 %v3047
        %v3177 = vpop.f32.mrf.mxu0
        %v3178 = vadd.f32 0.0, %v3177
        %v3179 = vpop.f32.mrf.mxu0
        %v3180 = vpop.f32.mrf.mxu0
        %v3181 = vadd.f32 0.0, %v3180
        %v3182 = vpop.f32.mrf.mxu0
        %3183 = vmatprep.mubr.bf16.mxu0 0
        %3184 = vmatmul.mubr.bf16.gmra.mxu0 %v3048
        %v3185 = vpop.f32.mrf.mxu0
        %v3186 = vadd.f32 0.0, %v3185
        %v3187 = vpop.f32.mrf.mxu0
        %v3188 = vpop.f32.mrf.mxu0
        %v3189 = vadd.f32 0.0, %v3188
        %v3190 = vpop.f32.mrf.mxu0
        %3191 = vmatprep.mubr.bf16.mxu0 0
        %3192 = vmatmul.mubr.bf16.gmra.mxu0 %v3049
        %v3193 = vpop.f32.mrf.mxu0
        %v3194 = vadd.f32 0.0, %v3193
        %v3195 = vpop.f32.mrf.mxu0
        %v3196 = vpop.f32.mrf.mxu0
        %v3197 = vadd.f32 0.0, %v3196
        %v3198 = vpop.f32.mrf.mxu0
        %3199 = vmatprep.mubr.bf16.mxu0 0
        %3200 = vmatmul.mubr.bf16.gmra.mxu0 %v3050
        %v3201 = vpop.f32.mrf.mxu0
        %v3202 = vadd.f32 0.0, %v3201
        %v3203 = vpop.f32.mrf.mxu0
        %v3204 = vpop.f32.mrf.mxu0
        %v3205 = vadd.f32 0.0, %v3204
        %v3206 = vpop.f32.mrf.mxu0
        %3207 = vmatprep.mubr.bf16.mxu0 0
        %3208 = vmatmul.mubr.bf16.gmra.mxu0 %v3051
        %v3209 = vpop.f32.mrf.mxu0
        %v3210 = vadd.f32 0.0, %v3209
        %v3211 = vpop.f32.mrf.mxu0
        %v3212 = vpop.f32.mrf.mxu0
        %v3213 = vadd.f32 0.0, %v3212
        %v3214 = vpop.f32.mrf.mxu0
        %3215 = vmatprep.mubr.bf16.mxu0 0
        %3216 = vmatmul.mubr.bf16.gmra.mxu0 %v3052
        %v3217 = vpop.f32.mrf.mxu0
        %v3218 = vadd.f32 0.0, %v3217
        %v3219 = vpop.f32.mrf.mxu0
        %v3220 = vpop.f32.mrf.mxu0
        %v3221 = vadd.f32 0.0, %v3220
        %v3222 = vpop.f32.mrf.mxu0
        %3223 = vmatprep.mubr.bf16.mxu0 0
        %3224 = vmatmul.mubr.bf16.gmra.mxu0 %v3053
        %v3225 = vpop.f32.mrf.mxu0
        %v3226 = vadd.f32 0.0, %v3225
        %v3227 = vpop.f32.mrf.mxu0
        %v3228 = vpop.f32.mrf.mxu0
        %v3229 = vadd.f32 0.0, %v3228
        %v3230 = vpop.f32.mrf.mxu0
        %3231 = vmatprep.mubr.bf16.mxu0 0
        %3232 = vmatmul.mubr.bf16.gmra.mxu0 %v3054
        %v3233 = vpop.f32.mrf.mxu0
        %v3234 = vadd.f32 0.0, %v3233
        %v3235 = vpop.f32.mrf.mxu0
        %v3236 = vpop.f32.mrf.mxu0
        %v3237 = vadd.f32 0.0, %v3236
        %v3238 = vpop.f32.mrf.mxu0
        %3239 = vmatprep.mubr.bf16.mxu0 0
        %3240 = vmatmul.mubr.bf16.gmra.mxu0 %v3055
        %v3241 = vpop.f32.mrf.mxu0
        %v3242 = vadd.f32 0.0, %v3241
        %v3243 = vpop.f32.mrf.mxu0
        %v3244 = vpop.f32.mrf.mxu0
        %v3245 = vadd.f32 0.0, %v3244
        %v3246 = vpop.f32.mrf.mxu0
        %3247 = vmatprep.mubr.bf16.mxu0 0
        %3248 = vmatmul.mubr.bf16.gmra.mxu0 %v3056
        %v3249 = vpop.f32.mrf.mxu0
        %v3250 = vadd.f32 0.0, %v3249
        %v3251 = vpop.f32.mrf.mxu0
        %v3252 = vpop.f32.mrf.mxu0
        %v3253 = vadd.f32 0.0, %v3252
        %v3254 = vpop.f32.mrf.mxu0
        %3255 = vmatprep.mubr.bf16.mxu0 0
        %3256 = vmatmul.mubr.bf16.gmra.mxu0 %v3057
        %v3257 = vpop.f32.mrf.mxu0
        %v3258 = vadd.f32 0.0, %v3257
        %v3259 = vpop.f32.mrf.mxu0
        %v3260 = vpop.f32.mrf.mxu0
        %v3261 = vadd.f32 0.0, %v3260
        %v3262 = vpop.f32.mrf.mxu0
        %3263 = vmatprep.mubr.bf16.mxu0 0
        %3264 = vmatmul.mubr.bf16.gmra.mxu0 %v3058
        %v3265 = vpop.f32.mrf.mxu0
        %v3266 = vadd.f32 0.0, %v3265
        %v3267 = vpop.f32.mrf.mxu0
        %v3268 = vpop.f32.mrf.mxu0
        %v3269 = vadd.f32 0.0, %v3268
        %v3270 = vpop.f32.mrf.mxu0
        %3271 = vmatprep.mubr.bf16.mxu0 0
        %3272 = vmatmul.mubr.bf16.gmra.mxu0 %v3059
        %v3273 = vpop.f32.mrf.mxu0
        %v3274 = vadd.f32 0.0, %v3273
        %v3275 = vpop.f32.mrf.mxu0
        %v3276 = vpop.f32.mrf.mxu0
        %v3277 = vadd.f32 0.0, %v3276
        %v3278 = vpop.f32.mrf.mxu0
        %3279 = vmatprep.mubr.bf16.mxu0 0
        %3280 = vmatmul.mubr.bf16.gmra.mxu0 %v3060
        %v3281 = vpop.f32.mrf.mxu0
        %v3282 = vadd.f32 0.0, %v3281
        %v3283 = vpop.f32.mrf.mxu0
        %v3284 = vpop.f32.mrf.mxu0
        %v3285 = vadd.f32 0.0, %v3284
        %v3286 = vpop.f32.mrf.mxu0
        %3287 = vmatprep.mubr.bf16.mxu0 0
        %3288 = vmatmul.mubr.bf16.gmra.mxu0 %v3061
        %v3289 = vpop.f32.mrf.mxu0
        %v3290 = vadd.f32 0.0, %v3289
        %v3291 = vpop.f32.mrf.mxu0
        %v3292 = vpop.f32.mrf.mxu0
        %v3293 = vadd.f32 0.0, %v3292
        %v3294 = vpop.f32.mrf.mxu0
        %3295 = vmatprep.mubr.bf16.mxu0 0
        %3296 = vmatmul.mubr.bf16.gmra.mxu0 %v3062
        %v3297 = vpop.f32.mrf.mxu0
        %v3298 = vadd.f32 0.0, %v3297
        %v3299 = vpop.f32.mrf.mxu0
        %v3300 = vpop.f32.mrf.mxu0
        %v3301 = vadd.f32 0.0, %v3300
        %v3302 = vpop.f32.mrf.mxu0
        %3303 = vmatprep.mubr.bf16.mxu0 0
        %3304 = vmatmul.mubr.bf16.gmra.mxu0 %v3063
        %v3305 = vpop.f32.mrf.mxu0
        %v3306 = vadd.f32 0.0, %v3305
        %v3307 = vpop.f32.mrf.mxu0
        %v3308 = vpop.f32.mrf.mxu0
        %v3309 = vadd.f32 0.0, %v3308
        %v3310 = vpop.f32.mrf.mxu0
        %3311 = vmatprep.mubr.bf16.mxu0 0
        %3312 = vmatmul.mubr.bf16.gmra.mxu0 %v3064
        %v3313 = vpop.f32.mrf.mxu0
        %v3314 = vadd.f32 0.0, %v3313
        %v3315 = vpop.f32.mrf.mxu0
        %v3316 = vpop.f32.mrf.mxu0
        %v3317 = vadd.f32 0.0, %v3316
        %v3318 = vpop.f32.mrf.mxu0
        %3319 = vmatprep.mubr.bf16.mxu0 0
        %3320 = vmatmul.mubr.bf16.gmra.mxu0 %v3065
        %v3321 = vpop.f32.mrf.mxu0
        %v3322 = vadd.f32 0.0, %v3321
        %v3323 = vpop.f32.mrf.mxu0
        %v3324 = vpop.f32.mrf.mxu0
        %v3325 = vadd.f32 0.0, %v3324
        %v3326 = vpop.f32.mrf.mxu0
        %3327 = vmatprep.mubr.bf16.mxu0 0
        %3328 = vmatmul.mubr.bf16.gmra.mxu0 %v3066
        %v3329 = vpop.f32.mrf.mxu0
        %v3330 = vadd.f32 0.0, %v3329
        %v3331 = vpop.f32.mrf.mxu0
        %v3332 = vpop.f32.mrf.mxu0
        %v3333 = vadd.f32 0.0, %v3332
        %v3334 = vpop.f32.mrf.mxu0
        %3335 = vmatprep.mubr.bf16.mxu0 0
        %3336 = vmatmul.mubr.bf16.gmra.mxu0 %v3067
        %v3337 = vpop.f32.mrf.mxu0
        %v3338 = vadd.f32 0.0, %v3337
        %v3339 = vpop.f32.mrf.mxu0
        %v3340 = vpop.f32.mrf.mxu0
        %v3341 = vadd.f32 0.0, %v3340
        %v3342 = vpop.f32.mrf.mxu0
        %3343 = vmatprep.mubr.bf16.mxu0 0
        %3344 = vmatmul.mubr.bf16.gmra.mxu0 %v3068
        %v3345 = vpop.f32.mrf.mxu0
        %v3346 = vadd.f32 0.0, %v3345
        %v3347 = vpop.f32.mrf.mxu0
        %v3348 = vpop.f32.mrf.mxu0
        %v3349 = vadd.f32 0.0, %v3348
        %v3350 = vpop.f32.mrf.mxu0
        %3351 = vmatprep.mubr.bf16.mxu0 0
        %3352 = vmatmul.mubr.bf16.gmra.mxu0 %v3069
        %v3353 = vpop.f32.mrf.mxu0
        %v3354 = vadd.f32 0.0, %v3353
        %v3355 = vpop.f32.mrf.mxu0
        %v3356 = vpop.f32.mrf.mxu0
        %v3357 = vadd.f32 0.0, %v3356
        %v3358 = vpop.f32.mrf.mxu0
        %3359 = vmatprep.mubr.bf16.mxu0 0
        %3360 = vmatmul.mubr.bf16.gmra.mxu0 %v3070
        %v3361 = vpop.f32.mrf.mxu0
        %v3362 = vadd.f32 0.0, %v3361
        %v3363 = vpop.f32.mrf.mxu0
        %v3364 = vpop.f32.mrf.mxu0
        %v3365 = vadd.f32 0.0, %v3364
        %v3366 = vpop.f32.mrf.mxu0
        %3367 = vdwg.mxu0
        %v3368 = vadd.f32 %v2982, %v3178
        %v3369 = vadd.f32 %v2983, %v3181
        %v3370 = vadd.f32 %v2984, %v3186
        %v3371 = vadd.f32 %v2985, %v3189
        %v3372 = vadd.f32 %v2986, %v3194
        %v3373 = vadd.f32 %v2987, %v3197
        %v3374 = vadd.f32 %v2988, %v3202
        %v3375 = vadd.f32 %v2989, %v3205
        %v3376 = vadd.f32 %v2990, %v3210
        %v3377 = vadd.f32 %v2991, %v3213
        %v3378 = vadd.f32 %v2992, %v3218
        %v3379 = vadd.f32 %v2993, %v3221
        %v3380 = vadd.f32 %v2994, %v3226
        %v3381 = vadd.f32 %v2995, %v3229
        %v3382 = vadd.f32 %v2996, %v3234
        %v3383 = vadd.f32 %v2997, %v3237
        %v3384 = vadd.f32 %v2998, %v3242
        %v3385 = vadd.f32 %v2999, %v3245
        %v3386 = vadd.f32 %v3000, %v3250
        %v3387 = vadd.f32 %v3001, %v3253
        %v3388 = vadd.f32 %v3002, %v3258
        %v3389 = vadd.f32 %v3003, %v3261
        %v3390 = vadd.f32 %v3004, %v3266
        %v3391 = vadd.f32 %v3005, %v3269
        %v3392 = vadd.f32 %v3006, %v3274
        %v3393 = vadd.f32 %v3007, %v3277
        %v3394 = vadd.f32 %v3008, %v3282
        %v3395 = vadd.f32 %v3009, %v3285
        %v3396 = vadd.f32 %v3010, %v3290
        %v3397 = vadd.f32 %v3011, %v3293
        %v3398 = vadd.f32 %v3012, %v3298
        %v3399 = vadd.f32 %v3013, %v3301
        %v3400 = vadd.f32 %v3014, %v3306
        %v3401 = vadd.f32 %v3015, %v3309
        %v3402 = vadd.f32 %v3016, %v3314
        %v3403 = vadd.f32 %v3017, %v3317
        %v3404 = vadd.f32 %v3018, %v3322
        %v3405 = vadd.f32 %v3019, %v3325
        %v3406 = vadd.f32 %v3020, %v3330
        %v3407 = vadd.f32 %v3021, %v3333
        %v3408 = vadd.f32 %v3022, %v3338
        %v3409 = vadd.f32 %v3023, %v3341
        %v3410 = vadd.f32 %v3024, %v3346
        %v3411 = vadd.f32 %v3025, %v3349
        %v3412 = vadd.f32 %v3026, %v3354
        %v3413 = vadd.f32 %v3027, %v3357
        %v3414 = vadd.f32 %v3028, %v3362
        %v3415 = vadd.f32 %v3029, %v3365
        %v3416 = vld [vmem:[#allocation2 + $0x10] sm:$0xf]
        %v3417 = vld [vmem:[#allocation2 + $0x14] sm:$0xf]
        %v3418 = vld [vmem:[#allocation2 + $0x18] sm:$0xf]
        %v3419 = vld [vmem:[#allocation2 + $0x1c] sm:$0xf]
        %v3420 = vld [vmem:[#allocation2 + $0x20] sm:$0xf]
        %v3421 = vld [vmem:[#allocation2 + $0x24] sm:$0xf]
        %v3422 = vld [vmem:[#allocation2 + $0x28] sm:$0xf]
        %v3423 = vld [vmem:[#allocation2 + $0x2c] sm:$0xf]
        %v3424 = vld [vmem:[#allocation2 + $0x30] sm:$0xf]
        %v3425 = vld [vmem:[#allocation2 + $0x34] sm:$0xf]
        %v3426 = vld [vmem:[#allocation2 + $0x38] sm:$0xf]
        %v3427 = vld [vmem:[#allocation2 + $0x3c] sm:$0xf]
        %v3428 = vld [vmem:[#allocation2 + $0x40] sm:$0xf]
        %v3429 = vld [vmem:[#allocation2 + $0x44] sm:$0xf]
        %v3430 = vld [vmem:[#allocation2 + $0x48] sm:$0xf]
        %v3431 = vld [vmem:[#allocation2 + $0x4c] sm:$0xf]
        %v3432 = vld [vmem:[#allocation2 + $0x50] sm:$0xf]
        %v3433 = vld [vmem:[#allocation2 + $0x54] sm:$0xf]
        %v3434 = vld [vmem:[#allocation2 + $0x58] sm:$0xf]
        %v3435 = vld [vmem:[#allocation2 + $0x5c] sm:$0xf]
        %v3436 = vld [vmem:[#allocation2 + $0x60] sm:$0xf]
        %v3437 = vld [vmem:[#allocation2 + $0x64] sm:$0xf]
        %v3438 = vld [vmem:[#allocation2 + $0x68] sm:$0xf]
        %v3439 = vld [vmem:[#allocation2 + $0x6c] sm:$0xf]
        %v3440 = vld [vmem:[#allocation2 + $0x70] sm:$0xf]
        %v3441 = vld [vmem:[#allocation2 + $0x74] sm:$0xf]
        %v3442 = vld [vmem:[#allocation2 + $0x78] sm:$0xf]
        %v3443 = vld [vmem:[#allocation2 + $0x7c] sm:$0xf]
        %v3444 = vld [vmem:[#allocation2 + $0x80] sm:$0xf]
        %v3445 = vld [vmem:[#allocation2 + $0x84] sm:$0xf]
        %v3446 = vld [vmem:[#allocation2 + $0x88] sm:$0xf]
        %v3447 = vld [vmem:[#allocation2 + $0x8c] sm:$0xf]
        %v3448 = vld [vmem:[#allocation2 + $0x90] sm:$0xf]
        %v3449 = vld [vmem:[#allocation2 + $0x94] sm:$0xf]
        %v3450 = vld [vmem:[#allocation2 + $0x98] sm:$0xf]
        %v3451 = vld [vmem:[#allocation2 + $0x9c] sm:$0xf]
        %v3452 = vld [vmem:[#allocation2 + $0xa0] sm:$0xf]
        %v3453 = vld [vmem:[#allocation2 + $0xa4] sm:$0xf]
        %v3454 = vld [vmem:[#allocation2 + $0xa8] sm:$0xf]
        %v3455 = vld [vmem:[#allocation2 + $0xac] sm:$0xf]
        %v3456 = vld [vmem:[#allocation2 + $0xb0] sm:$0xf]
        %v3457 = vld [vmem:[#allocation2 + $0xb4] sm:$0xf]
        %v3458 = vld [vmem:[#allocation2 + $0xb8] sm:$0xf]
        %v3459 = vld [vmem:[#allocation2 + $0xbc] sm:$0xf]
        %v3460 = vld [vmem:[#allocation2 + $0xc0] sm:$0xf]
        %v3461 = vld [vmem:[#allocation2 + $0xc4] sm:$0xf]
        %v3462 = vld [vmem:[#allocation2 + $0xc8] sm:$0xf]
        %v3463 = vld [vmem:[#allocation2 + $0xcc] sm:$0xf]
        %v3464 = vld [vmem:[#allocation2 + $0xd0] sm:$0x1]
        %s3465 = scalar_lea.vmem %s1, 320
        %v3466 = vld [vmem:[%s3465] sm:$0xf]
        %v3467 = vld [vmem:[%s3465 + $0x4] sm:$0xf]
        %v3468 = vld [vmem:[%s3465 + $0x8] sm:$0xf]
        %v3469 = vld [vmem:[%s3465 + $0xc] sm:$0xf]
        %v3470 = vld [vmem:[%s3465 + $0x10] sm:$0xf]
        %v3471 = vld [vmem:[%s3465 + $0x14] sm:$0xf]
        %v3472 = vld [vmem:[%s3465 + $0x18] sm:$0xf]
        %v3473 = vld [vmem:[%s3465 + $0x1c] sm:$0xf]
        %v3474 = vld [vmem:[%s3465 + $0x20] sm:$0xf]
        %v3475 = vld [vmem:[%s3465 + $0x24] sm:$0xf]
        %v3476 = vld [vmem:[%s3465 + $0x28] sm:$0xf]
        %v3477 = vld [vmem:[%s3465 + $0x2c] sm:$0xf]
        %v3478 = vld [vmem:[%s3465 + $0x30] sm:$0xf]
        %v3479 = vld [vmem:[%s3465 + $0x34] sm:$0xf]
        %v3480 = vld [vmem:[%s3465 + $0x38] sm:$0xf]
        %v3481 = vld [vmem:[%s3465 + $0x3c] sm:$0xf]
        %v3531 = vunpack.c.l.b16 %v3416
        %v3532 = vunpack.c.l.b16 %v3417
        %v3533 = vunpack.c.l.b16 %v3418
        %v3534 = vunpack.c.l.b16 %v3419
        %v3535 = vunpack.c.l.b16 %v3420
        %v3536 = vunpack.c.l.b16 %v3421
        %v3537 = vunpack.c.l.b16 %v3422
        %v3538 = vunpack.c.l.b16 %v3423
        %v3539 = vunpack.c.l.b16 %v3424
        %v3540 = vunpack.c.l.b16 %v3425
        %v3541 = vunpack.c.l.b16 %v3426
        %v3542 = vunpack.c.l.b16 %v3427
        %v3543 = vunpack.c.l.b16 %v3428
        %v3544 = vunpack.c.l.b16 %v3429
        %v3545 = vunpack.c.l.b16 %v3430
        %v3546 = vunpack.c.l.b16 %v3431
        %v3547 = vunpack.c.l.b16 %v3432
        %v3548 = vunpack.c.l.b16 %v3433
        %v3549 = vunpack.c.l.b16 %v3434
        %v3550 = vunpack.c.l.b16 %v3435
        %v3551 = vunpack.c.l.b16 %v3436
        %v3552 = vunpack.c.l.b16 %v3437
        %v3553 = vunpack.c.l.b16 %v3438
        %v3554 = vunpack.c.l.b16 %v3439
        %v3555 = vunpack.c.l.b16 %v3440
        %v3556 = vunpack.c.l.b16 %v3441
        %v3557 = vunpack.c.l.b16 %v3442
        %v3558 = vunpack.c.l.b16 %v3443
        %v3559 = vunpack.c.l.b16 %v3444
        %v3560 = vunpack.c.l.b16 %v3445
        %v3561 = vunpack.c.l.b16 %v3446
        %v3562 = vunpack.c.l.b16 %v3447
        %v3563 = vunpack.c.l.b16 %v3448
        %v3564 = vunpack.c.l.b16 %v3449
        %v3565 = vunpack.c.l.b16 %v3450
        %v3566 = vunpack.c.l.b16 %v3451
        %v3567 = vunpack.c.l.b16 %v3452
        %v3568 = vunpack.c.l.b16 %v3453
        %v3569 = vunpack.c.l.b16 %v3454
        %v3570 = vunpack.c.l.b16 %v3455
        %v3571 = vunpack.c.l.b16 %v3456
        %v3572 = vunpack.c.l.b16 %v3457
        %v3573 = vunpack.c.l.b16 %v3458
        %v3574 = vunpack.c.l.b16 %v3459
        %v3575 = vunpack.c.l.b16 %v3460
        %v3576 = vunpack.c.l.b16 %v3461
        %v3577 = vunpack.c.l.b16 %v3462
        %v3578 = vunpack.c.l.b16 %v3463
        %v3579 = vunpack.c.l.b16 %v3464
        %v3580 = vpack.c.b16 %v3532, %v3531
        %v3581 = vpack.c.b16 %v3534, %v3533
        %v3582 = vpack.c.b16 %v3536, %v3535
        %v3583 = vpack.c.b16 %v3538, %v3537
        %v3584 = vpack.c.b16 %v3540, %v3539
        %v3585 = vpack.c.b16 %v3542, %v3541
        %v3586 = vpack.c.b16 %v3544, %v3543
        %v3587 = vpack.c.b16 %v3546, %v3545
        %v3588 = vpack.c.b16 %v3548, %v3547
        %v3589 = vpack.c.b16 %v3550, %v3549
        %v3590 = vpack.c.b16 %v3552, %v3551
        %v3591 = vpack.c.b16 %v3554, %v3553
        %v3592 = vpack.c.b16 %v3556, %v3555
        %v3593 = vpack.c.b16 %v3558, %v3557
        %v3594 = vpack.c.b16 %v3560, %v3559
        %v3595 = vpack.c.b16 %v3562, %v3561
        %v3596 = vpack.c.b16 %v3564, %v3563
        %v3597 = vpack.c.b16 %v3566, %v3565
        %v3598 = vpack.c.b16 %v3568, %v3567
        %v3599 = vpack.c.b16 %v3570, %v3569
        %v3600 = vpack.c.b16 %v3572, %v3571
        %v3601 = vpack.c.b16 %v3574, %v3573
        %v3602 = vpack.c.b16 %v3576, %v3575
        %v3603 = vpack.c.b16 %v3578, %v3577
        %v3604 = vpack.c.b16 %v3579, %v3579
        %v3606 = vshrl.u32 %v3580, 16
        %v3608 = vshll.u32 %v3580, 16
        %v3610 = vrot.slane %v3608, 1
        %v3611 = vor.u32 %v3606, %v3610
        %v3613 = vshll.u32 %v3581, 16
        %v3615 = vrot.slane %v3613, 1
        %v3616 = vsel %vm1730, %v3611, %v3615
        %v3617 = vshrl.u32 %v3581, 16
        %v3619 = vor.u32 %v3617, %v3615
        %v3621 = vshll.u32 %v3582, 16
        %v3623 = vrot.slane %v3621, 1
        %v3624 = vsel %vm1730, %v3619, %v3623
        %v3625 = vshrl.u32 %v3582, 16
        %v3627 = vor.u32 %v3625, %v3623
        %v3629 = vshll.u32 %v3583, 16
        %v3631 = vrot.slane %v3629, 1
        %v3632 = vsel %vm1730, %v3627, %v3631
        %v3633 = vshrl.u32 %v3583, 16
        %v3635 = vor.u32 %v3633, %v3631
        %v3637 = vshll.u32 %v3584, 16
        %v3639 = vrot.slane %v3637, 1
        %v3640 = vsel %vm1730, %v3635, %v3639
        %v3641 = vshrl.u32 %v3584, 16
        %v3643 = vor.u32 %v3641, %v3639
        %v3645 = vshll.u32 %v3585, 16
        %v3647 = vrot.slane %v3645, 1
        %v3648 = vsel %vm1730, %v3643, %v3647
        %v3649 = vshrl.u32 %v3585, 16
        %v3651 = vor.u32 %v3649, %v3647
        %v3653 = vshll.u32 %v3586, 16
        %v3655 = vrot.slane %v3653, 1
        %v3656 = vsel %vm1730, %v3651, %v3655
        %v3657 = vshrl.u32 %v3586, 16
        %v3659 = vor.u32 %v3657, %v3655
        %v3661 = vshll.u32 %v3587, 16
        %v3663 = vrot.slane %v3661, 1
        %v3664 = vsel %vm1730, %v3659, %v3663
        %v3665 = vshrl.u32 %v3587, 16
        %v3667 = vor.u32 %v3665, %v3663
        %v3669 = vshll.u32 %v3588, 16
        %v3671 = vrot.slane %v3669, 1
        %v3672 = vsel %vm1730, %v3667, %v3671
        %v3673 = vshrl.u32 %v3588, 16
        %v3675 = vor.u32 %v3673, %v3671
        %v3677 = vshll.u32 %v3589, 16
        %v3679 = vrot.slane %v3677, 1
        %v3680 = vsel %vm1730, %v3675, %v3679
        %v3681 = vshrl.u32 %v3589, 16
        %v3683 = vor.u32 %v3681, %v3679
        %v3685 = vshll.u32 %v3590, 16
        %v3687 = vrot.slane %v3685, 1
        %v3688 = vsel %vm1730, %v3683, %v3687
        %v3689 = vshrl.u32 %v3590, 16
        %v3691 = vor.u32 %v3689, %v3687
        %v3693 = vshll.u32 %v3591, 16
        %v3695 = vrot.slane %v3693, 1
        %v3696 = vsel %vm1730, %v3691, %v3695
        %v3697 = vshrl.u32 %v3591, 16
        %v3699 = vor.u32 %v3697, %v3695
        %v3701 = vshll.u32 %v3592, 16
        %v3703 = vrot.slane %v3701, 1
        %v3704 = vsel %vm1730, %v3699, %v3703
        %v3705 = vshrl.u32 %v3592, 16
        %v3707 = vor.u32 %v3705, %v3703
        %v3709 = vshll.u32 %v3593, 16
        %v3711 = vrot.slane %v3709, 1
        %v3712 = vsel %vm1730, %v3707, %v3711
        %v3713 = vshrl.u32 %v3593, 16
        %v3715 = vor.u32 %v3713, %v3711
        %v3717 = vshll.u32 %v3594, 16
        %v3719 = vrot.slane %v3717, 1
        %v3720 = vsel %vm1730, %v3715, %v3719
        %v3721 = vshrl.u32 %v3594, 16
        %v3723 = vor.u32 %v3721, %v3719
        %v3725 = vshll.u32 %v3595, 16
        %v3727 = vrot.slane %v3725, 1
        %v3728 = vsel %vm1730, %v3723, %v3727
        %v3729 = vshrl.u32 %v3595, 16
        %v3731 = vor.u32 %v3729, %v3727
        %v3733 = vshll.u32 %v3596, 16
        %v3735 = vrot.slane %v3733, 1
        %v3736 = vsel %vm1730, %v3731, %v3735
        %v3737 = vshrl.u32 %v3596, 16
        %v3739 = vor.u32 %v3737, %v3735
        %v3741 = vshll.u32 %v3597, 16
        %v3743 = vrot.slane %v3741, 1
        %v3744 = vsel %vm1730, %v3739, %v3743
        %v3745 = vshrl.u32 %v3597, 16
        %v3747 = vor.u32 %v3745, %v3743
        %v3749 = vshll.u32 %v3598, 16
        %v3751 = vrot.slane %v3749, 1
        %v3752 = vsel %vm1730, %v3747, %v3751
        %v3753 = vshrl.u32 %v3598, 16
        %v3755 = vor.u32 %v3753, %v3751
        %v3757 = vshll.u32 %v3599, 16
        %v3759 = vrot.slane %v3757, 1
        %v3760 = vsel %vm1730, %v3755, %v3759
        %v3761 = vshrl.u32 %v3599, 16
        %v3763 = vor.u32 %v3761, %v3759
        %v3765 = vshll.u32 %v3600, 16
        %v3767 = vrot.slane %v3765, 1
        %v3768 = vsel %vm1730, %v3763, %v3767
        %v3769 = vshrl.u32 %v3600, 16
        %v3771 = vor.u32 %v3769, %v3767
        %v3773 = vshll.u32 %v3601, 16
        %v3775 = vrot.slane %v3773, 1
        %v3776 = vsel %vm1730, %v3771, %v3775
        %v3777 = vshrl.u32 %v3601, 16
        %v3779 = vor.u32 %v3777, %v3775
        %v3781 = vshll.u32 %v3602, 16
        %v3783 = vrot.slane %v3781, 1
        %v3784 = vsel %vm1730, %v3779, %v3783
        %v3785 = vshrl.u32 %v3602, 16
        %v3787 = vor.u32 %v3785, %v3783
        %v3789 = vshll.u32 %v3603, 16
        %v3791 = vrot.slane %v3789, 1
        %v3792 = vsel %vm1730, %v3787, %v3791
        %v3793 = vshrl.u32 %v3603, 16
        %v3795 = vor.u32 %v3793, %v3791
        %v3797 = vshll.u32 %v3604, 16
        %v3799 = vrot.slane %v3797, 1
        %v3800 = vsel %vm1730, %v3795, %v3799
        %v3841 = vunpack.c.l.b16 %v3466
        %v3842 = vunpack.c.l.b16 %v3467
        %v3843 = vunpack.c.l.b16 %v3468
        %v3844 = vunpack.c.l.b16 %v3469
        %v3845 = vunpack.c.l.b16 %v3470
        %v3846 = vunpack.c.l.b16 %v3471
        %v3847 = vunpack.c.l.b16 %v3472
        %v3848 = vunpack.c.l.b16 %v3473
        %v3849 = vunpack.c.l.b16 %v3474
        %v3850 = vunpack.c.l.b16 %v3475
        %v3851 = vunpack.c.l.b16 %v3476
        %v3852 = vunpack.c.l.b16 %v3477
        %v3853 = vunpack.c.l.b16 %v3478
        %v3854 = vunpack.c.l.b16 %v3479
        %v3855 = vunpack.c.l.b16 %v3480
        %v3856 = vunpack.c.l.b16 %v3481
        %v3857 = vpack.c.b16 %v3842, %v3841
        %v3858 = vpack.c.b16 %v3844, %v3843
        %v3859 = vpack.c.b16 %v3846, %v3845
        %v3860 = vpack.c.b16 %v3848, %v3847
        %v3861 = vpack.c.b16 %v3850, %v3849
        %v3862 = vpack.c.b16 %v3852, %v3851
        %v3863 = vpack.c.b16 %v3854, %v3853
        %v3864 = vpack.c.b16 %v3856, %v3855
        %3873 = vmatprep.subr.bf16.mxu0 0
        %3874 = vmatpush1.bf16.msra.mxu0 %v3864
        %3875 = vmatprep.subr.bf16.mxu0 0
        %3876 = vmatpush1.bf16.msra.mxu0 %v3863
        %3877 = vmatprep.subr.bf16.mxu0 0
        %3878 = vmatpush1.bf16.msra.mxu0 %v3862
        %3879 = vmatprep.subr.bf16.mxu0 0
        %3880 = vmatpush1.bf16.msra.mxu0 %v3861
        %3881 = vmatprep.subr.bf16.mxu0 0
        %3882 = vmatpush1.bf16.msra.mxu0 %v3860
        %3883 = vmatprep.subr.bf16.mxu0 0
        %3884 = vmatpush1.bf16.msra.mxu0 %v3859
        %3885 = vmatprep.subr.bf16.mxu0 0
        %3886 = vmatpush1.bf16.msra.mxu0 %v3858
        %3887 = vmatprep.subr.bf16.mxu0 0
        %3888 = vmatpush1.bf16.msra.mxu0 %v3857
        %3889 = vmatprep.subr.bf16.mxu0 0
        %3890 = vmatpush2.bf16.msra.mxu0 0
        %3891 = vmatprep.subr.bf16.mxu0 0
        %3892 = vmatpush2.bf16.msra.mxu0 0
        %3893 = vmatprep.subr.bf16.mxu0 0
        %3894 = vmatpush2.bf16.msra.mxu0 0
        %3895 = vmatprep.subr.bf16.mxu0 0
        %3896 = vmatpush2.bf16.msra.mxu0 0
        %3897 = vmatprep.subr.bf16.mxu0 0
        %3898 = vmatpush2.bf16.msra.mxu0 0
        %3899 = vmatprep.subr.bf16.mxu0 0
        %3900 = vmatpush2.bf16.msra.mxu0 0
        %3901 = vmatprep.subr.bf16.mxu0 0
        %3902 = vmatpush2.bf16.msra.mxu0 0
        %3903 = vmatprep.subr.bf16.mxu0 0
        %3904 = vmatpush2.bf16.msra.mxu0 0
        %3905 = vmatprep.mubr.bf16.mxu0 0
        %3906 = vmatmul.mubr.bf16.gmra.mxu0 %v3616
        %v3907 = vpop.f32.mrf.mxu0
        %v3908 = vadd.f32 0.0, %v3907
        %v3909 = vpop.f32.mrf.mxu0
        %v3910 = vpop.f32.mrf.mxu0
        %v3911 = vadd.f32 0.0, %v3910
        %v3912 = vpop.f32.mrf.mxu0
        %3913 = vmatprep.mubr.bf16.mxu0 0
        %3914 = vmatmul.mubr.bf16.gmra.mxu0 %v3624
        %v3915 = vpop.f32.mrf.mxu0
        %v3916 = vadd.f32 0.0, %v3915
        %v3917 = vpop.f32.mrf.mxu0
        %v3918 = vpop.f32.mrf.mxu0
        %v3919 = vadd.f32 0.0, %v3918
        %v3920 = vpop.f32.mrf.mxu0
        %3921 = vmatprep.mubr.bf16.mxu0 0
        %3922 = vmatmul.mubr.bf16.gmra.mxu0 %v3632
        %v3923 = vpop.f32.mrf.mxu0
        %v3924 = vadd.f32 0.0, %v3923
        %v3925 = vpop.f32.mrf.mxu0
        %v3926 = vpop.f32.mrf.mxu0
        %v3927 = vadd.f32 0.0, %v3926
        %v3928 = vpop.f32.mrf.mxu0
        %3929 = vmatprep.mubr.bf16.mxu0 0
        %3930 = vmatmul.mubr.bf16.gmra.mxu0 %v3640
        %v3931 = vpop.f32.mrf.mxu0
        %v3932 = vadd.f32 0.0, %v3931
        %v3933 = vpop.f32.mrf.mxu0
        %v3934 = vpop.f32.mrf.mxu0
        %v3935 = vadd.f32 0.0, %v3934
        %v3936 = vpop.f32.mrf.mxu0
        %3937 = vmatprep.mubr.bf16.mxu0 0
        %3938 = vmatmul.mubr.bf16.gmra.mxu0 %v3648
        %v3939 = vpop.f32.mrf.mxu0
        %v3940 = vadd.f32 0.0, %v3939
        %v3941 = vpop.f32.mrf.mxu0
        %v3942 = vpop.f32.mrf.mxu0
        %v3943 = vadd.f32 0.0, %v3942
        %v3944 = vpop.f32.mrf.mxu0
        %3945 = vmatprep.mubr.bf16.mxu0 0
        %3946 = vmatmul.mubr.bf16.gmra.mxu0 %v3656
        %v3947 = vpop.f32.mrf.mxu0
        %v3948 = vadd.f32 0.0, %v3947
        %v3949 = vpop.f32.mrf.mxu0
        %v3950 = vpop.f32.mrf.mxu0
        %v3951 = vadd.f32 0.0, %v3950
        %v3952 = vpop.f32.mrf.mxu0
        %3953 = vmatprep.mubr.bf16.mxu0 0
        %3954 = vmatmul.mubr.bf16.gmra.mxu0 %v3664
        %v3955 = vpop.f32.mrf.mxu0
        %v3956 = vadd.f32 0.0, %v3955
        %v3957 = vpop.f32.mrf.mxu0
        %v3958 = vpop.f32.mrf.mxu0
        %v3959 = vadd.f32 0.0, %v3958
        %v3960 = vpop.f32.mrf.mxu0
        %3961 = vmatprep.mubr.bf16.mxu0 0
        %3962 = vmatmul.mubr.bf16.gmra.mxu0 %v3672
        %v3963 = vpop.f32.mrf.mxu0
        %v3964 = vadd.f32 0.0, %v3963
        %v3965 = vpop.f32.mrf.mxu0
        %v3966 = vpop.f32.mrf.mxu0
        %v3967 = vadd.f32 0.0, %v3966
        %v3968 = vpop.f32.mrf.mxu0
        %3969 = vmatprep.mubr.bf16.mxu0 0
        %3970 = vmatmul.mubr.bf16.gmra.mxu0 %v3680
        %v3971 = vpop.f32.mrf.mxu0
        %v3972 = vadd.f32 0.0, %v3971
        %v3973 = vpop.f32.mrf.mxu0
        %v3974 = vpop.f32.mrf.mxu0
        %v3975 = vadd.f32 0.0, %v3974
        %v3976 = vpop.f32.mrf.mxu0
        %3977 = vmatprep.mubr.bf16.mxu0 0
        %3978 = vmatmul.mubr.bf16.gmra.mxu0 %v3688
        %v3979 = vpop.f32.mrf.mxu0
        %v3980 = vadd.f32 0.0, %v3979
        %v3981 = vpop.f32.mrf.mxu0
        %v3982 = vpop.f32.mrf.mxu0
        %v3983 = vadd.f32 0.0, %v3982
        %v3984 = vpop.f32.mrf.mxu0
        %3985 = vmatprep.mubr.bf16.mxu0 0
        %3986 = vmatmul.mubr.bf16.gmra.mxu0 %v3696
        %v3987 = vpop.f32.mrf.mxu0
        %v3988 = vadd.f32 0.0, %v3987
        %v3989 = vpop.f32.mrf.mxu0
        %v3990 = vpop.f32.mrf.mxu0
        %v3991 = vadd.f32 0.0, %v3990
        %v3992 = vpop.f32.mrf.mxu0
        %3993 = vmatprep.mubr.bf16.mxu0 0
        %3994 = vmatmul.mubr.bf16.gmra.mxu0 %v3704
        %v3995 = vpop.f32.mrf.mxu0
        %v3996 = vadd.f32 0.0, %v3995
        %v3997 = vpop.f32.mrf.mxu0
        %v3998 = vpop.f32.mrf.mxu0
        %v3999 = vadd.f32 0.0, %v3998
        %v4000 = vpop.f32.mrf.mxu0
        %4001 = vmatprep.mubr.bf16.mxu0 0
        %4002 = vmatmul.mubr.bf16.gmra.mxu0 %v3712
        %v4003 = vpop.f32.mrf.mxu0
        %v4004 = vadd.f32 0.0, %v4003
        %v4005 = vpop.f32.mrf.mxu0
        %v4006 = vpop.f32.mrf.mxu0
        %v4007 = vadd.f32 0.0, %v4006
        %v4008 = vpop.f32.mrf.mxu0
        %4009 = vmatprep.mubr.bf16.mxu0 0
        %4010 = vmatmul.mubr.bf16.gmra.mxu0 %v3720
        %v4011 = vpop.f32.mrf.mxu0
        %v4012 = vadd.f32 0.0, %v4011
        %v4013 = vpop.f32.mrf.mxu0
        %v4014 = vpop.f32.mrf.mxu0
        %v4015 = vadd.f32 0.0, %v4014
        %v4016 = vpop.f32.mrf.mxu0
        %4017 = vmatprep.mubr.bf16.mxu0 0
        %4018 = vmatmul.mubr.bf16.gmra.mxu0 %v3728
        %v4019 = vpop.f32.mrf.mxu0
        %v4020 = vadd.f32 0.0, %v4019
        %v4021 = vpop.f32.mrf.mxu0
        %v4022 = vpop.f32.mrf.mxu0
        %v4023 = vadd.f32 0.0, %v4022
        %v4024 = vpop.f32.mrf.mxu0
        %4025 = vmatprep.mubr.bf16.mxu0 0
        %4026 = vmatmul.mubr.bf16.gmra.mxu0 %v3736
        %v4027 = vpop.f32.mrf.mxu0
        %v4028 = vadd.f32 0.0, %v4027
        %v4029 = vpop.f32.mrf.mxu0
        %v4030 = vpop.f32.mrf.mxu0
        %v4031 = vadd.f32 0.0, %v4030
        %v4032 = vpop.f32.mrf.mxu0
        %4033 = vmatprep.mubr.bf16.mxu0 0
        %4034 = vmatmul.mubr.bf16.gmra.mxu0 %v3744
        %v4035 = vpop.f32.mrf.mxu0
        %v4036 = vadd.f32 0.0, %v4035
        %v4037 = vpop.f32.mrf.mxu0
        %v4038 = vpop.f32.mrf.mxu0
        %v4039 = vadd.f32 0.0, %v4038
        %v4040 = vpop.f32.mrf.mxu0
        %4041 = vmatprep.mubr.bf16.mxu0 0
        %4042 = vmatmul.mubr.bf16.gmra.mxu0 %v3752
        %v4043 = vpop.f32.mrf.mxu0
        %v4044 = vadd.f32 0.0, %v4043
        %v4045 = vpop.f32.mrf.mxu0
        %v4046 = vpop.f32.mrf.mxu0
        %v4047 = vadd.f32 0.0, %v4046
        %v4048 = vpop.f32.mrf.mxu0
        %4049 = vmatprep.mubr.bf16.mxu0 0
        %4050 = vmatmul.mubr.bf16.gmra.mxu0 %v3760
        %v4051 = vpop.f32.mrf.mxu0
        %v4052 = vadd.f32 0.0, %v4051
        %v4053 = vpop.f32.mrf.mxu0
        %v4054 = vpop.f32.mrf.mxu0
        %v4055 = vadd.f32 0.0, %v4054
        %v4056 = vpop.f32.mrf.mxu0
        %4057 = vmatprep.mubr.bf16.mxu0 0
        %4058 = vmatmul.mubr.bf16.gmra.mxu0 %v3768
        %v4059 = vpop.f32.mrf.mxu0
        %v4060 = vadd.f32 0.0, %v4059
        %v4061 = vpop.f32.mrf.mxu0
        %v4062 = vpop.f32.mrf.mxu0
        %v4063 = vadd.f32 0.0, %v4062
        %v4064 = vpop.f32.mrf.mxu0
        %4065 = vmatprep.mubr.bf16.mxu0 0
        %4066 = vmatmul.mubr.bf16.gmra.mxu0 %v3776
        %v4067 = vpop.f32.mrf.mxu0
        %v4068 = vadd.f32 0.0, %v4067
        %v4069 = vpop.f32.mrf.mxu0
        %v4070 = vpop.f32.mrf.mxu0
        %v4071 = vadd.f32 0.0, %v4070
        %v4072 = vpop.f32.mrf.mxu0
        %4073 = vmatprep.mubr.bf16.mxu0 0
        %4074 = vmatmul.mubr.bf16.gmra.mxu0 %v3784
        %v4075 = vpop.f32.mrf.mxu0
        %v4076 = vadd.f32 0.0, %v4075
        %v4077 = vpop.f32.mrf.mxu0
        %v4078 = vpop.f32.mrf.mxu0
        %v4079 = vadd.f32 0.0, %v4078
        %v4080 = vpop.f32.mrf.mxu0
        %4081 = vmatprep.mubr.bf16.mxu0 0
        %4082 = vmatmul.mubr.bf16.gmra.mxu0 %v3792
        %v4083 = vpop.f32.mrf.mxu0
        %v4084 = vadd.f32 0.0, %v4083
        %v4085 = vpop.f32.mrf.mxu0
        %v4086 = vpop.f32.mrf.mxu0
        %v4087 = vadd.f32 0.0, %v4086
        %v4088 = vpop.f32.mrf.mxu0
        %4089 = vmatprep.mubr.bf16.mxu0 0
        %4090 = vmatmul.mubr.bf16.gmra.mxu0 %v3800
        %v4091 = vpop.f32.mrf.mxu0
        %v4092 = vadd.f32 0.0, %v4091
        %v4093 = vpop.f32.mrf.mxu0
        %v4094 = vpop.f32.mrf.mxu0
        %v4095 = vadd.f32 0.0, %v4094
        %v4096 = vpop.f32.mrf.mxu0
        %4097 = vdwg.mxu0
        %v4098 = vadd.f32 %v3368, %v3908
        %v4099 = vadd.f32 %v3369, %v3911
        %v4100 = vadd.f32 %v3370, %v3916
        %v4101 = vadd.f32 %v3371, %v3919
        %v4102 = vadd.f32 %v3372, %v3924
        %v4103 = vadd.f32 %v3373, %v3927
        %v4104 = vadd.f32 %v3374, %v3932
        %v4105 = vadd.f32 %v3375, %v3935
        %v4106 = vadd.f32 %v3376, %v3940
        %v4107 = vadd.f32 %v3377, %v3943
        %v4108 = vadd.f32 %v3378, %v3948
        %v4109 = vadd.f32 %v3379, %v3951
        %v4110 = vadd.f32 %v3380, %v3956
        %v4111 = vadd.f32 %v3381, %v3959
        %v4112 = vadd.f32 %v3382, %v3964
        %v4113 = vadd.f32 %v3383, %v3967
        %v4114 = vadd.f32 %v3384, %v3972
        %v4115 = vadd.f32 %v3385, %v3975
        %v4116 = vadd.f32 %v3386, %v3980
        %v4117 = vadd.f32 %v3387, %v3983
        %v4118 = vadd.f32 %v3388, %v3988
        %v4119 = vadd.f32 %v3389, %v3991
        %v4120 = vadd.f32 %v3390, %v3996
        %v4121 = vadd.f32 %v3391, %v3999
        %v4122 = vadd.f32 %v3392, %v4004
        %v4123 = vadd.f32 %v3393, %v4007
        %v4124 = vadd.f32 %v3394, %v4012
        %v4125 = vadd.f32 %v3395, %v4015
        %v4126 = vadd.f32 %v3396, %v4020
        %v4127 = vadd.f32 %v3397, %v4023
        %v4128 = vadd.f32 %v3398, %v4028
        %v4129 = vadd.f32 %v3399, %v4031
        %v4130 = vadd.f32 %v3400, %v4036
        %v4131 = vadd.f32 %v3401, %v4039
        %v4132 = vadd.f32 %v3402, %v4044
        %v4133 = vadd.f32 %v3403, %v4047
        %v4134 = vadd.f32 %v3404, %v4052
        %v4135 = vadd.f32 %v3405, %v4055
        %v4136 = vadd.f32 %v3406, %v4060
        %v4137 = vadd.f32 %v3407, %v4063
        %v4138 = vadd.f32 %v3408, %v4068
        %v4139 = vadd.f32 %v3409, %v4071
        %v4140 = vadd.f32 %v3410, %v4076
        %v4141 = vadd.f32 %v3411, %v4079
        %v4142 = vadd.f32 %v3412, %v4084
        %v4143 = vadd.f32 %v3413, %v4087
        %v4144 = vadd.f32 %v3414, %v4092
        %v4145 = vadd.f32 %v3415, %v4095
        %v4146 = vld [vmem:[#allocation2 + $0x18] sm:$0x8]
        %v4147 = vld [vmem:[#allocation2 + $0x1c] sm:$0xf]
        %v4148 = vld [vmem:[#allocation2 + $0x20] sm:$0xf]
        %v4149 = vld [vmem:[#allocation2 + $0x24] sm:$0xf]
        %v4150 = vld [vmem:[#allocation2 + $0x28] sm:$0xf]
        %v4151 = vld [vmem:[#allocation2 + $0x2c] sm:$0xf]
        %v4152 = vld [vmem:[#allocation2 + $0x30] sm:$0xf]
        %v4153 = vld [vmem:[#allocation2 + $0x34] sm:$0xf]
        %v4154 = vld [vmem:[#allocation2 + $0x38] sm:$0xf]
        %v4155 = vld [vmem:[#allocation2 + $0x3c] sm:$0xf]
        %v4156 = vld [vmem:[#allocation2 + $0x40] sm:$0xf]
        %v4157 = vld [vmem:[#allocation2 + $0x44] sm:$0xf]
        %v4158 = vld [vmem:[#allocation2 + $0x48] sm:$0xf]
        %v4159 = vld [vmem:[#allocation2 + $0x4c] sm:$0xf]
        %v4160 = vld [vmem:[#allocation2 + $0x50] sm:$0xf]
        %v4161 = vld [vmem:[#allocation2 + $0x54] sm:$0xf]
        %v4162 = vld [vmem:[#allocation2 + $0x58] sm:$0xf]
        %v4163 = vld [vmem:[#allocation2 + $0x5c] sm:$0xf]
        %v4164 = vld [vmem:[#allocation2 + $0x60] sm:$0xf]
        %v4165 = vld [vmem:[#allocation2 + $0x64] sm:$0xf]
        %v4166 = vld [vmem:[#allocation2 + $0x68] sm:$0xf]
        %v4167 = vld [vmem:[#allocation2 + $0x6c] sm:$0xf]
        %v4168 = vld [vmem:[#allocation2 + $0x70] sm:$0xf]
        %v4169 = vld [vmem:[#allocation2 + $0x74] sm:$0xf]
        %v4170 = vld [vmem:[#allocation2 + $0x78] sm:$0xf]
        %v4171 = vld [vmem:[#allocation2 + $0x7c] sm:$0xf]
        %v4172 = vld [vmem:[#allocation2 + $0x80] sm:$0xf]
        %v4173 = vld [vmem:[#allocation2 + $0x84] sm:$0xf]
        %v4174 = vld [vmem:[#allocation2 + $0x88] sm:$0xf]
        %v4175 = vld [vmem:[#allocation2 + $0x8c] sm:$0xf]
        %v4176 = vld [vmem:[#allocation2 + $0x90] sm:$0xf]
        %v4177 = vld [vmem:[#allocation2 + $0x94] sm:$0xf]
        %v4178 = vld [vmem:[#allocation2 + $0x98] sm:$0xf]
        %v4179 = vld [vmem:[#allocation2 + $0x9c] sm:$0xf]
        %v4180 = vld [vmem:[#allocation2 + $0xa0] sm:$0xf]
        %v4181 = vld [vmem:[#allocation2 + $0xa4] sm:$0xf]
        %v4182 = vld [vmem:[#allocation2 + $0xa8] sm:$0xf]
        %v4183 = vld [vmem:[#allocation2 + $0xac] sm:$0xf]
        %v4184 = vld [vmem:[#allocation2 + $0xb0] sm:$0xf]
        %v4185 = vld [vmem:[#allocation2 + $0xb4] sm:$0xf]
        %v4186 = vld [vmem:[#allocation2 + $0xb8] sm:$0xf]
        %v4187 = vld [vmem:[#allocation2 + $0xbc] sm:$0xf]
        %v4188 = vld [vmem:[#allocation2 + $0xc0] sm:$0xf]
        %v4189 = vld [vmem:[#allocation2 + $0xc4] sm:$0xf]
        %v4190 = vld [vmem:[#allocation2 + $0xc8] sm:$0xf]
        %v4191 = vld [vmem:[#allocation2 + $0xcc] sm:$0xf]
        %v4192 = vld [vmem:[#allocation2 + $0xd0] sm:$0xf]
        %v4193 = vld [vmem:[#allocation2 + $0xd4] sm:$0xf]
        %v4194 = vld [vmem:[#allocation2 + $0xd8] sm:$0xf]
        %s4195 = scalar_lea.vmem %s1, 384
        %v4196 = vld [vmem:[%s4195] sm:$0xf]
        %v4197 = vld [vmem:[%s4195 + $0x4] sm:$0xf]
        %v4198 = vld [vmem:[%s4195 + $0x8] sm:$0xf]
        %v4199 = vld [vmem:[%s4195 + $0xc] sm:$0xf]
        %v4200 = vld [vmem:[%s4195 + $0x10] sm:$0xf]
        %v4201 = vld [vmem:[%s4195 + $0x14] sm:$0xf]
        %v4202 = vld [vmem:[%s4195 + $0x18] sm:$0xf]
        %v4203 = vld [vmem:[%s4195 + $0x1c] sm:$0xf]
        %v4204 = vld [vmem:[%s4195 + $0x20] sm:$0xf]
        %v4205 = vld [vmem:[%s4195 + $0x24] sm:$0xf]
        %v4206 = vld [vmem:[%s4195 + $0x28] sm:$0xf]
        %v4207 = vld [vmem:[%s4195 + $0x2c] sm:$0xf]
        %v4208 = vld [vmem:[%s4195 + $0x30] sm:$0xf]
        %v4209 = vld [vmem:[%s4195 + $0x34] sm:$0xf]
        %v4210 = vld [vmem:[%s4195 + $0x38] sm:$0xf]
        %v4211 = vld [vmem:[%s4195 + $0x3c] sm:$0xf]
        %v4261 = vunpack.c.l.b16 %v4146
        %v4262 = vunpack.c.l.b16 %v4147
        %v4263 = vunpack.c.l.b16 %v4148
        %v4264 = vunpack.c.l.b16 %v4149
        %v4265 = vunpack.c.l.b16 %v4150
        %v4266 = vunpack.c.l.b16 %v4151
        %v4267 = vunpack.c.l.b16 %v4152
        %v4268 = vunpack.c.l.b16 %v4153
        %v4269 = vunpack.c.l.b16 %v4154
        %v4270 = vunpack.c.l.b16 %v4155
        %v4271 = vunpack.c.l.b16 %v4156
        %v4272 = vunpack.c.l.b16 %v4157
        %v4273 = vunpack.c.l.b16 %v4158
        %v4274 = vunpack.c.l.b16 %v4159
        %v4275 = vunpack.c.l.b16 %v4160
        %v4276 = vunpack.c.l.b16 %v4161
        %v4277 = vunpack.c.l.b16 %v4162
        %v4278 = vunpack.c.l.b16 %v4163
        %v4279 = vunpack.c.l.b16 %v4164
        %v4280 = vunpack.c.l.b16 %v4165
        %v4281 = vunpack.c.l.b16 %v4166
        %v4282 = vunpack.c.l.b16 %v4167
        %v4283 = vunpack.c.l.b16 %v4168
        %v4284 = vunpack.c.l.b16 %v4169
        %v4285 = vunpack.c.l.b16 %v4170
        %v4286 = vunpack.c.l.b16 %v4171
        %v4287 = vunpack.c.l.b16 %v4172
        %v4288 = vunpack.c.l.b16 %v4173
        %v4289 = vunpack.c.l.b16 %v4174
        %v4290 = vunpack.c.l.b16 %v4175
        %v4291 = vunpack.c.l.b16 %v4176
        %v4292 = vunpack.c.l.b16 %v4177
        %v4293 = vunpack.c.l.b16 %v4178
        %v4294 = vunpack.c.l.b16 %v4179
        %v4295 = vunpack.c.l.b16 %v4180
        %v4296 = vunpack.c.l.b16 %v4181
        %v4297 = vunpack.c.l.b16 %v4182
        %v4298 = vunpack.c.l.b16 %v4183
        %v4299 = vunpack.c.l.b16 %v4184
        %v4300 = vunpack.c.l.b16 %v4185
        %v4301 = vunpack.c.l.b16 %v4186
        %v4302 = vunpack.c.l.b16 %v4187
        %v4303 = vunpack.c.l.b16 %v4188
        %v4304 = vunpack.c.l.b16 %v4189
        %v4305 = vunpack.c.l.b16 %v4190
        %v4306 = vunpack.c.l.b16 %v4191
        %v4307 = vunpack.c.l.b16 %v4192
        %v4308 = vunpack.c.l.b16 %v4193
        %v4309 = vunpack.c.l.b16 %v4194
        %v4310 = vpack.c.b16 %v4262, %v4261
        %v4311 = vpack.c.b16 %v4264, %v4263
        %v4312 = vpack.c.b16 %v4266, %v4265
        %v4313 = vpack.c.b16 %v4268, %v4267
        %v4314 = vpack.c.b16 %v4270, %v4269
        %v4315 = vpack.c.b16 %v4272, %v4271
        %v4316 = vpack.c.b16 %v4274, %v4273
        %v4317 = vpack.c.b16 %v4276, %v4275
        %v4318 = vpack.c.b16 %v4278, %v4277
        %v4319 = vpack.c.b16 %v4280, %v4279
        %v4320 = vpack.c.b16 %v4282, %v4281
        %v4321 = vpack.c.b16 %v4284, %v4283
        %v4322 = vpack.c.b16 %v4286, %v4285
        %v4323 = vpack.c.b16 %v4288, %v4287
        %v4324 = vpack.c.b16 %v4290, %v4289
        %v4325 = vpack.c.b16 %v4292, %v4291
        %v4326 = vpack.c.b16 %v4294, %v4293
        %v4327 = vpack.c.b16 %v4296, %v4295
        %v4328 = vpack.c.b16 %v4298, %v4297
        %v4329 = vpack.c.b16 %v4300, %v4299
        %v4330 = vpack.c.b16 %v4302, %v4301
        %v4331 = vpack.c.b16 %v4304, %v4303
        %v4332 = vpack.c.b16 %v4306, %v4305
        %v4333 = vpack.c.b16 %v4308, %v4307
        %v4334 = vpack.c.b16 %v4309, %v4309
        %v4336 = vshrl.u32 %v4310, 16
        %v4338 = vrot.slane %v4336, 3
        %v4339 = vshll.u32 %v4310, 16
        %v4341 = vrot.slane %v4339, 4
        %v4342 = vor.u32 %v4338, %v4341
        %v4344 = vshrl.u32 %v4311, 16
        %v4346 = vrot.slane %v4344, 3
        %v4347 = vshll.u32 %v4311, 16
        %v4349 = vrot.slane %v4347, 4
        %v4350 = vor.u32 %v4346, %v4349
        %v4351 = vsel %vm1019, %v4342, %v4350
        %v4353 = vshrl.u32 %v4312, 16
        %v4355 = vrot.slane %v4353, 3
        %v4356 = vshll.u32 %v4312, 16
        %v4358 = vrot.slane %v4356, 4
        %v4359 = vor.u32 %v4355, %v4358
        %v4360 = vsel %vm1019, %v4350, %v4359
        %v4362 = vshrl.u32 %v4313, 16
        %v4364 = vrot.slane %v4362, 3
        %v4365 = vshll.u32 %v4313, 16
        %v4367 = vrot.slane %v4365, 4
        %v4368 = vor.u32 %v4364, %v4367
        %v4369 = vsel %vm1019, %v4359, %v4368
        %v4371 = vshrl.u32 %v4314, 16
        %v4373 = vrot.slane %v4371, 3
        %v4374 = vshll.u32 %v4314, 16
        %v4376 = vrot.slane %v4374, 4
        %v4377 = vor.u32 %v4373, %v4376
        %v4378 = vsel %vm1019, %v4368, %v4377
        %v4380 = vshrl.u32 %v4315, 16
        %v4382 = vrot.slane %v4380, 3
        %v4383 = vshll.u32 %v4315, 16
        %v4385 = vrot.slane %v4383, 4
        %v4386 = vor.u32 %v4382, %v4385
        %v4387 = vsel %vm1019, %v4377, %v4386
        %v4389 = vshrl.u32 %v4316, 16
        %v4391 = vrot.slane %v4389, 3
        %v4392 = vshll.u32 %v4316, 16
        %v4394 = vrot.slane %v4392, 4
        %v4395 = vor.u32 %v4391, %v4394
        %v4396 = vsel %vm1019, %v4386, %v4395
        %v4398 = vshrl.u32 %v4317, 16
        %v4400 = vrot.slane %v4398, 3
        %v4401 = vshll.u32 %v4317, 16
        %v4403 = vrot.slane %v4401, 4
        %v4404 = vor.u32 %v4400, %v4403
        %v4405 = vsel %vm1019, %v4395, %v4404
        %v4407 = vshrl.u32 %v4318, 16
        %v4409 = vrot.slane %v4407, 3
        %v4410 = vshll.u32 %v4318, 16
        %v4412 = vrot.slane %v4410, 4
        %v4413 = vor.u32 %v4409, %v4412
        %v4414 = vsel %vm1019, %v4404, %v4413
        %v4416 = vshrl.u32 %v4319, 16
        %v4418 = vrot.slane %v4416, 3
        %v4419 = vshll.u32 %v4319, 16
        %v4421 = vrot.slane %v4419, 4
        %v4422 = vor.u32 %v4418, %v4421
        %v4423 = vsel %vm1019, %v4413, %v4422
        %v4425 = vshrl.u32 %v4320, 16
        %v4427 = vrot.slane %v4425, 3
        %v4428 = vshll.u32 %v4320, 16
        %v4430 = vrot.slane %v4428, 4
        %v4431 = vor.u32 %v4427, %v4430
        %v4432 = vsel %vm1019, %v4422, %v4431
        %v4434 = vshrl.u32 %v4321, 16
        %v4436 = vrot.slane %v4434, 3
        %v4437 = vshll.u32 %v4321, 16
        %v4439 = vrot.slane %v4437, 4
        %v4440 = vor.u32 %v4436, %v4439
        %v4441 = vsel %vm1019, %v4431, %v4440
        %v4443 = vshrl.u32 %v4322, 16
        %v4445 = vrot.slane %v4443, 3
        %v4446 = vshll.u32 %v4322, 16
        %v4448 = vrot.slane %v4446, 4
        %v4449 = vor.u32 %v4445, %v4448
        %v4450 = vsel %vm1019, %v4440, %v4449
        %v4452 = vshrl.u32 %v4323, 16
        %v4454 = vrot.slane %v4452, 3
        %v4455 = vshll.u32 %v4323, 16
        %v4457 = vrot.slane %v4455, 4
        %v4458 = vor.u32 %v4454, %v4457
        %v4459 = vsel %vm1019, %v4449, %v4458
        %v4461 = vshrl.u32 %v4324, 16
        %v4463 = vrot.slane %v4461, 3
        %v4464 = vshll.u32 %v4324, 16
        %v4466 = vrot.slane %v4464, 4
        %v4467 = vor.u32 %v4463, %v4466
        %v4468 = vsel %vm1019, %v4458, %v4467
        %v4470 = vshrl.u32 %v4325, 16
        %v4472 = vrot.slane %v4470, 3
        %v4473 = vshll.u32 %v4325, 16
        %v4475 = vrot.slane %v4473, 4
        %v4476 = vor.u32 %v4472, %v4475
        %v4477 = vsel %vm1019, %v4467, %v4476
        %v4479 = vshrl.u32 %v4326, 16
        %v4481 = vrot.slane %v4479, 3
        %v4482 = vshll.u32 %v4326, 16
        %v4484 = vrot.slane %v4482, 4
        %v4485 = vor.u32 %v4481, %v4484
        %v4486 = vsel %vm1019, %v4476, %v4485
        %v4488 = vshrl.u32 %v4327, 16
        %v4490 = vrot.slane %v4488, 3
        %v4491 = vshll.u32 %v4327, 16
        %v4493 = vrot.slane %v4491, 4
        %v4494 = vor.u32 %v4490, %v4493
        %v4495 = vsel %vm1019, %v4485, %v4494
        %v4497 = vshrl.u32 %v4328, 16
        %v4499 = vrot.slane %v4497, 3
        %v4500 = vshll.u32 %v4328, 16
        %v4502 = vrot.slane %v4500, 4
        %v4503 = vor.u32 %v4499, %v4502
        %v4504 = vsel %vm1019, %v4494, %v4503
        %v4506 = vshrl.u32 %v4329, 16
        %v4508 = vrot.slane %v4506, 3
        %v4509 = vshll.u32 %v4329, 16
        %v4511 = vrot.slane %v4509, 4
        %v4512 = vor.u32 %v4508, %v4511
        %v4513 = vsel %vm1019, %v4503, %v4512
        %v4515 = vshrl.u32 %v4330, 16
        %v4517 = vrot.slane %v4515, 3
        %v4518 = vshll.u32 %v4330, 16
        %v4520 = vrot.slane %v4518, 4
        %v4521 = vor.u32 %v4517, %v4520
        %v4522 = vsel %vm1019, %v4512, %v4521
        %v4524 = vshrl.u32 %v4331, 16
        %v4526 = vrot.slane %v4524, 3
        %v4527 = vshll.u32 %v4331, 16
        %v4529 = vrot.slane %v4527, 4
        %v4530 = vor.u32 %v4526, %v4529
        %v4531 = vsel %vm1019, %v4521, %v4530
        %v4533 = vshrl.u32 %v4332, 16
        %v4535 = vrot.slane %v4533, 3
        %v4536 = vshll.u32 %v4332, 16
        %v4538 = vrot.slane %v4536, 4
        %v4539 = vor.u32 %v4535, %v4538
        %v4540 = vsel %vm1019, %v4530, %v4539
        %v4542 = vshrl.u32 %v4333, 16
        %v4544 = vrot.slane %v4542, 3
        %v4545 = vshll.u32 %v4333, 16
        %v4547 = vrot.slane %v4545, 4
        %v4548 = vor.u32 %v4544, %v4547
        %v4549 = vsel %vm1019, %v4539, %v4548
        %v4551 = vshrl.u32 %v4334, 16
        %v4553 = vrot.slane %v4551, 3
        %v4554 = vshll.u32 %v4334, 16
        %v4556 = vrot.slane %v4554, 4
        %v4557 = vor.u32 %v4553, %v4556
        %v4558 = vsel %vm1019, %v4548, %v4557
        %v4599 = vunpack.c.l.b16 %v4196
        %v4600 = vunpack.c.l.b16 %v4197
        %v4601 = vunpack.c.l.b16 %v4198
        %v4602 = vunpack.c.l.b16 %v4199
        %v4603 = vunpack.c.l.b16 %v4200
        %v4604 = vunpack.c.l.b16 %v4201
        %v4605 = vunpack.c.l.b16 %v4202
        %v4606 = vunpack.c.l.b16 %v4203
        %v4607 = vunpack.c.l.b16 %v4204
        %v4608 = vunpack.c.l.b16 %v4205
        %v4609 = vunpack.c.l.b16 %v4206
        %v4610 = vunpack.c.l.b16 %v4207
        %v4611 = vunpack.c.l.b16 %v4208
        %v4612 = vunpack.c.l.b16 %v4209
        %v4613 = vunpack.c.l.b16 %v4210
        %v4614 = vunpack.c.l.b16 %v4211
        %v4615 = vpack.c.b16 %v4600, %v4599
        %v4616 = vpack.c.b16 %v4602, %v4601
        %v4617 = vpack.c.b16 %v4604, %v4603
        %v4618 = vpack.c.b16 %v4606, %v4605
        %v4619 = vpack.c.b16 %v4608, %v4607
        %v4620 = vpack.c.b16 %v4610, %v4609
        %v4621 = vpack.c.b16 %v4612, %v4611
        %v4622 = vpack.c.b16 %v4614, %v4613
        %4631 = vmatprep.subr.bf16.mxu0 0
        %4632 = vmatpush1.bf16.msra.mxu0 %v4622
        %4633 = vmatprep.subr.bf16.mxu0 0
        %4634 = vmatpush1.bf16.msra.mxu0 %v4621
        %4635 = vmatprep.subr.bf16.mxu0 0
        %4636 = vmatpush1.bf16.msra.mxu0 %v4620
        %4637 = vmatprep.subr.bf16.mxu0 0
        %4638 = vmatpush1.bf16.msra.mxu0 %v4619
        %4639 = vmatprep.subr.bf16.mxu0 0
        %4640 = vmatpush1.bf16.msra.mxu0 %v4618
        %4641 = vmatprep.subr.bf16.mxu0 0
        %4642 = vmatpush1.bf16.msra.mxu0 %v4617
        %4643 = vmatprep.subr.bf16.mxu0 0
        %4644 = vmatpush1.bf16.msra.mxu0 %v4616
        %4645 = vmatprep.subr.bf16.mxu0 0
        %4646 = vmatpush1.bf16.msra.mxu0 %v4615
        %4647 = vmatprep.subr.bf16.mxu0 0
        %4648 = vmatpush2.bf16.msra.mxu0 0
        %4649 = vmatprep.subr.bf16.mxu0 0
        %4650 = vmatpush2.bf16.msra.mxu0 0
        %4651 = vmatprep.subr.bf16.mxu0 0
        %4652 = vmatpush2.bf16.msra.mxu0 0
        %4653 = vmatprep.subr.bf16.mxu0 0
        %4654 = vmatpush2.bf16.msra.mxu0 0
        %4655 = vmatprep.subr.bf16.mxu0 0
        %4656 = vmatpush2.bf16.msra.mxu0 0
        %4657 = vmatprep.subr.bf16.mxu0 0
        %4658 = vmatpush2.bf16.msra.mxu0 0
        %4659 = vmatprep.subr.bf16.mxu0 0
        %4660 = vmatpush2.bf16.msra.mxu0 0
        %4661 = vmatprep.subr.bf16.mxu0 0
        %4662 = vmatpush2.bf16.msra.mxu0 0
        %4663 = vmatprep.mubr.bf16.mxu0 0
        %4664 = vmatmul.mubr.bf16.gmra.mxu0 %v4351
        %v4665 = vpop.f32.mrf.mxu0
        %v4666 = vadd.f32 0.0, %v4665
        %v4667 = vpop.f32.mrf.mxu0
        %v4668 = vpop.f32.mrf.mxu0
        %v4669 = vadd.f32 0.0, %v4668
        %v4670 = vpop.f32.mrf.mxu0
        %4671 = vmatprep.mubr.bf16.mxu0 0
        %4672 = vmatmul.mubr.bf16.gmra.mxu0 %v4360
        %v4673 = vpop.f32.mrf.mxu0
        %v4674 = vadd.f32 0.0, %v4673
        %v4675 = vpop.f32.mrf.mxu0
        %v4676 = vpop.f32.mrf.mxu0
        %v4677 = vadd.f32 0.0, %v4676
        %v4678 = vpop.f32.mrf.mxu0
        %4679 = vmatprep.mubr.bf16.mxu0 0
        %4680 = vmatmul.mubr.bf16.gmra.mxu0 %v4369
        %v4681 = vpop.f32.mrf.mxu0
        %v4682 = vadd.f32 0.0, %v4681
        %v4683 = vpop.f32.mrf.mxu0
        %v4684 = vpop.f32.mrf.mxu0
        %v4685 = vadd.f32 0.0, %v4684
        %v4686 = vpop.f32.mrf.mxu0
        %4687 = vmatprep.mubr.bf16.mxu0 0
        %4688 = vmatmul.mubr.bf16.gmra.mxu0 %v4378
        %v4689 = vpop.f32.mrf.mxu0
        %v4690 = vadd.f32 0.0, %v4689
        %v4691 = vpop.f32.mrf.mxu0
        %v4692 = vpop.f32.mrf.mxu0
        %v4693 = vadd.f32 0.0, %v4692
        %v4694 = vpop.f32.mrf.mxu0
        %4695 = vmatprep.mubr.bf16.mxu0 0
        %4696 = vmatmul.mubr.bf16.gmra.mxu0 %v4387
        %v4697 = vpop.f32.mrf.mxu0
        %v4698 = vadd.f32 0.0, %v4697
        %v4699 = vpop.f32.mrf.mxu0
        %v4700 = vpop.f32.mrf.mxu0
        %v4701 = vadd.f32 0.0, %v4700
        %v4702 = vpop.f32.mrf.mxu0
        %4703 = vmatprep.mubr.bf16.mxu0 0
        %4704 = vmatmul.mubr.bf16.gmra.mxu0 %v4396
        %v4705 = vpop.f32.mrf.mxu0
        %v4706 = vadd.f32 0.0, %v4705
        %v4707 = vpop.f32.mrf.mxu0
        %v4708 = vpop.f32.mrf.mxu0
        %v4709 = vadd.f32 0.0, %v4708
        %v4710 = vpop.f32.mrf.mxu0
        %4711 = vmatprep.mubr.bf16.mxu0 0
        %4712 = vmatmul.mubr.bf16.gmra.mxu0 %v4405
        %v4713 = vpop.f32.mrf.mxu0
        %v4714 = vadd.f32 0.0, %v4713
        %v4715 = vpop.f32.mrf.mxu0
        %v4716 = vpop.f32.mrf.mxu0
        %v4717 = vadd.f32 0.0, %v4716
        %v4718 = vpop.f32.mrf.mxu0
        %4719 = vmatprep.mubr.bf16.mxu0 0
        %4720 = vmatmul.mubr.bf16.gmra.mxu0 %v4414
        %v4721 = vpop.f32.mrf.mxu0
        %v4722 = vadd.f32 0.0, %v4721
        %v4723 = vpop.f32.mrf.mxu0
        %v4724 = vpop.f32.mrf.mxu0
        %v4725 = vadd.f32 0.0, %v4724
        %v4726 = vpop.f32.mrf.mxu0
        %4727 = vmatprep.mubr.bf16.mxu0 0
        %4728 = vmatmul.mubr.bf16.gmra.mxu0 %v4423
        %v4729 = vpop.f32.mrf.mxu0
        %v4730 = vadd.f32 0.0, %v4729
        %v4731 = vpop.f32.mrf.mxu0
        %v4732 = vpop.f32.mrf.mxu0
        %v4733 = vadd.f32 0.0, %v4732
        %v4734 = vpop.f32.mrf.mxu0
        %4735 = vmatprep.mubr.bf16.mxu0 0
        %4736 = vmatmul.mubr.bf16.gmra.mxu0 %v4432
        %v4737 = vpop.f32.mrf.mxu0
        %v4738 = vadd.f32 0.0, %v4737
        %v4739 = vpop.f32.mrf.mxu0
        %v4740 = vpop.f32.mrf.mxu0
        %v4741 = vadd.f32 0.0, %v4740
        %v4742 = vpop.f32.mrf.mxu0
        %4743 = vmatprep.mubr.bf16.mxu0 0
        %4744 = vmatmul.mubr.bf16.gmra.mxu0 %v4441
        %v4745 = vpop.f32.mrf.mxu0
        %v4746 = vadd.f32 0.0, %v4745
        %v4747 = vpop.f32.mrf.mxu0
        %v4748 = vpop.f32.mrf.mxu0
        %v4749 = vadd.f32 0.0, %v4748
        %v4750 = vpop.f32.mrf.mxu0
        %4751 = vmatprep.mubr.bf16.mxu0 0
        %4752 = vmatmul.mubr.bf16.gmra.mxu0 %v4450
        %v4753 = vpop.f32.mrf.mxu0
        %v4754 = vadd.f32 0.0, %v4753
        %v4755 = vpop.f32.mrf.mxu0
        %v4756 = vpop.f32.mrf.mxu0
        %v4757 = vadd.f32 0.0, %v4756
        %v4758 = vpop.f32.mrf.mxu0
        %4759 = vmatprep.mubr.bf16.mxu0 0
        %4760 = vmatmul.mubr.bf16.gmra.mxu0 %v4459
        %v4761 = vpop.f32.mrf.mxu0
        %v4762 = vadd.f32 0.0, %v4761
        %v4763 = vpop.f32.mrf.mxu0
        %v4764 = vpop.f32.mrf.mxu0
        %v4765 = vadd.f32 0.0, %v4764
        %v4766 = vpop.f32.mrf.mxu0
        %4767 = vmatprep.mubr.bf16.mxu0 0
        %4768 = vmatmul.mubr.bf16.gmra.mxu0 %v4468
        %v4769 = vpop.f32.mrf.mxu0
        %v4770 = vadd.f32 0.0, %v4769
        %v4771 = vpop.f32.mrf.mxu0
        %v4772 = vpop.f32.mrf.mxu0
        %v4773 = vadd.f32 0.0, %v4772
        %v4774 = vpop.f32.mrf.mxu0
        %4775 = vmatprep.mubr.bf16.mxu0 0
        %4776 = vmatmul.mubr.bf16.gmra.mxu0 %v4477
        %v4777 = vpop.f32.mrf.mxu0
        %v4778 = vadd.f32 0.0, %v4777
        %v4779 = vpop.f32.mrf.mxu0
        %v4780 = vpop.f32.mrf.mxu0
        %v4781 = vadd.f32 0.0, %v4780
        %v4782 = vpop.f32.mrf.mxu0
        %4783 = vmatprep.mubr.bf16.mxu0 0
        %4784 = vmatmul.mubr.bf16.gmra.mxu0 %v4486
        %v4785 = vpop.f32.mrf.mxu0
        %v4786 = vadd.f32 0.0, %v4785
        %v4787 = vpop.f32.mrf.mxu0
        %v4788 = vpop.f32.mrf.mxu0
        %v4789 = vadd.f32 0.0, %v4788
        %v4790 = vpop.f32.mrf.mxu0
        %4791 = vmatprep.mubr.bf16.mxu0 0
        %4792 = vmatmul.mubr.bf16.gmra.mxu0 %v4495
        %v4793 = vpop.f32.mrf.mxu0
        %v4794 = vadd.f32 0.0, %v4793
        %v4795 = vpop.f32.mrf.mxu0
        %v4796 = vpop.f32.mrf.mxu0
        %v4797 = vadd.f32 0.0, %v4796
        %v4798 = vpop.f32.mrf.mxu0
        %4799 = vmatprep.mubr.bf16.mxu0 0
        %4800 = vmatmul.mubr.bf16.gmra.mxu0 %v4504
        %v4801 = vpop.f32.mrf.mxu0
        %v4802 = vadd.f32 0.0, %v4801
        %v4803 = vpop.f32.mrf.mxu0
        %v4804 = vpop.f32.mrf.mxu0
        %v4805 = vadd.f32 0.0, %v4804
        %v4806 = vpop.f32.mrf.mxu0
        %4807 = vmatprep.mubr.bf16.mxu0 0
        %4808 = vmatmul.mubr.bf16.gmra.mxu0 %v4513
        %v4809 = vpop.f32.mrf.mxu0
        %v4810 = vadd.f32 0.0, %v4809
        %v4811 = vpop.f32.mrf.mxu0
        %v4812 = vpop.f32.mrf.mxu0
        %v4813 = vadd.f32 0.0, %v4812
        %v4814 = vpop.f32.mrf.mxu0
        %4815 = vmatprep.mubr.bf16.mxu0 0
        %4816 = vmatmul.mubr.bf16.gmra.mxu0 %v4522
        %v4817 = vpop.f32.mrf.mxu0
        %v4818 = vadd.f32 0.0, %v4817
        %v4819 = vpop.f32.mrf.mxu0
        %v4820 = vpop.f32.mrf.mxu0
        %v4821 = vadd.f32 0.0, %v4820
        %v4822 = vpop.f32.mrf.mxu0
        %4823 = vmatprep.mubr.bf16.mxu0 0
        %4824 = vmatmul.mubr.bf16.gmra.mxu0 %v4531
        %v4825 = vpop.f32.mrf.mxu0
        %v4826 = vadd.f32 0.0, %v4825
        %v4827 = vpop.f32.mrf.mxu0
        %v4828 = vpop.f32.mrf.mxu0
        %v4829 = vadd.f32 0.0, %v4828
        %v4830 = vpop.f32.mrf.mxu0
        %4831 = vmatprep.mubr.bf16.mxu0 0
        %4832 = vmatmul.mubr.bf16.gmra.mxu0 %v4540
        %v4833 = vpop.f32.mrf.mxu0
        %v4834 = vadd.f32 0.0, %v4833
        %v4835 = vpop.f32.mrf.mxu0
        %v4836 = vpop.f32.mrf.mxu0
        %v4837 = vadd.f32 0.0, %v4836
        %v4838 = vpop.f32.mrf.mxu0
        %4839 = vmatprep.mubr.bf16.mxu0 0
        %4840 = vmatmul.mubr.bf16.gmra.mxu0 %v4549
        %v4841 = vpop.f32.mrf.mxu0
        %v4842 = vadd.f32 0.0, %v4841
        %v4843 = vpop.f32.mrf.mxu0
        %v4844 = vpop.f32.mrf.mxu0
        %v4845 = vadd.f32 0.0, %v4844
        %v4846 = vpop.f32.mrf.mxu0
        %4847 = vmatprep.mubr.bf16.mxu0 0
        %4848 = vmatmul.mubr.bf16.gmra.mxu0 %v4558
        %v4849 = vpop.f32.mrf.mxu0
        %v4850 = vadd.f32 0.0, %v4849
        %v4851 = vpop.f32.mrf.mxu0
        %v4852 = vpop.f32.mrf.mxu0
        %v4853 = vadd.f32 0.0, %v4852
        %v4854 = vpop.f32.mrf.mxu0
        %4855 = vdwg.mxu0
        %v4856 = vadd.f32 %v4098, %v4666
        %v4857 = vadd.f32 %v4099, %v4669
        %v4858 = vadd.f32 %v4100, %v4674
        %v4859 = vadd.f32 %v4101, %v4677
        %v4860 = vadd.f32 %v4102, %v4682
        %v4861 = vadd.f32 %v4103, %v4685
        %v4862 = vadd.f32 %v4104, %v4690
        %v4863 = vadd.f32 %v4105, %v4693
        %v4864 = vadd.f32 %v4106, %v4698
        %v4865 = vadd.f32 %v4107, %v4701
        %v4866 = vadd.f32 %v4108, %v4706
        %v4867 = vadd.f32 %v4109, %v4709
        %v4868 = vadd.f32 %v4110, %v4714
        %v4869 = vadd.f32 %v4111, %v4717
        %v4870 = vadd.f32 %v4112, %v4722
        %v4871 = vadd.f32 %v4113, %v4725
        %v4872 = vadd.f32 %v4114, %v4730
        %v4873 = vadd.f32 %v4115, %v4733
        %v4874 = vadd.f32 %v4116, %v4738
        %v4875 = vadd.f32 %v4117, %v4741
        %v4876 = vadd.f32 %v4118, %v4746
        %v4877 = vadd.f32 %v4119, %v4749
        %v4878 = vadd.f32 %v4120, %v4754
        %v4879 = vadd.f32 %v4121, %v4757
        %v4880 = vadd.f32 %v4122, %v4762
        %v4881 = vadd.f32 %v4123, %v4765
        %v4882 = vadd.f32 %v4124, %v4770
        %v4883 = vadd.f32 %v4125, %v4773
        %v4884 = vadd.f32 %v4126, %v4778
        %v4885 = vadd.f32 %v4127, %v4781
        %v4886 = vadd.f32 %v4128, %v4786
        %v4887 = vadd.f32 %v4129, %v4789
        %v4888 = vadd.f32 %v4130, %v4794
        %v4889 = vadd.f32 %v4131, %v4797
        %v4890 = vadd.f32 %v4132, %v4802
        %v4891 = vadd.f32 %v4133, %v4805
        %v4892 = vadd.f32 %v4134, %v4810
        %v4893 = vadd.f32 %v4135, %v4813
        %v4894 = vadd.f32 %v4136, %v4818
        %v4895 = vadd.f32 %v4137, %v4821
        %v4896 = vadd.f32 %v4138, %v4826
        %v4897 = vadd.f32 %v4139, %v4829
        %v4898 = vadd.f32 %v4140, %v4834
        %v4899 = vadd.f32 %v4141, %v4837
        %v4900 = vadd.f32 %v4142, %v4842
        %v4901 = vadd.f32 %v4143, %v4845
        %v4902 = vadd.f32 %v4144, %v4850
        %v4903 = vadd.f32 %v4145, %v4853
        %s4904 = scalar_lea.vmem %s1, 448
        %v4905 = vld [vmem:[%s4904] sm:$0xf]
        %v4906 = vld [vmem:[%s4904 + $0x4] sm:$0xf]
        %v4907 = vld [vmem:[%s4904 + $0x8] sm:$0xf]
        %v4908 = vld [vmem:[%s4904 + $0xc] sm:$0xf]
        %v4909 = vld [vmem:[%s4904 + $0x10] sm:$0xf]
        %v4910 = vld [vmem:[%s4904 + $0x14] sm:$0xf]
        %v4911 = vld [vmem:[%s4904 + $0x18] sm:$0xf]
        %v4912 = vld [vmem:[%s4904 + $0x1c] sm:$0xf]
        %v4913 = vld [vmem:[%s4904 + $0x20] sm:$0xf]
        %v4914 = vld [vmem:[%s4904 + $0x24] sm:$0xf]
        %v4915 = vld [vmem:[%s4904 + $0x28] sm:$0xf]
        %v4916 = vld [vmem:[%s4904 + $0x2c] sm:$0xf]
        %v4917 = vld [vmem:[%s4904 + $0x30] sm:$0xf]
        %v4918 = vld [vmem:[%s4904 + $0x34] sm:$0xf]
        %v4919 = vld [vmem:[%s4904 + $0x38] sm:$0xf]
        %v4920 = vld [vmem:[%s4904 + $0x3c] sm:$0xf]
        %v4921 = vpack.c.b16 %v4263, %v4262
        %v4922 = vpack.c.b16 %v4265, %v4264
        %v4923 = vpack.c.b16 %v4267, %v4266
        %v4924 = vpack.c.b16 %v4269, %v4268
        %v4925 = vpack.c.b16 %v4271, %v4270
        %v4926 = vpack.c.b16 %v4273, %v4272
        %v4927 = vpack.c.b16 %v4275, %v4274
        %v4928 = vpack.c.b16 %v4277, %v4276
        %v4929 = vpack.c.b16 %v4279, %v4278
        %v4930 = vpack.c.b16 %v4281, %v4280
        %v4931 = vpack.c.b16 %v4283, %v4282
        %v4932 = vpack.c.b16 %v4285, %v4284
        %v4933 = vpack.c.b16 %v4287, %v4286
        %v4934 = vpack.c.b16 %v4289, %v4288
        %v4935 = vpack.c.b16 %v4291, %v4290
        %v4936 = vpack.c.b16 %v4293, %v4292
        %v4937 = vpack.c.b16 %v4295, %v4294
        %v4938 = vpack.c.b16 %v4297, %v4296
        %v4939 = vpack.c.b16 %v4299, %v4298
        %v4940 = vpack.c.b16 %v4301, %v4300
        %v4941 = vpack.c.b16 %v4303, %v4302
        %v4942 = vpack.c.b16 %v4305, %v4304
        %v4943 = vpack.c.b16 %v4307, %v4306
        %v4944 = vpack.c.b16 %v4309, %v4308
        %v4985 = vunpack.c.l.b16 %v4905
        %v4986 = vunpack.c.l.b16 %v4906
        %v4987 = vunpack.c.l.b16 %v4907
        %v4988 = vunpack.c.l.b16 %v4908
        %v4989 = vunpack.c.l.b16 %v4909
        %v4990 = vunpack.c.l.b16 %v4910
        %v4991 = vunpack.c.l.b16 %v4911
        %v4992 = vunpack.c.l.b16 %v4912
        %v4993 = vunpack.c.l.b16 %v4913
        %v4994 = vunpack.c.l.b16 %v4914
        %v4995 = vunpack.c.l.b16 %v4915
        %v4996 = vunpack.c.l.b16 %v4916
        %v4997 = vunpack.c.l.b16 %v4917
        %v4998 = vunpack.c.l.b16 %v4918
        %v4999 = vunpack.c.l.b16 %v4919
        %v5000 = vunpack.c.l.b16 %v4920
        %v5001 = vpack.c.b16 %v4986, %v4985
        %v5002 = vpack.c.b16 %v4988, %v4987
        %v5003 = vpack.c.b16 %v4990, %v4989
        %v5004 = vpack.c.b16 %v4992, %v4991
        %v5005 = vpack.c.b16 %v4994, %v4993
        %v5006 = vpack.c.b16 %v4996, %v4995
        %v5007 = vpack.c.b16 %v4998, %v4997
        %v5008 = vpack.c.b16 %v5000, %v4999
        %5017 = vmatprep.subr.bf16.mxu0 0
        %5018 = vmatpush1.bf16.msra.mxu0 %v5008
        %5019 = vmatprep.subr.bf16.mxu0 0
        %5020 = vmatpush1.bf16.msra.mxu0 %v5007
        %5021 = vmatprep.subr.bf16.mxu0 0
        %5022 = vmatpush1.bf16.msra.mxu0 %v5006
        %5023 = vmatprep.subr.bf16.mxu0 0
        %5024 = vmatpush1.bf16.msra.mxu0 %v5005
        %5025 = vmatprep.subr.bf16.mxu0 0
        %5026 = vmatpush1.bf16.msra.mxu0 %v5004
        %5027 = vmatprep.subr.bf16.mxu0 0
        %5028 = vmatpush1.bf16.msra.mxu0 %v5003
        %5029 = vmatprep.subr.bf16.mxu0 0
        %5030 = vmatpush1.bf16.msra.mxu0 %v5002
        %5031 = vmatprep.subr.bf16.mxu0 0
        %5032 = vmatpush1.bf16.msra.mxu0 %v5001
        %5033 = vmatprep.subr.bf16.mxu0 0
        %5034 = vmatpush2.bf16.msra.mxu0 0
        %5035 = vmatprep.subr.bf16.mxu0 0
        %5036 = vmatpush2.bf16.msra.mxu0 0
        %5037 = vmatprep.subr.bf16.mxu0 0
        %5038 = vmatpush2.bf16.msra.mxu0 0
        %5039 = vmatprep.subr.bf16.mxu0 0
        %5040 = vmatpush2.bf16.msra.mxu0 0
        %5041 = vmatprep.subr.bf16.mxu0 0
        %5042 = vmatpush2.bf16.msra.mxu0 0
        %5043 = vmatprep.subr.bf16.mxu0 0
        %5044 = vmatpush2.bf16.msra.mxu0 0
        %5045 = vmatprep.subr.bf16.mxu0 0
        %5046 = vmatpush2.bf16.msra.mxu0 0
        %5047 = vmatprep.subr.bf16.mxu0 0
        %5048 = vmatpush2.bf16.msra.mxu0 0
        %5049 = vmatprep.mubr.bf16.mxu0 0
        %5050 = vmatmul.mubr.bf16.gmra.mxu0 %v4921
        %v5051 = vpop.f32.mrf.mxu0
        %v5052 = vadd.f32 0.0, %v5051
        %v5053 = vpop.f32.mrf.mxu0
        %v5054 = vpop.f32.mrf.mxu0
        %v5055 = vadd.f32 0.0, %v5054
        %v5056 = vpop.f32.mrf.mxu0
        %5057 = vmatprep.mubr.bf16.mxu0 0
        %5058 = vmatmul.mubr.bf16.gmra.mxu0 %v4922
        %v5059 = vpop.f32.mrf.mxu0
        %v5060 = vadd.f32 0.0, %v5059
        %v5061 = vpop.f32.mrf.mxu0
        %v5062 = vpop.f32.mrf.mxu0
        %v5063 = vadd.f32 0.0, %v5062
        %v5064 = vpop.f32.mrf.mxu0
        %5065 = vmatprep.mubr.bf16.mxu0 0
        %5066 = vmatmul.mubr.bf16.gmra.mxu0 %v4923
        %v5067 = vpop.f32.mrf.mxu0
        %v5068 = vadd.f32 0.0, %v5067
        %v5069 = vpop.f32.mrf.mxu0
        %v5070 = vpop.f32.mrf.mxu0
        %v5071 = vadd.f32 0.0, %v5070
        %v5072 = vpop.f32.mrf.mxu0
        %5073 = vmatprep.mubr.bf16.mxu0 0
        %5074 = vmatmul.mubr.bf16.gmra.mxu0 %v4924
        %v5075 = vpop.f32.mrf.mxu0
        %v5076 = vadd.f32 0.0, %v5075
        %v5077 = vpop.f32.mrf.mxu0
        %v5078 = vpop.f32.mrf.mxu0
        %v5079 = vadd.f32 0.0, %v5078
        %v5080 = vpop.f32.mrf.mxu0
        %5081 = vmatprep.mubr.bf16.mxu0 0
        %5082 = vmatmul.mubr.bf16.gmra.mxu0 %v4925
        %v5083 = vpop.f32.mrf.mxu0
        %v5084 = vadd.f32 0.0, %v5083
        %v5085 = vpop.f32.mrf.mxu0
        %v5086 = vpop.f32.mrf.mxu0
        %v5087 = vadd.f32 0.0, %v5086
        %v5088 = vpop.f32.mrf.mxu0
        %5089 = vmatprep.mubr.bf16.mxu0 0
        %5090 = vmatmul.mubr.bf16.gmra.mxu0 %v4926
        %v5091 = vpop.f32.mrf.mxu0
        %v5092 = vadd.f32 0.0, %v5091
        %v5093 = vpop.f32.mrf.mxu0
        %v5094 = vpop.f32.mrf.mxu0
        %v5095 = vadd.f32 0.0, %v5094
        %v5096 = vpop.f32.mrf.mxu0
        %5097 = vmatprep.mubr.bf16.mxu0 0
        %5098 = vmatmul.mubr.bf16.gmra.mxu0 %v4927
        %v5099 = vpop.f32.mrf.mxu0
        %v5100 = vadd.f32 0.0, %v5099
        %v5101 = vpop.f32.mrf.mxu0
        %v5102 = vpop.f32.mrf.mxu0
        %v5103 = vadd.f32 0.0, %v5102
        %v5104 = vpop.f32.mrf.mxu0
        %5105 = vmatprep.mubr.bf16.mxu0 0
        %5106 = vmatmul.mubr.bf16.gmra.mxu0 %v4928
        %v5107 = vpop.f32.mrf.mxu0
        %v5108 = vadd.f32 0.0, %v5107
        %v5109 = vpop.f32.mrf.mxu0
        %v5110 = vpop.f32.mrf.mxu0
        %v5111 = vadd.f32 0.0, %v5110
        %v5112 = vpop.f32.mrf.mxu0
        %5113 = vmatprep.mubr.bf16.mxu0 0
        %5114 = vmatmul.mubr.bf16.gmra.mxu0 %v4929
        %v5115 = vpop.f32.mrf.mxu0
        %v5116 = vadd.f32 0.0, %v5115
        %v5117 = vpop.f32.mrf.mxu0
        %v5118 = vpop.f32.mrf.mxu0
        %v5119 = vadd.f32 0.0, %v5118
        %v5120 = vpop.f32.mrf.mxu0
        %5121 = vmatprep.mubr.bf16.mxu0 0
        %5122 = vmatmul.mubr.bf16.gmra.mxu0 %v4930
        %v5123 = vpop.f32.mrf.mxu0
        %v5124 = vadd.f32 0.0, %v5123
        %v5125 = vpop.f32.mrf.mxu0
        %v5126 = vpop.f32.mrf.mxu0
        %v5127 = vadd.f32 0.0, %v5126
        %v5128 = vpop.f32.mrf.mxu0
        %5129 = vmatprep.mubr.bf16.mxu0 0
        %5130 = vmatmul.mubr.bf16.gmra.mxu0 %v4931
        %v5131 = vpop.f32.mrf.mxu0
        %v5132 = vadd.f32 0.0, %v5131
        %v5133 = vpop.f32.mrf.mxu0
        %v5134 = vpop.f32.mrf.mxu0
        %v5135 = vadd.f32 0.0, %v5134
        %v5136 = vpop.f32.mrf.mxu0
        %5137 = vmatprep.mubr.bf16.mxu0 0
        %5138 = vmatmul.mubr.bf16.gmra.mxu0 %v4932
        %v5139 = vpop.f32.mrf.mxu0
        %v5140 = vadd.f32 0.0, %v5139
        %v5141 = vpop.f32.mrf.mxu0
        %v5142 = vpop.f32.mrf.mxu0
        %v5143 = vadd.f32 0.0, %v5142
        %v5144 = vpop.f32.mrf.mxu0
        %5145 = vmatprep.mubr.bf16.mxu0 0
        %5146 = vmatmul.mubr.bf16.gmra.mxu0 %v4933
        %v5147 = vpop.f32.mrf.mxu0
        %v5148 = vadd.f32 0.0, %v5147
        %v5149 = vpop.f32.mrf.mxu0
        %v5150 = vpop.f32.mrf.mxu0
        %v5151 = vadd.f32 0.0, %v5150
        %v5152 = vpop.f32.mrf.mxu0
        %5153 = vmatprep.mubr.bf16.mxu0 0
        %5154 = vmatmul.mubr.bf16.gmra.mxu0 %v4934
        %v5155 = vpop.f32.mrf.mxu0
        %v5156 = vadd.f32 0.0, %v5155
        %v5157 = vpop.f32.mrf.mxu0
        %v5158 = vpop.f32.mrf.mxu0
        %v5159 = vadd.f32 0.0, %v5158
        %v5160 = vpop.f32.mrf.mxu0
        %5161 = vmatprep.mubr.bf16.mxu0 0
        %5162 = vmatmul.mubr.bf16.gmra.mxu0 %v4935
        %v5163 = vpop.f32.mrf.mxu0
        %v5164 = vadd.f32 0.0, %v5163
        %v5165 = vpop.f32.mrf.mxu0
        %v5166 = vpop.f32.mrf.mxu0
        %v5167 = vadd.f32 0.0, %v5166
        %v5168 = vpop.f32.mrf.mxu0
        %5169 = vmatprep.mubr.bf16.mxu0 0
        %5170 = vmatmul.mubr.bf16.gmra.mxu0 %v4936
        %v5171 = vpop.f32.mrf.mxu0
        %v5172 = vadd.f32 0.0, %v5171
        %v5173 = vpop.f32.mrf.mxu0
        %v5174 = vpop.f32.mrf.mxu0
        %v5175 = vadd.f32 0.0, %v5174
        %v5176 = vpop.f32.mrf.mxu0
        %5177 = vmatprep.mubr.bf16.mxu0 0
        %5178 = vmatmul.mubr.bf16.gmra.mxu0 %v4937
        %v5179 = vpop.f32.mrf.mxu0
        %v5180 = vadd.f32 0.0, %v5179
        %v5181 = vpop.f32.mrf.mxu0
        %v5182 = vpop.f32.mrf.mxu0
        %v5183 = vadd.f32 0.0, %v5182
        %v5184 = vpop.f32.mrf.mxu0
        %5185 = vmatprep.mubr.bf16.mxu0 0
        %5186 = vmatmul.mubr.bf16.gmra.mxu0 %v4938
        %v5187 = vpop.f32.mrf.mxu0
        %v5188 = vadd.f32 0.0, %v5187
        %v5189 = vpop.f32.mrf.mxu0
        %v5190 = vpop.f32.mrf.mxu0
        %v5191 = vadd.f32 0.0, %v5190
        %v5192 = vpop.f32.mrf.mxu0
        %5193 = vmatprep.mubr.bf16.mxu0 0
        %5194 = vmatmul.mubr.bf16.gmra.mxu0 %v4939
        %v5195 = vpop.f32.mrf.mxu0
        %v5196 = vadd.f32 0.0, %v5195
        %v5197 = vpop.f32.mrf.mxu0
        %v5198 = vpop.f32.mrf.mxu0
        %v5199 = vadd.f32 0.0, %v5198
        %v5200 = vpop.f32.mrf.mxu0
        %5201 = vmatprep.mubr.bf16.mxu0 0
        %5202 = vmatmul.mubr.bf16.gmra.mxu0 %v4940
        %v5203 = vpop.f32.mrf.mxu0
        %v5204 = vadd.f32 0.0, %v5203
        %v5205 = vpop.f32.mrf.mxu0
        %v5206 = vpop.f32.mrf.mxu0
        %v5207 = vadd.f32 0.0, %v5206
        %v5208 = vpop.f32.mrf.mxu0
        %5209 = vmatprep.mubr.bf16.mxu0 0
        %5210 = vmatmul.mubr.bf16.gmra.mxu0 %v4941
        %v5211 = vpop.f32.mrf.mxu0
        %v5212 = vadd.f32 0.0, %v5211
        %v5213 = vpop.f32.mrf.mxu0
        %v5214 = vpop.f32.mrf.mxu0
        %v5215 = vadd.f32 0.0, %v5214
        %v5216 = vpop.f32.mrf.mxu0
        %5217 = vmatprep.mubr.bf16.mxu0 0
        %5218 = vmatmul.mubr.bf16.gmra.mxu0 %v4942
        %v5219 = vpop.f32.mrf.mxu0
        %v5220 = vadd.f32 0.0, %v5219
        %v5221 = vpop.f32.mrf.mxu0
        %v5222 = vpop.f32.mrf.mxu0
        %v5223 = vadd.f32 0.0, %v5222
        %v5224 = vpop.f32.mrf.mxu0
        %5225 = vmatprep.mubr.bf16.mxu0 0
        %5226 = vmatmul.mubr.bf16.gmra.mxu0 %v4943
        %v5227 = vpop.f32.mrf.mxu0
        %v5228 = vadd.f32 0.0, %v5227
        %v5229 = vpop.f32.mrf.mxu0
        %v5230 = vpop.f32.mrf.mxu0
        %v5231 = vadd.f32 0.0, %v5230
        %v5232 = vpop.f32.mrf.mxu0
        %5233 = vmatprep.mubr.bf16.mxu0 0
        %5234 = vmatmul.mubr.bf16.gmra.mxu0 %v4944
        %v5235 = vpop.f32.mrf.mxu0
        %v5236 = vadd.f32 0.0, %v5235
        %v5237 = vpop.f32.mrf.mxu0
        %v5238 = vpop.f32.mrf.mxu0
        %v5239 = vadd.f32 0.0, %v5238
        %v5240 = vpop.f32.mrf.mxu0
        %5241 = vdwg.mxu0
        %v5242 = vadd.f32 %v4856, %v5052
        %v5243 = vadd.f32 %v4857, %v5055
        %v5244 = vadd.f32 %v4858, %v5060
        %v5245 = vadd.f32 %v4859, %v5063
        %v5246 = vadd.f32 %v4860, %v5068
        %v5247 = vadd.f32 %v4861, %v5071
        %v5248 = vadd.f32 %v4862, %v5076
        %v5249 = vadd.f32 %v4863, %v5079
        %v5250 = vadd.f32 %v4864, %v5084
        %v5251 = vadd.f32 %v4865, %v5087
        %v5252 = vadd.f32 %v4866, %v5092
        %v5253 = vadd.f32 %v4867, %v5095
        %v5254 = vadd.f32 %v4868, %v5100
        %v5255 = vadd.f32 %v4869, %v5103
        %v5256 = vadd.f32 %v4870, %v5108
        %v5257 = vadd.f32 %v4871, %v5111
        %v5258 = vadd.f32 %v4872, %v5116
        %v5259 = vadd.f32 %v4873, %v5119
        %v5260 = vadd.f32 %v4874, %v5124
        %v5261 = vadd.f32 %v4875, %v5127
        %v5262 = vadd.f32 %v4876, %v5132
        %v5263 = vadd.f32 %v4877, %v5135
        %v5264 = vadd.f32 %v4878, %v5140
        %v5265 = vadd.f32 %v4879, %v5143
        %v5266 = vadd.f32 %v4880, %v5148
        %v5267 = vadd.f32 %v4881, %v5151
        %v5268 = vadd.f32 %v4882, %v5156
        %v5269 = vadd.f32 %v4883, %v5159
        %v5270 = vadd.f32 %v4884, %v5164
        %v5271 = vadd.f32 %v4885, %v5167
        %v5272 = vadd.f32 %v4886, %v5172
        %v5273 = vadd.f32 %v4887, %v5175
        %v5274 = vadd.f32 %v4888, %v5180
        %v5275 = vadd.f32 %v4889, %v5183
        %v5276 = vadd.f32 %v4890, %v5188
        %v5277 = vadd.f32 %v4891, %v5191
        %v5278 = vadd.f32 %v4892, %v5196
        %v5279 = vadd.f32 %v4893, %v5199
        %v5280 = vadd.f32 %v4894, %v5204
        %v5281 = vadd.f32 %v4895, %v5207
        %v5282 = vadd.f32 %v4896, %v5212
        %v5283 = vadd.f32 %v4897, %v5215
        %v5284 = vadd.f32 %v4898, %v5220
        %v5285 = vadd.f32 %v4899, %v5223
        %v5286 = vadd.f32 %v4900, %v5228
        %v5287 = vadd.f32 %v4901, %v5231
        %v5288 = vadd.f32 %v4902, %v5236
        %v5289 = vadd.f32 %v4903, %v5239
        %v5290 = vld [vmem:[#allocation2 + $0x1c] sm:$0xf]
        %v5291 = vld [vmem:[#allocation2 + $0x20] sm:$0xf]
        %v5292 = vld [vmem:[#allocation2 + $0x24] sm:$0xf]
        %v5293 = vld [vmem:[#allocation2 + $0x28] sm:$0xf]
        %v5294 = vld [vmem:[#allocation2 + $0x2c] sm:$0xf]
        %v5295 = vld [vmem:[#allocation2 + $0x30] sm:$0xf]
        %v5296 = vld [vmem:[#allocation2 + $0x34] sm:$0xf]
        %v5297 = vld [vmem:[#allocation2 + $0x38] sm:$0xf]
        %v5298 = vld [vmem:[#allocation2 + $0x3c] sm:$0xf]
        %v5299 = vld [vmem:[#allocation2 + $0x40] sm:$0xf]
        %v5300 = vld [vmem:[#allocation2 + $0x44] sm:$0xf]
        %v5301 = vld [vmem:[#allocation2 + $0x48] sm:$0xf]
        %v5302 = vld [vmem:[#allocation2 + $0x4c] sm:$0xf]
        %v5303 = vld [vmem:[#allocation2 + $0x50] sm:$0xf]
        %v5304 = vld [vmem:[#allocation2 + $0x54] sm:$0xf]
        %v5305 = vld [vmem:[#allocation2 + $0x58] sm:$0xf]
        %v5306 = vld [vmem:[#allocation2 + $0x5c] sm:$0xf]
        %v5307 = vld [vmem:[#allocation2 + $0x60] sm:$0xf]
        %v5308 = vld [vmem:[#allocation2 + $0x64] sm:$0xf]
        %v5309 = vld [vmem:[#allocation2 + $0x68] sm:$0xf]
        %v5310 = vld [vmem:[#allocation2 + $0x6c] sm:$0xf]
        %v5311 = vld [vmem:[#allocation2 + $0x70] sm:$0xf]
        %v5312 = vld [vmem:[#allocation2 + $0x74] sm:$0xf]
        %v5313 = vld [vmem:[#allocation2 + $0x78] sm:$0xf]
        %v5314 = vld [vmem:[#allocation2 + $0x7c] sm:$0xf]
        %v5315 = vld [vmem:[#allocation2 + $0x80] sm:$0xf]
        %v5316 = vld [vmem:[#allocation2 + $0x84] sm:$0xf]
        %v5317 = vld [vmem:[#allocation2 + $0x88] sm:$0xf]
        %v5318 = vld [vmem:[#allocation2 + $0x8c] sm:$0xf]
        %v5319 = vld [vmem:[#allocation2 + $0x90] sm:$0xf]
        %v5320 = vld [vmem:[#allocation2 + $0x94] sm:$0xf]
        %v5321 = vld [vmem:[#allocation2 + $0x98] sm:$0xf]
        %v5322 = vld [vmem:[#allocation2 + $0x9c] sm:$0xf]
        %v5323 = vld [vmem:[#allocation2 + $0xa0] sm:$0xf]
        %v5324 = vld [vmem:[#allocation2 + $0xa4] sm:$0xf]
        %v5325 = vld [vmem:[#allocation2 + $0xa8] sm:$0xf]
        %v5326 = vld [vmem:[#allocation2 + $0xac] sm:$0xf]
        %v5327 = vld [vmem:[#allocation2 + $0xb0] sm:$0xf]
        %v5328 = vld [vmem:[#allocation2 + $0xb4] sm:$0xf]
        %v5329 = vld [vmem:[#allocation2 + $0xb8] sm:$0xf]
        %v5330 = vld [vmem:[#allocation2 + $0xbc] sm:$0xf]
        %v5331 = vld [vmem:[#allocation2 + $0xc0] sm:$0xf]
        %v5332 = vld [vmem:[#allocation2 + $0xc4] sm:$0xf]
        %v5333 = vld [vmem:[#allocation2 + $0xc8] sm:$0xf]
        %v5334 = vld [vmem:[#allocation2 + $0xcc] sm:$0xf]
        %v5335 = vld [vmem:[#allocation2 + $0xd0] sm:$0xf]
        %v5336 = vld [vmem:[#allocation2 + $0xd4] sm:$0xf]
        %v5337 = vld [vmem:[#allocation2 + $0xd8] sm:$0xf]
        %v5338 = vld [vmem:[#allocation2 + $0xdc] sm:$0x1]
        %s5339 = scalar_lea.vmem %s1, 512
        %v5340 = vld [vmem:[%s5339] sm:$0xf]
        %v5341 = vld [vmem:[%s5339 + $0x4] sm:$0xf]
        %v5342 = vld [vmem:[%s5339 + $0x8] sm:$0xf]
        %v5343 = vld [vmem:[%s5339 + $0xc] sm:$0xf]
        %v5344 = vld [vmem:[%s5339 + $0x10] sm:$0xf]
        %v5345 = vld [vmem:[%s5339 + $0x14] sm:$0xf]
        %v5346 = vld [vmem:[%s5339 + $0x18] sm:$0xf]
        %v5347 = vld [vmem:[%s5339 + $0x1c] sm:$0xf]
        %v5348 = vld [vmem:[%s5339 + $0x20] sm:$0xf]
        %v5349 = vld [vmem:[%s5339 + $0x24] sm:$0xf]
        %v5350 = vld [vmem:[%s5339 + $0x28] sm:$0xf]
        %v5351 = vld [vmem:[%s5339 + $0x2c] sm:$0xf]
        %v5352 = vld [vmem:[%s5339 + $0x30] sm:$0xf]
        %v5353 = vld [vmem:[%s5339 + $0x34] sm:$0xf]
        %v5354 = vld [vmem:[%s5339 + $0x38] sm:$0xf]
        %v5355 = vld [vmem:[%s5339 + $0x3c] sm:$0xf]
        %v5405 = vunpack.c.l.b16 %v5290
        %v5406 = vunpack.c.l.b16 %v5291
        %v5407 = vunpack.c.l.b16 %v5292
        %v5408 = vunpack.c.l.b16 %v5293
        %v5409 = vunpack.c.l.b16 %v5294
        %v5410 = vunpack.c.l.b16 %v5295
        %v5411 = vunpack.c.l.b16 %v5296
        %v5412 = vunpack.c.l.b16 %v5297
        %v5413 = vunpack.c.l.b16 %v5298
        %v5414 = vunpack.c.l.b16 %v5299
        %v5415 = vunpack.c.l.b16 %v5300
        %v5416 = vunpack.c.l.b16 %v5301
        %v5417 = vunpack.c.l.b16 %v5302
        %v5418 = vunpack.c.l.b16 %v5303
        %v5419 = vunpack.c.l.b16 %v5304
        %v5420 = vunpack.c.l.b16 %v5305
        %v5421 = vunpack.c.l.b16 %v5306
        %v5422 = vunpack.c.l.b16 %v5307
        %v5423 = vunpack.c.l.b16 %v5308
        %v5424 = vunpack.c.l.b16 %v5309
        %v5425 = vunpack.c.l.b16 %v5310
        %v5426 = vunpack.c.l.b16 %v5311
        %v5427 = vunpack.c.l.b16 %v5312
        %v5428 = vunpack.c.l.b16 %v5313
        %v5429 = vunpack.c.l.b16 %v5314
        %v5430 = vunpack.c.l.b16 %v5315
        %v5431 = vunpack.c.l.b16 %v5316
        %v5432 = vunpack.c.l.b16 %v5317
        %v5433 = vunpack.c.l.b16 %v5318
        %v5434 = vunpack.c.l.b16 %v5319
        %v5435 = vunpack.c.l.b16 %v5320
        %v5436 = vunpack.c.l.b16 %v5321
        %v5437 = vunpack.c.l.b16 %v5322
        %v5438 = vunpack.c.l.b16 %v5323
        %v5439 = vunpack.c.l.b16 %v5324
        %v5440 = vunpack.c.l.b16 %v5325
        %v5441 = vunpack.c.l.b16 %v5326
        %v5442 = vunpack.c.l.b16 %v5327
        %v5443 = vunpack.c.l.b16 %v5328
        %v5444 = vunpack.c.l.b16 %v5329
        %v5445 = vunpack.c.l.b16 %v5330
        %v5446 = vunpack.c.l.b16 %v5331
        %v5447 = vunpack.c.l.b16 %v5332
        %v5448 = vunpack.c.l.b16 %v5333
        %v5449 = vunpack.c.l.b16 %v5334
        %v5450 = vunpack.c.l.b16 %v5335
        %v5451 = vunpack.c.l.b16 %v5336
        %v5452 = vunpack.c.l.b16 %v5337
        %v5453 = vunpack.c.l.b16 %v5338
        %v5454 = vpack.c.b16 %v5406, %v5405
        %v5455 = vpack.c.b16 %v5408, %v5407
        %v5456 = vpack.c.b16 %v5410, %v5409
        %v5457 = vpack.c.b16 %v5412, %v5411
        %v5458 = vpack.c.b16 %v5414, %v5413
        %v5459 = vpack.c.b16 %v5416, %v5415
        %v5460 = vpack.c.b16 %v5418, %v5417
        %v5461 = vpack.c.b16 %v5420, %v5419
        %v5462 = vpack.c.b16 %v5422, %v5421
        %v5463 = vpack.c.b16 %v5424, %v5423
        %v5464 = vpack.c.b16 %v5426, %v5425
        %v5465 = vpack.c.b16 %v5428, %v5427
        %v5466 = vpack.c.b16 %v5430, %v5429
        %v5467 = vpack.c.b16 %v5432, %v5431
        %v5468 = vpack.c.b16 %v5434, %v5433
        %v5469 = vpack.c.b16 %v5436, %v5435
        %v5470 = vpack.c.b16 %v5438, %v5437
        %v5471 = vpack.c.b16 %v5440, %v5439
        %v5472 = vpack.c.b16 %v5442, %v5441
        %v5473 = vpack.c.b16 %v5444, %v5443
        %v5474 = vpack.c.b16 %v5446, %v5445
        %v5475 = vpack.c.b16 %v5448, %v5447
        %v5476 = vpack.c.b16 %v5450, %v5449
        %v5477 = vpack.c.b16 %v5452, %v5451
        %v5478 = vpack.c.b16 %v5453, %v5453
        %v5480 = vshrl.u32 %v5454, 16
        %v5482 = vshll.u32 %v5454, 16
        %v5484 = vrot.slane %v5482, 1
        %v5485 = vor.u32 %v5480, %v5484
        %v5487 = vshll.u32 %v5455, 16
        %v5489 = vrot.slane %v5487, 1
        %v5490 = vsel %vm1730, %v5485, %v5489
        %v5491 = vshrl.u32 %v5455, 16
        %v5493 = vor.u32 %v5491, %v5489
        %v5495 = vshll.u32 %v5456, 16
        %v5497 = vrot.slane %v5495, 1
        %v5498 = vsel %vm1730, %v5493, %v5497
        %v5499 = vshrl.u32 %v5456, 16
        %v5501 = vor.u32 %v5499, %v5497
        %v5503 = vshll.u32 %v5457, 16
        %v5505 = vrot.slane %v5503, 1
        %v5506 = vsel %vm1730, %v5501, %v5505
        %v5507 = vshrl.u32 %v5457, 16
        %v5509 = vor.u32 %v5507, %v5505
        %v5511 = vshll.u32 %v5458, 16
        %v5513 = vrot.slane %v5511, 1
        %v5514 = vsel %vm1730, %v5509, %v5513
        %v5515 = vshrl.u32 %v5458, 16
        %v5517 = vor.u32 %v5515, %v5513
        %v5519 = vshll.u32 %v5459, 16
        %v5521 = vrot.slane %v5519, 1
        %v5522 = vsel %vm1730, %v5517, %v5521
        %v5523 = vshrl.u32 %v5459, 16
        %v5525 = vor.u32 %v5523, %v5521
        %v5527 = vshll.u32 %v5460, 16
        %v5529 = vrot.slane %v5527, 1
        %v5530 = vsel %vm1730, %v5525, %v5529
        %v5531 = vshrl.u32 %v5460, 16
        %v5533 = vor.u32 %v5531, %v5529
        %v5535 = vshll.u32 %v5461, 16
        %v5537 = vrot.slane %v5535, 1
        %v5538 = vsel %vm1730, %v5533, %v5537
        %v5539 = vshrl.u32 %v5461, 16
        %v5541 = vor.u32 %v5539, %v5537
        %v5543 = vshll.u32 %v5462, 16
        %v5545 = vrot.slane %v5543, 1
        %v5546 = vsel %vm1730, %v5541, %v5545
        %v5547 = vshrl.u32 %v5462, 16
        %v5549 = vor.u32 %v5547, %v5545
        %v5551 = vshll.u32 %v5463, 16
        %v5553 = vrot.slane %v5551, 1
        %v5554 = vsel %vm1730, %v5549, %v5553
        %v5555 = vshrl.u32 %v5463, 16
        %v5557 = vor.u32 %v5555, %v5553
        %v5559 = vshll.u32 %v5464, 16
        %v5561 = vrot.slane %v5559, 1
        %v5562 = vsel %vm1730, %v5557, %v5561
        %v5563 = vshrl.u32 %v5464, 16
        %v5565 = vor.u32 %v5563, %v5561
        %v5567 = vshll.u32 %v5465, 16
        %v5569 = vrot.slane %v5567, 1
        %v5570 = vsel %vm1730, %v5565, %v5569
        %v5571 = vshrl.u32 %v5465, 16
        %v5573 = vor.u32 %v5571, %v5569
        %v5575 = vshll.u32 %v5466, 16
        %v5577 = vrot.slane %v5575, 1
        %v5578 = vsel %vm1730, %v5573, %v5577
        %v5579 = vshrl.u32 %v5466, 16
        %v5581 = vor.u32 %v5579, %v5577
        %v5583 = vshll.u32 %v5467, 16
        %v5585 = vrot.slane %v5583, 1
        %v5586 = vsel %vm1730, %v5581, %v5585
        %v5587 = vshrl.u32 %v5467, 16
        %v5589 = vor.u32 %v5587, %v5585
        %v5591 = vshll.u32 %v5468, 16
        %v5593 = vrot.slane %v5591, 1
        %v5594 = vsel %vm1730, %v5589, %v5593
        %v5595 = vshrl.u32 %v5468, 16
        %v5597 = vor.u32 %v5595, %v5593
        %v5599 = vshll.u32 %v5469, 16
        %v5601 = vrot.slane %v5599, 1
        %v5602 = vsel %vm1730, %v5597, %v5601
        %v5603 = vshrl.u32 %v5469, 16
        %v5605 = vor.u32 %v5603, %v5601
        %v5607 = vshll.u32 %v5470, 16
        %v5609 = vrot.slane %v5607, 1
        %v5610 = vsel %vm1730, %v5605, %v5609
        %v5611 = vshrl.u32 %v5470, 16
        %v5613 = vor.u32 %v5611, %v5609
        %v5615 = vshll.u32 %v5471, 16
        %v5617 = vrot.slane %v5615, 1
        %v5618 = vsel %vm1730, %v5613, %v5617
        %v5619 = vshrl.u32 %v5471, 16
        %v5621 = vor.u32 %v5619, %v5617
        %v5623 = vshll.u32 %v5472, 16
        %v5625 = vrot.slane %v5623, 1
        %v5626 = vsel %vm1730, %v5621, %v5625
        %v5627 = vshrl.u32 %v5472, 16
        %v5629 = vor.u32 %v5627, %v5625
        %v5631 = vshll.u32 %v5473, 16
        %v5633 = vrot.slane %v5631, 1
        %v5634 = vsel %vm1730, %v5629, %v5633
        %v5635 = vshrl.u32 %v5473, 16
        %v5637 = vor.u32 %v5635, %v5633
        %v5639 = vshll.u32 %v5474, 16
        %v5641 = vrot.slane %v5639, 1
        %v5642 = vsel %vm1730, %v5637, %v5641
        %v5643 = vshrl.u32 %v5474, 16
        %v5645 = vor.u32 %v5643, %v5641
        %v5647 = vshll.u32 %v5475, 16
        %v5649 = vrot.slane %v5647, 1
        %v5650 = vsel %vm1730, %v5645, %v5649
        %v5651 = vshrl.u32 %v5475, 16
        %v5653 = vor.u32 %v5651, %v5649
        %v5655 = vshll.u32 %v5476, 16
        %v5657 = vrot.slane %v5655, 1
        %v5658 = vsel %vm1730, %v5653, %v5657
        %v5659 = vshrl.u32 %v5476, 16
        %v5661 = vor.u32 %v5659, %v5657
        %v5663 = vshll.u32 %v5477, 16
        %v5665 = vrot.slane %v5663, 1
        %v5666 = vsel %vm1730, %v5661, %v5665
        %v5667 = vshrl.u32 %v5477, 16
        %v5669 = vor.u32 %v5667, %v5665
        %v5671 = vshll.u32 %v5478, 16
        %v5673 = vrot.slane %v5671, 1
        %v5674 = vsel %vm1730, %v5669, %v5673
        %v5715 = vunpack.c.l.b16 %v5340
        %v5716 = vunpack.c.l.b16 %v5341
        %v5717 = vunpack.c.l.b16 %v5342
        %v5718 = vunpack.c.l.b16 %v5343
        %v5719 = vunpack.c.l.b16 %v5344
        %v5720 = vunpack.c.l.b16 %v5345
        %v5721 = vunpack.c.l.b16 %v5346
        %v5722 = vunpack.c.l.b16 %v5347
        %v5723 = vunpack.c.l.b16 %v5348
        %v5724 = vunpack.c.l.b16 %v5349
        %v5725 = vunpack.c.l.b16 %v5350
        %v5726 = vunpack.c.l.b16 %v5351
        %v5727 = vunpack.c.l.b16 %v5352
        %v5728 = vunpack.c.l.b16 %v5353
        %v5729 = vunpack.c.l.b16 %v5354
        %v5730 = vunpack.c.l.b16 %v5355
        %v5731 = vpack.c.b16 %v5716, %v5715
        %v5732 = vpack.c.b16 %v5718, %v5717
        %v5733 = vpack.c.b16 %v5720, %v5719
        %v5734 = vpack.c.b16 %v5722, %v5721
        %v5735 = vpack.c.b16 %v5724, %v5723
        %v5736 = vpack.c.b16 %v5726, %v5725
        %v5737 = vpack.c.b16 %v5728, %v5727
        %v5738 = vpack.c.b16 %v5730, %v5729
        %5747 = vmatprep.subr.bf16.mxu0 0
        %5748 = vmatpush1.bf16.msra.mxu0 %v5738
        %5749 = vmatprep.subr.bf16.mxu0 0
        %5750 = vmatpush1.bf16.msra.mxu0 %v5737
        %5751 = vmatprep.subr.bf16.mxu0 0
        %5752 = vmatpush1.bf16.msra.mxu0 %v5736
        %5753 = vmatprep.subr.bf16.mxu0 0
        %5754 = vmatpush1.bf16.msra.mxu0 %v5735
        %5755 = vmatprep.subr.bf16.mxu0 0
        %5756 = vmatpush1.bf16.msra.mxu0 %v5734
        %5757 = vmatprep.subr.bf16.mxu0 0
        %5758 = vmatpush1.bf16.msra.mxu0 %v5733
        %5759 = vmatprep.subr.bf16.mxu0 0
        %5760 = vmatpush1.bf16.msra.mxu0 %v5732
        %5761 = vmatprep.subr.bf16.mxu0 0
        %5762 = vmatpush1.bf16.msra.mxu0 %v5731
        %5763 = vmatprep.subr.bf16.mxu0 0
        %5764 = vmatpush2.bf16.msra.mxu0 0
        %5765 = vmatprep.subr.bf16.mxu0 0
        %5766 = vmatpush2.bf16.msra.mxu0 0
        %5767 = vmatprep.subr.bf16.mxu0 0
        %5768 = vmatpush2.bf16.msra.mxu0 0
        %5769 = vmatprep.subr.bf16.mxu0 0
        %5770 = vmatpush2.bf16.msra.mxu0 0
        %5771 = vmatprep.subr.bf16.mxu0 0
        %5772 = vmatpush2.bf16.msra.mxu0 0
        %5773 = vmatprep.subr.bf16.mxu0 0
        %5774 = vmatpush2.bf16.msra.mxu0 0
        %5775 = vmatprep.subr.bf16.mxu0 0
        %5776 = vmatpush2.bf16.msra.mxu0 0
        %5777 = vmatprep.subr.bf16.mxu0 0
        %5778 = vmatpush2.bf16.msra.mxu0 0
        %5779 = vmatprep.mubr.bf16.mxu0 0
        %5780 = vmatmul.mubr.bf16.gmra.mxu0 %v5490
        %v5781 = vpop.f32.mrf.mxu0
        %v5782 = vadd.f32 0.0, %v5781
        %v5783 = vpop.f32.mrf.mxu0
        %v5784 = vpop.f32.mrf.mxu0
        %v5785 = vadd.f32 0.0, %v5784
        %v5786 = vpop.f32.mrf.mxu0
        %5787 = vmatprep.mubr.bf16.mxu0 0
        %5788 = vmatmul.mubr.bf16.gmra.mxu0 %v5498
        %v5789 = vpop.f32.mrf.mxu0
        %v5790 = vadd.f32 0.0, %v5789
        %v5791 = vpop.f32.mrf.mxu0
        %v5792 = vpop.f32.mrf.mxu0
        %v5793 = vadd.f32 0.0, %v5792
        %v5794 = vpop.f32.mrf.mxu0
        %5795 = vmatprep.mubr.bf16.mxu0 0
        %5796 = vmatmul.mubr.bf16.gmra.mxu0 %v5506
        %v5797 = vpop.f32.mrf.mxu0
        %v5798 = vadd.f32 0.0, %v5797
        %v5799 = vpop.f32.mrf.mxu0
        %v5800 = vpop.f32.mrf.mxu0
        %v5801 = vadd.f32 0.0, %v5800
        %v5802 = vpop.f32.mrf.mxu0
        %5803 = vmatprep.mubr.bf16.mxu0 0
        %5804 = vmatmul.mubr.bf16.gmra.mxu0 %v5514
        %v5805 = vpop.f32.mrf.mxu0
        %v5806 = vadd.f32 0.0, %v5805
        %v5807 = vpop.f32.mrf.mxu0
        %v5808 = vpop.f32.mrf.mxu0
        %v5809 = vadd.f32 0.0, %v5808
        %v5810 = vpop.f32.mrf.mxu0
        %5811 = vmatprep.mubr.bf16.mxu0 0
        %5812 = vmatmul.mubr.bf16.gmra.mxu0 %v5522
        %v5813 = vpop.f32.mrf.mxu0
        %v5814 = vadd.f32 0.0, %v5813
        %v5815 = vpop.f32.mrf.mxu0
        %v5816 = vpop.f32.mrf.mxu0
        %v5817 = vadd.f32 0.0, %v5816
        %v5818 = vpop.f32.mrf.mxu0
        %5819 = vmatprep.mubr.bf16.mxu0 0
        %5820 = vmatmul.mubr.bf16.gmra.mxu0 %v5530
        %v5821 = vpop.f32.mrf.mxu0
        %v5822 = vadd.f32 0.0, %v5821
        %v5823 = vpop.f32.mrf.mxu0
        %v5824 = vpop.f32.mrf.mxu0
        %v5825 = vadd.f32 0.0, %v5824
        %v5826 = vpop.f32.mrf.mxu0
        %5827 = vmatprep.mubr.bf16.mxu0 0
        %5828 = vmatmul.mubr.bf16.gmra.mxu0 %v5538
        %v5829 = vpop.f32.mrf.mxu0
        %v5830 = vadd.f32 0.0, %v5829
        %v5831 = vpop.f32.mrf.mxu0
        %v5832 = vpop.f32.mrf.mxu0
        %v5833 = vadd.f32 0.0, %v5832
        %v5834 = vpop.f32.mrf.mxu0
        %5835 = vmatprep.mubr.bf16.mxu0 0
        %5836 = vmatmul.mubr.bf16.gmra.mxu0 %v5546
        %v5837 = vpop.f32.mrf.mxu0
        %v5838 = vadd.f32 0.0, %v5837
        %v5839 = vpop.f32.mrf.mxu0
        %v5840 = vpop.f32.mrf.mxu0
        %v5841 = vadd.f32 0.0, %v5840
        %v5842 = vpop.f32.mrf.mxu0
        %5843 = vmatprep.mubr.bf16.mxu0 0
        %5844 = vmatmul.mubr.bf16.gmra.mxu0 %v5554
        %v5845 = vpop.f32.mrf.mxu0
        %v5846 = vadd.f32 0.0, %v5845
        %v5847 = vpop.f32.mrf.mxu0
        %v5848 = vpop.f32.mrf.mxu0
        %v5849 = vadd.f32 0.0, %v5848
        %v5850 = vpop.f32.mrf.mxu0
        %5851 = vmatprep.mubr.bf16.mxu0 0
        %5852 = vmatmul.mubr.bf16.gmra.mxu0 %v5562
        %v5853 = vpop.f32.mrf.mxu0
        %v5854 = vadd.f32 0.0, %v5853
        %v5855 = vpop.f32.mrf.mxu0
        %v5856 = vpop.f32.mrf.mxu0
        %v5857 = vadd.f32 0.0, %v5856
        %v5858 = vpop.f32.mrf.mxu0
        %5859 = vmatprep.mubr.bf16.mxu0 0
        %5860 = vmatmul.mubr.bf16.gmra.mxu0 %v5570
        %v5861 = vpop.f32.mrf.mxu0
        %v5862 = vadd.f32 0.0, %v5861
        %v5863 = vpop.f32.mrf.mxu0
        %v5864 = vpop.f32.mrf.mxu0
        %v5865 = vadd.f32 0.0, %v5864
        %v5866 = vpop.f32.mrf.mxu0
        %5867 = vmatprep.mubr.bf16.mxu0 0
        %5868 = vmatmul.mubr.bf16.gmra.mxu0 %v5578
        %v5869 = vpop.f32.mrf.mxu0
        %v5870 = vadd.f32 0.0, %v5869
        %v5871 = vpop.f32.mrf.mxu0
        %v5872 = vpop.f32.mrf.mxu0
        %v5873 = vadd.f32 0.0, %v5872
        %v5874 = vpop.f32.mrf.mxu0
        %5875 = vmatprep.mubr.bf16.mxu0 0
        %5876 = vmatmul.mubr.bf16.gmra.mxu0 %v5586
        %v5877 = vpop.f32.mrf.mxu0
        %v5878 = vadd.f32 0.0, %v5877
        %v5879 = vpop.f32.mrf.mxu0
        %v5880 = vpop.f32.mrf.mxu0
        %v5881 = vadd.f32 0.0, %v5880
        %v5882 = vpop.f32.mrf.mxu0
        %5883 = vmatprep.mubr.bf16.mxu0 0
        %5884 = vmatmul.mubr.bf16.gmra.mxu0 %v5594
        %v5885 = vpop.f32.mrf.mxu0
        %v5886 = vadd.f32 0.0, %v5885
        %v5887 = vpop.f32.mrf.mxu0
        %v5888 = vpop.f32.mrf.mxu0
        %v5889 = vadd.f32 0.0, %v5888
        %v5890 = vpop.f32.mrf.mxu0
        %5891 = vmatprep.mubr.bf16.mxu0 0
        %5892 = vmatmul.mubr.bf16.gmra.mxu0 %v5602
        %v5893 = vpop.f32.mrf.mxu0
        %v5894 = vadd.f32 0.0, %v5893
        %v5895 = vpop.f32.mrf.mxu0
        %v5896 = vpop.f32.mrf.mxu0
        %v5897 = vadd.f32 0.0, %v5896
        %v5898 = vpop.f32.mrf.mxu0
        %5899 = vmatprep.mubr.bf16.mxu0 0
        %5900 = vmatmul.mubr.bf16.gmra.mxu0 %v5610
        %v5901 = vpop.f32.mrf.mxu0
        %v5902 = vadd.f32 0.0, %v5901
        %v5903 = vpop.f32.mrf.mxu0
        %v5904 = vpop.f32.mrf.mxu0
        %v5905 = vadd.f32 0.0, %v5904
        %v5906 = vpop.f32.mrf.mxu0
        %5907 = vmatprep.mubr.bf16.mxu0 0
        %5908 = vmatmul.mubr.bf16.gmra.mxu0 %v5618
        %v5909 = vpop.f32.mrf.mxu0
        %v5910 = vadd.f32 0.0, %v5909
        %v5911 = vpop.f32.mrf.mxu0
        %v5912 = vpop.f32.mrf.mxu0
        %v5913 = vadd.f32 0.0, %v5912
        %v5914 = vpop.f32.mrf.mxu0
        %5915 = vmatprep.mubr.bf16.mxu0 0
        %5916 = vmatmul.mubr.bf16.gmra.mxu0 %v5626
        %v5917 = vpop.f32.mrf.mxu0
        %v5918 = vadd.f32 0.0, %v5917
        %v5919 = vpop.f32.mrf.mxu0
        %v5920 = vpop.f32.mrf.mxu0
        %v5921 = vadd.f32 0.0, %v5920
        %v5922 = vpop.f32.mrf.mxu0
        %5923 = vmatprep.mubr.bf16.mxu0 0
        %5924 = vmatmul.mubr.bf16.gmra.mxu0 %v5634
        %v5925 = vpop.f32.mrf.mxu0
        %v5926 = vadd.f32 0.0, %v5925
        %v5927 = vpop.f32.mrf.mxu0
        %v5928 = vpop.f32.mrf.mxu0
        %v5929 = vadd.f32 0.0, %v5928
        %v5930 = vpop.f32.mrf.mxu0
        %5931 = vmatprep.mubr.bf16.mxu0 0
        %5932 = vmatmul.mubr.bf16.gmra.mxu0 %v5642
        %v5933 = vpop.f32.mrf.mxu0
        %v5934 = vadd.f32 0.0, %v5933
        %v5935 = vpop.f32.mrf.mxu0
        %v5936 = vpop.f32.mrf.mxu0
        %v5937 = vadd.f32 0.0, %v5936
        %v5938 = vpop.f32.mrf.mxu0
        %5939 = vmatprep.mubr.bf16.mxu0 0
        %5940 = vmatmul.mubr.bf16.gmra.mxu0 %v5650
        %v5941 = vpop.f32.mrf.mxu0
        %v5942 = vadd.f32 0.0, %v5941
        %v5943 = vpop.f32.mrf.mxu0
        %v5944 = vpop.f32.mrf.mxu0
        %v5945 = vadd.f32 0.0, %v5944
        %v5946 = vpop.f32.mrf.mxu0
        %5947 = vmatprep.mubr.bf16.mxu0 0
        %5948 = vmatmul.mubr.bf16.gmra.mxu0 %v5658
        %v5949 = vpop.f32.mrf.mxu0
        %v5950 = vadd.f32 0.0, %v5949
        %v5951 = vpop.f32.mrf.mxu0
        %v5952 = vpop.f32.mrf.mxu0
        %v5953 = vadd.f32 0.0, %v5952
        %v5954 = vpop.f32.mrf.mxu0
        %5955 = vmatprep.mubr.bf16.mxu0 0
        %5956 = vmatmul.mubr.bf16.gmra.mxu0 %v5666
        %v5957 = vpop.f32.mrf.mxu0
        %v5958 = vadd.f32 0.0, %v5957
        %v5959 = vpop.f32.mrf.mxu0
        %v5960 = vpop.f32.mrf.mxu0
        %v5961 = vadd.f32 0.0, %v5960
        %v5962 = vpop.f32.mrf.mxu0
        %5963 = vmatprep.mubr.bf16.mxu0 0
        %5964 = vmatmul.mubr.bf16.gmra.mxu0 %v5674
        %v5965 = vpop.f32.mrf.mxu0
        %v5966 = vadd.f32 0.0, %v5965
        %v5967 = vpop.f32.mrf.mxu0
        %v5968 = vpop.f32.mrf.mxu0
        %v5969 = vadd.f32 0.0, %v5968
        %v5970 = vpop.f32.mrf.mxu0
        %5971 = vdwg.mxu0
        %v5972 = vadd.f32 %v5242, %v5782
        %v5973 = vadd.f32 %v5243, %v5785
        %v5974 = vadd.f32 %v5244, %v5790
        %v5975 = vadd.f32 %v5245, %v5793
        %v5976 = vadd.f32 %v5246, %v5798
        %v5977 = vadd.f32 %v5247, %v5801
        %v5978 = vadd.f32 %v5248, %v5806
        %v5979 = vadd.f32 %v5249, %v5809
        %v5980 = vadd.f32 %v5250, %v5814
        %v5981 = vadd.f32 %v5251, %v5817
        %v5982 = vadd.f32 %v5252, %v5822
        %v5983 = vadd.f32 %v5253, %v5825
        %v5984 = vadd.f32 %v5254, %v5830
        %v5985 = vadd.f32 %v5255, %v5833
        %v5986 = vadd.f32 %v5256, %v5838
        %v5987 = vadd.f32 %v5257, %v5841
        %v5988 = vadd.f32 %v5258, %v5846
        %v5989 = vadd.f32 %v5259, %v5849
        %v5990 = vadd.f32 %v5260, %v5854
        %v5991 = vadd.f32 %v5261, %v5857
        %v5992 = vadd.f32 %v5262, %v5862
        %v5993 = vadd.f32 %v5263, %v5865
        %v5994 = vadd.f32 %v5264, %v5870
        %v5995 = vadd.f32 %v5265, %v5873
        %v5996 = vadd.f32 %v5266, %v5878
        %v5997 = vadd.f32 %v5267, %v5881
        %v5998 = vadd.f32 %v5268, %v5886
        %v5999 = vadd.f32 %v5269, %v5889
        %v6000 = vadd.f32 %v5270, %v5894
        %v6001 = vadd.f32 %v5271, %v5897
        %v6002 = vadd.f32 %v5272, %v5902
        %v6003 = vadd.f32 %v5273, %v5905
        %v6004 = vadd.f32 %v5274, %v5910
        %v6005 = vadd.f32 %v5275, %v5913
        %v6006 = vadd.f32 %v5276, %v5918
        %v6007 = vadd.f32 %v5277, %v5921
        %v6008 = vadd.f32 %v5278, %v5926
        %v6009 = vadd.f32 %v5279, %v5929
        %v6010 = vadd.f32 %v5280, %v5934
        %v6011 = vadd.f32 %v5281, %v5937
        %v6012 = vadd.f32 %v5282, %v5942
        %v6013 = vadd.f32 %v5283, %v5945
        %v6014 = vadd.f32 %v5284, %v5950
        %v6015 = vadd.f32 %v5285, %v5953
        %v6016 = vadd.f32 %v5286, %v5958
        %v6017 = vadd.f32 %v5287, %v5961
        %v6018 = vadd.f32 %v5288, %v5966
        %v6019 = vadd.f32 %v5289, %v5969
        %v6020 = vld [vmem:[%s3] sm:$0x1]
        %v6022 = vlaneseq
        %v6023 = vshrl.u32 %v6022, 7
        %v6024 = vsub.s32 0, %v6023
        %v6025 = vrot.slane %v6020, %v6024
        %v6027 = vadd.f32 %v5972, %v6025
        %v6028 = vadd.f32 %v5973, %v6025
        %v6029 = vadd.f32 %v5974, %v6025
        %v6030 = vadd.f32 %v5975, %v6025
        %v6031 = vadd.f32 %v5976, %v6025
        %v6032 = vadd.f32 %v5977, %v6025
        %v6033 = vadd.f32 %v5978, %v6025
        %v6034 = vadd.f32 %v5979, %v6025
        %v6035 = vadd.f32 %v5980, %v6025
        %v6036 = vadd.f32 %v5981, %v6025
        %v6037 = vadd.f32 %v5982, %v6025
        %v6038 = vadd.f32 %v5983, %v6025
        %v6039 = vadd.f32 %v5984, %v6025
        %v6040 = vadd.f32 %v5985, %v6025
        %v6041 = vadd.f32 %v5986, %v6025
        %v6042 = vadd.f32 %v5987, %v6025
        %v6043 = vadd.f32 %v5988, %v6025
        %v6044 = vadd.f32 %v5989, %v6025
        %v6045 = vadd.f32 %v5990, %v6025
        %v6046 = vadd.f32 %v5991, %v6025
        %v6047 = vadd.f32 %v5992, %v6025
        %v6048 = vadd.f32 %v5993, %v6025
        %v6049 = vadd.f32 %v5994, %v6025
        %v6050 = vadd.f32 %v5995, %v6025
        %v6051 = vadd.f32 %v5996, %v6025
        %v6052 = vadd.f32 %v5997, %v6025
        %v6053 = vadd.f32 %v5998, %v6025
        %v6054 = vadd.f32 %v5999, %v6025
        %v6055 = vadd.f32 %v6000, %v6025
        %v6056 = vadd.f32 %v6001, %v6025
        %v6057 = vadd.f32 %v6002, %v6025
        %v6058 = vadd.f32 %v6003, %v6025
        %v6059 = vadd.f32 %v6004, %v6025
        %v6060 = vadd.f32 %v6005, %v6025
        %v6061 = vadd.f32 %v6006, %v6025
        %v6062 = vadd.f32 %v6007, %v6025
        %v6063 = vadd.f32 %v6008, %v6025
        %v6064 = vadd.f32 %v6009, %v6025
        %v6065 = vadd.f32 %v6010, %v6025
        %v6066 = vadd.f32 %v6011, %v6025
        %v6067 = vadd.f32 %v6012, %v6025
        %v6068 = vadd.f32 %v6013, %v6025
        %v6069 = vadd.f32 %v6014, %v6025
        %v6070 = vadd.f32 %v6015, %v6025
        %v6071 = vadd.f32 %v6016, %v6025
        %v6072 = vadd.f32 %v6017, %v6025
        %v6073 = vadd.f32 %v6018, %v6025
        %v6074 = vadd.f32 %v6019, %v6025
        %v6075 = vmax.f32 %v6027, 0.0
        %v6076 = vmax.f32 %v6028, 0.0
        %v6077 = vmax.f32 %v6029, 0.0
        %v6078 = vmax.f32 %v6030, 0.0
        %v6079 = vmax.f32 %v6031, 0.0
        %v6080 = vmax.f32 %v6032, 0.0
        %v6081 = vmax.f32 %v6033, 0.0
        %v6082 = vmax.f32 %v6034, 0.0
        %v6083 = vmax.f32 %v6035, 0.0
        %v6084 = vmax.f32 %v6036, 0.0
        %v6085 = vmax.f32 %v6037, 0.0
        %v6086 = vmax.f32 %v6038, 0.0
        %v6087 = vmax.f32 %v6039, 0.0
        %v6088 = vmax.f32 %v6040, 0.0
        %v6089 = vmax.f32 %v6041, 0.0
        %v6090 = vmax.f32 %v6042, 0.0
        %v6091 = vmax.f32 %v6043, 0.0
        %v6092 = vmax.f32 %v6044, 0.0
        %v6093 = vmax.f32 %v6045, 0.0
        %v6094 = vmax.f32 %v6046, 0.0
        %v6095 = vmax.f32 %v6047, 0.0
        %v6096 = vmax.f32 %v6048, 0.0
        %v6097 = vmax.f32 %v6049, 0.0
        %v6098 = vmax.f32 %v6050, 0.0
        %v6099 = vmax.f32 %v6051, 0.0
        %v6100 = vmax.f32 %v6052, 0.0
        %v6101 = vmax.f32 %v6053, 0.0
        %v6102 = vmax.f32 %v6054, 0.0
        %v6103 = vmax.f32 %v6055, 0.0
        %v6104 = vmax.f32 %v6056, 0.0
        %v6105 = vmax.f32 %v6057, 0.0
        %v6106 = vmax.f32 %v6058, 0.0
        %v6107 = vmax.f32 %v6059, 0.0
        %v6108 = vmax.f32 %v6060, 0.0
        %v6109 = vmax.f32 %v6061, 0.0
        %v6110 = vmax.f32 %v6062, 0.0
        %v6111 = vmax.f32 %v6063, 0.0
        %v6112 = vmax.f32 %v6064, 0.0
        %v6113 = vmax.f32 %v6065, 0.0
        %v6114 = vmax.f32 %v6066, 0.0
        %v6115 = vmax.f32 %v6067, 0.0
        %v6116 = vmax.f32 %v6068, 0.0
        %v6117 = vmax.f32 %v6069, 0.0
        %v6118 = vmax.f32 %v6070, 0.0
        %v6119 = vmax.f32 %v6071, 0.0
        %v6120 = vmax.f32 %v6072, 0.0
        %v6121 = vmax.f32 %v6073, 0.0
        %v6122 = vmax.f32 %v6074, 0.0
        %v6123 = vlaneseq
        %v6124 = vshrl.u32 %v6123, 7
        %v6125 = vadd.s32 %v6124, 8
        %v6126 = vadd.s32 %v6124, 16
        %vm6127 = vcmp.lt.s32.totalorder %v6124, 16
        %vm6128 = vcmp.lt.s32.totalorder %v6125, 16
        %vm6129 = vcmp.lt.s32.totalorder %v6126, 16
        %v6130 = vsel %vm6127, 1, 0
        %v6131 = vsel %vm6128, 1, 0
        %v6132 = vsel %vm6129, 1, 0
        %vm6133 = vcmp.eq.s32.totalorder %v6130, 1
        %vm6134 = vcmp.eq.s32.totalorder %v6131, 1
        %vm6135 = vcmp.eq.s32.totalorder %v6132, 1
        %v6136 = vsel %vm6133, %v6075, 0.0
        %v6137 = vsel %vm6134, %v6076, 0.0
        %v6138 = vsel %vm6135, %v6077, 0.0
        %v6139 = vsel %vm6133, %v6078, 0.0
        %v6140 = vsel %vm6134, %v6079, 0.0
        %v6141 = vsel %vm6135, %v6080, 0.0
        %v6142 = vsel %vm6133, %v6081, 0.0
        %v6143 = vsel %vm6134, %v6082, 0.0
        %v6144 = vsel %vm6135, %v6083, 0.0
        %v6145 = vsel %vm6133, %v6084, 0.0
        %v6146 = vsel %vm6134, %v6085, 0.0
        %v6147 = vsel %vm6135, %v6086, 0.0
        %v6148 = vsel %vm6133, %v6087, 0.0
        %v6149 = vsel %vm6134, %v6088, 0.0
        %v6150 = vsel %vm6135, %v6089, 0.0
        %v6151 = vsel %vm6133, %v6090, 0.0
        %v6152 = vsel %vm6134, %v6091, 0.0
        %v6153 = vsel %vm6135, %v6092, 0.0
        %v6154 = vsel %vm6133, %v6093, 0.0
        %v6155 = vsel %vm6134, %v6094, 0.0
        %v6156 = vsel %vm6135, %v6095, 0.0
        %v6157 = vsel %vm6133, %v6096, 0.0
        %v6158 = vsel %vm6134, %v6097, 0.0
        %v6159 = vsel %vm6135, %v6098, 0.0
        %v6160 = vsel %vm6133, %v6099, 0.0
        %v6161 = vsel %vm6134, %v6100, 0.0
        %v6162 = vsel %vm6135, %v6101, 0.0
        %v6163 = vsel %vm6133, %v6102, 0.0
        %v6164 = vsel %vm6134, %v6103, 0.0
        %v6165 = vsel %vm6135, %v6104, 0.0
        %v6166 = vsel %vm6133, %v6105, 0.0
        %v6167 = vsel %vm6134, %v6106, 0.0
        %v6168 = vsel %vm6135, %v6107, 0.0
        %v6169 = vsel %vm6133, %v6108, 0.0
        %v6170 = vsel %vm6134, %v6109, 0.0
        %v6171 = vsel %vm6135, %v6110, 0.0
        %v6172 = vsel %vm6133, %v6111, 0.0
        %v6173 = vsel %vm6134, %v6112, 0.0
        %v6174 = vsel %vm6135, %v6113, 0.0
        %v6175 = vsel %vm6133, %v6114, 0.0
        %v6176 = vsel %vm6134, %v6115, 0.0
        %v6177 = vsel %vm6135, %v6116, 0.0
        %v6178 = vsel %vm6133, %v6117, 0.0
        %v6179 = vsel %vm6134, %v6118, 0.0
        %v6180 = vsel %vm6135, %v6119, 0.0
        %v6181 = vsel %vm6133, %v6120, 0.0
        %v6182 = vsel %vm6134, %v6121, 0.0
        %v6183 = vsel %vm6135, %v6122, 0.0
        %v6184 = vpack.c.bf16 %v6137, %v6136
        %v6185 = vpack.c.bf16 %v6139, %v6138
        %v6186 = vpack.c.bf16 %v6141, %v6140
        %v6187 = vpack.c.bf16 %v6143, %v6142
        %v6188 = vpack.c.bf16 %v6145, %v6144
        %v6189 = vpack.c.bf16 %v6147, %v6146
        %v6190 = vpack.c.bf16 %v6149, %v6148
        %v6191 = vpack.c.bf16 %v6151, %v6150
        %v6192 = vpack.c.bf16 %v6153, %v6152
        %v6193 = vpack.c.bf16 %v6155, %v6154
        %v6194 = vpack.c.bf16 %v6157, %v6156
        %v6195 = vpack.c.bf16 %v6159, %v6158
        %v6196 = vpack.c.bf16 %v6161, %v6160
        %v6197 = vpack.c.bf16 %v6163, %v6162
        %v6198 = vpack.c.bf16 %v6165, %v6164
        %v6199 = vpack.c.bf16 %v6167, %v6166
        %v6200 = vpack.c.bf16 %v6169, %v6168
        %v6201 = vpack.c.bf16 %v6171, %v6170
        %v6202 = vpack.c.bf16 %v6173, %v6172
        %v6203 = vpack.c.bf16 %v6175, %v6174
        %v6204 = vpack.c.bf16 %v6177, %v6176
        %v6205 = vpack.c.bf16 %v6179, %v6178
        %v6206 = vpack.c.bf16 %v6181, %v6180
        %v6207 = vpack.c.bf16 %v6183, %v6182
        %6208 = vst [vmem:[#allocation3] sm:$0xf] 0
        %6209 = vst [vmem:[#allocation3 + $0x4] sm:$0xf] 0
        %6210 = vst [vmem:[#allocation3 + $0x8] sm:$0xf] 0
        %6211 = vst [vmem:[#allocation3 + $0xc] sm:$0xf] 0
        %6212 = vst [vmem:[#allocation3 + $0xd0] sm:$0xf] 0
        %6213 = vst [vmem:[#allocation3 + $0xd4] sm:$0xf] 0
        %6214 = vst [vmem:[#allocation3 + $0xd8] sm:$0xf] 0
        %6215 = vst [vmem:[#allocation3 + $0xdc] sm:$0xf] 0
        %v6240 = vunpack.c.l.b16 %v6184
        %v6241 = vunpack.c.h.b16 %v6184
        %v6242 = vunpack.c.l.b16 %v6185
        %v6243 = vunpack.c.h.b16 %v6185
        %v6244 = vunpack.c.l.b16 %v6186
        %v6245 = vunpack.c.h.b16 %v6186
        %v6246 = vunpack.c.l.b16 %v6187
        %v6247 = vunpack.c.h.b16 %v6187
        %v6248 = vunpack.c.l.b16 %v6188
        %v6249 = vunpack.c.h.b16 %v6188
        %v6250 = vunpack.c.l.b16 %v6189
        %v6251 = vunpack.c.h.b16 %v6189
        %v6252 = vunpack.c.l.b16 %v6190
        %v6253 = vunpack.c.h.b16 %v6190
        %v6254 = vunpack.c.l.b16 %v6191
        %v6255 = vunpack.c.h.b16 %v6191
        %v6256 = vunpack.c.l.b16 %v6192
        %v6257 = vunpack.c.h.b16 %v6192
        %v6258 = vunpack.c.l.b16 %v6193
        %v6259 = vunpack.c.h.b16 %v6193
        %v6260 = vunpack.c.l.b16 %v6194
        %v6261 = vunpack.c.h.b16 %v6194
        %v6262 = vunpack.c.l.b16 %v6195
        %v6263 = vunpack.c.h.b16 %v6195
        %v6264 = vunpack.c.l.b16 %v6196
        %v6265 = vunpack.c.h.b16 %v6196
        %v6266 = vunpack.c.l.b16 %v6197
        %v6267 = vunpack.c.h.b16 %v6197
        %v6268 = vunpack.c.l.b16 %v6198
        %v6269 = vunpack.c.h.b16 %v6198
        %v6270 = vunpack.c.l.b16 %v6199
        %v6271 = vunpack.c.h.b16 %v6199
        %v6272 = vunpack.c.l.b16 %v6200
        %v6273 = vunpack.c.h.b16 %v6200
        %v6274 = vunpack.c.l.b16 %v6201
        %v6275 = vunpack.c.h.b16 %v6201
        %v6276 = vunpack.c.l.b16 %v6202
        %v6277 = vunpack.c.h.b16 %v6202
        %v6278 = vunpack.c.l.b16 %v6203
        %v6279 = vunpack.c.h.b16 %v6203
        %v6280 = vunpack.c.l.b16 %v6204
        %v6281 = vunpack.c.h.b16 %v6204
        %v6282 = vunpack.c.l.b16 %v6205
        %v6283 = vunpack.c.h.b16 %v6205
        %v6284 = vunpack.c.l.b16 %v6206
        %v6285 = vunpack.c.h.b16 %v6206
        %v6286 = vunpack.c.l.b16 %v6207
        %v6287 = vunpack.c.h.b16 %v6207
        %v6288 = vpack.c.b16 %v6240, %v6240
        %v6289 = vpack.c.b16 %v6241, %v6241
        %v6290 = vpack.c.b16 %v6242, %v6242
        %v6291 = vpack.c.b16 %v6243, %v6243
        %v6292 = vpack.c.b16 %v6244, %v6244
        %v6293 = vpack.c.b16 %v6245, %v6245
        %v6294 = vpack.c.b16 %v6246, %v6246
        %v6295 = vpack.c.b16 %v6247, %v6247
        %v6296 = vpack.c.b16 %v6248, %v6248
        %v6297 = vpack.c.b16 %v6249, %v6249
        %v6298 = vpack.c.b16 %v6250, %v6250
        %v6299 = vpack.c.b16 %v6251, %v6251
        %v6300 = vpack.c.b16 %v6252, %v6252
        %v6301 = vpack.c.b16 %v6253, %v6253
        %v6302 = vpack.c.b16 %v6254, %v6254
        %v6303 = vpack.c.b16 %v6255, %v6255
        %v6304 = vpack.c.b16 %v6256, %v6256
        %v6305 = vpack.c.b16 %v6257, %v6257
        %v6306 = vpack.c.b16 %v6258, %v6258
        %v6307 = vpack.c.b16 %v6259, %v6259
        %v6308 = vpack.c.b16 %v6260, %v6260
        %v6309 = vpack.c.b16 %v6261, %v6261
        %v6310 = vpack.c.b16 %v6262, %v6262
        %v6311 = vpack.c.b16 %v6263, %v6263
        %v6312 = vpack.c.b16 %v6264, %v6264
        %v6313 = vpack.c.b16 %v6265, %v6265
        %v6314 = vpack.c.b16 %v6266, %v6266
        %v6315 = vpack.c.b16 %v6267, %v6267
        %v6316 = vpack.c.b16 %v6268, %v6268
        %v6317 = vpack.c.b16 %v6269, %v6269
        %v6318 = vpack.c.b16 %v6270, %v6270
        %v6319 = vpack.c.b16 %v6271, %v6271
        %v6320 = vpack.c.b16 %v6272, %v6272
        %v6321 = vpack.c.b16 %v6273, %v6273
        %v6322 = vpack.c.b16 %v6274, %v6274
        %v6323 = vpack.c.b16 %v6275, %v6275
        %v6324 = vpack.c.b16 %v6276, %v6276
        %v6325 = vpack.c.b16 %v6277, %v6277
        %v6326 = vpack.c.b16 %v6278, %v6278
        %v6327 = vpack.c.b16 %v6279, %v6279
        %v6328 = vpack.c.b16 %v6280, %v6280
        %v6329 = vpack.c.b16 %v6281, %v6281
        %v6330 = vpack.c.b16 %v6282, %v6282
        %v6331 = vpack.c.b16 %v6283, %v6283
        %v6332 = vpack.c.b16 %v6284, %v6284
        %v6333 = vpack.c.b16 %v6285, %v6285
        %v6334 = vpack.c.b16 %v6286, %v6286
        %v6335 = vpack.c.b16 %v6287, %v6287
        %6384 = vst [vmem:[#allocation3 + $0x10] sm:$0xf] %v6288
        %6385 = vst [vmem:[#allocation3 + $0x14] sm:$0xf] %v6289
        %6386 = vst [vmem:[#allocation3 + $0x18] sm:$0xf] %v6290
        %6387 = vst [vmem:[#allocation3 + $0x1c] sm:$0xf] %v6291
        %6388 = vst [vmem:[#allocation3 + $0x20] sm:$0xf] %v6292
        %6389 = vst [vmem:[#allocation3 + $0x24] sm:$0xf] %v6293
        %6390 = vst [vmem:[#allocation3 + $0x28] sm:$0xf] %v6294
        %6391 = vst [vmem:[#allocation3 + $0x2c] sm:$0xf] %v6295
        %6392 = vst [vmem:[#allocation3 + $0x30] sm:$0xf] %v6296
        %6393 = vst [vmem:[#allocation3 + $0x34] sm:$0xf] %v6297
        %6394 = vst [vmem:[#allocation3 + $0x38] sm:$0xf] %v6298
        %6395 = vst [vmem:[#allocation3 + $0x3c] sm:$0xf] %v6299
        %6396 = vst [vmem:[#allocation3 + $0x40] sm:$0xf] %v6300
        %6397 = vst [vmem:[#allocation3 + $0x44] sm:$0xf] %v6301
        %6398 = vst [vmem:[#allocation3 + $0x48] sm:$0xf] %v6302
        %6399 = vst [vmem:[#allocation3 + $0x4c] sm:$0xf] %v6303
        %6400 = vst [vmem:[#allocation3 + $0x50] sm:$0xf] %v6304
        %6401 = vst [vmem:[#allocation3 + $0x54] sm:$0xf] %v6305
        %6402 = vst [vmem:[#allocation3 + $0x58] sm:$0xf] %v6306
        %6403 = vst [vmem:[#allocation3 + $0x5c] sm:$0xf] %v6307
        %6404 = vst [vmem:[#allocation3 + $0x60] sm:$0xf] %v6308
        %6405 = vst [vmem:[#allocation3 + $0x64] sm:$0xf] %v6309
        %6406 = vst [vmem:[#allocation3 + $0x68] sm:$0xf] %v6310
        %6407 = vst [vmem:[#allocation3 + $0x6c] sm:$0xf] %v6311
        %6408 = vst [vmem:[#allocation3 + $0x70] sm:$0xf] %v6312
        %6409 = vst [vmem:[#allocation3 + $0x74] sm:$0xf] %v6313
        %6410 = vst [vmem:[#allocation3 + $0x78] sm:$0xf] %v6314
        %6411 = vst [vmem:[#allocation3 + $0x7c] sm:$0xf] %v6315
        %6412 = vst [vmem:[#allocation3 + $0x80] sm:$0xf] %v6316
        %6413 = vst [vmem:[#allocation3 + $0x84] sm:$0xf] %v6317
        %6414 = vst [vmem:[#allocation3 + $0x88] sm:$0xf] %v6318
        %6415 = vst [vmem:[#allocation3 + $0x8c] sm:$0xf] %v6319
        %6416 = vst [vmem:[#allocation3 + $0x90] sm:$0xf] %v6320
        %6417 = vst [vmem:[#allocation3 + $0x94] sm:$0xf] %v6321
        %6418 = vst [vmem:[#allocation3 + $0x98] sm:$0xf] %v6322
        %6419 = vst [vmem:[#allocation3 + $0x9c] sm:$0xf] %v6323
        %6420 = vst [vmem:[#allocation3 + $0xa0] sm:$0xf] %v6324
        %6421 = vst [vmem:[#allocation3 + $0xa4] sm:$0xf] %v6325
        %6422 = vst [vmem:[#allocation3 + $0xa8] sm:$0xf] %v6326
        %6423 = vst [vmem:[#allocation3 + $0xac] sm:$0xf] %v6327
        %6424 = vst [vmem:[#allocation3 + $0xb0] sm:$0xf] %v6328
        %6425 = vst [vmem:[#allocation3 + $0xb4] sm:$0xf] %v6329
        %6426 = vst [vmem:[#allocation3 + $0xb8] sm:$0xf] %v6330
        %6427 = vst [vmem:[#allocation3 + $0xbc] sm:$0xf] %v6331
        %6428 = vst [vmem:[#allocation3 + $0xc0] sm:$0xf] %v6332
        %6429 = vst [vmem:[#allocation3 + $0xc4] sm:$0xf] %v6333
        %6430 = vst [vmem:[#allocation3 + $0xc8] sm:$0xf] %v6334
        %6431 = vst [vmem:[#allocation3 + $0xcc] sm:$0xf] %v6335
        %v6432 = vld [vmem:[#allocation3] sm:$0x8]
        %v6433 = vld [vmem:[#allocation3 + $0x4] sm:$0xf]
        %v6434 = vld [vmem:[#allocation3 + $0x8] sm:$0xf]
        %v6435 = vld [vmem:[#allocation3 + $0xc] sm:$0xf]
        %v6436 = vld [vmem:[#allocation3 + $0x10] sm:$0xf]
        %v6437 = vld [vmem:[#allocation3 + $0x14] sm:$0xf]
        %v6438 = vld [vmem:[#allocation3 + $0x18] sm:$0xf]
        %v6439 = vld [vmem:[#allocation3 + $0x1c] sm:$0xf]
        %v6440 = vld [vmem:[#allocation3 + $0x20] sm:$0xf]
        %v6441 = vld [vmem:[#allocation3 + $0x24] sm:$0xf]
        %v6442 = vld [vmem:[#allocation3 + $0x28] sm:$0xf]
        %v6443 = vld [vmem:[#allocation3 + $0x2c] sm:$0xf]
        %v6444 = vld [vmem:[#allocation3 + $0x30] sm:$0xf]
        %v6445 = vld [vmem:[#allocation3 + $0x34] sm:$0xf]
        %v6446 = vld [vmem:[#allocation3 + $0x38] sm:$0xf]
        %v6447 = vld [vmem:[#allocation3 + $0x3c] sm:$0xf]
        %v6448 = vld [vmem:[#allocation3 + $0x40] sm:$0xf]
        %v6449 = vld [vmem:[#allocation3 + $0x44] sm:$0xf]
        %v6450 = vld [vmem:[#allocation3 + $0x48] sm:$0xf]
        %v6451 = vld [vmem:[#allocation3 + $0x4c] sm:$0xf]
        %v6452 = vld [vmem:[#allocation3 + $0x50] sm:$0xf]
        %v6453 = vld [vmem:[#allocation3 + $0x54] sm:$0xf]
        %v6454 = vld [vmem:[#allocation3 + $0x58] sm:$0xf]
        %v6455 = vld [vmem:[#allocation3 + $0x5c] sm:$0xf]
        %v6456 = vld [vmem:[#allocation3 + $0x60] sm:$0xf]
        %v6457 = vld [vmem:[#allocation3 + $0x64] sm:$0xf]
        %v6458 = vld [vmem:[#allocation3 + $0x68] sm:$0xf]
        %v6459 = vld [vmem:[#allocation3 + $0x6c] sm:$0xf]
        %v6460 = vld [vmem:[#allocation3 + $0x70] sm:$0xf]
        %v6461 = vld [vmem:[#allocation3 + $0x74] sm:$0xf]
        %v6462 = vld [vmem:[#allocation3 + $0x78] sm:$0xf]
        %v6463 = vld [vmem:[#allocation3 + $0x7c] sm:$0xf]
        %v6464 = vld [vmem:[#allocation3 + $0x80] sm:$0xf]
        %v6465 = vld [vmem:[#allocation3 + $0x84] sm:$0xf]
        %v6466 = vld [vmem:[#allocation3 + $0x88] sm:$0xf]
        %v6467 = vld [vmem:[#allocation3 + $0x8c] sm:$0xf]
        %v6468 = vld [vmem:[#allocation3 + $0x90] sm:$0xf]
        %v6469 = vld [vmem:[#allocation3 + $0x94] sm:$0xf]
        %v6470 = vld [vmem:[#allocation3 + $0x98] sm:$0xf]
        %v6471 = vld [vmem:[#allocation3 + $0x9c] sm:$0xf]
        %v6472 = vld [vmem:[#allocation3 + $0xa0] sm:$0xf]
        %v6473 = vld [vmem:[#allocation3 + $0xa4] sm:$0xf]
        %v6474 = vld [vmem:[#allocation3 + $0xa8] sm:$0xf]
        %v6475 = vld [vmem:[#allocation3 + $0xac] sm:$0xf]
        %v6476 = vld [vmem:[#allocation3 + $0xb0] sm:$0xf]
        %v6477 = vld [vmem:[#allocation3 + $0xb4] sm:$0xf]
        %v6478 = vld [vmem:[#allocation3 + $0xb8] sm:$0xf]
        %v6479 = vld [vmem:[#allocation3 + $0xbc] sm:$0xf]
        %v6480 = vld [vmem:[#allocation3 + $0xc0] sm:$0xf]
        %v6481 = vld [vmem:[#allocation4] sm:$0xf]
        %v6482 = vld [vmem:[#allocation4 + $0x4] sm:$0xf]
        %v6483 = vld [vmem:[#allocation4 + $0x8] sm:$0xf]
        %v6484 = vld [vmem:[#allocation4 + $0xc] sm:$0xf]
        %v6485 = vld [vmem:[#allocation4 + $0x10] sm:$0xf]
        %v6486 = vld [vmem:[#allocation4 + $0x14] sm:$0xf]
        %v6487 = vld [vmem:[#allocation4 + $0x18] sm:$0xf]
        %v6488 = vld [vmem:[#allocation4 + $0x1c] sm:$0xf]
        %v6489 = vld [vmem:[#allocation4 + $0x20] sm:$0xf]
        %v6490 = vld [vmem:[#allocation4 + $0x24] sm:$0xf]
        %v6491 = vld [vmem:[#allocation4 + $0x28] sm:$0xf]
        %v6492 = vld [vmem:[#allocation4 + $0x2c] sm:$0xf]
        %v6493 = vld [vmem:[#allocation4 + $0x30] sm:$0xf]
        %v6494 = vld [vmem:[#allocation4 + $0x34] sm:$0xf]
        %v6495 = vld [vmem:[#allocation4 + $0x38] sm:$0xf]
        %v6496 = vld [vmem:[#allocation4 + $0x3c] sm:$0xf]
        %s6497 = scalar_lea.vmem [#allocation4], 64
        %v6498 = vld [vmem:[%s6497] sm:$0xf]
        %v6499 = vld [vmem:[%s6497 + $0x4] sm:$0xf]
        %v6500 = vld [vmem:[%s6497 + $0x8] sm:$0xf]
        %v6501 = vld [vmem:[%s6497 + $0xc] sm:$0xf]
        %v6502 = vld [vmem:[%s6497 + $0x10] sm:$0xf]
        %v6503 = vld [vmem:[%s6497 + $0x14] sm:$0xf]
        %v6504 = vld [vmem:[%s6497 + $0x18] sm:$0xf]
        %v6505 = vld [vmem:[%s6497 + $0x1c] sm:$0xf]
        %v6506 = vld [vmem:[%s6497 + $0x20] sm:$0xf]
        %v6507 = vld [vmem:[%s6497 + $0x24] sm:$0xf]
        %v6508 = vld [vmem:[%s6497 + $0x28] sm:$0xf]
        %v6509 = vld [vmem:[%s6497 + $0x2c] sm:$0xf]
        %v6510 = vld [vmem:[%s6497 + $0x30] sm:$0xf]
        %v6511 = vld [vmem:[%s6497 + $0x34] sm:$0xf]
        %v6512 = vld [vmem:[%s6497 + $0x38] sm:$0xf]
        %v6513 = vld [vmem:[%s6497 + $0x3c] sm:$0xf]
        %v6562 = vunpack.c.l.b16 %v6433
        %v6563 = vunpack.c.l.b16 %v6434
        %v6564 = vunpack.c.l.b16 %v6435
        %v6565 = vunpack.c.l.b16 %v6436
        %v6566 = vunpack.c.l.b16 %v6437
        %v6567 = vunpack.c.l.b16 %v6438
        %v6568 = vunpack.c.l.b16 %v6439
        %v6569 = vunpack.c.l.b16 %v6440
        %v6570 = vunpack.c.l.b16 %v6441
        %v6571 = vunpack.c.l.b16 %v6442
        %v6572 = vunpack.c.l.b16 %v6443
        %v6573 = vunpack.c.l.b16 %v6444
        %v6574 = vunpack.c.l.b16 %v6445
        %v6575 = vunpack.c.l.b16 %v6446
        %v6576 = vunpack.c.l.b16 %v6447
        %v6577 = vunpack.c.l.b16 %v6448
        %v6578 = vunpack.c.l.b16 %v6449
        %v6579 = vunpack.c.l.b16 %v6450
        %v6580 = vunpack.c.l.b16 %v6451
        %v6581 = vunpack.c.l.b16 %v6452
        %v6582 = vunpack.c.l.b16 %v6453
        %v6583 = vunpack.c.l.b16 %v6454
        %v6584 = vunpack.c.l.b16 %v6455
        %v6585 = vunpack.c.l.b16 %v6456
        %v6586 = vunpack.c.l.b16 %v6457
        %v6587 = vunpack.c.l.b16 %v6458
        %v6588 = vunpack.c.l.b16 %v6459
        %v6589 = vunpack.c.l.b16 %v6460
        %v6590 = vunpack.c.l.b16 %v6461
        %v6591 = vunpack.c.l.b16 %v6462
        %v6592 = vunpack.c.l.b16 %v6463
        %v6593 = vunpack.c.l.b16 %v6464
        %v6594 = vunpack.c.l.b16 %v6465
        %v6595 = vunpack.c.l.b16 %v6466
        %v6596 = vunpack.c.l.b16 %v6467
        %v6597 = vunpack.c.l.b16 %v6468
        %v6598 = vunpack.c.l.b16 %v6469
        %v6599 = vunpack.c.l.b16 %v6470
        %v6600 = vunpack.c.l.b16 %v6471
        %v6601 = vunpack.c.l.b16 %v6472
        %v6602 = vunpack.c.l.b16 %v6473
        %v6603 = vunpack.c.l.b16 %v6474
        %v6604 = vunpack.c.l.b16 %v6475
        %v6605 = vunpack.c.l.b16 %v6476
        %v6606 = vunpack.c.l.b16 %v6477
        %v6607 = vunpack.c.l.b16 %v6478
        %v6608 = vunpack.c.l.b16 %v6479
        %v6609 = vunpack.c.l.b16 %v6480
        %v6610 = vpack.c.b16 %v6563, %v6562
        %v6611 = vpack.c.b16 %v6565, %v6564
        %v6612 = vpack.c.b16 %v6567, %v6566
        %v6613 = vpack.c.b16 %v6569, %v6568
        %v6614 = vpack.c.b16 %v6571, %v6570
        %v6615 = vpack.c.b16 %v6573, %v6572
        %v6616 = vpack.c.b16 %v6575, %v6574
        %v6617 = vpack.c.b16 %v6577, %v6576
        %v6618 = vpack.c.b16 %v6579, %v6578
        %v6619 = vpack.c.b16 %v6581, %v6580
        %v6620 = vpack.c.b16 %v6583, %v6582
        %v6621 = vpack.c.b16 %v6585, %v6584
        %v6622 = vpack.c.b16 %v6587, %v6586
        %v6623 = vpack.c.b16 %v6589, %v6588
        %v6624 = vpack.c.b16 %v6591, %v6590
        %v6625 = vpack.c.b16 %v6593, %v6592
        %v6626 = vpack.c.b16 %v6595, %v6594
        %v6627 = vpack.c.b16 %v6597, %v6596
        %v6628 = vpack.c.b16 %v6599, %v6598
        %v6629 = vpack.c.b16 %v6601, %v6600
        %v6630 = vpack.c.b16 %v6603, %v6602
        %v6631 = vpack.c.b16 %v6605, %v6604
        %v6632 = vpack.c.b16 %v6607, %v6606
        %v6633 = vpack.c.b16 %v6609, %v6608
        %v6674 = vunpack.c.l.b16 %v6498
        %v6675 = vunpack.c.l.b16 %v6499
        %v6676 = vunpack.c.l.b16 %v6500
        %v6677 = vunpack.c.l.b16 %v6501
        %v6678 = vunpack.c.l.b16 %v6502
        %v6679 = vunpack.c.l.b16 %v6503
        %v6680 = vunpack.c.l.b16 %v6504
        %v6681 = vunpack.c.l.b16 %v6505
        %v6682 = vunpack.c.l.b16 %v6506
        %v6683 = vunpack.c.l.b16 %v6507
        %v6684 = vunpack.c.l.b16 %v6508
        %v6685 = vunpack.c.l.b16 %v6509
        %v6686 = vunpack.c.l.b16 %v6510
        %v6687 = vunpack.c.l.b16 %v6511
        %v6688 = vunpack.c.l.b16 %v6512
        %v6689 = vunpack.c.l.b16 %v6513
        %v6690 = vpack.c.b16 %v6675, %v6674
        %v6691 = vpack.c.b16 %v6677, %v6676
        %v6692 = vpack.c.b16 %v6679, %v6678
        %v6693 = vpack.c.b16 %v6681, %v6680
        %v6694 = vpack.c.b16 %v6683, %v6682
        %v6695 = vpack.c.b16 %v6685, %v6684
        %v6696 = vpack.c.b16 %v6687, %v6686
        %v6697 = vpack.c.b16 %v6689, %v6688
        %6706 = vmatprep.subr.bf16.mxu0 0
        %6707 = vmatpush1.bf16.msra.mxu0 %v6697
        %6708 = vmatprep.subr.bf16.mxu0 0
        %6709 = vmatpush1.bf16.msra.mxu0 %v6696
        %6710 = vmatprep.subr.bf16.mxu0 0
        %6711 = vmatpush1.bf16.msra.mxu0 %v6695
        %6712 = vmatprep.subr.bf16.mxu0 0
        %6713 = vmatpush1.bf16.msra.mxu0 %v6694
        %6714 = vmatprep.subr.bf16.mxu0 0
        %6715 = vmatpush1.bf16.msra.mxu0 %v6693
        %6716 = vmatprep.subr.bf16.mxu0 0
        %6717 = vmatpush1.bf16.msra.mxu0 %v6692
        %6718 = vmatprep.subr.bf16.mxu0 0
        %6719 = vmatpush1.bf16.msra.mxu0 %v6691
        %6720 = vmatprep.subr.bf16.mxu0 0
        %6721 = vmatpush1.bf16.msra.mxu0 %v6690
        %6722 = vmatprep.subr.bf16.mxu0 0
        %6723 = vmatpush2.bf16.msra.mxu0 0
        %6724 = vmatprep.subr.bf16.mxu0 0
        %6725 = vmatpush2.bf16.msra.mxu0 0
        %6726 = vmatprep.subr.bf16.mxu0 0
        %6727 = vmatpush2.bf16.msra.mxu0 0
        %6728 = vmatprep.subr.bf16.mxu0 0
        %6729 = vmatpush2.bf16.msra.mxu0 0
        %6730 = vmatprep.subr.bf16.mxu0 0
        %6731 = vmatpush2.bf16.msra.mxu0 0
        %6732 = vmatprep.subr.bf16.mxu0 0
        %6733 = vmatpush2.bf16.msra.mxu0 0
        %6734 = vmatprep.subr.bf16.mxu0 0
        %6735 = vmatpush2.bf16.msra.mxu0 0
        %6736 = vmatprep.subr.bf16.mxu0 0
        %6737 = vmatpush2.bf16.msra.mxu0 0
        %6738 = vmatprep.mubr.bf16.mxu0 0
        %6739 = vmatmul.mubr.bf16.gmra.mxu0 %v6610
        %v6740 = vpop.f32.mrf.mxu0
        %v6741 = vadd.f32 0.0, %v6740
        %v6742 = vpop.f32.mrf.mxu0
        %v6743 = vpop.f32.mrf.mxu0
        %v6744 = vadd.f32 0.0, %v6743
        %v6745 = vpop.f32.mrf.mxu0
        %6746 = vmatprep.mubr.bf16.mxu0 0
        %6747 = vmatmul.mubr.bf16.gmra.mxu0 %v6611
        %v6748 = vpop.f32.mrf.mxu0
        %v6749 = vpop.f32.mrf.mxu0
        %v6750 = vpop.f32.mrf.mxu0
        %v6751 = vadd.f32 0.0, %v6750
        %v6752 = vpop.f32.mrf.mxu0
        %6753 = vmatprep.mubr.bf16.mxu0 0
        %6754 = vmatmul.mubr.bf16.gmra.mxu0 %v6612
        %v6755 = vpop.f32.mrf.mxu0
        %v6756 = vadd.f32 0.0, %v6755
        %v6757 = vpop.f32.mrf.mxu0
        %v6758 = vpop.f32.mrf.mxu0
        %v6759 = vpop.f32.mrf.mxu0
        %6760 = vmatprep.mubr.bf16.mxu0 0
        %6761 = vmatmul.mubr.bf16.gmra.mxu0 %v6613
        %v6762 = vpop.f32.mrf.mxu0
        %v6763 = vadd.f32 0.0, %v6762
        %v6764 = vpop.f32.mrf.mxu0
        %v6765 = vpop.f32.mrf.mxu0
        %v6766 = vadd.f32 0.0, %v6765
        %v6767 = vpop.f32.mrf.mxu0
        %6768 = vmatprep.mubr.bf16.mxu0 0
        %6769 = vmatmul.mubr.bf16.gmra.mxu0 %v6614
        %v6770 = vpop.f32.mrf.mxu0
        %v6771 = vpop.f32.mrf.mxu0
        %v6772 = vpop.f32.mrf.mxu0
        %v6773 = vadd.f32 0.0, %v6772
        %v6774 = vpop.f32.mrf.mxu0
        %6775 = vmatprep.mubr.bf16.mxu0 0
        %6776 = vmatmul.mubr.bf16.gmra.mxu0 %v6615
        %v6777 = vpop.f32.mrf.mxu0
        %v6778 = vadd.f32 0.0, %v6777
        %v6779 = vpop.f32.mrf.mxu0
        %v6780 = vpop.f32.mrf.mxu0
        %v6781 = vpop.f32.mrf.mxu0
        %6782 = vmatprep.mubr.bf16.mxu0 0
        %6783 = vmatmul.mubr.bf16.gmra.mxu0 %v6616
        %v6784 = vpop.f32.mrf.mxu0
        %v6785 = vadd.f32 0.0, %v6784
        %v6786 = vpop.f32.mrf.mxu0
        %v6787 = vpop.f32.mrf.mxu0
        %v6788 = vadd.f32 0.0, %v6787
        %v6789 = vpop.f32.mrf.mxu0
        %6790 = vmatprep.mubr.bf16.mxu0 0
        %6791 = vmatmul.mubr.bf16.gmra.mxu0 %v6617
        %v6792 = vpop.f32.mrf.mxu0
        %v6793 = vpop.f32.mrf.mxu0
        %v6794 = vpop.f32.mrf.mxu0
        %v6795 = vadd.f32 0.0, %v6794
        %v6796 = vpop.f32.mrf.mxu0
        %6797 = vmatprep.mubr.bf16.mxu0 0
        %6798 = vmatmul.mubr.bf16.gmra.mxu0 %v6618
        %v6799 = vpop.f32.mrf.mxu0
        %v6800 = vadd.f32 0.0, %v6799
        %v6801 = vpop.f32.mrf.mxu0
        %v6802 = vpop.f32.mrf.mxu0
        %v6803 = vpop.f32.mrf.mxu0
        %6804 = vmatprep.mubr.bf16.mxu0 0
        %6805 = vmatmul.mubr.bf16.gmra.mxu0 %v6619
        %v6806 = vpop.f32.mrf.mxu0
        %v6807 = vadd.f32 0.0, %v6806
        %v6808 = vpop.f32.mrf.mxu0
        %v6809 = vpop.f32.mrf.mxu0
        %v6810 = vadd.f32 0.0, %v6809
        %v6811 = vpop.f32.mrf.mxu0
        %6812 = vmatprep.mubr.bf16.mxu0 0
        %6813 = vmatmul.mubr.bf16.gmra.mxu0 %v6620
        %v6814 = vpop.f32.mrf.mxu0
        %v6815 = vpop.f32.mrf.mxu0
        %v6816 = vpop.f32.mrf.mxu0
        %v6817 = vadd.f32 0.0, %v6816
        %v6818 = vpop.f32.mrf.mxu0
        %6819 = vmatprep.mubr.bf16.mxu0 0
        %6820 = vmatmul.mubr.bf16.gmra.mxu0 %v6621
        %v6821 = vpop.f32.mrf.mxu0
        %v6822 = vadd.f32 0.0, %v6821
        %v6823 = vpop.f32.mrf.mxu0
        %v6824 = vpop.f32.mrf.mxu0
        %v6825 = vpop.f32.mrf.mxu0
        %6826 = vmatprep.mubr.bf16.mxu0 0
        %6827 = vmatmul.mubr.bf16.gmra.mxu0 %v6622
        %v6828 = vpop.f32.mrf.mxu0
        %v6829 = vadd.f32 0.0, %v6828
        %v6830 = vpop.f32.mrf.mxu0
        %v6831 = vpop.f32.mrf.mxu0
        %v6832 = vadd.f32 0.0, %v6831
        %v6833 = vpop.f32.mrf.mxu0
        %6834 = vmatprep.mubr.bf16.mxu0 0
        %6835 = vmatmul.mubr.bf16.gmra.mxu0 %v6623
        %v6836 = vpop.f32.mrf.mxu0
        %v6837 = vpop.f32.mrf.mxu0
        %v6838 = vpop.f32.mrf.mxu0
        %v6839 = vadd.f32 0.0, %v6838
        %v6840 = vpop.f32.mrf.mxu0
        %6841 = vmatprep.mubr.bf16.mxu0 0
        %6842 = vmatmul.mubr.bf16.gmra.mxu0 %v6624
        %v6843 = vpop.f32.mrf.mxu0
        %v6844 = vadd.f32 0.0, %v6843
        %v6845 = vpop.f32.mrf.mxu0
        %v6846 = vpop.f32.mrf.mxu0
        %v6847 = vpop.f32.mrf.mxu0
        %6848 = vmatprep.mubr.bf16.mxu0 0
        %6849 = vmatmul.mubr.bf16.gmra.mxu0 %v6625
        %v6850 = vpop.f32.mrf.mxu0
        %v6851 = vadd.f32 0.0, %v6850
        %v6852 = vpop.f32.mrf.mxu0
        %v6853 = vpop.f32.mrf.mxu0
        %v6854 = vadd.f32 0.0, %v6853
        %v6855 = vpop.f32.mrf.mxu0
        %6856 = vmatprep.mubr.bf16.mxu0 0
        %6857 = vmatmul.mubr.bf16.gmra.mxu0 %v6626
        %v6858 = vpop.f32.mrf.mxu0
        %v6859 = vpop.f32.mrf.mxu0
        %v6860 = vpop.f32.mrf.mxu0
        %v6861 = vadd.f32 0.0, %v6860
        %v6862 = vpop.f32.mrf.mxu0
        %6863 = vmatprep.mubr.bf16.mxu0 0
        %6864 = vmatmul.mubr.bf16.gmra.mxu0 %v6627
        %v6865 = vpop.f32.mrf.mxu0
        %v6866 = vadd.f32 0.0, %v6865
        %v6867 = vpop.f32.mrf.mxu0
        %v6868 = vpop.f32.mrf.mxu0
        %v6869 = vpop.f32.mrf.mxu0
        %6870 = vmatprep.mubr.bf16.mxu0 0
        %6871 = vmatmul.mubr.bf16.gmra.mxu0 %v6628
        %v6872 = vpop.f32.mrf.mxu0
        %v6873 = vadd.f32 0.0, %v6872
        %v6874 = vpop.f32.mrf.mxu0
        %v6875 = vpop.f32.mrf.mxu0
        %v6876 = vadd.f32 0.0, %v6875
        %v6877 = vpop.f32.mrf.mxu0
        %6878 = vmatprep.mubr.bf16.mxu0 0
        %6879 = vmatmul.mubr.bf16.gmra.mxu0 %v6629
        %v6880 = vpop.f32.mrf.mxu0
        %v6881 = vpop.f32.mrf.mxu0
        %v6882 = vpop.f32.mrf.mxu0
        %v6883 = vadd.f32 0.0, %v6882
        %v6884 = vpop.f32.mrf.mxu0
        %6885 = vmatprep.mubr.bf16.mxu0 0
        %6886 = vmatmul.mubr.bf16.gmra.mxu0 %v6630
        %v6887 = vpop.f32.mrf.mxu0
        %v6888 = vadd.f32 0.0, %v6887
        %v6889 = vpop.f32.mrf.mxu0
        %v6890 = vpop.f32.mrf.mxu0
        %v6891 = vpop.f32.mrf.mxu0
        %6892 = vmatprep.mubr.bf16.mxu0 0
        %6893 = vmatmul.mubr.bf16.gmra.mxu0 %v6631
        %v6894 = vpop.f32.mrf.mxu0
        %v6895 = vadd.f32 0.0, %v6894
        %v6896 = vpop.f32.mrf.mxu0
        %v6897 = vpop.f32.mrf.mxu0
        %v6898 = vadd.f32 0.0, %v6897
        %v6899 = vpop.f32.mrf.mxu0
        %6900 = vmatprep.mubr.bf16.mxu0 0
        %6901 = vmatmul.mubr.bf16.gmra.mxu0 %v6632
        %v6902 = vpop.f32.mrf.mxu0
        %v6903 = vpop.f32.mrf.mxu0
        %v6904 = vpop.f32.mrf.mxu0
        %v6905 = vadd.f32 0.0, %v6904
        %v6906 = vpop.f32.mrf.mxu0
        %6907 = vmatprep.mubr.bf16.mxu0 0
        %6908 = vmatmul.mubr.bf16.gmra.mxu0 %v6633
        %v6909 = vpop.f32.mrf.mxu0
        %v6910 = vadd.f32 0.0, %v6909
        %v6911 = vpop.f32.mrf.mxu0
        %v6912 = vpop.f32.mrf.mxu0
        %v6913 = vpop.f32.mrf.mxu0
        %6914 = vdwg.mxu0
        %v6916 = vunpack.c.l.b16 %v6432
        %v6917 = vpack.c.b16 %v6562, %v6916
        %v6918 = vpack.c.b16 %v6564, %v6563
        %v6919 = vpack.c.b16 %v6566, %v6565
        %v6920 = vpack.c.b16 %v6568, %v6567
        %v6921 = vpack.c.b16 %v6570, %v6569
        %v6922 = vpack.c.b16 %v6572, %v6571
        %v6923 = vpack.c.b16 %v6574, %v6573
        %v6924 = vpack.c.b16 %v6576, %v6575
        %v6925 = vpack.c.b16 %v6578, %v6577
        %v6926 = vpack.c.b16 %v6580, %v6579
        %v6927 = vpack.c.b16 %v6582, %v6581
        %v6928 = vpack.c.b16 %v6584, %v6583
        %v6929 = vpack.c.b16 %v6586, %v6585
        %v6930 = vpack.c.b16 %v6588, %v6587
        %v6931 = vpack.c.b16 %v6590, %v6589
        %v6932 = vpack.c.b16 %v6592, %v6591
        %v6933 = vpack.c.b16 %v6594, %v6593
        %v6934 = vpack.c.b16 %v6596, %v6595
        %v6935 = vpack.c.b16 %v6598, %v6597
        %v6936 = vpack.c.b16 %v6600, %v6599
        %v6937 = vpack.c.b16 %v6602, %v6601
        %v6938 = vpack.c.b16 %v6604, %v6603
        %v6939 = vpack.c.b16 %v6606, %v6605
        %v6940 = vpack.c.b16 %v6608, %v6607
        %v6941 = vpack.c.b16 %v6609, %v6609
        %v6943 = vshrl.u32 %v6917, 16
        %v6945 = vrot.slane %v6943, 3
        %v6946 = vshll.u32 %v6917, 16
        %v6948 = vrot.slane %v6946, 4
        %v6949 = vor.u32 %v6945, %v6948
        %v6951 = vshrl.u32 %v6918, 16
        %v6953 = vrot.slane %v6951, 3
        %v6954 = vshll.u32 %v6918, 16
        %v6956 = vrot.slane %v6954, 4
        %v6957 = vor.u32 %v6953, %v6956
        %v6958 = vsel %vm1019, %v6949, %v6957
        %v6960 = vshrl.u32 %v6919, 16
        %v6962 = vrot.slane %v6960, 3
        %v6963 = vshll.u32 %v6919, 16
        %v6965 = vrot.slane %v6963, 4
        %v6966 = vor.u32 %v6962, %v6965
        %v6967 = vsel %vm1019, %v6957, %v6966
        %v6969 = vshrl.u32 %v6920, 16
        %v6971 = vrot.slane %v6969, 3
        %v6972 = vshll.u32 %v6920, 16
        %v6974 = vrot.slane %v6972, 4
        %v6975 = vor.u32 %v6971, %v6974
        %v6976 = vsel %vm1019, %v6966, %v6975
        %v6978 = vshrl.u32 %v6921, 16
        %v6980 = vrot.slane %v6978, 3
        %v6981 = vshll.u32 %v6921, 16
        %v6983 = vrot.slane %v6981, 4
        %v6984 = vor.u32 %v6980, %v6983
        %v6985 = vsel %vm1019, %v6975, %v6984
        %v6987 = vshrl.u32 %v6922, 16
        %v6989 = vrot.slane %v6987, 3
        %v6990 = vshll.u32 %v6922, 16
        %v6992 = vrot.slane %v6990, 4
        %v6993 = vor.u32 %v6989, %v6992
        %v6994 = vsel %vm1019, %v6984, %v6993
        %v6996 = vshrl.u32 %v6923, 16
        %v6998 = vrot.slane %v6996, 3
        %v6999 = vshll.u32 %v6923, 16
        %v7001 = vrot.slane %v6999, 4
        %v7002 = vor.u32 %v6998, %v7001
        %v7003 = vsel %vm1019, %v6993, %v7002
        %v7005 = vshrl.u32 %v6924, 16
        %v7007 = vrot.slane %v7005, 3
        %v7008 = vshll.u32 %v6924, 16
        %v7010 = vrot.slane %v7008, 4
        %v7011 = vor.u32 %v7007, %v7010
        %v7012 = vsel %vm1019, %v7002, %v7011
        %v7014 = vshrl.u32 %v6925, 16
        %v7016 = vrot.slane %v7014, 3
        %v7017 = vshll.u32 %v6925, 16
        %v7019 = vrot.slane %v7017, 4
        %v7020 = vor.u32 %v7016, %v7019
        %v7021 = vsel %vm1019, %v7011, %v7020
        %v7023 = vshrl.u32 %v6926, 16
        %v7025 = vrot.slane %v7023, 3
        %v7026 = vshll.u32 %v6926, 16
        %v7028 = vrot.slane %v7026, 4
        %v7029 = vor.u32 %v7025, %v7028
        %v7030 = vsel %vm1019, %v7020, %v7029
        %v7032 = vshrl.u32 %v6927, 16
        %v7034 = vrot.slane %v7032, 3
        %v7035 = vshll.u32 %v6927, 16
        %v7037 = vrot.slane %v7035, 4
        %v7038 = vor.u32 %v7034, %v7037
        %v7039 = vsel %vm1019, %v7029, %v7038
        %v7041 = vshrl.u32 %v6928, 16
        %v7043 = vrot.slane %v7041, 3
        %v7044 = vshll.u32 %v6928, 16
        %v7046 = vrot.slane %v7044, 4
        %v7047 = vor.u32 %v7043, %v7046
        %v7048 = vsel %vm1019, %v7038, %v7047
        %v7050 = vshrl.u32 %v6929, 16
        %v7052 = vrot.slane %v7050, 3
        %v7053 = vshll.u32 %v6929, 16
        %v7055 = vrot.slane %v7053, 4
        %v7056 = vor.u32 %v7052, %v7055
        %v7057 = vsel %vm1019, %v7047, %v7056
        %v7059 = vshrl.u32 %v6930, 16
        %v7061 = vrot.slane %v7059, 3
        %v7062 = vshll.u32 %v6930, 16
        %v7064 = vrot.slane %v7062, 4
        %v7065 = vor.u32 %v7061, %v7064
        %v7066 = vsel %vm1019, %v7056, %v7065
        %v7068 = vshrl.u32 %v6931, 16
        %v7070 = vrot.slane %v7068, 3
        %v7071 = vshll.u32 %v6931, 16
        %v7073 = vrot.slane %v7071, 4
        %v7074 = vor.u32 %v7070, %v7073
        %v7075 = vsel %vm1019, %v7065, %v7074
        %v7077 = vshrl.u32 %v6932, 16
        %v7079 = vrot.slane %v7077, 3
        %v7080 = vshll.u32 %v6932, 16
        %v7082 = vrot.slane %v7080, 4
        %v7083 = vor.u32 %v7079, %v7082
        %v7084 = vsel %vm1019, %v7074, %v7083
        %v7086 = vshrl.u32 %v6933, 16
        %v7088 = vrot.slane %v7086, 3
        %v7089 = vshll.u32 %v6933, 16
        %v7091 = vrot.slane %v7089, 4
        %v7092 = vor.u32 %v7088, %v7091
        %v7093 = vsel %vm1019, %v7083, %v7092
        %v7095 = vshrl.u32 %v6934, 16
        %v7097 = vrot.slane %v7095, 3
        %v7098 = vshll.u32 %v6934, 16
        %v7100 = vrot.slane %v7098, 4
        %v7101 = vor.u32 %v7097, %v7100
        %v7102 = vsel %vm1019, %v7092, %v7101
        %v7104 = vshrl.u32 %v6935, 16
        %v7106 = vrot.slane %v7104, 3
        %v7107 = vshll.u32 %v6935, 16
        %v7109 = vrot.slane %v7107, 4
        %v7110 = vor.u32 %v7106, %v7109
        %v7111 = vsel %vm1019, %v7101, %v7110
        %v7113 = vshrl.u32 %v6936, 16
        %v7115 = vrot.slane %v7113, 3
        %v7116 = vshll.u32 %v6936, 16
        %v7118 = vrot.slane %v7116, 4
        %v7119 = vor.u32 %v7115, %v7118
        %v7120 = vsel %vm1019, %v7110, %v7119
        %v7122 = vshrl.u32 %v6937, 16
        %v7124 = vrot.slane %v7122, 3
        %v7125 = vshll.u32 %v6937, 16
        %v7127 = vrot.slane %v7125, 4
        %v7128 = vor.u32 %v7124, %v7127
        %v7129 = vsel %vm1019, %v7119, %v7128
        %v7131 = vshrl.u32 %v6938, 16
        %v7133 = vrot.slane %v7131, 3
        %v7134 = vshll.u32 %v6938, 16
        %v7136 = vrot.slane %v7134, 4
        %v7137 = vor.u32 %v7133, %v7136
        %v7138 = vsel %vm1019, %v7128, %v7137
        %v7140 = vshrl.u32 %v6939, 16
        %v7142 = vrot.slane %v7140, 3
        %v7143 = vshll.u32 %v6939, 16
        %v7145 = vrot.slane %v7143, 4
        %v7146 = vor.u32 %v7142, %v7145
        %v7147 = vsel %vm1019, %v7137, %v7146
        %v7149 = vshrl.u32 %v6940, 16
        %v7151 = vrot.slane %v7149, 3
        %v7152 = vshll.u32 %v6940, 16
        %v7154 = vrot.slane %v7152, 4
        %v7155 = vor.u32 %v7151, %v7154
        %v7156 = vsel %vm1019, %v7146, %v7155
        %v7158 = vshrl.u32 %v6941, 16
        %v7160 = vrot.slane %v7158, 3
        %v7161 = vshll.u32 %v6941, 16
        %v7163 = vrot.slane %v7161, 4
        %v7164 = vor.u32 %v7160, %v7163
        %v7165 = vsel %vm1019, %v7155, %v7164
        %v7206 = vunpack.c.l.b16 %v6481
        %v7207 = vunpack.c.l.b16 %v6482
        %v7208 = vunpack.c.l.b16 %v6483
        %v7209 = vunpack.c.l.b16 %v6484
        %v7210 = vunpack.c.l.b16 %v6485
        %v7211 = vunpack.c.l.b16 %v6486
        %v7212 = vunpack.c.l.b16 %v6487
        %v7213 = vunpack.c.l.b16 %v6488
        %v7214 = vunpack.c.l.b16 %v6489
        %v7215 = vunpack.c.l.b16 %v6490
        %v7216 = vunpack.c.l.b16 %v6491
        %v7217 = vunpack.c.l.b16 %v6492
        %v7218 = vunpack.c.l.b16 %v6493
        %v7219 = vunpack.c.l.b16 %v6494
        %v7220 = vunpack.c.l.b16 %v6495
        %v7221 = vunpack.c.l.b16 %v6496
        %v7222 = vpack.c.b16 %v7207, %v7206
        %v7223 = vpack.c.b16 %v7209, %v7208
        %v7224 = vpack.c.b16 %v7211, %v7210
        %v7225 = vpack.c.b16 %v7213, %v7212
        %v7226 = vpack.c.b16 %v7215, %v7214
        %v7227 = vpack.c.b16 %v7217, %v7216
        %v7228 = vpack.c.b16 %v7219, %v7218
        %v7229 = vpack.c.b16 %v7221, %v7220
        %7238 = vmatprep.subr.bf16.mxu0 0
        %7239 = vmatpush1.bf16.msra.mxu0 %v7229
        %7240 = vmatprep.subr.bf16.mxu0 0
        %7241 = vmatpush1.bf16.msra.mxu0 %v7228
        %7242 = vmatprep.subr.bf16.mxu0 0
        %7243 = vmatpush1.bf16.msra.mxu0 %v7227
        %7244 = vmatprep.subr.bf16.mxu0 0
        %7245 = vmatpush1.bf16.msra.mxu0 %v7226
        %7246 = vmatprep.subr.bf16.mxu0 0
        %7247 = vmatpush1.bf16.msra.mxu0 %v7225
        %7248 = vmatprep.subr.bf16.mxu0 0
        %7249 = vmatpush1.bf16.msra.mxu0 %v7224
        %7250 = vmatprep.subr.bf16.mxu0 0
        %7251 = vmatpush1.bf16.msra.mxu0 %v7223
        %7252 = vmatprep.subr.bf16.mxu0 0
        %7253 = vmatpush1.bf16.msra.mxu0 %v7222
        %7254 = vmatprep.subr.bf16.mxu0 0
        %7255 = vmatpush2.bf16.msra.mxu0 0
        %7256 = vmatprep.subr.bf16.mxu0 0
        %7257 = vmatpush2.bf16.msra.mxu0 0
        %7258 = vmatprep.subr.bf16.mxu0 0
        %7259 = vmatpush2.bf16.msra.mxu0 0
        %7260 = vmatprep.subr.bf16.mxu0 0
        %7261 = vmatpush2.bf16.msra.mxu0 0
        %7262 = vmatprep.subr.bf16.mxu0 0
        %7263 = vmatpush2.bf16.msra.mxu0 0
        %7264 = vmatprep.subr.bf16.mxu0 0
        %7265 = vmatpush2.bf16.msra.mxu0 0
        %7266 = vmatprep.subr.bf16.mxu0 0
        %7267 = vmatpush2.bf16.msra.mxu0 0
        %7268 = vmatprep.subr.bf16.mxu0 0
        %7269 = vmatpush2.bf16.msra.mxu0 0
        %7270 = vmatprep.mubr.bf16.mxu0 0
        %7271 = vmatmul.mubr.bf16.gmra.mxu0 %v6958
        %v7272 = vpop.f32.mrf.mxu0
        %v7273 = vadd.f32 %v6741, %v7272
        %v7274 = vpop.f32.mrf.mxu0
        %v7275 = vpop.f32.mrf.mxu0
        %v7276 = vadd.f32 %v6744, %v7275
        %v7277 = vpop.f32.mrf.mxu0
        %7278 = vmatprep.mubr.bf16.mxu0 0
        %7279 = vmatmul.mubr.bf16.gmra.mxu0 %v6967
        %v7280 = vpop.f32.mrf.mxu0
        %v7281 = vpop.f32.mrf.mxu0
        %v7282 = vpop.f32.mrf.mxu0
        %v7283 = vadd.f32 %v6751, %v7282
        %v7284 = vpop.f32.mrf.mxu0
        %7285 = vmatprep.mubr.bf16.mxu0 0
        %7286 = vmatmul.mubr.bf16.gmra.mxu0 %v6976
        %v7287 = vpop.f32.mrf.mxu0
        %v7288 = vadd.f32 %v6756, %v7287
        %v7289 = vpop.f32.mrf.mxu0
        %v7290 = vpop.f32.mrf.mxu0
        %v7291 = vpop.f32.mrf.mxu0
        %7292 = vmatprep.mubr.bf16.mxu0 0
        %7293 = vmatmul.mubr.bf16.gmra.mxu0 %v6985
        %v7294 = vpop.f32.mrf.mxu0
        %v7295 = vadd.f32 %v6763, %v7294
        %v7296 = vpop.f32.mrf.mxu0
        %v7297 = vpop.f32.mrf.mxu0
        %v7298 = vadd.f32 %v6766, %v7297
        %v7299 = vpop.f32.mrf.mxu0
        %7300 = vmatprep.mubr.bf16.mxu0 0
        %7301 = vmatmul.mubr.bf16.gmra.mxu0 %v6994
        %v7302 = vpop.f32.mrf.mxu0
        %v7303 = vpop.f32.mrf.mxu0
        %v7304 = vpop.f32.mrf.mxu0
        %v7305 = vadd.f32 %v6773, %v7304
        %v7306 = vpop.f32.mrf.mxu0
        %7307 = vmatprep.mubr.bf16.mxu0 0
        %7308 = vmatmul.mubr.bf16.gmra.mxu0 %v7003
        %v7309 = vpop.f32.mrf.mxu0
        %v7310 = vadd.f32 %v6778, %v7309
        %v7311 = vpop.f32.mrf.mxu0
        %v7312 = vpop.f32.mrf.mxu0
        %v7313 = vpop.f32.mrf.mxu0
        %7314 = vmatprep.mubr.bf16.mxu0 0
        %7315 = vmatmul.mubr.bf16.gmra.mxu0 %v7012
        %v7316 = vpop.f32.mrf.mxu0
        %v7317 = vadd.f32 %v6785, %v7316
        %v7318 = vpop.f32.mrf.mxu0
        %v7319 = vpop.f32.mrf.mxu0
        %v7320 = vadd.f32 %v6788, %v7319
        %v7321 = vpop.f32.mrf.mxu0
        %7322 = vmatprep.mubr.bf16.mxu0 0
        %7323 = vmatmul.mubr.bf16.gmra.mxu0 %v7021
        %v7324 = vpop.f32.mrf.mxu0
        %v7325 = vpop.f32.mrf.mxu0
        %v7326 = vpop.f32.mrf.mxu0
        %v7327 = vadd.f32 %v6795, %v7326
        %v7328 = vpop.f32.mrf.mxu0
        %7329 = vmatprep.mubr.bf16.mxu0 0
        %7330 = vmatmul.mubr.bf16.gmra.mxu0 %v7030
        %v7331 = vpop.f32.mrf.mxu0
        %v7332 = vadd.f32 %v6800, %v7331
        %v7333 = vpop.f32.mrf.mxu0
        %v7334 = vpop.f32.mrf.mxu0
        %v7335 = vpop.f32.mrf.mxu0
        %7336 = vmatprep.mubr.bf16.mxu0 0
        %7337 = vmatmul.mubr.bf16.gmra.mxu0 %v7039
        %v7338 = vpop.f32.mrf.mxu0
        %v7339 = vadd.f32 %v6807, %v7338
        %v7340 = vpop.f32.mrf.mxu0
        %v7341 = vpop.f32.mrf.mxu0
        %v7342 = vadd.f32 %v6810, %v7341
        %v7343 = vpop.f32.mrf.mxu0
        %7344 = vmatprep.mubr.bf16.mxu0 0
        %7345 = vmatmul.mubr.bf16.gmra.mxu0 %v7048
        %v7346 = vpop.f32.mrf.mxu0
        %v7347 = vpop.f32.mrf.mxu0
        %v7348 = vpop.f32.mrf.mxu0
        %v7349 = vadd.f32 %v6817, %v7348
        %v7350 = vpop.f32.mrf.mxu0
        %7351 = vmatprep.mubr.bf16.mxu0 0
        %7352 = vmatmul.mubr.bf16.gmra.mxu0 %v7057
        %v7353 = vpop.f32.mrf.mxu0
        %v7354 = vadd.f32 %v6822, %v7353
        %v7355 = vpop.f32.mrf.mxu0
        %v7356 = vpop.f32.mrf.mxu0
        %v7357 = vpop.f32.mrf.mxu0
        %7358 = vmatprep.mubr.bf16.mxu0 0
        %7359 = vmatmul.mubr.bf16.gmra.mxu0 %v7066
        %v7360 = vpop.f32.mrf.mxu0
        %v7361 = vadd.f32 %v6829, %v7360
        %v7362 = vpop.f32.mrf.mxu0
        %v7363 = vpop.f32.mrf.mxu0
        %v7364 = vadd.f32 %v6832, %v7363
        %v7365 = vpop.f32.mrf.mxu0
        %7366 = vmatprep.mubr.bf16.mxu0 0
        %7367 = vmatmul.mubr.bf16.gmra.mxu0 %v7075
        %v7368 = vpop.f32.mrf.mxu0
        %v7369 = vpop.f32.mrf.mxu0
        %v7370 = vpop.f32.mrf.mxu0
        %v7371 = vadd.f32 %v6839, %v7370
        %v7372 = vpop.f32.mrf.mxu0
        %7373 = vmatprep.mubr.bf16.mxu0 0
        %7374 = vmatmul.mubr.bf16.gmra.mxu0 %v7084
        %v7375 = vpop.f32.mrf.mxu0
        %v7376 = vadd.f32 %v6844, %v7375
        %v7377 = vpop.f32.mrf.mxu0
        %v7378 = vpop.f32.mrf.mxu0
        %v7379 = vpop.f32.mrf.mxu0
        %7380 = vmatprep.mubr.bf16.mxu0 0
        %7381 = vmatmul.mubr.bf16.gmra.mxu0 %v7093
        %v7382 = vpop.f32.mrf.mxu0
        %v7383 = vadd.f32 %v6851, %v7382
        %v7384 = vpop.f32.mrf.mxu0
        %v7385 = vpop.f32.mrf.mxu0
        %v7386 = vadd.f32 %v6854, %v7385
        %v7387 = vpop.f32.mrf.mxu0
        %7388 = vmatprep.mubr.bf16.mxu0 0
        %7389 = vmatmul.mubr.bf16.gmra.mxu0 %v7102
        %v7390 = vpop.f32.mrf.mxu0
        %v7391 = vpop.f32.mrf.mxu0
        %v7392 = vpop.f32.mrf.mxu0
        %v7393 = vadd.f32 %v6861, %v7392
        %v7394 = vpop.f32.mrf.mxu0
        %7395 = vmatprep.mubr.bf16.mxu0 0
        %7396 = vmatmul.mubr.bf16.gmra.mxu0 %v7111
        %v7397 = vpop.f32.mrf.mxu0
        %v7398 = vadd.f32 %v6866, %v7397
        %v7399 = vpop.f32.mrf.mxu0
        %v7400 = vpop.f32.mrf.mxu0
        %v7401 = vpop.f32.mrf.mxu0
        %7402 = vmatprep.mubr.bf16.mxu0 0
        %7403 = vmatmul.mubr.bf16.gmra.mxu0 %v7120
        %v7404 = vpop.f32.mrf.mxu0
        %v7405 = vadd.f32 %v6873, %v7404
        %v7406 = vpop.f32.mrf.mxu0
        %v7407 = vpop.f32.mrf.mxu0
        %v7408 = vadd.f32 %v6876, %v7407
        %v7409 = vpop.f32.mrf.mxu0
        %7410 = vmatprep.mubr.bf16.mxu0 0
        %7411 = vmatmul.mubr.bf16.gmra.mxu0 %v7129
        %v7412 = vpop.f32.mrf.mxu0
        %v7413 = vpop.f32.mrf.mxu0
        %v7414 = vpop.f32.mrf.mxu0
        %v7415 = vadd.f32 %v6883, %v7414
        %v7416 = vpop.f32.mrf.mxu0
        %7417 = vmatprep.mubr.bf16.mxu0 0
        %7418 = vmatmul.mubr.bf16.gmra.mxu0 %v7138
        %v7419 = vpop.f32.mrf.mxu0
        %v7420 = vadd.f32 %v6888, %v7419
        %v7421 = vpop.f32.mrf.mxu0
        %v7422 = vpop.f32.mrf.mxu0
        %v7423 = vpop.f32.mrf.mxu0
        %7424 = vmatprep.mubr.bf16.mxu0 0
        %7425 = vmatmul.mubr.bf16.gmra.mxu0 %v7147
        %v7426 = vpop.f32.mrf.mxu0
        %v7427 = vadd.f32 %v6895, %v7426
        %v7428 = vpop.f32.mrf.mxu0
        %v7429 = vpop.f32.mrf.mxu0
        %v7430 = vadd.f32 %v6898, %v7429
        %v7431 = vpop.f32.mrf.mxu0
        %7432 = vmatprep.mubr.bf16.mxu0 0
        %7433 = vmatmul.mubr.bf16.gmra.mxu0 %v7156
        %v7434 = vpop.f32.mrf.mxu0
        %v7435 = vpop.f32.mrf.mxu0
        %v7436 = vpop.f32.mrf.mxu0
        %v7437 = vadd.f32 %v6905, %v7436
        %v7438 = vpop.f32.mrf.mxu0
        %7439 = vmatprep.mubr.bf16.mxu0 0
        %7440 = vmatmul.mubr.bf16.gmra.mxu0 %v7165
        %v7441 = vpop.f32.mrf.mxu0
        %v7442 = vadd.f32 %v6910, %v7441
        %v7443 = vpop.f32.mrf.mxu0
        %v7444 = vpop.f32.mrf.mxu0
        %v7445 = vpop.f32.mrf.mxu0
        %7446 = vdwg.mxu0
        %v7447 = vld [vmem:[#allocation3 + $0x4] sm:$0xf]
        %v7448 = vld [vmem:[#allocation3 + $0x8] sm:$0xf]
        %v7449 = vld [vmem:[#allocation3 + $0xc] sm:$0xf]
        %v7450 = vld [vmem:[#allocation3 + $0x10] sm:$0xf]
        %v7451 = vld [vmem:[#allocation3 + $0x14] sm:$0xf]
        %v7452 = vld [vmem:[#allocation3 + $0x18] sm:$0xf]
        %v7453 = vld [vmem:[#allocation3 + $0x1c] sm:$0xf]
        %v7454 = vld [vmem:[#allocation3 + $0x20] sm:$0xf]
        %v7455 = vld [vmem:[#allocation3 + $0x24] sm:$0xf]
        %v7456 = vld [vmem:[#allocation3 + $0x28] sm:$0xf]
        %v7457 = vld [vmem:[#allocation3 + $0x2c] sm:$0xf]
        %v7458 = vld [vmem:[#allocation3 + $0x30] sm:$0xf]
        %v7459 = vld [vmem:[#allocation3 + $0x34] sm:$0xf]
        %v7460 = vld [vmem:[#allocation3 + $0x38] sm:$0xf]
        %v7461 = vld [vmem:[#allocation3 + $0x3c] sm:$0xf]
        %v7462 = vld [vmem:[#allocation3 + $0x40] sm:$0xf]
        %v7463 = vld [vmem:[#allocation3 + $0x44] sm:$0xf]
        %v7464 = vld [vmem:[#allocation3 + $0x48] sm:$0xf]
        %v7465 = vld [vmem:[#allocation3 + $0x4c] sm:$0xf]
        %v7466 = vld [vmem:[#allocation3 + $0x50] sm:$0xf]
        %v7467 = vld [vmem:[#allocation3 + $0x54] sm:$0xf]
        %v7468 = vld [vmem:[#allocation3 + $0x58] sm:$0xf]
        %v7469 = vld [vmem:[#allocation3 + $0x5c] sm:$0xf]
        %v7470 = vld [vmem:[#allocation3 + $0x60] sm:$0xf]
        %v7471 = vld [vmem:[#allocation3 + $0x64] sm:$0xf]
        %v7472 = vld [vmem:[#allocation3 + $0x68] sm:$0xf]
        %v7473 = vld [vmem:[#allocation3 + $0x6c] sm:$0xf]
        %v7474 = vld [vmem:[#allocation3 + $0x70] sm:$0xf]
        %v7475 = vld [vmem:[#allocation3 + $0x74] sm:$0xf]
        %v7476 = vld [vmem:[#allocation3 + $0x78] sm:$0xf]
        %v7477 = vld [vmem:[#allocation3 + $0x7c] sm:$0xf]
        %v7478 = vld [vmem:[#allocation3 + $0x80] sm:$0xf]
        %v7479 = vld [vmem:[#allocation3 + $0x84] sm:$0xf]
        %v7480 = vld [vmem:[#allocation3 + $0x88] sm:$0xf]
        %v7481 = vld [vmem:[#allocation3 + $0x8c] sm:$0xf]
        %v7482 = vld [vmem:[#allocation3 + $0x90] sm:$0xf]
        %v7483 = vld [vmem:[#allocation3 + $0x94] sm:$0xf]
        %v7484 = vld [vmem:[#allocation3 + $0x98] sm:$0xf]
        %v7485 = vld [vmem:[#allocation3 + $0x9c] sm:$0xf]
        %v7486 = vld [vmem:[#allocation3 + $0xa0] sm:$0xf]
        %v7487 = vld [vmem:[#allocation3 + $0xa4] sm:$0xf]
        %v7488 = vld [vmem:[#allocation3 + $0xa8] sm:$0xf]
        %v7489 = vld [vmem:[#allocation3 + $0xac] sm:$0xf]
        %v7490 = vld [vmem:[#allocation3 + $0xb0] sm:$0xf]
        %v7491 = vld [vmem:[#allocation3 + $0xb4] sm:$0xf]
        %v7492 = vld [vmem:[#allocation3 + $0xb8] sm:$0xf]
        %v7493 = vld [vmem:[#allocation3 + $0xbc] sm:$0xf]
        %v7494 = vld [vmem:[#allocation3 + $0xc0] sm:$0xf]
        %v7495 = vld [vmem:[#allocation3 + $0xc4] sm:$0x1]
        %s7496 = scalar_lea.vmem [#allocation4], 128
        %v7497 = vld [vmem:[%s7496] sm:$0xf]
        %v7498 = vld [vmem:[%s7496 + $0x4] sm:$0xf]
        %v7499 = vld [vmem:[%s7496 + $0x8] sm:$0xf]
        %v7500 = vld [vmem:[%s7496 + $0xc] sm:$0xf]
        %v7501 = vld [vmem:[%s7496 + $0x10] sm:$0xf]
        %v7502 = vld [vmem:[%s7496 + $0x14] sm:$0xf]
        %v7503 = vld [vmem:[%s7496 + $0x18] sm:$0xf]
        %v7504 = vld [vmem:[%s7496 + $0x1c] sm:$0xf]
        %v7505 = vld [vmem:[%s7496 + $0x20] sm:$0xf]
        %v7506 = vld [vmem:[%s7496 + $0x24] sm:$0xf]
        %v7507 = vld [vmem:[%s7496 + $0x28] sm:$0xf]
        %v7508 = vld [vmem:[%s7496 + $0x2c] sm:$0xf]
        %v7509 = vld [vmem:[%s7496 + $0x30] sm:$0xf]
        %v7510 = vld [vmem:[%s7496 + $0x34] sm:$0xf]
        %v7511 = vld [vmem:[%s7496 + $0x38] sm:$0xf]
        %v7512 = vld [vmem:[%s7496 + $0x3c] sm:$0xf]
        %v7562 = vunpack.c.l.b16 %v7447
        %v7563 = vunpack.c.l.b16 %v7448
        %v7564 = vunpack.c.l.b16 %v7449
        %v7565 = vunpack.c.l.b16 %v7450
        %v7566 = vunpack.c.l.b16 %v7451
        %v7567 = vunpack.c.l.b16 %v7452
        %v7568 = vunpack.c.l.b16 %v7453
        %v7569 = vunpack.c.l.b16 %v7454
        %v7570 = vunpack.c.l.b16 %v7455
        %v7571 = vunpack.c.l.b16 %v7456
        %v7572 = vunpack.c.l.b16 %v7457
        %v7573 = vunpack.c.l.b16 %v7458
        %v7574 = vunpack.c.l.b16 %v7459
        %v7575 = vunpack.c.l.b16 %v7460
        %v7576 = vunpack.c.l.b16 %v7461
        %v7577 = vunpack.c.l.b16 %v7462
        %v7578 = vunpack.c.l.b16 %v7463
        %v7579 = vunpack.c.l.b16 %v7464
        %v7580 = vunpack.c.l.b16 %v7465
        %v7581 = vunpack.c.l.b16 %v7466
        %v7582 = vunpack.c.l.b16 %v7467
        %v7583 = vunpack.c.l.b16 %v7468
        %v7584 = vunpack.c.l.b16 %v7469
        %v7585 = vunpack.c.l.b16 %v7470
        %v7586 = vunpack.c.l.b16 %v7471
        %v7587 = vunpack.c.l.b16 %v7472
        %v7588 = vunpack.c.l.b16 %v7473
        %v7589 = vunpack.c.l.b16 %v7474
        %v7590 = vunpack.c.l.b16 %v7475
        %v7591 = vunpack.c.l.b16 %v7476
        %v7592 = vunpack.c.l.b16 %v7477
        %v7593 = vunpack.c.l.b16 %v7478
        %v7594 = vunpack.c.l.b16 %v7479
        %v7595 = vunpack.c.l.b16 %v7480
        %v7596 = vunpack.c.l.b16 %v7481
        %v7597 = vunpack.c.l.b16 %v7482
        %v7598 = vunpack.c.l.b16 %v7483
        %v7599 = vunpack.c.l.b16 %v7484
        %v7600 = vunpack.c.l.b16 %v7485
        %v7601 = vunpack.c.l.b16 %v7486
        %v7602 = vunpack.c.l.b16 %v7487
        %v7603 = vunpack.c.l.b16 %v7488
        %v7604 = vunpack.c.l.b16 %v7489
        %v7605 = vunpack.c.l.b16 %v7490
        %v7606 = vunpack.c.l.b16 %v7491
        %v7607 = vunpack.c.l.b16 %v7492
        %v7608 = vunpack.c.l.b16 %v7493
        %v7609 = vunpack.c.l.b16 %v7494
        %v7610 = vunpack.c.l.b16 %v7495
        %v7611 = vpack.c.b16 %v7563, %v7562
        %v7612 = vpack.c.b16 %v7565, %v7564
        %v7613 = vpack.c.b16 %v7567, %v7566
        %v7614 = vpack.c.b16 %v7569, %v7568
        %v7615 = vpack.c.b16 %v7571, %v7570
        %v7616 = vpack.c.b16 %v7573, %v7572
        %v7617 = vpack.c.b16 %v7575, %v7574
        %v7618 = vpack.c.b16 %v7577, %v7576
        %v7619 = vpack.c.b16 %v7579, %v7578
        %v7620 = vpack.c.b16 %v7581, %v7580
        %v7621 = vpack.c.b16 %v7583, %v7582
        %v7622 = vpack.c.b16 %v7585, %v7584
        %v7623 = vpack.c.b16 %v7587, %v7586
        %v7624 = vpack.c.b16 %v7589, %v7588
        %v7625 = vpack.c.b16 %v7591, %v7590
        %v7626 = vpack.c.b16 %v7593, %v7592
        %v7627 = vpack.c.b16 %v7595, %v7594
        %v7628 = vpack.c.b16 %v7597, %v7596
        %v7629 = vpack.c.b16 %v7599, %v7598
        %v7630 = vpack.c.b16 %v7601, %v7600
        %v7631 = vpack.c.b16 %v7603, %v7602
        %v7632 = vpack.c.b16 %v7605, %v7604
        %v7633 = vpack.c.b16 %v7607, %v7606
        %v7634 = vpack.c.b16 %v7609, %v7608
        %v7635 = vpack.c.b16 %v7610, %v7610
        %v7637 = vshrl.u32 %v7611, 16
        %v7639 = vshll.u32 %v7611, 16
        %v7641 = vrot.slane %v7639, 1
        %v7642 = vor.u32 %v7637, %v7641
        %v7644 = vshll.u32 %v7612, 16
        %v7646 = vrot.slane %v7644, 1
        %v7647 = vsel %vm1730, %v7642, %v7646
        %v7648 = vshrl.u32 %v7612, 16
        %v7650 = vor.u32 %v7648, %v7646
        %v7652 = vshll.u32 %v7613, 16
        %v7654 = vrot.slane %v7652, 1
        %v7655 = vsel %vm1730, %v7650, %v7654
        %v7656 = vshrl.u32 %v7613, 16
        %v7658 = vor.u32 %v7656, %v7654
        %v7660 = vshll.u32 %v7614, 16
        %v7662 = vrot.slane %v7660, 1
        %v7663 = vsel %vm1730, %v7658, %v7662
        %v7664 = vshrl.u32 %v7614, 16
        %v7666 = vor.u32 %v7664, %v7662
        %v7668 = vshll.u32 %v7615, 16
        %v7670 = vrot.slane %v7668, 1
        %v7671 = vsel %vm1730, %v7666, %v7670
        %v7672 = vshrl.u32 %v7615, 16
        %v7674 = vor.u32 %v7672, %v7670
        %v7676 = vshll.u32 %v7616, 16
        %v7678 = vrot.slane %v7676, 1
        %v7679 = vsel %vm1730, %v7674, %v7678
        %v7680 = vshrl.u32 %v7616, 16
        %v7682 = vor.u32 %v7680, %v7678
        %v7684 = vshll.u32 %v7617, 16
        %v7686 = vrot.slane %v7684, 1
        %v7687 = vsel %vm1730, %v7682, %v7686
        %v7688 = vshrl.u32 %v7617, 16
        %v7690 = vor.u32 %v7688, %v7686
        %v7692 = vshll.u32 %v7618, 16
        %v7694 = vrot.slane %v7692, 1
        %v7695 = vsel %vm1730, %v7690, %v7694
        %v7696 = vshrl.u32 %v7618, 16
        %v7698 = vor.u32 %v7696, %v7694
        %v7700 = vshll.u32 %v7619, 16
        %v7702 = vrot.slane %v7700, 1
        %v7703 = vsel %vm1730, %v7698, %v7702
        %v7704 = vshrl.u32 %v7619, 16
        %v7706 = vor.u32 %v7704, %v7702
        %v7708 = vshll.u32 %v7620, 16
        %v7710 = vrot.slane %v7708, 1
        %v7711 = vsel %vm1730, %v7706, %v7710
        %v7712 = vshrl.u32 %v7620, 16
        %v7714 = vor.u32 %v7712, %v7710
        %v7716 = vshll.u32 %v7621, 16
        %v7718 = vrot.slane %v7716, 1
        %v7719 = vsel %vm1730, %v7714, %v7718
        %v7720 = vshrl.u32 %v7621, 16
        %v7722 = vor.u32 %v7720, %v7718
        %v7724 = vshll.u32 %v7622, 16
        %v7726 = vrot.slane %v7724, 1
        %v7727 = vsel %vm1730, %v7722, %v7726
        %v7728 = vshrl.u32 %v7622, 16
        %v7730 = vor.u32 %v7728, %v7726
        %v7732 = vshll.u32 %v7623, 16
        %v7734 = vrot.slane %v7732, 1
        %v7735 = vsel %vm1730, %v7730, %v7734
        %v7736 = vshrl.u32 %v7623, 16
        %v7738 = vor.u32 %v7736, %v7734
        %v7740 = vshll.u32 %v7624, 16
        %v7742 = vrot.slane %v7740, 1
        %v7743 = vsel %vm1730, %v7738, %v7742
        %v7744 = vshrl.u32 %v7624, 16
        %v7746 = vor.u32 %v7744, %v7742
        %v7748 = vshll.u32 %v7625, 16
        %v7750 = vrot.slane %v7748, 1
        %v7751 = vsel %vm1730, %v7746, %v7750
        %v7752 = vshrl.u32 %v7625, 16
        %v7754 = vor.u32 %v7752, %v7750
        %v7756 = vshll.u32 %v7626, 16
        %v7758 = vrot.slane %v7756, 1
        %v7759 = vsel %vm1730, %v7754, %v7758
        %v7760 = vshrl.u32 %v7626, 16
        %v7762 = vor.u32 %v7760, %v7758
        %v7764 = vshll.u32 %v7627, 16
        %v7766 = vrot.slane %v7764, 1
        %v7767 = vsel %vm1730, %v7762, %v7766
        %v7768 = vshrl.u32 %v7627, 16
        %v7770 = vor.u32 %v7768, %v7766
        %v7772 = vshll.u32 %v7628, 16
        %v7774 = vrot.slane %v7772, 1
        %v7775 = vsel %vm1730, %v7770, %v7774
        %v7776 = vshrl.u32 %v7628, 16
        %v7778 = vor.u32 %v7776, %v7774
        %v7780 = vshll.u32 %v7629, 16
        %v7782 = vrot.slane %v7780, 1
        %v7783 = vsel %vm1730, %v7778, %v7782
        %v7784 = vshrl.u32 %v7629, 16
        %v7786 = vor.u32 %v7784, %v7782
        %v7788 = vshll.u32 %v7630, 16
        %v7790 = vrot.slane %v7788, 1
        %v7791 = vsel %vm1730, %v7786, %v7790
        %v7792 = vshrl.u32 %v7630, 16
        %v7794 = vor.u32 %v7792, %v7790
        %v7796 = vshll.u32 %v7631, 16
        %v7798 = vrot.slane %v7796, 1
        %v7799 = vsel %vm1730, %v7794, %v7798
        %v7800 = vshrl.u32 %v7631, 16
        %v7802 = vor.u32 %v7800, %v7798
        %v7804 = vshll.u32 %v7632, 16
        %v7806 = vrot.slane %v7804, 1
        %v7807 = vsel %vm1730, %v7802, %v7806
        %v7808 = vshrl.u32 %v7632, 16
        %v7810 = vor.u32 %v7808, %v7806
        %v7812 = vshll.u32 %v7633, 16
        %v7814 = vrot.slane %v7812, 1
        %v7815 = vsel %vm1730, %v7810, %v7814
        %v7816 = vshrl.u32 %v7633, 16
        %v7818 = vor.u32 %v7816, %v7814
        %v7820 = vshll.u32 %v7634, 16
        %v7822 = vrot.slane %v7820, 1
        %v7823 = vsel %vm1730, %v7818, %v7822
        %v7824 = vshrl.u32 %v7634, 16
        %v7826 = vor.u32 %v7824, %v7822
        %v7828 = vshll.u32 %v7635, 16
        %v7830 = vrot.slane %v7828, 1
        %v7831 = vsel %vm1730, %v7826, %v7830
        %v7872 = vunpack.c.l.b16 %v7497
        %v7873 = vunpack.c.l.b16 %v7498
        %v7874 = vunpack.c.l.b16 %v7499
        %v7875 = vunpack.c.l.b16 %v7500
        %v7876 = vunpack.c.l.b16 %v7501
        %v7877 = vunpack.c.l.b16 %v7502
        %v7878 = vunpack.c.l.b16 %v7503
        %v7879 = vunpack.c.l.b16 %v7504
        %v7880 = vunpack.c.l.b16 %v7505
        %v7881 = vunpack.c.l.b16 %v7506
        %v7882 = vunpack.c.l.b16 %v7507
        %v7883 = vunpack.c.l.b16 %v7508
        %v7884 = vunpack.c.l.b16 %v7509
        %v7885 = vunpack.c.l.b16 %v7510
        %v7886 = vunpack.c.l.b16 %v7511
        %v7887 = vunpack.c.l.b16 %v7512
        %v7888 = vpack.c.b16 %v7873, %v7872
        %v7889 = vpack.c.b16 %v7875, %v7874
        %v7890 = vpack.c.b16 %v7877, %v7876
        %v7891 = vpack.c.b16 %v7879, %v7878
        %v7892 = vpack.c.b16 %v7881, %v7880
        %v7893 = vpack.c.b16 %v7883, %v7882
        %v7894 = vpack.c.b16 %v7885, %v7884
        %v7895 = vpack.c.b16 %v7887, %v7886
        %7904 = vmatprep.subr.bf16.mxu0 0
        %7905 = vmatpush1.bf16.msra.mxu0 %v7895
        %7906 = vmatprep.subr.bf16.mxu0 0
        %7907 = vmatpush1.bf16.msra.mxu0 %v7894
        %7908 = vmatprep.subr.bf16.mxu0 0
        %7909 = vmatpush1.bf16.msra.mxu0 %v7893
        %7910 = vmatprep.subr.bf16.mxu0 0
        %7911 = vmatpush1.bf16.msra.mxu0 %v7892
        %7912 = vmatprep.subr.bf16.mxu0 0
        %7913 = vmatpush1.bf16.msra.mxu0 %v7891
        %7914 = vmatprep.subr.bf16.mxu0 0
        %7915 = vmatpush1.bf16.msra.mxu0 %v7890
        %7916 = vmatprep.subr.bf16.mxu0 0
        %7917 = vmatpush1.bf16.msra.mxu0 %v7889
        %7918 = vmatprep.subr.bf16.mxu0 0
        %7919 = vmatpush1.bf16.msra.mxu0 %v7888
        %7920 = vmatprep.subr.bf16.mxu0 0
        %7921 = vmatpush2.bf16.msra.mxu0 0
        %7922 = vmatprep.subr.bf16.mxu0 0
        %7923 = vmatpush2.bf16.msra.mxu0 0
        %7924 = vmatprep.subr.bf16.mxu0 0
        %7925 = vmatpush2.bf16.msra.mxu0 0
        %7926 = vmatprep.subr.bf16.mxu0 0
        %7927 = vmatpush2.bf16.msra.mxu0 0
        %7928 = vmatprep.subr.bf16.mxu0 0
        %7929 = vmatpush2.bf16.msra.mxu0 0
        %7930 = vmatprep.subr.bf16.mxu0 0
        %7931 = vmatpush2.bf16.msra.mxu0 0
        %7932 = vmatprep.subr.bf16.mxu0 0
        %7933 = vmatpush2.bf16.msra.mxu0 0
        %7934 = vmatprep.subr.bf16.mxu0 0
        %7935 = vmatpush2.bf16.msra.mxu0 0
        %7936 = vmatprep.mubr.bf16.mxu0 0
        %7937 = vmatmul.mubr.bf16.gmra.mxu0 %v7647
        %v7938 = vpop.f32.mrf.mxu0
        %v7939 = vadd.f32 0.0, %v7938
        %v7940 = vpop.f32.mrf.mxu0
        %v7941 = vpop.f32.mrf.mxu0
        %v7942 = vadd.f32 0.0, %v7941
        %v7943 = vpop.f32.mrf.mxu0
        %7944 = vmatprep.mubr.bf16.mxu0 0
        %7945 = vmatmul.mubr.bf16.gmra.mxu0 %v7655
        %v7946 = vpop.f32.mrf.mxu0
        %v7947 = vpop.f32.mrf.mxu0
        %v7948 = vpop.f32.mrf.mxu0
        %v7949 = vadd.f32 0.0, %v7948
        %v7950 = vpop.f32.mrf.mxu0
        %7951 = vmatprep.mubr.bf16.mxu0 0
        %7952 = vmatmul.mubr.bf16.gmra.mxu0 %v7663
        %v7953 = vpop.f32.mrf.mxu0
        %v7954 = vadd.f32 0.0, %v7953
        %v7955 = vpop.f32.mrf.mxu0
        %v7956 = vpop.f32.mrf.mxu0
        %v7957 = vpop.f32.mrf.mxu0
        %7958 = vmatprep.mubr.bf16.mxu0 0
        %7959 = vmatmul.mubr.bf16.gmra.mxu0 %v7671
        %v7960 = vpop.f32.mrf.mxu0
        %v7961 = vadd.f32 0.0, %v7960
        %v7962 = vpop.f32.mrf.mxu0
        %v7963 = vpop.f32.mrf.mxu0
        %v7964 = vadd.f32 0.0, %v7963
        %v7965 = vpop.f32.mrf.mxu0
        %7966 = vmatprep.mubr.bf16.mxu0 0
        %7967 = vmatmul.mubr.bf16.gmra.mxu0 %v7679
        %v7968 = vpop.f32.mrf.mxu0
        %v7969 = vpop.f32.mrf.mxu0
        %v7970 = vpop.f32.mrf.mxu0
        %v7971 = vadd.f32 0.0, %v7970
        %v7972 = vpop.f32.mrf.mxu0
        %7973 = vmatprep.mubr.bf16.mxu0 0
        %7974 = vmatmul.mubr.bf16.gmra.mxu0 %v7687
        %v7975 = vpop.f32.mrf.mxu0
        %v7976 = vadd.f32 0.0, %v7975
        %v7977 = vpop.f32.mrf.mxu0
        %v7978 = vpop.f32.mrf.mxu0
        %v7979 = vpop.f32.mrf.mxu0
        %7980 = vmatprep.mubr.bf16.mxu0 0
        %7981 = vmatmul.mubr.bf16.gmra.mxu0 %v7695
        %v7982 = vpop.f32.mrf.mxu0
        %v7983 = vadd.f32 0.0, %v7982
        %v7984 = vpop.f32.mrf.mxu0
        %v7985 = vpop.f32.mrf.mxu0
        %v7986 = vadd.f32 0.0, %v7985
        %v7987 = vpop.f32.mrf.mxu0
        %7988 = vmatprep.mubr.bf16.mxu0 0
        %7989 = vmatmul.mubr.bf16.gmra.mxu0 %v7703
        %v7990 = vpop.f32.mrf.mxu0
        %v7991 = vpop.f32.mrf.mxu0
        %v7992 = vpop.f32.mrf.mxu0
        %v7993 = vadd.f32 0.0, %v7992
        %v7994 = vpop.f32.mrf.mxu0
        %7995 = vmatprep.mubr.bf16.mxu0 0
        %7996 = vmatmul.mubr.bf16.gmra.mxu0 %v7711
        %v7997 = vpop.f32.mrf.mxu0
        %v7998 = vadd.f32 0.0, %v7997
        %v7999 = vpop.f32.mrf.mxu0
        %v8000 = vpop.f32.mrf.mxu0
        %v8001 = vpop.f32.mrf.mxu0
        %8002 = vmatprep.mubr.bf16.mxu0 0
        %8003 = vmatmul.mubr.bf16.gmra.mxu0 %v7719
        %v8004 = vpop.f32.mrf.mxu0
        %v8005 = vadd.f32 0.0, %v8004
        %v8006 = vpop.f32.mrf.mxu0
        %v8007 = vpop.f32.mrf.mxu0
        %v8008 = vadd.f32 0.0, %v8007
        %v8009 = vpop.f32.mrf.mxu0
        %8010 = vmatprep.mubr.bf16.mxu0 0
        %8011 = vmatmul.mubr.bf16.gmra.mxu0 %v7727
        %v8012 = vpop.f32.mrf.mxu0
        %v8013 = vpop.f32.mrf.mxu0
        %v8014 = vpop.f32.mrf.mxu0
        %v8015 = vadd.f32 0.0, %v8014
        %v8016 = vpop.f32.mrf.mxu0
        %8017 = vmatprep.mubr.bf16.mxu0 0
        %8018 = vmatmul.mubr.bf16.gmra.mxu0 %v7735
        %v8019 = vpop.f32.mrf.mxu0
        %v8020 = vadd.f32 0.0, %v8019
        %v8021 = vpop.f32.mrf.mxu0
        %v8022 = vpop.f32.mrf.mxu0
        %v8023 = vpop.f32.mrf.mxu0
        %8024 = vmatprep.mubr.bf16.mxu0 0
        %8025 = vmatmul.mubr.bf16.gmra.mxu0 %v7743
        %v8026 = vpop.f32.mrf.mxu0
        %v8027 = vadd.f32 0.0, %v8026
        %v8028 = vpop.f32.mrf.mxu0
        %v8029 = vpop.f32.mrf.mxu0
        %v8030 = vadd.f32 0.0, %v8029
        %v8031 = vpop.f32.mrf.mxu0
        %8032 = vmatprep.mubr.bf16.mxu0 0
        %8033 = vmatmul.mubr.bf16.gmra.mxu0 %v7751
        %v8034 = vpop.f32.mrf.mxu0
        %v8035 = vpop.f32.mrf.mxu0
        %v8036 = vpop.f32.mrf.mxu0
        %v8037 = vadd.f32 0.0, %v8036
        %v8038 = vpop.f32.mrf.mxu0
        %8039 = vmatprep.mubr.bf16.mxu0 0
        %8040 = vmatmul.mubr.bf16.gmra.mxu0 %v7759
        %v8041 = vpop.f32.mrf.mxu0
        %v8042 = vadd.f32 0.0, %v8041
        %v8043 = vpop.f32.mrf.mxu0
        %v8044 = vpop.f32.mrf.mxu0
        %v8045 = vpop.f32.mrf.mxu0
        %8046 = vmatprep.mubr.bf16.mxu0 0
        %8047 = vmatmul.mubr.bf16.gmra.mxu0 %v7767
        %v8048 = vpop.f32.mrf.mxu0
        %v8049 = vadd.f32 0.0, %v8048
        %v8050 = vpop.f32.mrf.mxu0
        %v8051 = vpop.f32.mrf.mxu0
        %v8052 = vadd.f32 0.0, %v8051
        %v8053 = vpop.f32.mrf.mxu0
        %8054 = vmatprep.mubr.bf16.mxu0 0
        %8055 = vmatmul.mubr.bf16.gmra.mxu0 %v7775
        %v8056 = vpop.f32.mrf.mxu0
        %v8057 = vpop.f32.mrf.mxu0
        %v8058 = vpop.f32.mrf.mxu0
        %v8059 = vadd.f32 0.0, %v8058
        %v8060 = vpop.f32.mrf.mxu0
        %8061 = vmatprep.mubr.bf16.mxu0 0
        %8062 = vmatmul.mubr.bf16.gmra.mxu0 %v7783
        %v8063 = vpop.f32.mrf.mxu0
        %v8064 = vadd.f32 0.0, %v8063
        %v8065 = vpop.f32.mrf.mxu0
        %v8066 = vpop.f32.mrf.mxu0
        %v8067 = vpop.f32.mrf.mxu0
        %8068 = vmatprep.mubr.bf16.mxu0 0
        %8069 = vmatmul.mubr.bf16.gmra.mxu0 %v7791
        %v8070 = vpop.f32.mrf.mxu0
        %v8071 = vadd.f32 0.0, %v8070
        %v8072 = vpop.f32.mrf.mxu0
        %v8073 = vpop.f32.mrf.mxu0
        %v8074 = vadd.f32 0.0, %v8073
        %v8075 = vpop.f32.mrf.mxu0
        %8076 = vmatprep.mubr.bf16.mxu0 0
        %8077 = vmatmul.mubr.bf16.gmra.mxu0 %v7799
        %v8078 = vpop.f32.mrf.mxu0
        %v8079 = vpop.f32.mrf.mxu0
        %v8080 = vpop.f32.mrf.mxu0
        %v8081 = vadd.f32 0.0, %v8080
        %v8082 = vpop.f32.mrf.mxu0
        %8083 = vmatprep.mubr.bf16.mxu0 0
        %8084 = vmatmul.mubr.bf16.gmra.mxu0 %v7807
        %v8085 = vpop.f32.mrf.mxu0
        %v8086 = vadd.f32 0.0, %v8085
        %v8087 = vpop.f32.mrf.mxu0
        %v8088 = vpop.f32.mrf.mxu0
        %v8089 = vpop.f32.mrf.mxu0
        %8090 = vmatprep.mubr.bf16.mxu0 0
        %8091 = vmatmul.mubr.bf16.gmra.mxu0 %v7815
        %v8092 = vpop.f32.mrf.mxu0
        %v8093 = vadd.f32 0.0, %v8092
        %v8094 = vpop.f32.mrf.mxu0
        %v8095 = vpop.f32.mrf.mxu0
        %v8096 = vadd.f32 0.0, %v8095
        %v8097 = vpop.f32.mrf.mxu0
        %8098 = vmatprep.mubr.bf16.mxu0 0
        %8099 = vmatmul.mubr.bf16.gmra.mxu0 %v7823
        %v8100 = vpop.f32.mrf.mxu0
        %v8101 = vpop.f32.mrf.mxu0
        %v8102 = vpop.f32.mrf.mxu0
        %v8103 = vadd.f32 0.0, %v8102
        %v8104 = vpop.f32.mrf.mxu0
        %8105 = vmatprep.mubr.bf16.mxu0 0
        %8106 = vmatmul.mubr.bf16.gmra.mxu0 %v7831
        %v8107 = vpop.f32.mrf.mxu0
        %v8108 = vadd.f32 0.0, %v8107
        %v8109 = vpop.f32.mrf.mxu0
        %v8110 = vpop.f32.mrf.mxu0
        %v8111 = vpop.f32.mrf.mxu0
        %8112 = vdwg.mxu0
        %v8113 = vadd.f32 %v7273, %v7939
        %v8114 = vadd.f32 %v7276, %v7942
        %v8115 = vadd.f32 %v7283, %v7949
        %v8116 = vadd.f32 %v7288, %v7954
        %v8117 = vadd.f32 %v7295, %v7961
        %v8118 = vadd.f32 %v7298, %v7964
        %v8119 = vadd.f32 %v7305, %v7971
        %v8120 = vadd.f32 %v7310, %v7976
        %v8121 = vadd.f32 %v7317, %v7983
        %v8122 = vadd.f32 %v7320, %v7986
        %v8123 = vadd.f32 %v7327, %v7993
        %v8124 = vadd.f32 %v7332, %v7998
        %v8125 = vadd.f32 %v7339, %v8005
        %v8126 = vadd.f32 %v7342, %v8008
        %v8127 = vadd.f32 %v7349, %v8015
        %v8128 = vadd.f32 %v7354, %v8020
        %v8129 = vadd.f32 %v7361, %v8027
        %v8130 = vadd.f32 %v7364, %v8030
        %v8131 = vadd.f32 %v7371, %v8037
        %v8132 = vadd.f32 %v7376, %v8042
        %v8133 = vadd.f32 %v7383, %v8049
        %v8134 = vadd.f32 %v7386, %v8052
        %v8135 = vadd.f32 %v7393, %v8059
        %v8136 = vadd.f32 %v7398, %v8064
        %v8137 = vadd.f32 %v7405, %v8071
        %v8138 = vadd.f32 %v7408, %v8074
        %v8139 = vadd.f32 %v7415, %v8081
        %v8140 = vadd.f32 %v7420, %v8086
        %v8141 = vadd.f32 %v7427, %v8093
        %v8142 = vadd.f32 %v7430, %v8096
        %v8143 = vadd.f32 %v7437, %v8103
        %v8144 = vadd.f32 %v7442, %v8108
        %v8145 = vld [vmem:[#allocation3 + $0xc] sm:$0x8]
        %v8146 = vld [vmem:[#allocation3 + $0x10] sm:$0xf]
        %v8147 = vld [vmem:[#allocation3 + $0x14] sm:$0xf]
        %v8148 = vld [vmem:[#allocation3 + $0x18] sm:$0xf]
        %v8149 = vld [vmem:[#allocation3 + $0x1c] sm:$0xf]
        %v8150 = vld [vmem:[#allocation3 + $0x20] sm:$0xf]
        %v8151 = vld [vmem:[#allocation3 + $0x24] sm:$0xf]
        %v8152 = vld [vmem:[#allocation3 + $0x28] sm:$0xf]
        %v8153 = vld [vmem:[#allocation3 + $0x2c] sm:$0xf]
        %v8154 = vld [vmem:[#allocation3 + $0x30] sm:$0xf]
        %v8155 = vld [vmem:[#allocation3 + $0x34] sm:$0xf]
        %v8156 = vld [vmem:[#allocation3 + $0x38] sm:$0xf]
        %v8157 = vld [vmem:[#allocation3 + $0x3c] sm:$0xf]
        %v8158 = vld [vmem:[#allocation3 + $0x40] sm:$0xf]
        %v8159 = vld [vmem:[#allocation3 + $0x44] sm:$0xf]
        %v8160 = vld [vmem:[#allocation3 + $0x48] sm:$0xf]
        %v8161 = vld [vmem:[#allocation3 + $0x4c] sm:$0xf]
        %v8162 = vld [vmem:[#allocation3 + $0x50] sm:$0xf]
        %v8163 = vld [vmem:[#allocation3 + $0x54] sm:$0xf]
        %v8164 = vld [vmem:[#allocation3 + $0x58] sm:$0xf]
        %v8165 = vld [vmem:[#allocation3 + $0x5c] sm:$0xf]
        %v8166 = vld [vmem:[#allocation3 + $0x60] sm:$0xf]
        %v8167 = vld [vmem:[#allocation3 + $0x64] sm:$0xf]
        %v8168 = vld [vmem:[#allocation3 + $0x68] sm:$0xf]
        %v8169 = vld [vmem:[#allocation3 + $0x6c] sm:$0xf]
        %v8170 = vld [vmem:[#allocation3 + $0x70] sm:$0xf]
        %v8171 = vld [vmem:[#allocation3 + $0x74] sm:$0xf]
        %v8172 = vld [vmem:[#allocation3 + $0x78] sm:$0xf]
        %v8173 = vld [vmem:[#allocation3 + $0x7c] sm:$0xf]
        %v8174 = vld [vmem:[#allocation3 + $0x80] sm:$0xf]
        %v8175 = vld [vmem:[#allocation3 + $0x84] sm:$0xf]
        %v8176 = vld [vmem:[#allocation3 + $0x88] sm:$0xf]
        %v8177 = vld [vmem:[#allocation3 + $0x8c] sm:$0xf]
        %v8178 = vld [vmem:[#allocation3 + $0x90] sm:$0xf]
        %v8179 = vld [vmem:[#allocation3 + $0x94] sm:$0xf]
        %v8180 = vld [vmem:[#allocation3 + $0x98] sm:$0xf]
        %v8181 = vld [vmem:[#allocation3 + $0x9c] sm:$0xf]
        %v8182 = vld [vmem:[#allocation3 + $0xa0] sm:$0xf]
        %v8183 = vld [vmem:[#allocation3 + $0xa4] sm:$0xf]
        %v8184 = vld [vmem:[#allocation3 + $0xa8] sm:$0xf]
        %v8185 = vld [vmem:[#allocation3 + $0xac] sm:$0xf]
        %v8186 = vld [vmem:[#allocation3 + $0xb0] sm:$0xf]
        %v8187 = vld [vmem:[#allocation3 + $0xb4] sm:$0xf]
        %v8188 = vld [vmem:[#allocation3 + $0xb8] sm:$0xf]
        %v8189 = vld [vmem:[#allocation3 + $0xbc] sm:$0xf]
        %v8190 = vld [vmem:[#allocation3 + $0xc0] sm:$0xf]
        %v8191 = vld [vmem:[#allocation3 + $0xc4] sm:$0xf]
        %v8192 = vld [vmem:[#allocation3 + $0xc8] sm:$0xf]
        %v8193 = vld [vmem:[#allocation3 + $0xcc] sm:$0xf]
        %s8194 = scalar_lea.vmem [#allocation4], 192
        %v8195 = vld [vmem:[%s8194] sm:$0xf]
        %v8196 = vld [vmem:[%s8194 + $0x4] sm:$0xf]
        %v8197 = vld [vmem:[%s8194 + $0x8] sm:$0xf]
        %v8198 = vld [vmem:[%s8194 + $0xc] sm:$0xf]
        %v8199 = vld [vmem:[%s8194 + $0x10] sm:$0xf]
        %v8200 = vld [vmem:[%s8194 + $0x14] sm:$0xf]
        %v8201 = vld [vmem:[%s8194 + $0x18] sm:$0xf]
        %v8202 = vld [vmem:[%s8194 + $0x1c] sm:$0xf]
        %v8203 = vld [vmem:[%s8194 + $0x20] sm:$0xf]
        %v8204 = vld [vmem:[%s8194 + $0x24] sm:$0xf]
        %v8205 = vld [vmem:[%s8194 + $0x28] sm:$0xf]
        %v8206 = vld [vmem:[%s8194 + $0x2c] sm:$0xf]
        %v8207 = vld [vmem:[%s8194 + $0x30] sm:$0xf]
        %v8208 = vld [vmem:[%s8194 + $0x34] sm:$0xf]
        %v8209 = vld [vmem:[%s8194 + $0x38] sm:$0xf]
        %v8210 = vld [vmem:[%s8194 + $0x3c] sm:$0xf]
        %v8260 = vunpack.c.l.b16 %v8145
        %v8261 = vunpack.c.l.b16 %v8146
        %v8262 = vunpack.c.l.b16 %v8147
        %v8263 = vunpack.c.l.b16 %v8148
        %v8264 = vunpack.c.l.b16 %v8149
        %v8265 = vunpack.c.l.b16 %v8150
        %v8266 = vunpack.c.l.b16 %v8151
        %v8267 = vunpack.c.l.b16 %v8152
        %v8268 = vunpack.c.l.b16 %v8153
        %v8269 = vunpack.c.l.b16 %v8154
        %v8270 = vunpack.c.l.b16 %v8155
        %v8271 = vunpack.c.l.b16 %v8156
        %v8272 = vunpack.c.l.b16 %v8157
        %v8273 = vunpack.c.l.b16 %v8158
        %v8274 = vunpack.c.l.b16 %v8159
        %v8275 = vunpack.c.l.b16 %v8160
        %v8276 = vunpack.c.l.b16 %v8161
        %v8277 = vunpack.c.l.b16 %v8162
        %v8278 = vunpack.c.l.b16 %v8163
        %v8279 = vunpack.c.l.b16 %v8164
        %v8280 = vunpack.c.l.b16 %v8165
        %v8281 = vunpack.c.l.b16 %v8166
        %v8282 = vunpack.c.l.b16 %v8167
        %v8283 = vunpack.c.l.b16 %v8168
        %v8284 = vunpack.c.l.b16 %v8169
        %v8285 = vunpack.c.l.b16 %v8170
        %v8286 = vunpack.c.l.b16 %v8171
        %v8287 = vunpack.c.l.b16 %v8172
        %v8288 = vunpack.c.l.b16 %v8173
        %v8289 = vunpack.c.l.b16 %v8174
        %v8290 = vunpack.c.l.b16 %v8175
        %v8291 = vunpack.c.l.b16 %v8176
        %v8292 = vunpack.c.l.b16 %v8177
        %v8293 = vunpack.c.l.b16 %v8178
        %v8294 = vunpack.c.l.b16 %v8179
        %v8295 = vunpack.c.l.b16 %v8180
        %v8296 = vunpack.c.l.b16 %v8181
        %v8297 = vunpack.c.l.b16 %v8182
        %v8298 = vunpack.c.l.b16 %v8183
        %v8299 = vunpack.c.l.b16 %v8184
        %v8300 = vunpack.c.l.b16 %v8185
        %v8301 = vunpack.c.l.b16 %v8186
        %v8302 = vunpack.c.l.b16 %v8187
        %v8303 = vunpack.c.l.b16 %v8188
        %v8304 = vunpack.c.l.b16 %v8189
        %v8305 = vunpack.c.l.b16 %v8190
        %v8306 = vunpack.c.l.b16 %v8191
        %v8307 = vunpack.c.l.b16 %v8192
        %v8308 = vunpack.c.l.b16 %v8193
        %v8309 = vpack.c.b16 %v8261, %v8260
        %v8310 = vpack.c.b16 %v8263, %v8262
        %v8311 = vpack.c.b16 %v8265, %v8264
        %v8312 = vpack.c.b16 %v8267, %v8266
        %v8313 = vpack.c.b16 %v8269, %v8268
        %v8314 = vpack.c.b16 %v8271, %v8270
        %v8315 = vpack.c.b16 %v8273, %v8272
        %v8316 = vpack.c.b16 %v8275, %v8274
        %v8317 = vpack.c.b16 %v8277, %v8276
        %v8318 = vpack.c.b16 %v8279, %v8278
        %v8319 = vpack.c.b16 %v8281, %v8280
        %v8320 = vpack.c.b16 %v8283, %v8282
        %v8321 = vpack.c.b16 %v8285, %v8284
        %v8322 = vpack.c.b16 %v8287, %v8286
        %v8323 = vpack.c.b16 %v8289, %v8288
        %v8324 = vpack.c.b16 %v8291, %v8290
        %v8325 = vpack.c.b16 %v8293, %v8292
        %v8326 = vpack.c.b16 %v8295, %v8294
        %v8327 = vpack.c.b16 %v8297, %v8296
        %v8328 = vpack.c.b16 %v8299, %v8298
        %v8329 = vpack.c.b16 %v8301, %v8300
        %v8330 = vpack.c.b16 %v8303, %v8302
        %v8331 = vpack.c.b16 %v8305, %v8304
        %v8332 = vpack.c.b16 %v8307, %v8306
        %v8333 = vpack.c.b16 %v8308, %v8308
        %v8335 = vshrl.u32 %v8309, 16
        %v8337 = vrot.slane %v8335, 3
        %v8338 = vshll.u32 %v8309, 16
        %v8340 = vrot.slane %v8338, 4
        %v8341 = vor.u32 %v8337, %v8340
        %v8343 = vshrl.u32 %v8310, 16
        %v8345 = vrot.slane %v8343, 3
        %v8346 = vshll.u32 %v8310, 16
        %v8348 = vrot.slane %v8346, 4
        %v8349 = vor.u32 %v8345, %v8348
        %v8350 = vsel %vm1019, %v8341, %v8349
        %v8352 = vshrl.u32 %v8311, 16
        %v8354 = vrot.slane %v8352, 3
        %v8355 = vshll.u32 %v8311, 16
        %v8357 = vrot.slane %v8355, 4
        %v8358 = vor.u32 %v8354, %v8357
        %v8359 = vsel %vm1019, %v8349, %v8358
        %v8361 = vshrl.u32 %v8312, 16
        %v8363 = vrot.slane %v8361, 3
        %v8364 = vshll.u32 %v8312, 16
        %v8366 = vrot.slane %v8364, 4
        %v8367 = vor.u32 %v8363, %v8366
        %v8368 = vsel %vm1019, %v8358, %v8367
        %v8370 = vshrl.u32 %v8313, 16
        %v8372 = vrot.slane %v8370, 3
        %v8373 = vshll.u32 %v8313, 16
        %v8375 = vrot.slane %v8373, 4
        %v8376 = vor.u32 %v8372, %v8375
        %v8377 = vsel %vm1019, %v8367, %v8376
        %v8379 = vshrl.u32 %v8314, 16
        %v8381 = vrot.slane %v8379, 3
        %v8382 = vshll.u32 %v8314, 16
        %v8384 = vrot.slane %v8382, 4
        %v8385 = vor.u32 %v8381, %v8384
        %v8386 = vsel %vm1019, %v8376, %v8385
        %v8388 = vshrl.u32 %v8315, 16
        %v8390 = vrot.slane %v8388, 3
        %v8391 = vshll.u32 %v8315, 16
        %v8393 = vrot.slane %v8391, 4
        %v8394 = vor.u32 %v8390, %v8393
        %v8395 = vsel %vm1019, %v8385, %v8394
        %v8397 = vshrl.u32 %v8316, 16
        %v8399 = vrot.slane %v8397, 3
        %v8400 = vshll.u32 %v8316, 16
        %v8402 = vrot.slane %v8400, 4
        %v8403 = vor.u32 %v8399, %v8402
        %v8404 = vsel %vm1019, %v8394, %v8403
        %v8406 = vshrl.u32 %v8317, 16
        %v8408 = vrot.slane %v8406, 3
        %v8409 = vshll.u32 %v8317, 16
        %v8411 = vrot.slane %v8409, 4
        %v8412 = vor.u32 %v8408, %v8411
        %v8413 = vsel %vm1019, %v8403, %v8412
        %v8415 = vshrl.u32 %v8318, 16
        %v8417 = vrot.slane %v8415, 3
        %v8418 = vshll.u32 %v8318, 16
        %v8420 = vrot.slane %v8418, 4
        %v8421 = vor.u32 %v8417, %v8420
        %v8422 = vsel %vm1019, %v8412, %v8421
        %v8424 = vshrl.u32 %v8319, 16
        %v8426 = vrot.slane %v8424, 3
        %v8427 = vshll.u32 %v8319, 16
        %v8429 = vrot.slane %v8427, 4
        %v8430 = vor.u32 %v8426, %v8429
        %v8431 = vsel %vm1019, %v8421, %v8430
        %v8433 = vshrl.u32 %v8320, 16
        %v8435 = vrot.slane %v8433, 3
        %v8436 = vshll.u32 %v8320, 16
        %v8438 = vrot.slane %v8436, 4
        %v8439 = vor.u32 %v8435, %v8438
        %v8440 = vsel %vm1019, %v8430, %v8439
        %v8442 = vshrl.u32 %v8321, 16
        %v8444 = vrot.slane %v8442, 3
        %v8445 = vshll.u32 %v8321, 16
        %v8447 = vrot.slane %v8445, 4
        %v8448 = vor.u32 %v8444, %v8447
        %v8449 = vsel %vm1019, %v8439, %v8448
        %v8451 = vshrl.u32 %v8322, 16
        %v8453 = vrot.slane %v8451, 3
        %v8454 = vshll.u32 %v8322, 16
        %v8456 = vrot.slane %v8454, 4
        %v8457 = vor.u32 %v8453, %v8456
        %v8458 = vsel %vm1019, %v8448, %v8457
        %v8460 = vshrl.u32 %v8323, 16
        %v8462 = vrot.slane %v8460, 3
        %v8463 = vshll.u32 %v8323, 16
        %v8465 = vrot.slane %v8463, 4
        %v8466 = vor.u32 %v8462, %v8465
        %v8467 = vsel %vm1019, %v8457, %v8466
        %v8469 = vshrl.u32 %v8324, 16
        %v8471 = vrot.slane %v8469, 3
        %v8472 = vshll.u32 %v8324, 16
        %v8474 = vrot.slane %v8472, 4
        %v8475 = vor.u32 %v8471, %v8474
        %v8476 = vsel %vm1019, %v8466, %v8475
        %v8478 = vshrl.u32 %v8325, 16
        %v8480 = vrot.slane %v8478, 3
        %v8481 = vshll.u32 %v8325, 16
        %v8483 = vrot.slane %v8481, 4
        %v8484 = vor.u32 %v8480, %v8483
        %v8485 = vsel %vm1019, %v8475, %v8484
        %v8487 = vshrl.u32 %v8326, 16
        %v8489 = vrot.slane %v8487, 3
        %v8490 = vshll.u32 %v8326, 16
        %v8492 = vrot.slane %v8490, 4
        %v8493 = vor.u32 %v8489, %v8492
        %v8494 = vsel %vm1019, %v8484, %v8493
        %v8496 = vshrl.u32 %v8327, 16
        %v8498 = vrot.slane %v8496, 3
        %v8499 = vshll.u32 %v8327, 16
        %v8501 = vrot.slane %v8499, 4
        %v8502 = vor.u32 %v8498, %v8501
        %v8503 = vsel %vm1019, %v8493, %v8502
        %v8505 = vshrl.u32 %v8328, 16
        %v8507 = vrot.slane %v8505, 3
        %v8508 = vshll.u32 %v8328, 16
        %v8510 = vrot.slane %v8508, 4
        %v8511 = vor.u32 %v8507, %v8510
        %v8512 = vsel %vm1019, %v8502, %v8511
        %v8514 = vshrl.u32 %v8329, 16
        %v8516 = vrot.slane %v8514, 3
        %v8517 = vshll.u32 %v8329, 16
        %v8519 = vrot.slane %v8517, 4
        %v8520 = vor.u32 %v8516, %v8519
        %v8521 = vsel %vm1019, %v8511, %v8520
        %v8523 = vshrl.u32 %v8330, 16
        %v8525 = vrot.slane %v8523, 3
        %v8526 = vshll.u32 %v8330, 16
        %v8528 = vrot.slane %v8526, 4
        %v8529 = vor.u32 %v8525, %v8528
        %v8530 = vsel %vm1019, %v8520, %v8529
        %v8532 = vshrl.u32 %v8331, 16
        %v8534 = vrot.slane %v8532, 3
        %v8535 = vshll.u32 %v8331, 16
        %v8537 = vrot.slane %v8535, 4
        %v8538 = vor.u32 %v8534, %v8537
        %v8539 = vsel %vm1019, %v8529, %v8538
        %v8541 = vshrl.u32 %v8332, 16
        %v8543 = vrot.slane %v8541, 3
        %v8544 = vshll.u32 %v8332, 16
        %v8546 = vrot.slane %v8544, 4
        %v8547 = vor.u32 %v8543, %v8546
        %v8548 = vsel %vm1019, %v8538, %v8547
        %v8550 = vshrl.u32 %v8333, 16
        %v8552 = vrot.slane %v8550, 3
        %v8553 = vshll.u32 %v8333, 16
        %v8555 = vrot.slane %v8553, 4
        %v8556 = vor.u32 %v8552, %v8555
        %v8557 = vsel %vm1019, %v8547, %v8556
        %v8598 = vunpack.c.l.b16 %v8195
        %v8599 = vunpack.c.l.b16 %v8196
        %v8600 = vunpack.c.l.b16 %v8197
        %v8601 = vunpack.c.l.b16 %v8198
        %v8602 = vunpack.c.l.b16 %v8199
        %v8603 = vunpack.c.l.b16 %v8200
        %v8604 = vunpack.c.l.b16 %v8201
        %v8605 = vunpack.c.l.b16 %v8202
        %v8606 = vunpack.c.l.b16 %v8203
        %v8607 = vunpack.c.l.b16 %v8204
        %v8608 = vunpack.c.l.b16 %v8205
        %v8609 = vunpack.c.l.b16 %v8206
        %v8610 = vunpack.c.l.b16 %v8207
        %v8611 = vunpack.c.l.b16 %v8208
        %v8612 = vunpack.c.l.b16 %v8209
        %v8613 = vunpack.c.l.b16 %v8210
        %v8614 = vpack.c.b16 %v8599, %v8598
        %v8615 = vpack.c.b16 %v8601, %v8600
        %v8616 = vpack.c.b16 %v8603, %v8602
        %v8617 = vpack.c.b16 %v8605, %v8604
        %v8618 = vpack.c.b16 %v8607, %v8606
        %v8619 = vpack.c.b16 %v8609, %v8608
        %v8620 = vpack.c.b16 %v8611, %v8610
        %v8621 = vpack.c.b16 %v8613, %v8612
        %8630 = vmatprep.subr.bf16.mxu0 0
        %8631 = vmatpush1.bf16.msra.mxu0 %v8621
        %8632 = vmatprep.subr.bf16.mxu0 0
        %8633 = vmatpush1.bf16.msra.mxu0 %v8620
        %8634 = vmatprep.subr.bf16.mxu0 0
        %8635 = vmatpush1.bf16.msra.mxu0 %v8619
        %8636 = vmatprep.subr.bf16.mxu0 0
        %8637 = vmatpush1.bf16.msra.mxu0 %v8618
        %8638 = vmatprep.subr.bf16.mxu0 0
        %8639 = vmatpush1.bf16.msra.mxu0 %v8617
        %8640 = vmatprep.subr.bf16.mxu0 0
        %8641 = vmatpush1.bf16.msra.mxu0 %v8616
        %8642 = vmatprep.subr.bf16.mxu0 0
        %8643 = vmatpush1.bf16.msra.mxu0 %v8615
        %8644 = vmatprep.subr.bf16.mxu0 0
        %8645 = vmatpush1.bf16.msra.mxu0 %v8614
        %8646 = vmatprep.subr.bf16.mxu0 0
        %8647 = vmatpush2.bf16.msra.mxu0 0
        %8648 = vmatprep.subr.bf16.mxu0 0
        %8649 = vmatpush2.bf16.msra.mxu0 0
        %8650 = vmatprep.subr.bf16.mxu0 0
        %8651 = vmatpush2.bf16.msra.mxu0 0
        %8652 = vmatprep.subr.bf16.mxu0 0
        %8653 = vmatpush2.bf16.msra.mxu0 0
        %8654 = vmatprep.subr.bf16.mxu0 0
        %8655 = vmatpush2.bf16.msra.mxu0 0
        %8656 = vmatprep.subr.bf16.mxu0 0
        %8657 = vmatpush2.bf16.msra.mxu0 0
        %8658 = vmatprep.subr.bf16.mxu0 0
        %8659 = vmatpush2.bf16.msra.mxu0 0
        %8660 = vmatprep.subr.bf16.mxu0 0
        %8661 = vmatpush2.bf16.msra.mxu0 0
        %8662 = vmatprep.mubr.bf16.mxu0 0
        %8663 = vmatmul.mubr.bf16.gmra.mxu0 %v8350
        %v8664 = vpop.f32.mrf.mxu0
        %v8665 = vadd.f32 0.0, %v8664
        %v8666 = vpop.f32.mrf.mxu0
        %v8667 = vpop.f32.mrf.mxu0
        %v8668 = vadd.f32 0.0, %v8667
        %v8669 = vpop.f32.mrf.mxu0
        %8670 = vmatprep.mubr.bf16.mxu0 0
        %8671 = vmatmul.mubr.bf16.gmra.mxu0 %v8359
        %v8672 = vpop.f32.mrf.mxu0
        %v8673 = vpop.f32.mrf.mxu0
        %v8674 = vpop.f32.mrf.mxu0
        %v8675 = vadd.f32 0.0, %v8674
        %v8676 = vpop.f32.mrf.mxu0
        %8677 = vmatprep.mubr.bf16.mxu0 0
        %8678 = vmatmul.mubr.bf16.gmra.mxu0 %v8368
        %v8679 = vpop.f32.mrf.mxu0
        %v8680 = vadd.f32 0.0, %v8679
        %v8681 = vpop.f32.mrf.mxu0
        %v8682 = vpop.f32.mrf.mxu0
        %v8683 = vpop.f32.mrf.mxu0
        %8684 = vmatprep.mubr.bf16.mxu0 0
        %8685 = vmatmul.mubr.bf16.gmra.mxu0 %v8377
        %v8686 = vpop.f32.mrf.mxu0
        %v8687 = vadd.f32 0.0, %v8686
        %v8688 = vpop.f32.mrf.mxu0
        %v8689 = vpop.f32.mrf.mxu0
        %v8690 = vadd.f32 0.0, %v8689
        %v8691 = vpop.f32.mrf.mxu0
        %8692 = vmatprep.mubr.bf16.mxu0 0
        %8693 = vmatmul.mubr.bf16.gmra.mxu0 %v8386
        %v8694 = vpop.f32.mrf.mxu0
        %v8695 = vpop.f32.mrf.mxu0
        %v8696 = vpop.f32.mrf.mxu0
        %v8697 = vadd.f32 0.0, %v8696
        %v8698 = vpop.f32.mrf.mxu0
        %8699 = vmatprep.mubr.bf16.mxu0 0
        %8700 = vmatmul.mubr.bf16.gmra.mxu0 %v8395
        %v8701 = vpop.f32.mrf.mxu0
        %v8702 = vadd.f32 0.0, %v8701
        %v8703 = vpop.f32.mrf.mxu0
        %v8704 = vpop.f32.mrf.mxu0
        %v8705 = vpop.f32.mrf.mxu0
        %8706 = vmatprep.mubr.bf16.mxu0 0
        %8707 = vmatmul.mubr.bf16.gmra.mxu0 %v8404
        %v8708 = vpop.f32.mrf.mxu0
        %v8709 = vadd.f32 0.0, %v8708
        %v8710 = vpop.f32.mrf.mxu0
        %v8711 = vpop.f32.mrf.mxu0
        %v8712 = vadd.f32 0.0, %v8711
        %v8713 = vpop.f32.mrf.mxu0
        %8714 = vmatprep.mubr.bf16.mxu0 0
        %8715 = vmatmul.mubr.bf16.gmra.mxu0 %v8413
        %v8716 = vpop.f32.mrf.mxu0
        %v8717 = vpop.f32.mrf.mxu0
        %v8718 = vpop.f32.mrf.mxu0
        %v8719 = vadd.f32 0.0, %v8718
        %v8720 = vpop.f32.mrf.mxu0
        %8721 = vmatprep.mubr.bf16.mxu0 0
        %8722 = vmatmul.mubr.bf16.gmra.mxu0 %v8422
        %v8723 = vpop.f32.mrf.mxu0
        %v8724 = vadd.f32 0.0, %v8723
        %v8725 = vpop.f32.mrf.mxu0
        %v8726 = vpop.f32.mrf.mxu0
        %v8727 = vpop.f32.mrf.mxu0
        %8728 = vmatprep.mubr.bf16.mxu0 0
        %8729 = vmatmul.mubr.bf16.gmra.mxu0 %v8431
        %v8730 = vpop.f32.mrf.mxu0
        %v8731 = vadd.f32 0.0, %v8730
        %v8732 = vpop.f32.mrf.mxu0
        %v8733 = vpop.f32.mrf.mxu0
        %v8734 = vadd.f32 0.0, %v8733
        %v8735 = vpop.f32.mrf.mxu0
        %8736 = vmatprep.mubr.bf16.mxu0 0
        %8737 = vmatmul.mubr.bf16.gmra.mxu0 %v8440
        %v8738 = vpop.f32.mrf.mxu0
        %v8739 = vpop.f32.mrf.mxu0
        %v8740 = vpop.f32.mrf.mxu0
        %v8741 = vadd.f32 0.0, %v8740
        %v8742 = vpop.f32.mrf.mxu0
        %8743 = vmatprep.mubr.bf16.mxu0 0
        %8744 = vmatmul.mubr.bf16.gmra.mxu0 %v8449
        %v8745 = vpop.f32.mrf.mxu0
        %v8746 = vadd.f32 0.0, %v8745
        %v8747 = vpop.f32.mrf.mxu0
        %v8748 = vpop.f32.mrf.mxu0
        %v8749 = vpop.f32.mrf.mxu0
        %8750 = vmatprep.mubr.bf16.mxu0 0
        %8751 = vmatmul.mubr.bf16.gmra.mxu0 %v8458
        %v8752 = vpop.f32.mrf.mxu0
        %v8753 = vadd.f32 0.0, %v8752
        %v8754 = vpop.f32.mrf.mxu0
        %v8755 = vpop.f32.mrf.mxu0
        %v8756 = vadd.f32 0.0, %v8755
        %v8757 = vpop.f32.mrf.mxu0
        %8758 = vmatprep.mubr.bf16.mxu0 0
        %8759 = vmatmul.mubr.bf16.gmra.mxu0 %v8467
        %v8760 = vpop.f32.mrf.mxu0
        %v8761 = vpop.f32.mrf.mxu0
        %v8762 = vpop.f32.mrf.mxu0
        %v8763 = vadd.f32 0.0, %v8762
        %v8764 = vpop.f32.mrf.mxu0
        %8765 = vmatprep.mubr.bf16.mxu0 0
        %8766 = vmatmul.mubr.bf16.gmra.mxu0 %v8476
        %v8767 = vpop.f32.mrf.mxu0
        %v8768 = vadd.f32 0.0, %v8767
        %v8769 = vpop.f32.mrf.mxu0
        %v8770 = vpop.f32.mrf.mxu0
        %v8771 = vpop.f32.mrf.mxu0
        %8772 = vmatprep.mubr.bf16.mxu0 0
        %8773 = vmatmul.mubr.bf16.gmra.mxu0 %v8485
        %v8774 = vpop.f32.mrf.mxu0
        %v8775 = vadd.f32 0.0, %v8774
        %v8776 = vpop.f32.mrf.mxu0
        %v8777 = vpop.f32.mrf.mxu0
        %v8778 = vadd.f32 0.0, %v8777
        %v8779 = vpop.f32.mrf.mxu0
        %8780 = vmatprep.mubr.bf16.mxu0 0
        %8781 = vmatmul.mubr.bf16.gmra.mxu0 %v8494
        %v8782 = vpop.f32.mrf.mxu0
        %v8783 = vpop.f32.mrf.mxu0
        %v8784 = vpop.f32.mrf.mxu0
        %v8785 = vadd.f32 0.0, %v8784
        %v8786 = vpop.f32.mrf.mxu0
        %8787 = vmatprep.mubr.bf16.mxu0 0
        %8788 = vmatmul.mubr.bf16.gmra.mxu0 %v8503
        %v8789 = vpop.f32.mrf.mxu0
        %v8790 = vadd.f32 0.0, %v8789
        %v8791 = vpop.f32.mrf.mxu0
        %v8792 = vpop.f32.mrf.mxu0
        %v8793 = vpop.f32.mrf.mxu0
        %8794 = vmatprep.mubr.bf16.mxu0 0
        %8795 = vmatmul.mubr.bf16.gmra.mxu0 %v8512
        %v8796 = vpop.f32.mrf.mxu0
        %v8797 = vadd.f32 0.0, %v8796
        %v8798 = vpop.f32.mrf.mxu0
        %v8799 = vpop.f32.mrf.mxu0
        %v8800 = vadd.f32 0.0, %v8799
        %v8801 = vpop.f32.mrf.mxu0
        %8802 = vmatprep.mubr.bf16.mxu0 0
        %8803 = vmatmul.mubr.bf16.gmra.mxu0 %v8521
        %v8804 = vpop.f32.mrf.mxu0
        %v8805 = vpop.f32.mrf.mxu0
        %v8806 = vpop.f32.mrf.mxu0
        %v8807 = vadd.f32 0.0, %v8806
        %v8808 = vpop.f32.mrf.mxu0
        %8809 = vmatprep.mubr.bf16.mxu0 0
        %8810 = vmatmul.mubr.bf16.gmra.mxu0 %v8530
        %v8811 = vpop.f32.mrf.mxu0
        %v8812 = vadd.f32 0.0, %v8811
        %v8813 = vpop.f32.mrf.mxu0
        %v8814 = vpop.f32.mrf.mxu0
        %v8815 = vpop.f32.mrf.mxu0
        %8816 = vmatprep.mubr.bf16.mxu0 0
        %8817 = vmatmul.mubr.bf16.gmra.mxu0 %v8539
        %v8818 = vpop.f32.mrf.mxu0
        %v8819 = vadd.f32 0.0, %v8818
        %v8820 = vpop.f32.mrf.mxu0
        %v8821 = vpop.f32.mrf.mxu0
        %v8822 = vadd.f32 0.0, %v8821
        %v8823 = vpop.f32.mrf.mxu0
        %8824 = vmatprep.mubr.bf16.mxu0 0
        %8825 = vmatmul.mubr.bf16.gmra.mxu0 %v8548
        %v8826 = vpop.f32.mrf.mxu0
        %v8827 = vpop.f32.mrf.mxu0
        %v8828 = vpop.f32.mrf.mxu0
        %v8829 = vadd.f32 0.0, %v8828
        %v8830 = vpop.f32.mrf.mxu0
        %8831 = vmatprep.mubr.bf16.mxu0 0
        %8832 = vmatmul.mubr.bf16.gmra.mxu0 %v8557
        %v8833 = vpop.f32.mrf.mxu0
        %v8834 = vadd.f32 0.0, %v8833
        %v8835 = vpop.f32.mrf.mxu0
        %v8836 = vpop.f32.mrf.mxu0
        %v8837 = vpop.f32.mrf.mxu0
        %8838 = vdwg.mxu0
        %v8839 = vadd.f32 %v8113, %v8665
        %v8840 = vadd.f32 %v8114, %v8668
        %v8841 = vadd.f32 %v8115, %v8675
        %v8842 = vadd.f32 %v8116, %v8680
        %v8843 = vadd.f32 %v8117, %v8687
        %v8844 = vadd.f32 %v8118, %v8690
        %v8845 = vadd.f32 %v8119, %v8697
        %v8846 = vadd.f32 %v8120, %v8702
        %v8847 = vadd.f32 %v8121, %v8709
        %v8848 = vadd.f32 %v8122, %v8712
        %v8849 = vadd.f32 %v8123, %v8719
        %v8850 = vadd.f32 %v8124, %v8724
        %v8851 = vadd.f32 %v8125, %v8731
        %v8852 = vadd.f32 %v8126, %v8734
        %v8853 = vadd.f32 %v8127, %v8741
        %v8854 = vadd.f32 %v8128, %v8746
        %v8855 = vadd.f32 %v8129, %v8753
        %v8856 = vadd.f32 %v8130, %v8756
        %v8857 = vadd.f32 %v8131, %v8763
        %v8858 = vadd.f32 %v8132, %v8768
        %v8859 = vadd.f32 %v8133, %v8775
        %v8860 = vadd.f32 %v8134, %v8778
        %v8861 = vadd.f32 %v8135, %v8785
        %v8862 = vadd.f32 %v8136, %v8790
        %v8863 = vadd.f32 %v8137, %v8797
        %v8864 = vadd.f32 %v8138, %v8800
        %v8865 = vadd.f32 %v8139, %v8807
        %v8866 = vadd.f32 %v8140, %v8812
        %v8867 = vadd.f32 %v8141, %v8819
        %v8868 = vadd.f32 %v8142, %v8822
        %v8869 = vadd.f32 %v8143, %v8829
        %v8870 = vadd.f32 %v8144, %v8834
        %s8871 = scalar_lea.vmem [#allocation4], 256
        %v8872 = vld [vmem:[%s8871] sm:$0xf]
        %v8873 = vld [vmem:[%s8871 + $0x4] sm:$0xf]
        %v8874 = vld [vmem:[%s8871 + $0x8] sm:$0xf]
        %v8875 = vld [vmem:[%s8871 + $0xc] sm:$0xf]
        %v8876 = vld [vmem:[%s8871 + $0x10] sm:$0xf]
        %v8877 = vld [vmem:[%s8871 + $0x14] sm:$0xf]
        %v8878 = vld [vmem:[%s8871 + $0x18] sm:$0xf]
        %v8879 = vld [vmem:[%s8871 + $0x1c] sm:$0xf]
        %v8880 = vld [vmem:[%s8871 + $0x20] sm:$0xf]
        %v8881 = vld [vmem:[%s8871 + $0x24] sm:$0xf]
        %v8882 = vld [vmem:[%s8871 + $0x28] sm:$0xf]
        %v8883 = vld [vmem:[%s8871 + $0x2c] sm:$0xf]
        %v8884 = vld [vmem:[%s8871 + $0x30] sm:$0xf]
        %v8885 = vld [vmem:[%s8871 + $0x34] sm:$0xf]
        %v8886 = vld [vmem:[%s8871 + $0x38] sm:$0xf]
        %v8887 = vld [vmem:[%s8871 + $0x3c] sm:$0xf]
        %v8888 = vpack.c.b16 %v8262, %v8261
        %v8889 = vpack.c.b16 %v8264, %v8263
        %v8890 = vpack.c.b16 %v8266, %v8265
        %v8891 = vpack.c.b16 %v8268, %v8267
        %v8892 = vpack.c.b16 %v8270, %v8269
        %v8893 = vpack.c.b16 %v8272, %v8271
        %v8894 = vpack.c.b16 %v8274, %v8273
        %v8895 = vpack.c.b16 %v8276, %v8275
        %v8896 = vpack.c.b16 %v8278, %v8277
        %v8897 = vpack.c.b16 %v8280, %v8279
        %v8898 = vpack.c.b16 %v8282, %v8281
        %v8899 = vpack.c.b16 %v8284, %v8283
        %v8900 = vpack.c.b16 %v8286, %v8285
        %v8901 = vpack.c.b16 %v8288, %v8287
        %v8902 = vpack.c.b16 %v8290, %v8289
        %v8903 = vpack.c.b16 %v8292, %v8291
        %v8904 = vpack.c.b16 %v8294, %v8293
        %v8905 = vpack.c.b16 %v8296, %v8295
        %v8906 = vpack.c.b16 %v8298, %v8297
        %v8907 = vpack.c.b16 %v8300, %v8299
        %v8908 = vpack.c.b16 %v8302, %v8301
        %v8909 = vpack.c.b16 %v8304, %v8303
        %v8910 = vpack.c.b16 %v8306, %v8305
        %v8911 = vpack.c.b16 %v8308, %v8307
        %v8952 = vunpack.c.l.b16 %v8872
        %v8953 = vunpack.c.l.b16 %v8873
        %v8954 = vunpack.c.l.b16 %v8874
        %v8955 = vunpack.c.l.b16 %v8875
        %v8956 = vunpack.c.l.b16 %v8876
        %v8957 = vunpack.c.l.b16 %v8877
        %v8958 = vunpack.c.l.b16 %v8878
        %v8959 = vunpack.c.l.b16 %v8879
        %v8960 = vunpack.c.l.b16 %v8880
        %v8961 = vunpack.c.l.b16 %v8881
        %v8962 = vunpack.c.l.b16 %v8882
        %v8963 = vunpack.c.l.b16 %v8883
        %v8964 = vunpack.c.l.b16 %v8884
        %v8965 = vunpack.c.l.b16 %v8885
        %v8966 = vunpack.c.l.b16 %v8886
        %v8967 = vunpack.c.l.b16 %v8887
        %v8968 = vpack.c.b16 %v8953, %v8952
        %v8969 = vpack.c.b16 %v8955, %v8954
        %v8970 = vpack.c.b16 %v8957, %v8956
        %v8971 = vpack.c.b16 %v8959, %v8958
        %v8972 = vpack.c.b16 %v8961, %v8960
        %v8973 = vpack.c.b16 %v8963, %v8962
        %v8974 = vpack.c.b16 %v8965, %v8964
        %v8975 = vpack.c.b16 %v8967, %v8966
        %8984 = vmatprep.subr.bf16.mxu0 0
        %8985 = vmatpush1.bf16.msra.mxu0 %v8975
        %8986 = vmatprep.subr.bf16.mxu0 0
        %8987 = vmatpush1.bf16.msra.mxu0 %v8974
        %8988 = vmatprep.subr.bf16.mxu0 0
        %8989 = vmatpush1.bf16.msra.mxu0 %v8973
        %8990 = vmatprep.subr.bf16.mxu0 0
        %8991 = vmatpush1.bf16.msra.mxu0 %v8972
        %8992 = vmatprep.subr.bf16.mxu0 0
        %8993 = vmatpush1.bf16.msra.mxu0 %v8971
        %8994 = vmatprep.subr.bf16.mxu0 0
        %8995 = vmatpush1.bf16.msra.mxu0 %v8970
        %8996 = vmatprep.subr.bf16.mxu0 0
        %8997 = vmatpush1.bf16.msra.mxu0 %v8969
        %8998 = vmatprep.subr.bf16.mxu0 0
        %8999 = vmatpush1.bf16.msra.mxu0 %v8968
        %9000 = vmatprep.subr.bf16.mxu0 0
        %9001 = vmatpush2.bf16.msra.mxu0 0
        %9002 = vmatprep.subr.bf16.mxu0 0
        %9003 = vmatpush2.bf16.msra.mxu0 0
        %9004 = vmatprep.subr.bf16.mxu0 0
        %9005 = vmatpush2.bf16.msra.mxu0 0
        %9006 = vmatprep.subr.bf16.mxu0 0
        %9007 = vmatpush2.bf16.msra.mxu0 0
        %9008 = vmatprep.subr.bf16.mxu0 0
        %9009 = vmatpush2.bf16.msra.mxu0 0
        %9010 = vmatprep.subr.bf16.mxu0 0
        %9011 = vmatpush2.bf16.msra.mxu0 0
        %9012 = vmatprep.subr.bf16.mxu0 0
        %9013 = vmatpush2.bf16.msra.mxu0 0
        %9014 = vmatprep.subr.bf16.mxu0 0
        %9015 = vmatpush2.bf16.msra.mxu0 0
        %9016 = vmatprep.mubr.bf16.mxu0 0
        %9017 = vmatmul.mubr.bf16.gmra.mxu0 %v8888
        %v9018 = vpop.f32.mrf.mxu0
        %v9019 = vadd.f32 0.0, %v9018
        %v9020 = vpop.f32.mrf.mxu0
        %v9021 = vpop.f32.mrf.mxu0
        %v9022 = vadd.f32 0.0, %v9021
        %v9023 = vpop.f32.mrf.mxu0
        %9024 = vmatprep.mubr.bf16.mxu0 0
        %9025 = vmatmul.mubr.bf16.gmra.mxu0 %v8889
        %v9026 = vpop.f32.mrf.mxu0
        %v9027 = vpop.f32.mrf.mxu0
        %v9028 = vpop.f32.mrf.mxu0
        %v9029 = vadd.f32 0.0, %v9028
        %v9030 = vpop.f32.mrf.mxu0
        %9031 = vmatprep.mubr.bf16.mxu0 0
        %9032 = vmatmul.mubr.bf16.gmra.mxu0 %v8890
        %v9033 = vpop.f32.mrf.mxu0
        %v9034 = vadd.f32 0.0, %v9033
        %v9035 = vpop.f32.mrf.mxu0
        %v9036 = vpop.f32.mrf.mxu0
        %v9037 = vpop.f32.mrf.mxu0
        %9038 = vmatprep.mubr.bf16.mxu0 0
        %9039 = vmatmul.mubr.bf16.gmra.mxu0 %v8891
        %v9040 = vpop.f32.mrf.mxu0
        %v9041 = vadd.f32 0.0, %v9040
        %v9042 = vpop.f32.mrf.mxu0
        %v9043 = vpop.f32.mrf.mxu0
        %v9044 = vadd.f32 0.0, %v9043
        %v9045 = vpop.f32.mrf.mxu0
        %9046 = vmatprep.mubr.bf16.mxu0 0
        %9047 = vmatmul.mubr.bf16.gmra.mxu0 %v8892
        %v9048 = vpop.f32.mrf.mxu0
        %v9049 = vpop.f32.mrf.mxu0
        %v9050 = vpop.f32.mrf.mxu0
        %v9051 = vadd.f32 0.0, %v9050
        %v9052 = vpop.f32.mrf.mxu0
        %9053 = vmatprep.mubr.bf16.mxu0 0
        %9054 = vmatmul.mubr.bf16.gmra.mxu0 %v8893
        %v9055 = vpop.f32.mrf.mxu0
        %v9056 = vadd.f32 0.0, %v9055
        %v9057 = vpop.f32.mrf.mxu0
        %v9058 = vpop.f32.mrf.mxu0
        %v9059 = vpop.f32.mrf.mxu0
        %9060 = vmatprep.mubr.bf16.mxu0 0
        %9061 = vmatmul.mubr.bf16.gmra.mxu0 %v8894
        %v9062 = vpop.f32.mrf.mxu0
        %v9063 = vadd.f32 0.0, %v9062
        %v9064 = vpop.f32.mrf.mxu0
        %v9065 = vpop.f32.mrf.mxu0
        %v9066 = vadd.f32 0.0, %v9065
        %v9067 = vpop.f32.mrf.mxu0
        %9068 = vmatprep.mubr.bf16.mxu0 0
        %9069 = vmatmul.mubr.bf16.gmra.mxu0 %v8895
        %v9070 = vpop.f32.mrf.mxu0
        %v9071 = vpop.f32.mrf.mxu0
        %v9072 = vpop.f32.mrf.mxu0
        %v9073 = vadd.f32 0.0, %v9072
        %v9074 = vpop.f32.mrf.mxu0
        %9075 = vmatprep.mubr.bf16.mxu0 0
        %9076 = vmatmul.mubr.bf16.gmra.mxu0 %v8896
        %v9077 = vpop.f32.mrf.mxu0
        %v9078 = vadd.f32 0.0, %v9077
        %v9079 = vpop.f32.mrf.mxu0
        %v9080 = vpop.f32.mrf.mxu0
        %v9081 = vpop.f32.mrf.mxu0
        %9082 = vmatprep.mubr.bf16.mxu0 0
        %9083 = vmatmul.mubr.bf16.gmra.mxu0 %v8897
        %v9084 = vpop.f32.mrf.mxu0
        %v9085 = vadd.f32 0.0, %v9084
        %v9086 = vpop.f32.mrf.mxu0
        %v9087 = vpop.f32.mrf.mxu0
        %v9088 = vadd.f32 0.0, %v9087
        %v9089 = vpop.f32.mrf.mxu0
        %9090 = vmatprep.mubr.bf16.mxu0 0
        %9091 = vmatmul.mubr.bf16.gmra.mxu0 %v8898
        %v9092 = vpop.f32.mrf.mxu0
        %v9093 = vpop.f32.mrf.mxu0
        %v9094 = vpop.f32.mrf.mxu0
        %v9095 = vadd.f32 0.0, %v9094
        %v9096 = vpop.f32.mrf.mxu0
        %9097 = vmatprep.mubr.bf16.mxu0 0
        %9098 = vmatmul.mubr.bf16.gmra.mxu0 %v8899
        %v9099 = vpop.f32.mrf.mxu0
        %v9100 = vadd.f32 0.0, %v9099
        %v9101 = vpop.f32.mrf.mxu0
        %v9102 = vpop.f32.mrf.mxu0
        %v9103 = vpop.f32.mrf.mxu0
        %9104 = vmatprep.mubr.bf16.mxu0 0
        %9105 = vmatmul.mubr.bf16.gmra.mxu0 %v8900
        %v9106 = vpop.f32.mrf.mxu0
        %v9107 = vadd.f32 0.0, %v9106
        %v9108 = vpop.f32.mrf.mxu0
        %v9109 = vpop.f32.mrf.mxu0
        %v9110 = vadd.f32 0.0, %v9109
        %v9111 = vpop.f32.mrf.mxu0
        %9112 = vmatprep.mubr.bf16.mxu0 0
        %9113 = vmatmul.mubr.bf16.gmra.mxu0 %v8901
        %v9114 = vpop.f32.mrf.mxu0
        %v9115 = vpop.f32.mrf.mxu0
        %v9116 = vpop.f32.mrf.mxu0
        %v9117 = vadd.f32 0.0, %v9116
        %v9118 = vpop.f32.mrf.mxu0
        %9119 = vmatprep.mubr.bf16.mxu0 0
        %9120 = vmatmul.mubr.bf16.gmra.mxu0 %v8902
        %v9121 = vpop.f32.mrf.mxu0
        %v9122 = vadd.f32 0.0, %v9121
        %v9123 = vpop.f32.mrf.mxu0
        %v9124 = vpop.f32.mrf.mxu0
        %v9125 = vpop.f32.mrf.mxu0
        %9126 = vmatprep.mubr.bf16.mxu0 0
        %9127 = vmatmul.mubr.bf16.gmra.mxu0 %v8903
        %v9128 = vpop.f32.mrf.mxu0
        %v9129 = vadd.f32 0.0, %v9128
        %v9130 = vpop.f32.mrf.mxu0
        %v9131 = vpop.f32.mrf.mxu0
        %v9132 = vadd.f32 0.0, %v9131
        %v9133 = vpop.f32.mrf.mxu0
        %9134 = vmatprep.mubr.bf16.mxu0 0
        %9135 = vmatmul.mubr.bf16.gmra.mxu0 %v8904
        %v9136 = vpop.f32.mrf.mxu0
        %v9137 = vpop.f32.mrf.mxu0
        %v9138 = vpop.f32.mrf.mxu0
        %v9139 = vadd.f32 0.0, %v9138
        %v9140 = vpop.f32.mrf.mxu0
        %9141 = vmatprep.mubr.bf16.mxu0 0
        %9142 = vmatmul.mubr.bf16.gmra.mxu0 %v8905
        %v9143 = vpop.f32.mrf.mxu0
        %v9144 = vadd.f32 0.0, %v9143
        %v9145 = vpop.f32.mrf.mxu0
        %v9146 = vpop.f32.mrf.mxu0
        %v9147 = vpop.f32.mrf.mxu0
        %9148 = vmatprep.mubr.bf16.mxu0 0
        %9149 = vmatmul.mubr.bf16.gmra.mxu0 %v8906
        %v9150 = vpop.f32.mrf.mxu0
        %v9151 = vadd.f32 0.0, %v9150
        %v9152 = vpop.f32.mrf.mxu0
        %v9153 = vpop.f32.mrf.mxu0
        %v9154 = vadd.f32 0.0, %v9153
        %v9155 = vpop.f32.mrf.mxu0
        %9156 = vmatprep.mubr.bf16.mxu0 0
        %9157 = vmatmul.mubr.bf16.gmra.mxu0 %v8907
        %v9158 = vpop.f32.mrf.mxu0
        %v9159 = vpop.f32.mrf.mxu0
        %v9160 = vpop.f32.mrf.mxu0
        %v9161 = vadd.f32 0.0, %v9160
        %v9162 = vpop.f32.mrf.mxu0
        %9163 = vmatprep.mubr.bf16.mxu0 0
        %9164 = vmatmul.mubr.bf16.gmra.mxu0 %v8908
        %v9165 = vpop.f32.mrf.mxu0
        %v9166 = vadd.f32 0.0, %v9165
        %v9167 = vpop.f32.mrf.mxu0
        %v9168 = vpop.f32.mrf.mxu0
        %v9169 = vpop.f32.mrf.mxu0
        %9170 = vmatprep.mubr.bf16.mxu0 0
        %9171 = vmatmul.mubr.bf16.gmra.mxu0 %v8909
        %v9172 = vpop.f32.mrf.mxu0
        %v9173 = vadd.f32 0.0, %v9172
        %v9174 = vpop.f32.mrf.mxu0
        %v9175 = vpop.f32.mrf.mxu0
        %v9176 = vadd.f32 0.0, %v9175
        %v9177 = vpop.f32.mrf.mxu0
        %9178 = vmatprep.mubr.bf16.mxu0 0
        %9179 = vmatmul.mubr.bf16.gmra.mxu0 %v8910
        %v9180 = vpop.f32.mrf.mxu0
        %v9181 = vpop.f32.mrf.mxu0
        %v9182 = vpop.f32.mrf.mxu0
        %v9183 = vadd.f32 0.0, %v9182
        %v9184 = vpop.f32.mrf.mxu0
        %9185 = vmatprep.mubr.bf16.mxu0 0
        %9186 = vmatmul.mubr.bf16.gmra.mxu0 %v8911
        %v9187 = vpop.f32.mrf.mxu0
        %v9188 = vadd.f32 0.0, %v9187
        %v9189 = vpop.f32.mrf.mxu0
        %v9190 = vpop.f32.mrf.mxu0
        %v9191 = vpop.f32.mrf.mxu0
        %9192 = vdwg.mxu0
        %v9193 = vadd.f32 %v8839, %v9019
        %v9194 = vadd.f32 %v8840, %v9022
        %v9195 = vadd.f32 %v8841, %v9029
        %v9196 = vadd.f32 %v8842, %v9034
        %v9197 = vadd.f32 %v8843, %v9041
        %v9198 = vadd.f32 %v8844, %v9044
        %v9199 = vadd.f32 %v8845, %v9051
        %v9200 = vadd.f32 %v8846, %v9056
        %v9201 = vadd.f32 %v8847, %v9063
        %v9202 = vadd.f32 %v8848, %v9066
        %v9203 = vadd.f32 %v8849, %v9073
        %v9204 = vadd.f32 %v8850, %v9078
        %v9205 = vadd.f32 %v8851, %v9085
        %v9206 = vadd.f32 %v8852, %v9088
        %v9207 = vadd.f32 %v8853, %v9095
        %v9208 = vadd.f32 %v8854, %v9100
        %v9209 = vadd.f32 %v8855, %v9107
        %v9210 = vadd.f32 %v8856, %v9110
        %v9211 = vadd.f32 %v8857, %v9117
        %v9212 = vadd.f32 %v8858, %v9122
        %v9213 = vadd.f32 %v8859, %v9129
        %v9214 = vadd.f32 %v8860, %v9132
        %v9215 = vadd.f32 %v8861, %v9139
        %v9216 = vadd.f32 %v8862, %v9144
        %v9217 = vadd.f32 %v8863, %v9151
        %v9218 = vadd.f32 %v8864, %v9154
        %v9219 = vadd.f32 %v8865, %v9161
        %v9220 = vadd.f32 %v8866, %v9166
        %v9221 = vadd.f32 %v8867, %v9173
        %v9222 = vadd.f32 %v8868, %v9176
        %v9223 = vadd.f32 %v8869, %v9183
        %v9224 = vadd.f32 %v8870, %v9188
        %v9225 = vld [vmem:[#allocation3 + $0x10] sm:$0xf]
        %v9226 = vld [vmem:[#allocation3 + $0x14] sm:$0xf]
        %v9227 = vld [vmem:[#allocation3 + $0x18] sm:$0xf]
        %v9228 = vld [vmem:[#allocation3 + $0x1c] sm:$0xf]
        %v9229 = vld [vmem:[#allocation3 + $0x20] sm:$0xf]
        %v9230 = vld [vmem:[#allocation3 + $0x24] sm:$0xf]
        %v9231 = vld [vmem:[#allocation3 + $0x28] sm:$0xf]
        %v9232 = vld [vmem:[#allocation3 + $0x2c] sm:$0xf]
        %v9233 = vld [vmem:[#allocation3 + $0x30] sm:$0xf]
        %v9234 = vld [vmem:[#allocation3 + $0x34] sm:$0xf]
        %v9235 = vld [vmem:[#allocation3 + $0x38] sm:$0xf]
        %v9236 = vld [vmem:[#allocation3 + $0x3c] sm:$0xf]
        %v9237 = vld [vmem:[#allocation3 + $0x40] sm:$0xf]
        %v9238 = vld [vmem:[#allocation3 + $0x44] sm:$0xf]
        %v9239 = vld [vmem:[#allocation3 + $0x48] sm:$0xf]
        %v9240 = vld [vmem:[#allocation3 + $0x4c] sm:$0xf]
        %v9241 = vld [vmem:[#allocation3 + $0x50] sm:$0xf]
        %v9242 = vld [vmem:[#allocation3 + $0x54] sm:$0xf]
        %v9243 = vld [vmem:[#allocation3 + $0x58] sm:$0xf]
        %v9244 = vld [vmem:[#allocation3 + $0x5c] sm:$0xf]
        %v9245 = vld [vmem:[#allocation3 + $0x60] sm:$0xf]
        %v9246 = vld [vmem:[#allocation3 + $0x64] sm:$0xf]
        %v9247 = vld [vmem:[#allocation3 + $0x68] sm:$0xf]
        %v9248 = vld [vmem:[#allocation3 + $0x6c] sm:$0xf]
        %v9249 = vld [vmem:[#allocation3 + $0x70] sm:$0xf]
        %v9250 = vld [vmem:[#allocation3 + $0x74] sm:$0xf]
        %v9251 = vld [vmem:[#allocation3 + $0x78] sm:$0xf]
        %v9252 = vld [vmem:[#allocation3 + $0x7c] sm:$0xf]
        %v9253 = vld [vmem:[#allocation3 + $0x80] sm:$0xf]
        %v9254 = vld [vmem:[#allocation3 + $0x84] sm:$0xf]
        %v9255 = vld [vmem:[#allocation3 + $0x88] sm:$0xf]
        %v9256 = vld [vmem:[#allocation3 + $0x8c] sm:$0xf]
        %v9257 = vld [vmem:[#allocation3 + $0x90] sm:$0xf]
        %v9258 = vld [vmem:[#allocation3 + $0x94] sm:$0xf]
        %v9259 = vld [vmem:[#allocation3 + $0x98] sm:$0xf]
        %v9260 = vld [vmem:[#allocation3 + $0x9c] sm:$0xf]
        %v9261 = vld [vmem:[#allocation3 + $0xa0] sm:$0xf]
        %v9262 = vld [vmem:[#allocation3 + $0xa4] sm:$0xf]
        %v9263 = vld [vmem:[#allocation3 + $0xa8] sm:$0xf]
        %v9264 = vld [vmem:[#allocation3 + $0xac] sm:$0xf]
        %v9265 = vld [vmem:[#allocation3 + $0xb0] sm:$0xf]
        %v9266 = vld [vmem:[#allocation3 + $0xb4] sm:$0xf]
        %v9267 = vld [vmem:[#allocation3 + $0xb8] sm:$0xf]
        %v9268 = vld [vmem:[#allocation3 + $0xbc] sm:$0xf]
        %v9269 = vld [vmem:[#allocation3 + $0xc0] sm:$0xf]
        %v9270 = vld [vmem:[#allocation3 + $0xc4] sm:$0xf]
        %v9271 = vld [vmem:[#allocation3 + $0xc8] sm:$0xf]
        %v9272 = vld [vmem:[#allocation3 + $0xcc] sm:$0xf]
        %v9273 = vld [vmem:[#allocation3 + $0xd0] sm:$0x1]
        %s9274 = scalar_lea.vmem [#allocation4], 320
        %v9275 = vld [vmem:[%s9274] sm:$0xf]
        %v9276 = vld [vmem:[%s9274 + $0x4] sm:$0xf]
        %v9277 = vld [vmem:[%s9274 + $0x8] sm:$0xf]
        %v9278 = vld [vmem:[%s9274 + $0xc] sm:$0xf]
        %v9279 = vld [vmem:[%s9274 + $0x10] sm:$0xf]
        %v9280 = vld [vmem:[%s9274 + $0x14] sm:$0xf]
        %v9281 = vld [vmem:[%s9274 + $0x18] sm:$0xf]
        %v9282 = vld [vmem:[%s9274 + $0x1c] sm:$0xf]
        %v9283 = vld [vmem:[%s9274 + $0x20] sm:$0xf]
        %v9284 = vld [vmem:[%s9274 + $0x24] sm:$0xf]
        %v9285 = vld [vmem:[%s9274 + $0x28] sm:$0xf]
        %v9286 = vld [vmem:[%s9274 + $0x2c] sm:$0xf]
        %v9287 = vld [vmem:[%s9274 + $0x30] sm:$0xf]
        %v9288 = vld [vmem:[%s9274 + $0x34] sm:$0xf]
        %v9289 = vld [vmem:[%s9274 + $0x38] sm:$0xf]
        %v9290 = vld [vmem:[%s9274 + $0x3c] sm:$0xf]
        %v9340 = vunpack.c.l.b16 %v9225
        %v9341 = vunpack.c.l.b16 %v9226
        %v9342 = vunpack.c.l.b16 %v9227
        %v9343 = vunpack.c.l.b16 %v9228
        %v9344 = vunpack.c.l.b16 %v9229
        %v9345 = vunpack.c.l.b16 %v9230
        %v9346 = vunpack.c.l.b16 %v9231
        %v9347 = vunpack.c.l.b16 %v9232
        %v9348 = vunpack.c.l.b16 %v9233
        %v9349 = vunpack.c.l.b16 %v9234
        %v9350 = vunpack.c.l.b16 %v9235
        %v9351 = vunpack.c.l.b16 %v9236
        %v9352 = vunpack.c.l.b16 %v9237
        %v9353 = vunpack.c.l.b16 %v9238
        %v9354 = vunpack.c.l.b16 %v9239
        %v9355 = vunpack.c.l.b16 %v9240
        %v9356 = vunpack.c.l.b16 %v9241
        %v9357 = vunpack.c.l.b16 %v9242
        %v9358 = vunpack.c.l.b16 %v9243
        %v9359 = vunpack.c.l.b16 %v9244
        %v9360 = vunpack.c.l.b16 %v9245
        %v9361 = vunpack.c.l.b16 %v9246
        %v9362 = vunpack.c.l.b16 %v9247
        %v9363 = vunpack.c.l.b16 %v9248
        %v9364 = vunpack.c.l.b16 %v9249
        %v9365 = vunpack.c.l.b16 %v9250
        %v9366 = vunpack.c.l.b16 %v9251
        %v9367 = vunpack.c.l.b16 %v9252
        %v9368 = vunpack.c.l.b16 %v9253
        %v9369 = vunpack.c.l.b16 %v9254
        %v9370 = vunpack.c.l.b16 %v9255
        %v9371 = vunpack.c.l.b16 %v9256
        %v9372 = vunpack.c.l.b16 %v9257
        %v9373 = vunpack.c.l.b16 %v9258
        %v9374 = vunpack.c.l.b16 %v9259
        %v9375 = vunpack.c.l.b16 %v9260
        %v9376 = vunpack.c.l.b16 %v9261
        %v9377 = vunpack.c.l.b16 %v9262
        %v9378 = vunpack.c.l.b16 %v9263
        %v9379 = vunpack.c.l.b16 %v9264
        %v9380 = vunpack.c.l.b16 %v9265
        %v9381 = vunpack.c.l.b16 %v9266
        %v9382 = vunpack.c.l.b16 %v9267
        %v9383 = vunpack.c.l.b16 %v9268
        %v9384 = vunpack.c.l.b16 %v9269
        %v9385 = vunpack.c.l.b16 %v9270
        %v9386 = vunpack.c.l.b16 %v9271
        %v9387 = vunpack.c.l.b16 %v9272
        %v9388 = vunpack.c.l.b16 %v9273
        %v9389 = vpack.c.b16 %v9341, %v9340
        %v9390 = vpack.c.b16 %v9343, %v9342
        %v9391 = vpack.c.b16 %v9345, %v9344
        %v9392 = vpack.c.b16 %v9347, %v9346
        %v9393 = vpack.c.b16 %v9349, %v9348
        %v9394 = vpack.c.b16 %v9351, %v9350
        %v9395 = vpack.c.b16 %v9353, %v9352
        %v9396 = vpack.c.b16 %v9355, %v9354
        %v9397 = vpack.c.b16 %v9357, %v9356
        %v9398 = vpack.c.b16 %v9359, %v9358
        %v9399 = vpack.c.b16 %v9361, %v9360
        %v9400 = vpack.c.b16 %v9363, %v9362
        %v9401 = vpack.c.b16 %v9365, %v9364
        %v9402 = vpack.c.b16 %v9367, %v9366
        %v9403 = vpack.c.b16 %v9369, %v9368
        %v9404 = vpack.c.b16 %v9371, %v9370
        %v9405 = vpack.c.b16 %v9373, %v9372
        %v9406 = vpack.c.b16 %v9375, %v9374
        %v9407 = vpack.c.b16 %v9377, %v9376
        %v9408 = vpack.c.b16 %v9379, %v9378
        %v9409 = vpack.c.b16 %v9381, %v9380
        %v9410 = vpack.c.b16 %v9383, %v9382
        %v9411 = vpack.c.b16 %v9385, %v9384
        %v9412 = vpack.c.b16 %v9387, %v9386
        %v9413 = vpack.c.b16 %v9388, %v9388
        %v9415 = vshrl.u32 %v9389, 16
        %v9417 = vshll.u32 %v9389, 16
        %v9419 = vrot.slane %v9417, 1
        %v9420 = vor.u32 %v9415, %v9419
        %v9422 = vshll.u32 %v9390, 16
        %v9424 = vrot.slane %v9422, 1
        %v9425 = vsel %vm1730, %v9420, %v9424
        %v9426 = vshrl.u32 %v9390, 16
        %v9428 = vor.u32 %v9426, %v9424
        %v9430 = vshll.u32 %v9391, 16
        %v9432 = vrot.slane %v9430, 1
        %v9433 = vsel %vm1730, %v9428, %v9432
        %v9434 = vshrl.u32 %v9391, 16
        %v9436 = vor.u32 %v9434, %v9432
        %v9438 = vshll.u32 %v9392, 16
        %v9440 = vrot.slane %v9438, 1
        %v9441 = vsel %vm1730, %v9436, %v9440
        %v9442 = vshrl.u32 %v9392, 16
        %v9444 = vor.u32 %v9442, %v9440
        %v9446 = vshll.u32 %v9393, 16
        %v9448 = vrot.slane %v9446, 1
        %v9449 = vsel %vm1730, %v9444, %v9448
        %v9450 = vshrl.u32 %v9393, 16
        %v9452 = vor.u32 %v9450, %v9448
        %v9454 = vshll.u32 %v9394, 16
        %v9456 = vrot.slane %v9454, 1
        %v9457 = vsel %vm1730, %v9452, %v9456
        %v9458 = vshrl.u32 %v9394, 16
        %v9460 = vor.u32 %v9458, %v9456
        %v9462 = vshll.u32 %v9395, 16
        %v9464 = vrot.slane %v9462, 1
        %v9465 = vsel %vm1730, %v9460, %v9464
        %v9466 = vshrl.u32 %v9395, 16
        %v9468 = vor.u32 %v9466, %v9464
        %v9470 = vshll.u32 %v9396, 16
        %v9472 = vrot.slane %v9470, 1
        %v9473 = vsel %vm1730, %v9468, %v9472
        %v9474 = vshrl.u32 %v9396, 16
        %v9476 = vor.u32 %v9474, %v9472
        %v9478 = vshll.u32 %v9397, 16
        %v9480 = vrot.slane %v9478, 1
        %v9481 = vsel %vm1730, %v9476, %v9480
        %v9482 = vshrl.u32 %v9397, 16
        %v9484 = vor.u32 %v9482, %v9480
        %v9486 = vshll.u32 %v9398, 16
        %v9488 = vrot.slane %v9486, 1
        %v9489 = vsel %vm1730, %v9484, %v9488
        %v9490 = vshrl.u32 %v9398, 16
        %v9492 = vor.u32 %v9490, %v9488
        %v9494 = vshll.u32 %v9399, 16
        %v9496 = vrot.slane %v9494, 1
        %v9497 = vsel %vm1730, %v9492, %v9496
        %v9498 = vshrl.u32 %v9399, 16
        %v9500 = vor.u32 %v9498, %v9496
        %v9502 = vshll.u32 %v9400, 16
        %v9504 = vrot.slane %v9502, 1
        %v9505 = vsel %vm1730, %v9500, %v9504
        %v9506 = vshrl.u32 %v9400, 16
        %v9508 = vor.u32 %v9506, %v9504
        %v9510 = vshll.u32 %v9401, 16
        %v9512 = vrot.slane %v9510, 1
        %v9513 = vsel %vm1730, %v9508, %v9512
        %v9514 = vshrl.u32 %v9401, 16
        %v9516 = vor.u32 %v9514, %v9512
        %v9518 = vshll.u32 %v9402, 16
        %v9520 = vrot.slane %v9518, 1
        %v9521 = vsel %vm1730, %v9516, %v9520
        %v9522 = vshrl.u32 %v9402, 16
        %v9524 = vor.u32 %v9522, %v9520
        %v9526 = vshll.u32 %v9403, 16
        %v9528 = vrot.slane %v9526, 1
        %v9529 = vsel %vm1730, %v9524, %v9528
        %v9530 = vshrl.u32 %v9403, 16
        %v9532 = vor.u32 %v9530, %v9528
        %v9534 = vshll.u32 %v9404, 16
        %v9536 = vrot.slane %v9534, 1
        %v9537 = vsel %vm1730, %v9532, %v9536
        %v9538 = vshrl.u32 %v9404, 16
        %v9540 = vor.u32 %v9538, %v9536
        %v9542 = vshll.u32 %v9405, 16
        %v9544 = vrot.slane %v9542, 1
        %v9545 = vsel %vm1730, %v9540, %v9544
        %v9546 = vshrl.u32 %v9405, 16
        %v9548 = vor.u32 %v9546, %v9544
        %v9550 = vshll.u32 %v9406, 16
        %v9552 = vrot.slane %v9550, 1
        %v9553 = vsel %vm1730, %v9548, %v9552
        %v9554 = vshrl.u32 %v9406, 16
        %v9556 = vor.u32 %v9554, %v9552
        %v9558 = vshll.u32 %v9407, 16
        %v9560 = vrot.slane %v9558, 1
        %v9561 = vsel %vm1730, %v9556, %v9560
        %v9562 = vshrl.u32 %v9407, 16
        %v9564 = vor.u32 %v9562, %v9560
        %v9566 = vshll.u32 %v9408, 16
        %v9568 = vrot.slane %v9566, 1
        %v9569 = vsel %vm1730, %v9564, %v9568
        %v9570 = vshrl.u32 %v9408, 16
        %v9572 = vor.u32 %v9570, %v9568
        %v9574 = vshll.u32 %v9409, 16
        %v9576 = vrot.slane %v9574, 1
        %v9577 = vsel %vm1730, %v9572, %v9576
        %v9578 = vshrl.u32 %v9409, 16
        %v9580 = vor.u32 %v9578, %v9576
        %v9582 = vshll.u32 %v9410, 16
        %v9584 = vrot.slane %v9582, 1
        %v9585 = vsel %vm1730, %v9580, %v9584
        %v9586 = vshrl.u32 %v9410, 16
        %v9588 = vor.u32 %v9586, %v9584
        %v9590 = vshll.u32 %v9411, 16
        %v9592 = vrot.slane %v9590, 1
        %v9593 = vsel %vm1730, %v9588, %v9592
        %v9594 = vshrl.u32 %v9411, 16
        %v9596 = vor.u32 %v9594, %v9592
        %v9598 = vshll.u32 %v9412, 16
        %v9600 = vrot.slane %v9598, 1
        %v9601 = vsel %vm1730, %v9596, %v9600
        %v9602 = vshrl.u32 %v9412, 16
        %v9604 = vor.u32 %v9602, %v9600
        %v9606 = vshll.u32 %v9413, 16
        %v9608 = vrot.slane %v9606, 1
        %v9609 = vsel %vm1730, %v9604, %v9608
        %v9650 = vunpack.c.l.b16 %v9275
        %v9651 = vunpack.c.l.b16 %v9276
        %v9652 = vunpack.c.l.b16 %v9277
        %v9653 = vunpack.c.l.b16 %v9278
        %v9654 = vunpack.c.l.b16 %v9279
        %v9655 = vunpack.c.l.b16 %v9280
        %v9656 = vunpack.c.l.b16 %v9281
        %v9657 = vunpack.c.l.b16 %v9282
        %v9658 = vunpack.c.l.b16 %v9283
        %v9659 = vunpack.c.l.b16 %v9284
        %v9660 = vunpack.c.l.b16 %v9285
        %v9661 = vunpack.c.l.b16 %v9286
        %v9662 = vunpack.c.l.b16 %v9287
        %v9663 = vunpack.c.l.b16 %v9288
        %v9664 = vunpack.c.l.b16 %v9289
        %v9665 = vunpack.c.l.b16 %v9290
        %v9666 = vpack.c.b16 %v9651, %v9650
        %v9667 = vpack.c.b16 %v9653, %v9652
        %v9668 = vpack.c.b16 %v9655, %v9654
        %v9669 = vpack.c.b16 %v9657, %v9656
        %v9670 = vpack.c.b16 %v9659, %v9658
        %v9671 = vpack.c.b16 %v9661, %v9660
        %v9672 = vpack.c.b16 %v9663, %v9662
        %v9673 = vpack.c.b16 %v9665, %v9664
        %9682 = vmatprep.subr.bf16.mxu0 0
        %9683 = vmatpush1.bf16.msra.mxu0 %v9673
        %9684 = vmatprep.subr.bf16.mxu0 0
        %9685 = vmatpush1.bf16.msra.mxu0 %v9672
        %9686 = vmatprep.subr.bf16.mxu0 0
        %9687 = vmatpush1.bf16.msra.mxu0 %v9671
        %9688 = vmatprep.subr.bf16.mxu0 0
        %9689 = vmatpush1.bf16.msra.mxu0 %v9670
        %9690 = vmatprep.subr.bf16.mxu0 0
        %9691 = vmatpush1.bf16.msra.mxu0 %v9669
        %9692 = vmatprep.subr.bf16.mxu0 0
        %9693 = vmatpush1.bf16.msra.mxu0 %v9668
        %9694 = vmatprep.subr.bf16.mxu0 0
        %9695 = vmatpush1.bf16.msra.mxu0 %v9667
        %9696 = vmatprep.subr.bf16.mxu0 0
        %9697 = vmatpush1.bf16.msra.mxu0 %v9666
        %9698 = vmatprep.subr.bf16.mxu0 0
        %9699 = vmatpush2.bf16.msra.mxu0 0
        %9700 = vmatprep.subr.bf16.mxu0 0
        %9701 = vmatpush2.bf16.msra.mxu0 0
        %9702 = vmatprep.subr.bf16.mxu0 0
        %9703 = vmatpush2.bf16.msra.mxu0 0
        %9704 = vmatprep.subr.bf16.mxu0 0
        %9705 = vmatpush2.bf16.msra.mxu0 0
        %9706 = vmatprep.subr.bf16.mxu0 0
        %9707 = vmatpush2.bf16.msra.mxu0 0
        %9708 = vmatprep.subr.bf16.mxu0 0
        %9709 = vmatpush2.bf16.msra.mxu0 0
        %9710 = vmatprep.subr.bf16.mxu0 0
        %9711 = vmatpush2.bf16.msra.mxu0 0
        %9712 = vmatprep.subr.bf16.mxu0 0
        %9713 = vmatpush2.bf16.msra.mxu0 0
        %9714 = vmatprep.mubr.bf16.mxu0 0
        %9715 = vmatmul.mubr.bf16.gmra.mxu0 %v9425
        %v9716 = vpop.f32.mrf.mxu0
        %v9717 = vadd.f32 0.0, %v9716
        %v9718 = vpop.f32.mrf.mxu0
        %v9719 = vpop.f32.mrf.mxu0
        %v9720 = vadd.f32 0.0, %v9719
        %v9721 = vpop.f32.mrf.mxu0
        %9722 = vmatprep.mubr.bf16.mxu0 0
        %9723 = vmatmul.mubr.bf16.gmra.mxu0 %v9433
        %v9724 = vpop.f32.mrf.mxu0
        %v9725 = vpop.f32.mrf.mxu0
        %v9726 = vpop.f32.mrf.mxu0
        %v9727 = vadd.f32 0.0, %v9726
        %v9728 = vpop.f32.mrf.mxu0
        %9729 = vmatprep.mubr.bf16.mxu0 0
        %9730 = vmatmul.mubr.bf16.gmra.mxu0 %v9441
        %v9731 = vpop.f32.mrf.mxu0
        %v9732 = vadd.f32 0.0, %v9731
        %v9733 = vpop.f32.mrf.mxu0
        %v9734 = vpop.f32.mrf.mxu0
        %v9735 = vpop.f32.mrf.mxu0
        %9736 = vmatprep.mubr.bf16.mxu0 0
        %9737 = vmatmul.mubr.bf16.gmra.mxu0 %v9449
        %v9738 = vpop.f32.mrf.mxu0
        %v9739 = vadd.f32 0.0, %v9738
        %v9740 = vpop.f32.mrf.mxu0
        %v9741 = vpop.f32.mrf.mxu0
        %v9742 = vadd.f32 0.0, %v9741
        %v9743 = vpop.f32.mrf.mxu0
        %9744 = vmatprep.mubr.bf16.mxu0 0
        %9745 = vmatmul.mubr.bf16.gmra.mxu0 %v9457
        %v9746 = vpop.f32.mrf.mxu0
        %v9747 = vpop.f32.mrf.mxu0
        %v9748 = vpop.f32.mrf.mxu0
        %v9749 = vadd.f32 0.0, %v9748
        %v9750 = vpop.f32.mrf.mxu0
        %9751 = vmatprep.mubr.bf16.mxu0 0
        %9752 = vmatmul.mubr.bf16.gmra.mxu0 %v9465
        %v9753 = vpop.f32.mrf.mxu0
        %v9754 = vadd.f32 0.0, %v9753
        %v9755 = vpop.f32.mrf.mxu0
        %v9756 = vpop.f32.mrf.mxu0
        %v9757 = vpop.f32.mrf.mxu0
        %9758 = vmatprep.mubr.bf16.mxu0 0
        %9759 = vmatmul.mubr.bf16.gmra.mxu0 %v9473
        %v9760 = vpop.f32.mrf.mxu0
        %v9761 = vadd.f32 0.0, %v9760
        %v9762 = vpop.f32.mrf.mxu0
        %v9763 = vpop.f32.mrf.mxu0
        %v9764 = vadd.f32 0.0, %v9763
        %v9765 = vpop.f32.mrf.mxu0
        %9766 = vmatprep.mubr.bf16.mxu0 0
        %9767 = vmatmul.mubr.bf16.gmra.mxu0 %v9481
        %v9768 = vpop.f32.mrf.mxu0
        %v9769 = vpop.f32.mrf.mxu0
        %v9770 = vpop.f32.mrf.mxu0
        %v9771 = vadd.f32 0.0, %v9770
        %v9772 = vpop.f32.mrf.mxu0
        %9773 = vmatprep.mubr.bf16.mxu0 0
        %9774 = vmatmul.mubr.bf16.gmra.mxu0 %v9489
        %v9775 = vpop.f32.mrf.mxu0
        %v9776 = vadd.f32 0.0, %v9775
        %v9777 = vpop.f32.mrf.mxu0
        %v9778 = vpop.f32.mrf.mxu0
        %v9779 = vpop.f32.mrf.mxu0
        %9780 = vmatprep.mubr.bf16.mxu0 0
        %9781 = vmatmul.mubr.bf16.gmra.mxu0 %v9497
        %v9782 = vpop.f32.mrf.mxu0
        %v9783 = vadd.f32 0.0, %v9782
        %v9784 = vpop.f32.mrf.mxu0
        %v9785 = vpop.f32.mrf.mxu0
        %v9786 = vadd.f32 0.0, %v9785
        %v9787 = vpop.f32.mrf.mxu0
        %9788 = vmatprep.mubr.bf16.mxu0 0
        %9789 = vmatmul.mubr.bf16.gmra.mxu0 %v9505
        %v9790 = vpop.f32.mrf.mxu0
        %v9791 = vpop.f32.mrf.mxu0
        %v9792 = vpop.f32.mrf.mxu0
        %v9793 = vadd.f32 0.0, %v9792
        %v9794 = vpop.f32.mrf.mxu0
        %9795 = vmatprep.mubr.bf16.mxu0 0
        %9796 = vmatmul.mubr.bf16.gmra.mxu0 %v9513
        %v9797 = vpop.f32.mrf.mxu0
        %v9798 = vadd.f32 0.0, %v9797
        %v9799 = vpop.f32.mrf.mxu0
        %v9800 = vpop.f32.mrf.mxu0
        %v9801 = vpop.f32.mrf.mxu0
        %9802 = vmatprep.mubr.bf16.mxu0 0
        %9803 = vmatmul.mubr.bf16.gmra.mxu0 %v9521
        %v9804 = vpop.f32.mrf.mxu0
        %v9805 = vadd.f32 0.0, %v9804
        %v9806 = vpop.f32.mrf.mxu0
        %v9807 = vpop.f32.mrf.mxu0
        %v9808 = vadd.f32 0.0, %v9807
        %v9809 = vpop.f32.mrf.mxu0
        %9810 = vmatprep.mubr.bf16.mxu0 0
        %9811 = vmatmul.mubr.bf16.gmra.mxu0 %v9529
        %v9812 = vpop.f32.mrf.mxu0
        %v9813 = vpop.f32.mrf.mxu0
        %v9814 = vpop.f32.mrf.mxu0
        %v9815 = vadd.f32 0.0, %v9814
        %v9816 = vpop.f32.mrf.mxu0
        %9817 = vmatprep.mubr.bf16.mxu0 0
        %9818 = vmatmul.mubr.bf16.gmra.mxu0 %v9537
        %v9819 = vpop.f32.mrf.mxu0
        %v9820 = vadd.f32 0.0, %v9819
        %v9821 = vpop.f32.mrf.mxu0
        %v9822 = vpop.f32.mrf.mxu0
        %v9823 = vpop.f32.mrf.mxu0
        %9824 = vmatprep.mubr.bf16.mxu0 0
        %9825 = vmatmul.mubr.bf16.gmra.mxu0 %v9545
        %v9826 = vpop.f32.mrf.mxu0
        %v9827 = vadd.f32 0.0, %v9826
        %v9828 = vpop.f32.mrf.mxu0
        %v9829 = vpop.f32.mrf.mxu0
        %v9830 = vadd.f32 0.0, %v9829
        %v9831 = vpop.f32.mrf.mxu0
        %9832 = vmatprep.mubr.bf16.mxu0 0
        %9833 = vmatmul.mubr.bf16.gmra.mxu0 %v9553
        %v9834 = vpop.f32.mrf.mxu0
        %v9835 = vpop.f32.mrf.mxu0
        %v9836 = vpop.f32.mrf.mxu0
        %v9837 = vadd.f32 0.0, %v9836
        %v9838 = vpop.f32.mrf.mxu0
        %9839 = vmatprep.mubr.bf16.mxu0 0
        %9840 = vmatmul.mubr.bf16.gmra.mxu0 %v9561
        %v9841 = vpop.f32.mrf.mxu0
        %v9842 = vadd.f32 0.0, %v9841
        %v9843 = vpop.f32.mrf.mxu0
        %v9844 = vpop.f32.mrf.mxu0
        %v9845 = vpop.f32.mrf.mxu0
        %9846 = vmatprep.mubr.bf16.mxu0 0
        %9847 = vmatmul.mubr.bf16.gmra.mxu0 %v9569
        %v9848 = vpop.f32.mrf.mxu0
        %v9849 = vadd.f32 0.0, %v9848
        %v9850 = vpop.f32.mrf.mxu0
        %v9851 = vpop.f32.mrf.mxu0
        %v9852 = vadd.f32 0.0, %v9851
        %v9853 = vpop.f32.mrf.mxu0
        %9854 = vmatprep.mubr.bf16.mxu0 0
        %9855 = vmatmul.mubr.bf16.gmra.mxu0 %v9577
        %v9856 = vpop.f32.mrf.mxu0
        %v9857 = vpop.f32.mrf.mxu0
        %v9858 = vpop.f32.mrf.mxu0
        %v9859 = vadd.f32 0.0, %v9858
        %v9860 = vpop.f32.mrf.mxu0
        %9861 = vmatprep.mubr.bf16.mxu0 0
        %9862 = vmatmul.mubr.bf16.gmra.mxu0 %v9585
        %v9863 = vpop.f32.mrf.mxu0
        %v9864 = vadd.f32 0.0, %v9863
        %v9865 = vpop.f32.mrf.mxu0
        %v9866 = vpop.f32.mrf.mxu0
        %v9867 = vpop.f32.mrf.mxu0
        %9868 = vmatprep.mubr.bf16.mxu0 0
        %9869 = vmatmul.mubr.bf16.gmra.mxu0 %v9593
        %v9870 = vpop.f32.mrf.mxu0
        %v9871 = vadd.f32 0.0, %v9870
        %v9872 = vpop.f32.mrf.mxu0
        %v9873 = vpop.f32.mrf.mxu0
        %v9874 = vadd.f32 0.0, %v9873
        %v9875 = vpop.f32.mrf.mxu0
        %9876 = vmatprep.mubr.bf16.mxu0 0
        %9877 = vmatmul.mubr.bf16.gmra.mxu0 %v9601
        %v9878 = vpop.f32.mrf.mxu0
        %v9879 = vpop.f32.mrf.mxu0
        %v9880 = vpop.f32.mrf.mxu0
        %v9881 = vadd.f32 0.0, %v9880
        %v9882 = vpop.f32.mrf.mxu0
        %9883 = vmatprep.mubr.bf16.mxu0 0
        %9884 = vmatmul.mubr.bf16.gmra.mxu0 %v9609
        %v9885 = vpop.f32.mrf.mxu0
        %v9886 = vadd.f32 0.0, %v9885
        %v9887 = vpop.f32.mrf.mxu0
        %v9888 = vpop.f32.mrf.mxu0
        %v9889 = vpop.f32.mrf.mxu0
        %9890 = vdwg.mxu0
        %v9891 = vadd.f32 %v9193, %v9717
        %v9892 = vadd.f32 %v9194, %v9720
        %v9893 = vadd.f32 %v9195, %v9727
        %v9894 = vadd.f32 %v9196, %v9732
        %v9895 = vadd.f32 %v9197, %v9739
        %v9896 = vadd.f32 %v9198, %v9742
        %v9897 = vadd.f32 %v9199, %v9749
        %v9898 = vadd.f32 %v9200, %v9754
        %v9899 = vadd.f32 %v9201, %v9761
        %v9900 = vadd.f32 %v9202, %v9764
        %v9901 = vadd.f32 %v9203, %v9771
        %v9902 = vadd.f32 %v9204, %v9776
        %v9903 = vadd.f32 %v9205, %v9783
        %v9904 = vadd.f32 %v9206, %v9786
        %v9905 = vadd.f32 %v9207, %v9793
        %v9906 = vadd.f32 %v9208, %v9798
        %v9907 = vadd.f32 %v9209, %v9805
        %v9908 = vadd.f32 %v9210, %v9808
        %v9909 = vadd.f32 %v9211, %v9815
        %v9910 = vadd.f32 %v9212, %v9820
        %v9911 = vadd.f32 %v9213, %v9827
        %v9912 = vadd.f32 %v9214, %v9830
        %v9913 = vadd.f32 %v9215, %v9837
        %v9914 = vadd.f32 %v9216, %v9842
        %v9915 = vadd.f32 %v9217, %v9849
        %v9916 = vadd.f32 %v9218, %v9852
        %v9917 = vadd.f32 %v9219, %v9859
        %v9918 = vadd.f32 %v9220, %v9864
        %v9919 = vadd.f32 %v9221, %v9871
        %v9920 = vadd.f32 %v9222, %v9874
        %v9921 = vadd.f32 %v9223, %v9881
        %v9922 = vadd.f32 %v9224, %v9886
        %v9923 = vld [vmem:[#allocation3 + $0x18] sm:$0x8]
        %v9924 = vld [vmem:[#allocation3 + $0x1c] sm:$0xf]
        %v9925 = vld [vmem:[#allocation3 + $0x20] sm:$0xf]
        %v9926 = vld [vmem:[#allocation3 + $0x24] sm:$0xf]
        %v9927 = vld [vmem:[#allocation3 + $0x28] sm:$0xf]
        %v9928 = vld [vmem:[#allocation3 + $0x2c] sm:$0xf]
        %v9929 = vld [vmem:[#allocation3 + $0x30] sm:$0xf]
        %v9930 = vld [vmem:[#allocation3 + $0x34] sm:$0xf]
        %v9931 = vld [vmem:[#allocation3 + $0x38] sm:$0xf]
        %v9932 = vld [vmem:[#allocation3 + $0x3c] sm:$0xf]
        %v9933 = vld [vmem:[#allocation3 + $0x40] sm:$0xf]
        %v9934 = vld [vmem:[#allocation3 + $0x44] sm:$0xf]
        %v9935 = vld [vmem:[#allocation3 + $0x48] sm:$0xf]
        %v9936 = vld [vmem:[#allocation3 + $0x4c] sm:$0xf]
        %v9937 = vld [vmem:[#allocation3 + $0x50] sm:$0xf]
        %v9938 = vld [vmem:[#allocation3 + $0x54] sm:$0xf]
        %v9939 = vld [vmem:[#allocation3 + $0x58] sm:$0xf]
        %v9940 = vld [vmem:[#allocation3 + $0x5c] sm:$0xf]
        %v9941 = vld [vmem:[#allocation3 + $0x60] sm:$0xf]
        %v9942 = vld [vmem:[#allocation3 + $0x64] sm:$0xf]
        %v9943 = vld [vmem:[#allocation3 + $0x68] sm:$0xf]
        %v9944 = vld [vmem:[#allocation3 + $0x6c] sm:$0xf]
        %v9945 = vld [vmem:[#allocation3 + $0x70] sm:$0xf]
        %v9946 = vld [vmem:[#allocation3 + $0x74] sm:$0xf]
        %v9947 = vld [vmem:[#allocation3 + $0x78] sm:$0xf]
        %v9948 = vld [vmem:[#allocation3 + $0x7c] sm:$0xf]
        %v9949 = vld [vmem:[#allocation3 + $0x80] sm:$0xf]
        %v9950 = vld [vmem:[#allocation3 + $0x84] sm:$0xf]
        %v9951 = vld [vmem:[#allocation3 + $0x88] sm:$0xf]
        %v9952 = vld [vmem:[#allocation3 + $0x8c] sm:$0xf]
        %v9953 = vld [vmem:[#allocation3 + $0x90] sm:$0xf]
        %v9954 = vld [vmem:[#allocation3 + $0x94] sm:$0xf]
        %v9955 = vld [vmem:[#allocation3 + $0x98] sm:$0xf]
        %v9956 = vld [vmem:[#allocation3 + $0x9c] sm:$0xf]
        %v9957 = vld [vmem:[#allocation3 + $0xa0] sm:$0xf]
        %v9958 = vld [vmem:[#allocation3 + $0xa4] sm:$0xf]
        %v9959 = vld [vmem:[#allocation3 + $0xa8] sm:$0xf]
        %v9960 = vld [vmem:[#allocation3 + $0xac] sm:$0xf]
        %v9961 = vld [vmem:[#allocation3 + $0xb0] sm:$0xf]
        %v9962 = vld [vmem:[#allocation3 + $0xb4] sm:$0xf]
        %v9963 = vld [vmem:[#allocation3 + $0xb8] sm:$0xf]
        %v9964 = vld [vmem:[#allocation3 + $0xbc] sm:$0xf]
        %v9965 = vld [vmem:[#allocation3 + $0xc0] sm:$0xf]
        %v9966 = vld [vmem:[#allocation3 + $0xc4] sm:$0xf]
        %v9967 = vld [vmem:[#allocation3 + $0xc8] sm:$0xf]
        %v9968 = vld [vmem:[#allocation3 + $0xcc] sm:$0xf]
        %v9969 = vld [vmem:[#allocation3 + $0xd0] sm:$0xf]
        %v9970 = vld [vmem:[#allocation3 + $0xd4] sm:$0xf]
        %v9971 = vld [vmem:[#allocation3 + $0xd8] sm:$0xf]
        %s9972 = scalar_lea.vmem [#allocation4], 384
        %v9973 = vld [vmem:[%s9972] sm:$0xf]
        %v9974 = vld [vmem:[%s9972 + $0x4] sm:$0xf]
        %v9975 = vld [vmem:[%s9972 + $0x8] sm:$0xf]
        %v9976 = vld [vmem:[%s9972 + $0xc] sm:$0xf]
        %v9977 = vld [vmem:[%s9972 + $0x10] sm:$0xf]
        %v9978 = vld [vmem:[%s9972 + $0x14] sm:$0xf]
        %v9979 = vld [vmem:[%s9972 + $0x18] sm:$0xf]
        %v9980 = vld [vmem:[%s9972 + $0x1c] sm:$0xf]
        %v9981 = vld [vmem:[%s9972 + $0x20] sm:$0xf]
        %v9982 = vld [vmem:[%s9972 + $0x24] sm:$0xf]
        %v9983 = vld [vmem:[%s9972 + $0x28] sm:$0xf]
        %v9984 = vld [vmem:[%s9972 + $0x2c] sm:$0xf]
        %v9985 = vld [vmem:[%s9972 + $0x30] sm:$0xf]
        %v9986 = vld [vmem:[%s9972 + $0x34] sm:$0xf]
        %v9987 = vld [vmem:[%s9972 + $0x38] sm:$0xf]
        %v9988 = vld [vmem:[%s9972 + $0x3c] sm:$0xf]
        %v10038 = vunpack.c.l.b16 %v9923
        %v10039 = vunpack.c.l.b16 %v9924
        %v10040 = vunpack.c.l.b16 %v9925
        %v10041 = vunpack.c.l.b16 %v9926
        %v10042 = vunpack.c.l.b16 %v9927
        %v10043 = vunpack.c.l.b16 %v9928
        %v10044 = vunpack.c.l.b16 %v9929
        %v10045 = vunpack.c.l.b16 %v9930
        %v10046 = vunpack.c.l.b16 %v9931
        %v10047 = vunpack.c.l.b16 %v9932
        %v10048 = vunpack.c.l.b16 %v9933
        %v10049 = vunpack.c.l.b16 %v9934
        %v10050 = vunpack.c.l.b16 %v9935
        %v10051 = vunpack.c.l.b16 %v9936
        %v10052 = vunpack.c.l.b16 %v9937
        %v10053 = vunpack.c.l.b16 %v9938
        %v10054 = vunpack.c.l.b16 %v9939
        %v10055 = vunpack.c.l.b16 %v9940
        %v10056 = vunpack.c.l.b16 %v9941
        %v10057 = vunpack.c.l.b16 %v9942
        %v10058 = vunpack.c.l.b16 %v9943
        %v10059 = vunpack.c.l.b16 %v9944
        %v10060 = vunpack.c.l.b16 %v9945
        %v10061 = vunpack.c.l.b16 %v9946
        %v10062 = vunpack.c.l.b16 %v9947
        %v10063 = vunpack.c.l.b16 %v9948
        %v10064 = vunpack.c.l.b16 %v9949
        %v10065 = vunpack.c.l.b16 %v9950
        %v10066 = vunpack.c.l.b16 %v9951
        %v10067 = vunpack.c.l.b16 %v9952
        %v10068 = vunpack.c.l.b16 %v9953
        %v10069 = vunpack.c.l.b16 %v9954
        %v10070 = vunpack.c.l.b16 %v9955
        %v10071 = vunpack.c.l.b16 %v9956
        %v10072 = vunpack.c.l.b16 %v9957
        %v10073 = vunpack.c.l.b16 %v9958
        %v10074 = vunpack.c.l.b16 %v9959
        %v10075 = vunpack.c.l.b16 %v9960
        %v10076 = vunpack.c.l.b16 %v9961
        %v10077 = vunpack.c.l.b16 %v9962
        %v10078 = vunpack.c.l.b16 %v9963
        %v10079 = vunpack.c.l.b16 %v9964
        %v10080 = vunpack.c.l.b16 %v9965
        %v10081 = vunpack.c.l.b16 %v9966
        %v10082 = vunpack.c.l.b16 %v9967
        %v10083 = vunpack.c.l.b16 %v9968
        %v10084 = vunpack.c.l.b16 %v9969
        %v10085 = vunpack.c.l.b16 %v9970
        %v10086 = vunpack.c.l.b16 %v9971
        %v10087 = vpack.c.b16 %v10039, %v10038
        %v10088 = vpack.c.b16 %v10041, %v10040
        %v10089 = vpack.c.b16 %v10043, %v10042
        %v10090 = vpack.c.b16 %v10045, %v10044
        %v10091 = vpack.c.b16 %v10047, %v10046
        %v10092 = vpack.c.b16 %v10049, %v10048
        %v10093 = vpack.c.b16 %v10051, %v10050
        %v10094 = vpack.c.b16 %v10053, %v10052
        %v10095 = vpack.c.b16 %v10055, %v10054
        %v10096 = vpack.c.b16 %v10057, %v10056
        %v10097 = vpack.c.b16 %v10059, %v10058
        %v10098 = vpack.c.b16 %v10061, %v10060
        %v10099 = vpack.c.b16 %v10063, %v10062
        %v10100 = vpack.c.b16 %v10065, %v10064
        %v10101 = vpack.c.b16 %v10067, %v10066
        %v10102 = vpack.c.b16 %v10069, %v10068
        %v10103 = vpack.c.b16 %v10071, %v10070
        %v10104 = vpack.c.b16 %v10073, %v10072
        %v10105 = vpack.c.b16 %v10075, %v10074
        %v10106 = vpack.c.b16 %v10077, %v10076
        %v10107 = vpack.c.b16 %v10079, %v10078
        %v10108 = vpack.c.b16 %v10081, %v10080
        %v10109 = vpack.c.b16 %v10083, %v10082
        %v10110 = vpack.c.b16 %v10085, %v10084
        %v10111 = vpack.c.b16 %v10086, %v10086
        %v10113 = vshrl.u32 %v10087, 16
        %v10115 = vrot.slane %v10113, 3
        %v10116 = vshll.u32 %v10087, 16
        %v10118 = vrot.slane %v10116, 4
        %v10119 = vor.u32 %v10115, %v10118
        %v10121 = vshrl.u32 %v10088, 16
        %v10123 = vrot.slane %v10121, 3
        %v10124 = vshll.u32 %v10088, 16
        %v10126 = vrot.slane %v10124, 4
        %v10127 = vor.u32 %v10123, %v10126
        %v10128 = vsel %vm1019, %v10119, %v10127
        %v10130 = vshrl.u32 %v10089, 16
        %v10132 = vrot.slane %v10130, 3
        %v10133 = vshll.u32 %v10089, 16
        %v10135 = vrot.slane %v10133, 4
        %v10136 = vor.u32 %v10132, %v10135
        %v10137 = vsel %vm1019, %v10127, %v10136
        %v10139 = vshrl.u32 %v10090, 16
        %v10141 = vrot.slane %v10139, 3
        %v10142 = vshll.u32 %v10090, 16
        %v10144 = vrot.slane %v10142, 4
        %v10145 = vor.u32 %v10141, %v10144
        %v10146 = vsel %vm1019, %v10136, %v10145
        %v10148 = vshrl.u32 %v10091, 16
        %v10150 = vrot.slane %v10148, 3
        %v10151 = vshll.u32 %v10091, 16
        %v10153 = vrot.slane %v10151, 4
        %v10154 = vor.u32 %v10150, %v10153
        %v10155 = vsel %vm1019, %v10145, %v10154
        %v10157 = vshrl.u32 %v10092, 16
        %v10159 = vrot.slane %v10157, 3
        %v10160 = vshll.u32 %v10092, 16
        %v10162 = vrot.slane %v10160, 4
        %v10163 = vor.u32 %v10159, %v10162
        %v10164 = vsel %vm1019, %v10154, %v10163
        %v10166 = vshrl.u32 %v10093, 16
        %v10168 = vrot.slane %v10166, 3
        %v10169 = vshll.u32 %v10093, 16
        %v10171 = vrot.slane %v10169, 4
        %v10172 = vor.u32 %v10168, %v10171
        %v10173 = vsel %vm1019, %v10163, %v10172
        %v10175 = vshrl.u32 %v10094, 16
        %v10177 = vrot.slane %v10175, 3
        %v10178 = vshll.u32 %v10094, 16
        %v10180 = vrot.slane %v10178, 4
        %v10181 = vor.u32 %v10177, %v10180
        %v10182 = vsel %vm1019, %v10172, %v10181
        %v10184 = vshrl.u32 %v10095, 16
        %v10186 = vrot.slane %v10184, 3
        %v10187 = vshll.u32 %v10095, 16
        %v10189 = vrot.slane %v10187, 4
        %v10190 = vor.u32 %v10186, %v10189
        %v10191 = vsel %vm1019, %v10181, %v10190
        %v10193 = vshrl.u32 %v10096, 16
        %v10195 = vrot.slane %v10193, 3
        %v10196 = vshll.u32 %v10096, 16
        %v10198 = vrot.slane %v10196, 4
        %v10199 = vor.u32 %v10195, %v10198
        %v10200 = vsel %vm1019, %v10190, %v10199
        %v10202 = vshrl.u32 %v10097, 16
        %v10204 = vrot.slane %v10202, 3
        %v10205 = vshll.u32 %v10097, 16
        %v10207 = vrot.slane %v10205, 4
        %v10208 = vor.u32 %v10204, %v10207
        %v10209 = vsel %vm1019, %v10199, %v10208
        %v10211 = vshrl.u32 %v10098, 16
        %v10213 = vrot.slane %v10211, 3
        %v10214 = vshll.u32 %v10098, 16
        %v10216 = vrot.slane %v10214, 4
        %v10217 = vor.u32 %v10213, %v10216
        %v10218 = vsel %vm1019, %v10208, %v10217
        %v10220 = vshrl.u32 %v10099, 16
        %v10222 = vrot.slane %v10220, 3
        %v10223 = vshll.u32 %v10099, 16
        %v10225 = vrot.slane %v10223, 4
        %v10226 = vor.u32 %v10222, %v10225
        %v10227 = vsel %vm1019, %v10217, %v10226
        %v10229 = vshrl.u32 %v10100, 16
        %v10231 = vrot.slane %v10229, 3
        %v10232 = vshll.u32 %v10100, 16
        %v10234 = vrot.slane %v10232, 4
        %v10235 = vor.u32 %v10231, %v10234
        %v10236 = vsel %vm1019, %v10226, %v10235
        %v10238 = vshrl.u32 %v10101, 16
        %v10240 = vrot.slane %v10238, 3
        %v10241 = vshll.u32 %v10101, 16
        %v10243 = vrot.slane %v10241, 4
        %v10244 = vor.u32 %v10240, %v10243
        %v10245 = vsel %vm1019, %v10235, %v10244
        %v10247 = vshrl.u32 %v10102, 16
        %v10249 = vrot.slane %v10247, 3
        %v10250 = vshll.u32 %v10102, 16
        %v10252 = vrot.slane %v10250, 4
        %v10253 = vor.u32 %v10249, %v10252
        %v10254 = vsel %vm1019, %v10244, %v10253
        %v10256 = vshrl.u32 %v10103, 16
        %v10258 = vrot.slane %v10256, 3
        %v10259 = vshll.u32 %v10103, 16
        %v10261 = vrot.slane %v10259, 4
        %v10262 = vor.u32 %v10258, %v10261
        %v10263 = vsel %vm1019, %v10253, %v10262
        %v10265 = vshrl.u32 %v10104, 16
        %v10267 = vrot.slane %v10265, 3
        %v10268 = vshll.u32 %v10104, 16
        %v10270 = vrot.slane %v10268, 4
        %v10271 = vor.u32 %v10267, %v10270
        %v10272 = vsel %vm1019, %v10262, %v10271
        %v10274 = vshrl.u32 %v10105, 16
        %v10276 = vrot.slane %v10274, 3
        %v10277 = vshll.u32 %v10105, 16
        %v10279 = vrot.slane %v10277, 4
        %v10280 = vor.u32 %v10276, %v10279
        %v10281 = vsel %vm1019, %v10271, %v10280
        %v10283 = vshrl.u32 %v10106, 16
        %v10285 = vrot.slane %v10283, 3
        %v10286 = vshll.u32 %v10106, 16
        %v10288 = vrot.slane %v10286, 4
        %v10289 = vor.u32 %v10285, %v10288
        %v10290 = vsel %vm1019, %v10280, %v10289
        %v10292 = vshrl.u32 %v10107, 16
        %v10294 = vrot.slane %v10292, 3
        %v10295 = vshll.u32 %v10107, 16
        %v10297 = vrot.slane %v10295, 4
        %v10298 = vor.u32 %v10294, %v10297
        %v10299 = vsel %vm1019, %v10289, %v10298
        %v10301 = vshrl.u32 %v10108, 16
        %v10303 = vrot.slane %v10301, 3
        %v10304 = vshll.u32 %v10108, 16
        %v10306 = vrot.slane %v10304, 4
        %v10307 = vor.u32 %v10303, %v10306
        %v10308 = vsel %vm1019, %v10298, %v10307
        %v10310 = vshrl.u32 %v10109, 16
        %v10312 = vrot.slane %v10310, 3
        %v10313 = vshll.u32 %v10109, 16
        %v10315 = vrot.slane %v10313, 4
        %v10316 = vor.u32 %v10312, %v10315
        %v10317 = vsel %vm1019, %v10307, %v10316
        %v10319 = vshrl.u32 %v10110, 16
        %v10321 = vrot.slane %v10319, 3
        %v10322 = vshll.u32 %v10110, 16
        %v10324 = vrot.slane %v10322, 4
        %v10325 = vor.u32 %v10321, %v10324
        %v10326 = vsel %vm1019, %v10316, %v10325
        %v10328 = vshrl.u32 %v10111, 16
        %v10330 = vrot.slane %v10328, 3
        %v10331 = vshll.u32 %v10111, 16
        %v10333 = vrot.slane %v10331, 4
        %v10334 = vor.u32 %v10330, %v10333
        %v10335 = vsel %vm1019, %v10325, %v10334
        %v10376 = vunpack.c.l.b16 %v9973
        %v10377 = vunpack.c.l.b16 %v9974
        %v10378 = vunpack.c.l.b16 %v9975
        %v10379 = vunpack.c.l.b16 %v9976
        %v10380 = vunpack.c.l.b16 %v9977
        %v10381 = vunpack.c.l.b16 %v9978
        %v10382 = vunpack.c.l.b16 %v9979
        %v10383 = vunpack.c.l.b16 %v9980
        %v10384 = vunpack.c.l.b16 %v9981
        %v10385 = vunpack.c.l.b16 %v9982
        %v10386 = vunpack.c.l.b16 %v9983
        %v10387 = vunpack.c.l.b16 %v9984
        %v10388 = vunpack.c.l.b16 %v9985
        %v10389 = vunpack.c.l.b16 %v9986
        %v10390 = vunpack.c.l.b16 %v9987
        %v10391 = vunpack.c.l.b16 %v9988
        %v10392 = vpack.c.b16 %v10377, %v10376
        %v10393 = vpack.c.b16 %v10379, %v10378
        %v10394 = vpack.c.b16 %v10381, %v10380
        %v10395 = vpack.c.b16 %v10383, %v10382
        %v10396 = vpack.c.b16 %v10385, %v10384
        %v10397 = vpack.c.b16 %v10387, %v10386
        %v10398 = vpack.c.b16 %v10389, %v10388
        %v10399 = vpack.c.b16 %v10391, %v10390
        %10408 = vmatprep.subr.bf16.mxu0 0
        %10409 = vmatpush1.bf16.msra.mxu0 %v10399
        %10410 = vmatprep.subr.bf16.mxu0 0
        %10411 = vmatpush1.bf16.msra.mxu0 %v10398
        %10412 = vmatprep.subr.bf16.mxu0 0
        %10413 = vmatpush1.bf16.msra.mxu0 %v10397
        %10414 = vmatprep.subr.bf16.mxu0 0
        %10415 = vmatpush1.bf16.msra.mxu0 %v10396
        %10416 = vmatprep.subr.bf16.mxu0 0
        %10417 = vmatpush1.bf16.msra.mxu0 %v10395
        %10418 = vmatprep.subr.bf16.mxu0 0
        %10419 = vmatpush1.bf16.msra.mxu0 %v10394
        %10420 = vmatprep.subr.bf16.mxu0 0
        %10421 = vmatpush1.bf16.msra.mxu0 %v10393
        %10422 = vmatprep.subr.bf16.mxu0 0
        %10423 = vmatpush1.bf16.msra.mxu0 %v10392
        %10424 = vmatprep.subr.bf16.mxu0 0
        %10425 = vmatpush2.bf16.msra.mxu0 0
        %10426 = vmatprep.subr.bf16.mxu0 0
        %10427 = vmatpush2.bf16.msra.mxu0 0
        %10428 = vmatprep.subr.bf16.mxu0 0
        %10429 = vmatpush2.bf16.msra.mxu0 0
        %10430 = vmatprep.subr.bf16.mxu0 0
        %10431 = vmatpush2.bf16.msra.mxu0 0
        %10432 = vmatprep.subr.bf16.mxu0 0
        %10433 = vmatpush2.bf16.msra.mxu0 0
        %10434 = vmatprep.subr.bf16.mxu0 0
        %10435 = vmatpush2.bf16.msra.mxu0 0
        %10436 = vmatprep.subr.bf16.mxu0 0
        %10437 = vmatpush2.bf16.msra.mxu0 0
        %10438 = vmatprep.subr.bf16.mxu0 0
        %10439 = vmatpush2.bf16.msra.mxu0 0
        %10440 = vmatprep.mubr.bf16.mxu0 0
        %10441 = vmatmul.mubr.bf16.gmra.mxu0 %v10128
        %v10442 = vpop.f32.mrf.mxu0
        %v10443 = vadd.f32 0.0, %v10442
        %v10444 = vpop.f32.mrf.mxu0
        %v10445 = vpop.f32.mrf.mxu0
        %v10446 = vadd.f32 0.0, %v10445
        %v10447 = vpop.f32.mrf.mxu0
        %10448 = vmatprep.mubr.bf16.mxu0 0
        %10449 = vmatmul.mubr.bf16.gmra.mxu0 %v10137
        %v10450 = vpop.f32.mrf.mxu0
        %v10451 = vpop.f32.mrf.mxu0
        %v10452 = vpop.f32.mrf.mxu0
        %v10453 = vadd.f32 0.0, %v10452
        %v10454 = vpop.f32.mrf.mxu0
        %10455 = vmatprep.mubr.bf16.mxu0 0
        %10456 = vmatmul.mubr.bf16.gmra.mxu0 %v10146
        %v10457 = vpop.f32.mrf.mxu0
        %v10458 = vadd.f32 0.0, %v10457
        %v10459 = vpop.f32.mrf.mxu0
        %v10460 = vpop.f32.mrf.mxu0
        %v10461 = vpop.f32.mrf.mxu0
        %10462 = vmatprep.mubr.bf16.mxu0 0
        %10463 = vmatmul.mubr.bf16.gmra.mxu0 %v10155
        %v10464 = vpop.f32.mrf.mxu0
        %v10465 = vadd.f32 0.0, %v10464
        %v10466 = vpop.f32.mrf.mxu0
        %v10467 = vpop.f32.mrf.mxu0
        %v10468 = vadd.f32 0.0, %v10467
        %v10469 = vpop.f32.mrf.mxu0
        %10470 = vmatprep.mubr.bf16.mxu0 0
        %10471 = vmatmul.mubr.bf16.gmra.mxu0 %v10164
        %v10472 = vpop.f32.mrf.mxu0
        %v10473 = vpop.f32.mrf.mxu0
        %v10474 = vpop.f32.mrf.mxu0
        %v10475 = vadd.f32 0.0, %v10474
        %v10476 = vpop.f32.mrf.mxu0
        %10477 = vmatprep.mubr.bf16.mxu0 0
        %10478 = vmatmul.mubr.bf16.gmra.mxu0 %v10173
        %v10479 = vpop.f32.mrf.mxu0
        %v10480 = vadd.f32 0.0, %v10479
        %v10481 = vpop.f32.mrf.mxu0
        %v10482 = vpop.f32.mrf.mxu0
        %v10483 = vpop.f32.mrf.mxu0
        %10484 = vmatprep.mubr.bf16.mxu0 0
        %10485 = vmatmul.mubr.bf16.gmra.mxu0 %v10182
        %v10486 = vpop.f32.mrf.mxu0
        %v10487 = vadd.f32 0.0, %v10486
        %v10488 = vpop.f32.mrf.mxu0
        %v10489 = vpop.f32.mrf.mxu0
        %v10490 = vadd.f32 0.0, %v10489
        %v10491 = vpop.f32.mrf.mxu0
        %10492 = vmatprep.mubr.bf16.mxu0 0
        %10493 = vmatmul.mubr.bf16.gmra.mxu0 %v10191
        %v10494 = vpop.f32.mrf.mxu0
        %v10495 = vpop.f32.mrf.mxu0
        %v10496 = vpop.f32.mrf.mxu0
        %v10497 = vadd.f32 0.0, %v10496
        %v10498 = vpop.f32.mrf.mxu0
        %10499 = vmatprep.mubr.bf16.mxu0 0
        %10500 = vmatmul.mubr.bf16.gmra.mxu0 %v10200
        %v10501 = vpop.f32.mrf.mxu0
        %v10502 = vadd.f32 0.0, %v10501
        %v10503 = vpop.f32.mrf.mxu0
        %v10504 = vpop.f32.mrf.mxu0
        %v10505 = vpop.f32.mrf.mxu0
        %10506 = vmatprep.mubr.bf16.mxu0 0
        %10507 = vmatmul.mubr.bf16.gmra.mxu0 %v10209
        %v10508 = vpop.f32.mrf.mxu0
        %v10509 = vadd.f32 0.0, %v10508
        %v10510 = vpop.f32.mrf.mxu0
        %v10511 = vpop.f32.mrf.mxu0
        %v10512 = vadd.f32 0.0, %v10511
        %v10513 = vpop.f32.mrf.mxu0
        %10514 = vmatprep.mubr.bf16.mxu0 0
        %10515 = vmatmul.mubr.bf16.gmra.mxu0 %v10218
        %v10516 = vpop.f32.mrf.mxu0
        %v10517 = vpop.f32.mrf.mxu0
        %v10518 = vpop.f32.mrf.mxu0
        %v10519 = vadd.f32 0.0, %v10518
        %v10520 = vpop.f32.mrf.mxu0
        %10521 = vmatprep.mubr.bf16.mxu0 0
        %10522 = vmatmul.mubr.bf16.gmra.mxu0 %v10227
        %v10523 = vpop.f32.mrf.mxu0
        %v10524 = vadd.f32 0.0, %v10523
        %v10525 = vpop.f32.mrf.mxu0
        %v10526 = vpop.f32.mrf.mxu0
        %v10527 = vpop.f32.mrf.mxu0
        %10528 = vmatprep.mubr.bf16.mxu0 0
        %10529 = vmatmul.mubr.bf16.gmra.mxu0 %v10236
        %v10530 = vpop.f32.mrf.mxu0
        %v10531 = vadd.f32 0.0, %v10530
        %v10532 = vpop.f32.mrf.mxu0
        %v10533 = vpop.f32.mrf.mxu0
        %v10534 = vadd.f32 0.0, %v10533
        %v10535 = vpop.f32.mrf.mxu0
        %10536 = vmatprep.mubr.bf16.mxu0 0
        %10537 = vmatmul.mubr.bf16.gmra.mxu0 %v10245
        %v10538 = vpop.f32.mrf.mxu0
        %v10539 = vpop.f32.mrf.mxu0
        %v10540 = vpop.f32.mrf.mxu0
        %v10541 = vadd.f32 0.0, %v10540
        %v10542 = vpop.f32.mrf.mxu0
        %10543 = vmatprep.mubr.bf16.mxu0 0
        %10544 = vmatmul.mubr.bf16.gmra.mxu0 %v10254
        %v10545 = vpop.f32.mrf.mxu0
        %v10546 = vadd.f32 0.0, %v10545
        %v10547 = vpop.f32.mrf.mxu0
        %v10548 = vpop.f32.mrf.mxu0
        %v10549 = vpop.f32.mrf.mxu0
        %10550 = vmatprep.mubr.bf16.mxu0 0
        %10551 = vmatmul.mubr.bf16.gmra.mxu0 %v10263
        %v10552 = vpop.f32.mrf.mxu0
        %v10553 = vadd.f32 0.0, %v10552
        %v10554 = vpop.f32.mrf.mxu0
        %v10555 = vpop.f32.mrf.mxu0
        %v10556 = vadd.f32 0.0, %v10555
        %v10557 = vpop.f32.mrf.mxu0
        %10558 = vmatprep.mubr.bf16.mxu0 0
        %10559 = vmatmul.mubr.bf16.gmra.mxu0 %v10272
        %v10560 = vpop.f32.mrf.mxu0
        %v10561 = vpop.f32.mrf.mxu0
        %v10562 = vpop.f32.mrf.mxu0
        %v10563 = vadd.f32 0.0, %v10562
        %v10564 = vpop.f32.mrf.mxu0
        %10565 = vmatprep.mubr.bf16.mxu0 0
        %10566 = vmatmul.mubr.bf16.gmra.mxu0 %v10281
        %v10567 = vpop.f32.mrf.mxu0
        %v10568 = vadd.f32 0.0, %v10567
        %v10569 = vpop.f32.mrf.mxu0
        %v10570 = vpop.f32.mrf.mxu0
        %v10571 = vpop.f32.mrf.mxu0
        %10572 = vmatprep.mubr.bf16.mxu0 0
        %10573 = vmatmul.mubr.bf16.gmra.mxu0 %v10290
        %v10574 = vpop.f32.mrf.mxu0
        %v10575 = vadd.f32 0.0, %v10574
        %v10576 = vpop.f32.mrf.mxu0
        %v10577 = vpop.f32.mrf.mxu0
        %v10578 = vadd.f32 0.0, %v10577
        %v10579 = vpop.f32.mrf.mxu0
        %10580 = vmatprep.mubr.bf16.mxu0 0
        %10581 = vmatmul.mubr.bf16.gmra.mxu0 %v10299
        %v10582 = vpop.f32.mrf.mxu0
        %v10583 = vpop.f32.mrf.mxu0
        %v10584 = vpop.f32.mrf.mxu0
        %v10585 = vadd.f32 0.0, %v10584
        %v10586 = vpop.f32.mrf.mxu0
        %10587 = vmatprep.mubr.bf16.mxu0 0
        %10588 = vmatmul.mubr.bf16.gmra.mxu0 %v10308
        %v10589 = vpop.f32.mrf.mxu0
        %v10590 = vadd.f32 0.0, %v10589
        %v10591 = vpop.f32.mrf.mxu0
        %v10592 = vpop.f32.mrf.mxu0
        %v10593 = vpop.f32.mrf.mxu0
        %10594 = vmatprep.mubr.bf16.mxu0 0
        %10595 = vmatmul.mubr.bf16.gmra.mxu0 %v10317
        %v10596 = vpop.f32.mrf.mxu0
        %v10597 = vadd.f32 0.0, %v10596
        %v10598 = vpop.f32.mrf.mxu0
        %v10599 = vpop.f32.mrf.mxu0
        %v10600 = vadd.f32 0.0, %v10599
        %v10601 = vpop.f32.mrf.mxu0
        %10602 = vmatprep.mubr.bf16.mxu0 0
        %10603 = vmatmul.mubr.bf16.gmra.mxu0 %v10326
        %v10604 = vpop.f32.mrf.mxu0
        %v10605 = vpop.f32.mrf.mxu0
        %v10606 = vpop.f32.mrf.mxu0
        %v10607 = vadd.f32 0.0, %v10606
        %v10608 = vpop.f32.mrf.mxu0
        %10609 = vmatprep.mubr.bf16.mxu0 0
        %10610 = vmatmul.mubr.bf16.gmra.mxu0 %v10335
        %v10611 = vpop.f32.mrf.mxu0
        %v10612 = vadd.f32 0.0, %v10611
        %v10613 = vpop.f32.mrf.mxu0
        %v10614 = vpop.f32.mrf.mxu0
        %v10615 = vpop.f32.mrf.mxu0
        %10616 = vdwg.mxu0
        %v10617 = vadd.f32 %v9891, %v10443
        %v10618 = vadd.f32 %v9892, %v10446
        %v10619 = vadd.f32 %v9893, %v10453
        %v10620 = vadd.f32 %v9894, %v10458
        %v10621 = vadd.f32 %v9895, %v10465
        %v10622 = vadd.f32 %v9896, %v10468
        %v10623 = vadd.f32 %v9897, %v10475
        %v10624 = vadd.f32 %v9898, %v10480
        %v10625 = vadd.f32 %v9899, %v10487
        %v10626 = vadd.f32 %v9900, %v10490
        %v10627 = vadd.f32 %v9901, %v10497
        %v10628 = vadd.f32 %v9902, %v10502
        %v10629 = vadd.f32 %v9903, %v10509
        %v10630 = vadd.f32 %v9904, %v10512
        %v10631 = vadd.f32 %v9905, %v10519
        %v10632 = vadd.f32 %v9906, %v10524
        %v10633 = vadd.f32 %v9907, %v10531
        %v10634 = vadd.f32 %v9908, %v10534
        %v10635 = vadd.f32 %v9909, %v10541
        %v10636 = vadd.f32 %v9910, %v10546
        %v10637 = vadd.f32 %v9911, %v10553
        %v10638 = vadd.f32 %v9912, %v10556
        %v10639 = vadd.f32 %v9913, %v10563
        %v10640 = vadd.f32 %v9914, %v10568
        %v10641 = vadd.f32 %v9915, %v10575
        %v10642 = vadd.f32 %v9916, %v10578
        %v10643 = vadd.f32 %v9917, %v10585
        %v10644 = vadd.f32 %v9918, %v10590
        %v10645 = vadd.f32 %v9919, %v10597
        %v10646 = vadd.f32 %v9920, %v10600
        %v10647 = vadd.f32 %v9921, %v10607
        %v10648 = vadd.f32 %v9922, %v10612
        %s10649 = scalar_lea.vmem [#allocation4], 448
        %v10650 = vld [vmem:[%s10649] sm:$0xf]
        %v10651 = vld [vmem:[%s10649 + $0x4] sm:$0xf]
        %v10652 = vld [vmem:[%s10649 + $0x8] sm:$0xf]
        %v10653 = vld [vmem:[%s10649 + $0xc] sm:$0xf]
        %v10654 = vld [vmem:[%s10649 + $0x10] sm:$0xf]
        %v10655 = vld [vmem:[%s10649 + $0x14] sm:$0xf]
        %v10656 = vld [vmem:[%s10649 + $0x18] sm:$0xf]
        %v10657 = vld [vmem:[%s10649 + $0x1c] sm:$0xf]
        %v10658 = vld [vmem:[%s10649 + $0x20] sm:$0xf]
        %v10659 = vld [vmem:[%s10649 + $0x24] sm:$0xf]
        %v10660 = vld [vmem:[%s10649 + $0x28] sm:$0xf]
        %v10661 = vld [vmem:[%s10649 + $0x2c] sm:$0xf]
        %v10662 = vld [vmem:[%s10649 + $0x30] sm:$0xf]
        %v10663 = vld [vmem:[%s10649 + $0x34] sm:$0xf]
        %v10664 = vld [vmem:[%s10649 + $0x38] sm:$0xf]
        %v10665 = vld [vmem:[%s10649 + $0x3c] sm:$0xf]
        %v10666 = vpack.c.b16 %v10040, %v10039
        %v10667 = vpack.c.b16 %v10042, %v10041
        %v10668 = vpack.c.b16 %v10044, %v10043
        %v10669 = vpack.c.b16 %v10046, %v10045
        %v10670 = vpack.c.b16 %v10048, %v10047
        %v10671 = vpack.c.b16 %v10050, %v10049
        %v10672 = vpack.c.b16 %v10052, %v10051
        %v10673 = vpack.c.b16 %v10054, %v10053
        %v10674 = vpack.c.b16 %v10056, %v10055
        %v10675 = vpack.c.b16 %v10058, %v10057
        %v10676 = vpack.c.b16 %v10060, %v10059
        %v10677 = vpack.c.b16 %v10062, %v10061
        %v10678 = vpack.c.b16 %v10064, %v10063
        %v10679 = vpack.c.b16 %v10066, %v10065
        %v10680 = vpack.c.b16 %v10068, %v10067
        %v10681 = vpack.c.b16 %v10070, %v10069
        %v10682 = vpack.c.b16 %v10072, %v10071
        %v10683 = vpack.c.b16 %v10074, %v10073
        %v10684 = vpack.c.b16 %v10076, %v10075
        %v10685 = vpack.c.b16 %v10078, %v10077
        %v10686 = vpack.c.b16 %v10080, %v10079
        %v10687 = vpack.c.b16 %v10082, %v10081
        %v10688 = vpack.c.b16 %v10084, %v10083
        %v10689 = vpack.c.b16 %v10086, %v10085
        %v10730 = vunpack.c.l.b16 %v10650
        %v10731 = vunpack.c.l.b16 %v10651
        %v10732 = vunpack.c.l.b16 %v10652
        %v10733 = vunpack.c.l.b16 %v10653
        %v10734 = vunpack.c.l.b16 %v10654
        %v10735 = vunpack.c.l.b16 %v10655
        %v10736 = vunpack.c.l.b16 %v10656
        %v10737 = vunpack.c.l.b16 %v10657
        %v10738 = vunpack.c.l.b16 %v10658
        %v10739 = vunpack.c.l.b16 %v10659
        %v10740 = vunpack.c.l.b16 %v10660
        %v10741 = vunpack.c.l.b16 %v10661
        %v10742 = vunpack.c.l.b16 %v10662
        %v10743 = vunpack.c.l.b16 %v10663
        %v10744 = vunpack.c.l.b16 %v10664
        %v10745 = vunpack.c.l.b16 %v10665
        %v10746 = vpack.c.b16 %v10731, %v10730
        %v10747 = vpack.c.b16 %v10733, %v10732
        %v10748 = vpack.c.b16 %v10735, %v10734
        %v10749 = vpack.c.b16 %v10737, %v10736
        %v10750 = vpack.c.b16 %v10739, %v10738
        %v10751 = vpack.c.b16 %v10741, %v10740
        %v10752 = vpack.c.b16 %v10743, %v10742
        %v10753 = vpack.c.b16 %v10745, %v10744
        %10762 = vmatprep.subr.bf16.mxu0 0
        %10763 = vmatpush1.bf16.msra.mxu0 %v10753
        %10764 = vmatprep.subr.bf16.mxu0 0
        %10765 = vmatpush1.bf16.msra.mxu0 %v10752
        %10766 = vmatprep.subr.bf16.mxu0 0
        %10767 = vmatpush1.bf16.msra.mxu0 %v10751
        %10768 = vmatprep.subr.bf16.mxu0 0
        %10769 = vmatpush1.bf16.msra.mxu0 %v10750
        %10770 = vmatprep.subr.bf16.mxu0 0
        %10771 = vmatpush1.bf16.msra.mxu0 %v10749
        %10772 = vmatprep.subr.bf16.mxu0 0
        %10773 = vmatpush1.bf16.msra.mxu0 %v10748
        %10774 = vmatprep.subr.bf16.mxu0 0
        %10775 = vmatpush1.bf16.msra.mxu0 %v10747
        %10776 = vmatprep.subr.bf16.mxu0 0
        %10777 = vmatpush1.bf16.msra.mxu0 %v10746
        %10778 = vmatprep.subr.bf16.mxu0 0
        %10779 = vmatpush2.bf16.msra.mxu0 0
        %10780 = vmatprep.subr.bf16.mxu0 0
        %10781 = vmatpush2.bf16.msra.mxu0 0
        %10782 = vmatprep.subr.bf16.mxu0 0
        %10783 = vmatpush2.bf16.msra.mxu0 0
        %10784 = vmatprep.subr.bf16.mxu0 0
        %10785 = vmatpush2.bf16.msra.mxu0 0
        %10786 = vmatprep.subr.bf16.mxu0 0
        %10787 = vmatpush2.bf16.msra.mxu0 0
        %10788 = vmatprep.subr.bf16.mxu0 0
        %10789 = vmatpush2.bf16.msra.mxu0 0
        %10790 = vmatprep.subr.bf16.mxu0 0
        %10791 = vmatpush2.bf16.msra.mxu0 0
        %10792 = vmatprep.subr.bf16.mxu0 0
        %10793 = vmatpush2.bf16.msra.mxu0 0
        %10794 = vmatprep.mubr.bf16.mxu0 0
        %10795 = vmatmul.mubr.bf16.gmra.mxu0 %v10666
        %v10796 = vpop.f32.mrf.mxu0
        %v10797 = vadd.f32 0.0, %v10796
        %v10798 = vpop.f32.mrf.mxu0
        %v10799 = vpop.f32.mrf.mxu0
        %v10800 = vadd.f32 0.0, %v10799
        %v10801 = vpop.f32.mrf.mxu0
        %10802 = vmatprep.mubr.bf16.mxu0 0
        %10803 = vmatmul.mubr.bf16.gmra.mxu0 %v10667
        %v10804 = vpop.f32.mrf.mxu0
        %v10805 = vpop.f32.mrf.mxu0
        %v10806 = vpop.f32.mrf.mxu0
        %v10807 = vadd.f32 0.0, %v10806
        %v10808 = vpop.f32.mrf.mxu0
        %10809 = vmatprep.mubr.bf16.mxu0 0
        %10810 = vmatmul.mubr.bf16.gmra.mxu0 %v10668
        %v10811 = vpop.f32.mrf.mxu0
        %v10812 = vadd.f32 0.0, %v10811
        %v10813 = vpop.f32.mrf.mxu0
        %v10814 = vpop.f32.mrf.mxu0
        %v10815 = vpop.f32.mrf.mxu0
        %10816 = vmatprep.mubr.bf16.mxu0 0
        %10817 = vmatmul.mubr.bf16.gmra.mxu0 %v10669
        %v10818 = vpop.f32.mrf.mxu0
        %v10819 = vadd.f32 0.0, %v10818
        %v10820 = vpop.f32.mrf.mxu0
        %v10821 = vpop.f32.mrf.mxu0
        %v10822 = vadd.f32 0.0, %v10821
        %v10823 = vpop.f32.mrf.mxu0
        %10824 = vmatprep.mubr.bf16.mxu0 0
        %10825 = vmatmul.mubr.bf16.gmra.mxu0 %v10670
        %v10826 = vpop.f32.mrf.mxu0
        %v10827 = vpop.f32.mrf.mxu0
        %v10828 = vpop.f32.mrf.mxu0
        %v10829 = vadd.f32 0.0, %v10828
        %v10830 = vpop.f32.mrf.mxu0
        %10831 = vmatprep.mubr.bf16.mxu0 0
        %10832 = vmatmul.mubr.bf16.gmra.mxu0 %v10671
        %v10833 = vpop.f32.mrf.mxu0
        %v10834 = vadd.f32 0.0, %v10833
        %v10835 = vpop.f32.mrf.mxu0
        %v10836 = vpop.f32.mrf.mxu0
        %v10837 = vpop.f32.mrf.mxu0
        %10838 = vmatprep.mubr.bf16.mxu0 0
        %10839 = vmatmul.mubr.bf16.gmra.mxu0 %v10672
        %v10840 = vpop.f32.mrf.mxu0
        %v10841 = vadd.f32 0.0, %v10840
        %v10842 = vpop.f32.mrf.mxu0
        %v10843 = vpop.f32.mrf.mxu0
        %v10844 = vadd.f32 0.0, %v10843
        %v10845 = vpop.f32.mrf.mxu0
        %10846 = vmatprep.mubr.bf16.mxu0 0
        %10847 = vmatmul.mubr.bf16.gmra.mxu0 %v10673
        %v10848 = vpop.f32.mrf.mxu0
        %v10849 = vpop.f32.mrf.mxu0
        %v10850 = vpop.f32.mrf.mxu0
        %v10851 = vadd.f32 0.0, %v10850
        %v10852 = vpop.f32.mrf.mxu0
        %10853 = vmatprep.mubr.bf16.mxu0 0
        %10854 = vmatmul.mubr.bf16.gmra.mxu0 %v10674
        %v10855 = vpop.f32.mrf.mxu0
        %v10856 = vadd.f32 0.0, %v10855
        %v10857 = vpop.f32.mrf.mxu0
        %v10858 = vpop.f32.mrf.mxu0
        %v10859 = vpop.f32.mrf.mxu0
        %10860 = vmatprep.mubr.bf16.mxu0 0
        %10861 = vmatmul.mubr.bf16.gmra.mxu0 %v10675
        %v10862 = vpop.f32.mrf.mxu0
        %v10863 = vadd.f32 0.0, %v10862
        %v10864 = vpop.f32.mrf.mxu0
        %v10865 = vpop.f32.mrf.mxu0
        %v10866 = vadd.f32 0.0, %v10865
        %v10867 = vpop.f32.mrf.mxu0
        %10868 = vmatprep.mubr.bf16.mxu0 0
        %10869 = vmatmul.mubr.bf16.gmra.mxu0 %v10676
        %v10870 = vpop.f32.mrf.mxu0
        %v10871 = vpop.f32.mrf.mxu0
        %v10872 = vpop.f32.mrf.mxu0
        %v10873 = vadd.f32 0.0, %v10872
        %v10874 = vpop.f32.mrf.mxu0
        %10875 = vmatprep.mubr.bf16.mxu0 0
        %10876 = vmatmul.mubr.bf16.gmra.mxu0 %v10677
        %v10877 = vpop.f32.mrf.mxu0
        %v10878 = vadd.f32 0.0, %v10877
        %v10879 = vpop.f32.mrf.mxu0
        %v10880 = vpop.f32.mrf.mxu0
        %v10881 = vpop.f32.mrf.mxu0
        %10882 = vmatprep.mubr.bf16.mxu0 0
        %10883 = vmatmul.mubr.bf16.gmra.mxu0 %v10678
        %v10884 = vpop.f32.mrf.mxu0
        %v10885 = vadd.f32 0.0, %v10884
        %v10886 = vpop.f32.mrf.mxu0
        %v10887 = vpop.f32.mrf.mxu0
        %v10888 = vadd.f32 0.0, %v10887
        %v10889 = vpop.f32.mrf.mxu0
        %10890 = vmatprep.mubr.bf16.mxu0 0
        %10891 = vmatmul.mubr.bf16.gmra.mxu0 %v10679
        %v10892 = vpop.f32.mrf.mxu0
        %v10893 = vpop.f32.mrf.mxu0
        %v10894 = vpop.f32.mrf.mxu0
        %v10895 = vadd.f32 0.0, %v10894
        %v10896 = vpop.f32.mrf.mxu0
        %10897 = vmatprep.mubr.bf16.mxu0 0
        %10898 = vmatmul.mubr.bf16.gmra.mxu0 %v10680
        %v10899 = vpop.f32.mrf.mxu0
        %v10900 = vadd.f32 0.0, %v10899
        %v10901 = vpop.f32.mrf.mxu0
        %v10902 = vpop.f32.mrf.mxu0
        %v10903 = vpop.f32.mrf.mxu0
        %10904 = vmatprep.mubr.bf16.mxu0 0
        %10905 = vmatmul.mubr.bf16.gmra.mxu0 %v10681
        %v10906 = vpop.f32.mrf.mxu0
        %v10907 = vadd.f32 0.0, %v10906
        %v10908 = vpop.f32.mrf.mxu0
        %v10909 = vpop.f32.mrf.mxu0
        %v10910 = vadd.f32 0.0, %v10909
        %v10911 = vpop.f32.mrf.mxu0
        %10912 = vmatprep.mubr.bf16.mxu0 0
        %10913 = vmatmul.mubr.bf16.gmra.mxu0 %v10682
        %v10914 = vpop.f32.mrf.mxu0
        %v10915 = vpop.f32.mrf.mxu0
        %v10916 = vpop.f32.mrf.mxu0
        %v10917 = vadd.f32 0.0, %v10916
        %v10918 = vpop.f32.mrf.mxu0
        %10919 = vmatprep.mubr.bf16.mxu0 0
        %10920 = vmatmul.mubr.bf16.gmra.mxu0 %v10683
        %v10921 = vpop.f32.mrf.mxu0
        %v10922 = vadd.f32 0.0, %v10921
        %v10923 = vpop.f32.mrf.mxu0
        %v10924 = vpop.f32.mrf.mxu0
        %v10925 = vpop.f32.mrf.mxu0
        %10926 = vmatprep.mubr.bf16.mxu0 0
        %10927 = vmatmul.mubr.bf16.gmra.mxu0 %v10684
        %v10928 = vpop.f32.mrf.mxu0
        %v10929 = vadd.f32 0.0, %v10928
        %v10930 = vpop.f32.mrf.mxu0
        %v10931 = vpop.f32.mrf.mxu0
        %v10932 = vadd.f32 0.0, %v10931
        %v10933 = vpop.f32.mrf.mxu0
        %10934 = vmatprep.mubr.bf16.mxu0 0
        %10935 = vmatmul.mubr.bf16.gmra.mxu0 %v10685
        %v10936 = vpop.f32.mrf.mxu0
        %v10937 = vpop.f32.mrf.mxu0
        %v10938 = vpop.f32.mrf.mxu0
        %v10939 = vadd.f32 0.0, %v10938
        %v10940 = vpop.f32.mrf.mxu0
        %10941 = vmatprep.mubr.bf16.mxu0 0
        %10942 = vmatmul.mubr.bf16.gmra.mxu0 %v10686
        %v10943 = vpop.f32.mrf.mxu0
        %v10944 = vadd.f32 0.0, %v10943
        %v10945 = vpop.f32.mrf.mxu0
        %v10946 = vpop.f32.mrf.mxu0
        %v10947 = vpop.f32.mrf.mxu0
        %10948 = vmatprep.mubr.bf16.mxu0 0
        %10949 = vmatmul.mubr.bf16.gmra.mxu0 %v10687
        %v10950 = vpop.f32.mrf.mxu0
        %v10951 = vadd.f32 0.0, %v10950
        %v10952 = vpop.f32.mrf.mxu0
        %v10953 = vpop.f32.mrf.mxu0
        %v10954 = vadd.f32 0.0, %v10953
        %v10955 = vpop.f32.mrf.mxu0
        %10956 = vmatprep.mubr.bf16.mxu0 0
        %10957 = vmatmul.mubr.bf16.gmra.mxu0 %v10688
        %v10958 = vpop.f32.mrf.mxu0
        %v10959 = vpop.f32.mrf.mxu0
        %v10960 = vpop.f32.mrf.mxu0
        %v10961 = vadd.f32 0.0, %v10960
        %v10962 = vpop.f32.mrf.mxu0
        %10963 = vmatprep.mubr.bf16.mxu0 0
        %10964 = vmatmul.mubr.bf16.gmra.mxu0 %v10689
        %v10965 = vpop.f32.mrf.mxu0
        %v10966 = vadd.f32 0.0, %v10965
        %v10967 = vpop.f32.mrf.mxu0
        %v10968 = vpop.f32.mrf.mxu0
        %v10969 = vpop.f32.mrf.mxu0
        %10970 = vdwg.mxu0
        %v10971 = vadd.f32 %v10617, %v10797
        %v10972 = vadd.f32 %v10618, %v10800
        %v10973 = vadd.f32 %v10619, %v10807
        %v10974 = vadd.f32 %v10620, %v10812
        %v10975 = vadd.f32 %v10621, %v10819
        %v10976 = vadd.f32 %v10622, %v10822
        %v10977 = vadd.f32 %v10623, %v10829
        %v10978 = vadd.f32 %v10624, %v10834
        %v10979 = vadd.f32 %v10625, %v10841
        %v10980 = vadd.f32 %v10626, %v10844
        %v10981 = vadd.f32 %v10627, %v10851
        %v10982 = vadd.f32 %v10628, %v10856
        %v10983 = vadd.f32 %v10629, %v10863
        %v10984 = vadd.f32 %v10630, %v10866
        %v10985 = vadd.f32 %v10631, %v10873
        %v10986 = vadd.f32 %v10632, %v10878
        %v10987 = vadd.f32 %v10633, %v10885
        %v10988 = vadd.f32 %v10634, %v10888
        %v10989 = vadd.f32 %v10635, %v10895
        %v10990 = vadd.f32 %v10636, %v10900
        %v10991 = vadd.f32 %v10637, %v10907
        %v10992 = vadd.f32 %v10638, %v10910
        %v10993 = vadd.f32 %v10639, %v10917
        %v10994 = vadd.f32 %v10640, %v10922
        %v10995 = vadd.f32 %v10641, %v10929
        %v10996 = vadd.f32 %v10642, %v10932
        %v10997 = vadd.f32 %v10643, %v10939
        %v10998 = vadd.f32 %v10644, %v10944
        %v10999 = vadd.f32 %v10645, %v10951
        %v11000 = vadd.f32 %v10646, %v10954
        %v11001 = vadd.f32 %v10647, %v10961
        %v11002 = vadd.f32 %v10648, %v10966
        %v11003 = vld [vmem:[#allocation3 + $0x1c] sm:$0xf]
        %v11004 = vld [vmem:[#allocation3 + $0x20] sm:$0xf]
        %v11005 = vld [vmem:[#allocation3 + $0x24] sm:$0xf]
        %v11006 = vld [vmem:[#allocation3 + $0x28] sm:$0xf]
        %v11007 = vld [vmem:[#allocation3 + $0x2c] sm:$0xf]
        %v11008 = vld [vmem:[#allocation3 + $0x30] sm:$0xf]
        %v11009 = vld [vmem:[#allocation3 + $0x34] sm:$0xf]
        %v11010 = vld [vmem:[#allocation3 + $0x38] sm:$0xf]
        %v11011 = vld [vmem:[#allocation3 + $0x3c] sm:$0xf]
        %v11012 = vld [vmem:[#allocation3 + $0x40] sm:$0xf]
        %v11013 = vld [vmem:[#allocation3 + $0x44] sm:$0xf]
        %v11014 = vld [vmem:[#allocation3 + $0x48] sm:$0xf]
        %v11015 = vld [vmem:[#allocation3 + $0x4c] sm:$0xf]
        %v11016 = vld [vmem:[#allocation3 + $0x50] sm:$0xf]
        %v11017 = vld [vmem:[#allocation3 + $0x54] sm:$0xf]
        %v11018 = vld [vmem:[#allocation3 + $0x58] sm:$0xf]
        %v11019 = vld [vmem:[#allocation3 + $0x5c] sm:$0xf]
        %v11020 = vld [vmem:[#allocation3 + $0x60] sm:$0xf]
        %v11021 = vld [vmem:[#allocation3 + $0x64] sm:$0xf]
        %v11022 = vld [vmem:[#allocation3 + $0x68] sm:$0xf]
        %v11023 = vld [vmem:[#allocation3 + $0x6c] sm:$0xf]
        %v11024 = vld [vmem:[#allocation3 + $0x70] sm:$0xf]
        %v11025 = vld [vmem:[#allocation3 + $0x74] sm:$0xf]
        %v11026 = vld [vmem:[#allocation3 + $0x78] sm:$0xf]
        %v11027 = vld [vmem:[#allocation3 + $0x7c] sm:$0xf]
        %v11028 = vld [vmem:[#allocation3 + $0x80] sm:$0xf]
        %v11029 = vld [vmem:[#allocation3 + $0x84] sm:$0xf]
        %v11030 = vld [vmem:[#allocation3 + $0x88] sm:$0xf]
        %v11031 = vld [vmem:[#allocation3 + $0x8c] sm:$0xf]
        %v11032 = vld [vmem:[#allocation3 + $0x90] sm:$0xf]
        %v11033 = vld [vmem:[#allocation3 + $0x94] sm:$0xf]
        %v11034 = vld [vmem:[#allocation3 + $0x98] sm:$0xf]
        %v11035 = vld [vmem:[#allocation3 + $0x9c] sm:$0xf]
        %v11036 = vld [vmem:[#allocation3 + $0xa0] sm:$0xf]
        %v11037 = vld [vmem:[#allocation3 + $0xa4] sm:$0xf]
        %v11038 = vld [vmem:[#allocation3 + $0xa8] sm:$0xf]
        %v11039 = vld [vmem:[#allocation3 + $0xac] sm:$0xf]
        %v11040 = vld [vmem:[#allocation3 + $0xb0] sm:$0xf]
        %v11041 = vld [vmem:[#allocation3 + $0xb4] sm:$0xf]
        %v11042 = vld [vmem:[#allocation3 + $0xb8] sm:$0xf]
        %v11043 = vld [vmem:[#allocation3 + $0xbc] sm:$0xf]
        %v11044 = vld [vmem:[#allocation3 + $0xc0] sm:$0xf]
        %v11045 = vld [vmem:[#allocation3 + $0xc4] sm:$0xf]
        %v11046 = vld [vmem:[#allocation3 + $0xc8] sm:$0xf]
        %v11047 = vld [vmem:[#allocation3 + $0xcc] sm:$0xf]
        %v11048 = vld [vmem:[#allocation3 + $0xd0] sm:$0xf]
        %v11049 = vld [vmem:[#allocation3 + $0xd4] sm:$0xf]
        %v11050 = vld [vmem:[#allocation3 + $0xd8] sm:$0xf]
        %v11051 = vld [vmem:[#allocation3 + $0xdc] sm:$0x1]
        %s11052 = scalar_lea.vmem [#allocation4], 512
        %v11053 = vld [vmem:[%s11052] sm:$0xf]
        %v11054 = vld [vmem:[%s11052 + $0x4] sm:$0xf]
        %v11055 = vld [vmem:[%s11052 + $0x8] sm:$0xf]
        %v11056 = vld [vmem:[%s11052 + $0xc] sm:$0xf]
        %v11057 = vld [vmem:[%s11052 + $0x10] sm:$0xf]
        %v11058 = vld [vmem:[%s11052 + $0x14] sm:$0xf]
        %v11059 = vld [vmem:[%s11052 + $0x18] sm:$0xf]
        %v11060 = vld [vmem:[%s11052 + $0x1c] sm:$0xf]
        %v11061 = vld [vmem:[%s11052 + $0x20] sm:$0xf]
        %v11062 = vld [vmem:[%s11052 + $0x24] sm:$0xf]
        %v11063 = vld [vmem:[%s11052 + $0x28] sm:$0xf]
        %v11064 = vld [vmem:[%s11052 + $0x2c] sm:$0xf]
        %v11065 = vld [vmem:[%s11052 + $0x30] sm:$0xf]
        %v11066 = vld [vmem:[%s11052 + $0x34] sm:$0xf]
        %v11067 = vld [vmem:[%s11052 + $0x38] sm:$0xf]
        %v11068 = vld [vmem:[%s11052 + $0x3c] sm:$0xf]
        %v11118 = vunpack.c.l.b16 %v11003
        %v11119 = vunpack.c.l.b16 %v11004
        %v11120 = vunpack.c.l.b16 %v11005
        %v11121 = vunpack.c.l.b16 %v11006
        %v11122 = vunpack.c.l.b16 %v11007
        %v11123 = vunpack.c.l.b16 %v11008
        %v11124 = vunpack.c.l.b16 %v11009
        %v11125 = vunpack.c.l.b16 %v11010
        %v11126 = vunpack.c.l.b16 %v11011
        %v11127 = vunpack.c.l.b16 %v11012
        %v11128 = vunpack.c.l.b16 %v11013
        %v11129 = vunpack.c.l.b16 %v11014
        %v11130 = vunpack.c.l.b16 %v11015
        %v11131 = vunpack.c.l.b16 %v11016
        %v11132 = vunpack.c.l.b16 %v11017
        %v11133 = vunpack.c.l.b16 %v11018
        %v11134 = vunpack.c.l.b16 %v11019
        %v11135 = vunpack.c.l.b16 %v11020
        %v11136 = vunpack.c.l.b16 %v11021
        %v11137 = vunpack.c.l.b16 %v11022
        %v11138 = vunpack.c.l.b16 %v11023
        %v11139 = vunpack.c.l.b16 %v11024
        %v11140 = vunpack.c.l.b16 %v11025
        %v11141 = vunpack.c.l.b16 %v11026
        %v11142 = vunpack.c.l.b16 %v11027
        %v11143 = vunpack.c.l.b16 %v11028
        %v11144 = vunpack.c.l.b16 %v11029
        %v11145 = vunpack.c.l.b16 %v11030
        %v11146 = vunpack.c.l.b16 %v11031
        %v11147 = vunpack.c.l.b16 %v11032
        %v11148 = vunpack.c.l.b16 %v11033
        %v11149 = vunpack.c.l.b16 %v11034
        %v11150 = vunpack.c.l.b16 %v11035
        %v11151 = vunpack.c.l.b16 %v11036
        %v11152 = vunpack.c.l.b16 %v11037
        %v11153 = vunpack.c.l.b16 %v11038
        %v11154 = vunpack.c.l.b16 %v11039
        %v11155 = vunpack.c.l.b16 %v11040
        %v11156 = vunpack.c.l.b16 %v11041
        %v11157 = vunpack.c.l.b16 %v11042
        %v11158 = vunpack.c.l.b16 %v11043
        %v11159 = vunpack.c.l.b16 %v11044
        %v11160 = vunpack.c.l.b16 %v11045
        %v11161 = vunpack.c.l.b16 %v11046
        %v11162 = vunpack.c.l.b16 %v11047
        %v11163 = vunpack.c.l.b16 %v11048
        %v11164 = vunpack.c.l.b16 %v11049
        %v11165 = vunpack.c.l.b16 %v11050
        %v11166 = vunpack.c.l.b16 %v11051
        %v11167 = vpack.c.b16 %v11119, %v11118
        %v11168 = vpack.c.b16 %v11121, %v11120
        %v11169 = vpack.c.b16 %v11123, %v11122
        %v11170 = vpack.c.b16 %v11125, %v11124
        %v11171 = vpack.c.b16 %v11127, %v11126
        %v11172 = vpack.c.b16 %v11129, %v11128
        %v11173 = vpack.c.b16 %v11131, %v11130
        %v11174 = vpack.c.b16 %v11133, %v11132
        %v11175 = vpack.c.b16 %v11135, %v11134
        %v11176 = vpack.c.b16 %v11137, %v11136
        %v11177 = vpack.c.b16 %v11139, %v11138
        %v11178 = vpack.c.b16 %v11141, %v11140
        %v11179 = vpack.c.b16 %v11143, %v11142
        %v11180 = vpack.c.b16 %v11145, %v11144
        %v11181 = vpack.c.b16 %v11147, %v11146
        %v11182 = vpack.c.b16 %v11149, %v11148
        %v11183 = vpack.c.b16 %v11151, %v11150
        %v11184 = vpack.c.b16 %v11153, %v11152
        %v11185 = vpack.c.b16 %v11155, %v11154
        %v11186 = vpack.c.b16 %v11157, %v11156
        %v11187 = vpack.c.b16 %v11159, %v11158
        %v11188 = vpack.c.b16 %v11161, %v11160
        %v11189 = vpack.c.b16 %v11163, %v11162
        %v11190 = vpack.c.b16 %v11165, %v11164
        %v11191 = vpack.c.b16 %v11166, %v11166
        %v11193 = vshrl.u32 %v11167, 16
        %v11195 = vshll.u32 %v11167, 16
        %v11197 = vrot.slane %v11195, 1
        %v11198 = vor.u32 %v11193, %v11197
        %v11200 = vshll.u32 %v11168, 16
        %v11202 = vrot.slane %v11200, 1
        %v11203 = vsel %vm1730, %v11198, %v11202
        %v11204 = vshrl.u32 %v11168, 16
        %v11206 = vor.u32 %v11204, %v11202
        %v11208 = vshll.u32 %v11169, 16
        %v11210 = vrot.slane %v11208, 1
        %v11211 = vsel %vm1730, %v11206, %v11210
        %v11212 = vshrl.u32 %v11169, 16
        %v11214 = vor.u32 %v11212, %v11210
        %v11216 = vshll.u32 %v11170, 16
        %v11218 = vrot.slane %v11216, 1
        %v11219 = vsel %vm1730, %v11214, %v11218
        %v11220 = vshrl.u32 %v11170, 16
        %v11222 = vor.u32 %v11220, %v11218
        %v11224 = vshll.u32 %v11171, 16
        %v11226 = vrot.slane %v11224, 1
        %v11227 = vsel %vm1730, %v11222, %v11226
        %v11228 = vshrl.u32 %v11171, 16
        %v11230 = vor.u32 %v11228, %v11226
        %v11232 = vshll.u32 %v11172, 16
        %v11234 = vrot.slane %v11232, 1
        %v11235 = vsel %vm1730, %v11230, %v11234
        %v11236 = vshrl.u32 %v11172, 16
        %v11238 = vor.u32 %v11236, %v11234
        %v11240 = vshll.u32 %v11173, 16
        %v11242 = vrot.slane %v11240, 1
        %v11243 = vsel %vm1730, %v11238, %v11242
        %v11244 = vshrl.u32 %v11173, 16
        %v11246 = vor.u32 %v11244, %v11242
        %v11248 = vshll.u32 %v11174, 16
        %v11250 = vrot.slane %v11248, 1
        %v11251 = vsel %vm1730, %v11246, %v11250
        %v11252 = vshrl.u32 %v11174, 16
        %v11254 = vor.u32 %v11252, %v11250
        %v11256 = vshll.u32 %v11175, 16
        %v11258 = vrot.slane %v11256, 1
        %v11259 = vsel %vm1730, %v11254, %v11258
        %v11260 = vshrl.u32 %v11175, 16
        %v11262 = vor.u32 %v11260, %v11258
        %v11264 = vshll.u32 %v11176, 16
        %v11266 = vrot.slane %v11264, 1
        %v11267 = vsel %vm1730, %v11262, %v11266
        %v11268 = vshrl.u32 %v11176, 16
        %v11270 = vor.u32 %v11268, %v11266
        %v11272 = vshll.u32 %v11177, 16
        %v11274 = vrot.slane %v11272, 1
        %v11275 = vsel %vm1730, %v11270, %v11274
        %v11276 = vshrl.u32 %v11177, 16
        %v11278 = vor.u32 %v11276, %v11274
        %v11280 = vshll.u32 %v11178, 16
        %v11282 = vrot.slane %v11280, 1
        %v11283 = vsel %vm1730, %v11278, %v11282
        %v11284 = vshrl.u32 %v11178, 16
        %v11286 = vor.u32 %v11284, %v11282
        %v11288 = vshll.u32 %v11179, 16
        %v11290 = vrot.slane %v11288, 1
        %v11291 = vsel %vm1730, %v11286, %v11290
        %v11292 = vshrl.u32 %v11179, 16
        %v11294 = vor.u32 %v11292, %v11290
        %v11296 = vshll.u32 %v11180, 16
        %v11298 = vrot.slane %v11296, 1
        %v11299 = vsel %vm1730, %v11294, %v11298
        %v11300 = vshrl.u32 %v11180, 16
        %v11302 = vor.u32 %v11300, %v11298
        %v11304 = vshll.u32 %v11181, 16
        %v11306 = vrot.slane %v11304, 1
        %v11307 = vsel %vm1730, %v11302, %v11306
        %v11308 = vshrl.u32 %v11181, 16
        %v11310 = vor.u32 %v11308, %v11306
        %v11312 = vshll.u32 %v11182, 16
        %v11314 = vrot.slane %v11312, 1
        %v11315 = vsel %vm1730, %v11310, %v11314
        %v11316 = vshrl.u32 %v11182, 16
        %v11318 = vor.u32 %v11316, %v11314
        %v11320 = vshll.u32 %v11183, 16
        %v11322 = vrot.slane %v11320, 1
        %v11323 = vsel %vm1730, %v11318, %v11322
        %v11324 = vshrl.u32 %v11183, 16
        %v11326 = vor.u32 %v11324, %v11322
        %v11328 = vshll.u32 %v11184, 16
        %v11330 = vrot.slane %v11328, 1
        %v11331 = vsel %vm1730, %v11326, %v11330
        %v11332 = vshrl.u32 %v11184, 16
        %v11334 = vor.u32 %v11332, %v11330
        %v11336 = vshll.u32 %v11185, 16
        %v11338 = vrot.slane %v11336, 1
        %v11339 = vsel %vm1730, %v11334, %v11338
        %v11340 = vshrl.u32 %v11185, 16
        %v11342 = vor.u32 %v11340, %v11338
        %v11344 = vshll.u32 %v11186, 16
        %v11346 = vrot.slane %v11344, 1
        %v11347 = vsel %vm1730, %v11342, %v11346
        %v11348 = vshrl.u32 %v11186, 16
        %v11350 = vor.u32 %v11348, %v11346
        %v11352 = vshll.u32 %v11187, 16
        %v11354 = vrot.slane %v11352, 1
        %v11355 = vsel %vm1730, %v11350, %v11354
        %v11356 = vshrl.u32 %v11187, 16
        %v11358 = vor.u32 %v11356, %v11354
        %v11360 = vshll.u32 %v11188, 16
        %v11362 = vrot.slane %v11360, 1
        %v11363 = vsel %vm1730, %v11358, %v11362
        %v11364 = vshrl.u32 %v11188, 16
        %v11366 = vor.u32 %v11364, %v11362
        %v11368 = vshll.u32 %v11189, 16
        %v11370 = vrot.slane %v11368, 1
        %v11371 = vsel %vm1730, %v11366, %v11370
        %v11372 = vshrl.u32 %v11189, 16
        %v11374 = vor.u32 %v11372, %v11370
        %v11376 = vshll.u32 %v11190, 16
        %v11378 = vrot.slane %v11376, 1
        %v11379 = vsel %vm1730, %v11374, %v11378
        %v11380 = vshrl.u32 %v11190, 16
        %v11382 = vor.u32 %v11380, %v11378
        %v11384 = vshll.u32 %v11191, 16
        %v11386 = vrot.slane %v11384, 1
        %v11387 = vsel %vm1730, %v11382, %v11386
        %v11428 = vunpack.c.l.b16 %v11053
        %v11429 = vunpack.c.l.b16 %v11054
        %v11430 = vunpack.c.l.b16 %v11055
        %v11431 = vunpack.c.l.b16 %v11056
        %v11432 = vunpack.c.l.b16 %v11057
        %v11433 = vunpack.c.l.b16 %v11058
        %v11434 = vunpack.c.l.b16 %v11059
        %v11435 = vunpack.c.l.b16 %v11060
        %v11436 = vunpack.c.l.b16 %v11061
        %v11437 = vunpack.c.l.b16 %v11062
        %v11438 = vunpack.c.l.b16 %v11063
        %v11439 = vunpack.c.l.b16 %v11064
        %v11440 = vunpack.c.l.b16 %v11065
        %v11441 = vunpack.c.l.b16 %v11066
        %v11442 = vunpack.c.l.b16 %v11067
        %v11443 = vunpack.c.l.b16 %v11068
        %v11444 = vpack.c.b16 %v11429, %v11428
        %v11445 = vpack.c.b16 %v11431, %v11430
        %v11446 = vpack.c.b16 %v11433, %v11432
        %v11447 = vpack.c.b16 %v11435, %v11434
        %v11448 = vpack.c.b16 %v11437, %v11436
        %v11449 = vpack.c.b16 %v11439, %v11438
        %v11450 = vpack.c.b16 %v11441, %v11440
        %v11451 = vpack.c.b16 %v11443, %v11442
        %11460 = vmatprep.subr.bf16.mxu0 0
        %11461 = vmatpush1.bf16.msra.mxu0 %v11451
        %11462 = vmatprep.subr.bf16.mxu0 0
        %11463 = vmatpush1.bf16.msra.mxu0 %v11450
        %11464 = vmatprep.subr.bf16.mxu0 0
        %11465 = vmatpush1.bf16.msra.mxu0 %v11449
        %11466 = vmatprep.subr.bf16.mxu0 0
        %11467 = vmatpush1.bf16.msra.mxu0 %v11448
        %11468 = vmatprep.subr.bf16.mxu0 0
        %11469 = vmatpush1.bf16.msra.mxu0 %v11447
        %11470 = vmatprep.subr.bf16.mxu0 0
        %11471 = vmatpush1.bf16.msra.mxu0 %v11446
        %11472 = vmatprep.subr.bf16.mxu0 0
        %11473 = vmatpush1.bf16.msra.mxu0 %v11445
        %11474 = vmatprep.subr.bf16.mxu0 0
        %11475 = vmatpush1.bf16.msra.mxu0 %v11444
        %11476 = vmatprep.subr.bf16.mxu0 0
        %11477 = vmatpush2.bf16.msra.mxu0 0
        %11478 = vmatprep.subr.bf16.mxu0 0
        %11479 = vmatpush2.bf16.msra.mxu0 0
        %11480 = vmatprep.subr.bf16.mxu0 0
        %11481 = vmatpush2.bf16.msra.mxu0 0
        %11482 = vmatprep.subr.bf16.mxu0 0
        %11483 = vmatpush2.bf16.msra.mxu0 0
        %11484 = vmatprep.subr.bf16.mxu0 0
        %11485 = vmatpush2.bf16.msra.mxu0 0
        %11486 = vmatprep.subr.bf16.mxu0 0
        %11487 = vmatpush2.bf16.msra.mxu0 0
        %11488 = vmatprep.subr.bf16.mxu0 0
        %11489 = vmatpush2.bf16.msra.mxu0 0
        %11490 = vmatprep.subr.bf16.mxu0 0
        %11491 = vmatpush2.bf16.msra.mxu0 0
        %11492 = vmatprep.mubr.bf16.mxu0 0
        %11493 = vmatmul.mubr.bf16.gmra.mxu0 %v11203
        %v11494 = vpop.f32.mrf.mxu0
        %v11495 = vadd.f32 0.0, %v11494
        %v11496 = vpop.f32.mrf.mxu0
        %v11497 = vpop.f32.mrf.mxu0
        %v11498 = vadd.f32 0.0, %v11497
        %v11499 = vpop.f32.mrf.mxu0
        %11500 = vmatprep.mubr.bf16.mxu0 0
        %11501 = vmatmul.mubr.bf16.gmra.mxu0 %v11211
        %v11502 = vpop.f32.mrf.mxu0
        %v11503 = vpop.f32.mrf.mxu0
        %v11504 = vpop.f32.mrf.mxu0
        %v11505 = vadd.f32 0.0, %v11504
        %v11506 = vpop.f32.mrf.mxu0
        %11507 = vmatprep.mubr.bf16.mxu0 0
        %11508 = vmatmul.mubr.bf16.gmra.mxu0 %v11219
        %v11509 = vpop.f32.mrf.mxu0
        %v11510 = vadd.f32 0.0, %v11509
        %v11511 = vpop.f32.mrf.mxu0
        %v11512 = vpop.f32.mrf.mxu0
        %v11513 = vpop.f32.mrf.mxu0
        %11514 = vmatprep.mubr.bf16.mxu0 0
        %11515 = vmatmul.mubr.bf16.gmra.mxu0 %v11227
        %v11516 = vpop.f32.mrf.mxu0
        %v11517 = vadd.f32 0.0, %v11516
        %v11518 = vpop.f32.mrf.mxu0
        %v11519 = vpop.f32.mrf.mxu0
        %v11520 = vadd.f32 0.0, %v11519
        %v11521 = vpop.f32.mrf.mxu0
        %11522 = vmatprep.mubr.bf16.mxu0 0
        %11523 = vmatmul.mubr.bf16.gmra.mxu0 %v11235
        %v11524 = vpop.f32.mrf.mxu0
        %v11525 = vpop.f32.mrf.mxu0
        %v11526 = vpop.f32.mrf.mxu0
        %v11527 = vadd.f32 0.0, %v11526
        %v11528 = vpop.f32.mrf.mxu0
        %11529 = vmatprep.mubr.bf16.mxu0 0
        %11530 = vmatmul.mubr.bf16.gmra.mxu0 %v11243
        %v11531 = vpop.f32.mrf.mxu0
        %v11532 = vadd.f32 0.0, %v11531
        %v11533 = vpop.f32.mrf.mxu0
        %v11534 = vpop.f32.mrf.mxu0
        %v11535 = vpop.f32.mrf.mxu0
        %11536 = vmatprep.mubr.bf16.mxu0 0
        %11537 = vmatmul.mubr.bf16.gmra.mxu0 %v11251
        %v11538 = vpop.f32.mrf.mxu0
        %v11539 = vadd.f32 0.0, %v11538
        %v11540 = vpop.f32.mrf.mxu0
        %v11541 = vpop.f32.mrf.mxu0
        %v11542 = vadd.f32 0.0, %v11541
        %v11543 = vpop.f32.mrf.mxu0
        %11544 = vmatprep.mubr.bf16.mxu0 0
        %11545 = vmatmul.mubr.bf16.gmra.mxu0 %v11259
        %v11546 = vpop.f32.mrf.mxu0
        %v11547 = vpop.f32.mrf.mxu0
        %v11548 = vpop.f32.mrf.mxu0
        %v11549 = vadd.f32 0.0, %v11548
        %v11550 = vpop.f32.mrf.mxu0
        %11551 = vmatprep.mubr.bf16.mxu0 0
        %11552 = vmatmul.mubr.bf16.gmra.mxu0 %v11267
        %v11553 = vpop.f32.mrf.mxu0
        %v11554 = vadd.f32 0.0, %v11553
        %v11555 = vpop.f32.mrf.mxu0
        %v11556 = vpop.f32.mrf.mxu0
        %v11557 = vpop.f32.mrf.mxu0
        %11558 = vmatprep.mubr.bf16.mxu0 0
        %11559 = vmatmul.mubr.bf16.gmra.mxu0 %v11275
        %v11560 = vpop.f32.mrf.mxu0
        %v11561 = vadd.f32 0.0, %v11560
        %v11562 = vpop.f32.mrf.mxu0
        %v11563 = vpop.f32.mrf.mxu0
        %v11564 = vadd.f32 0.0, %v11563
        %v11565 = vpop.f32.mrf.mxu0
        %11566 = vmatprep.mubr.bf16.mxu0 0
        %11567 = vmatmul.mubr.bf16.gmra.mxu0 %v11283
        %v11568 = vpop.f32.mrf.mxu0
        %v11569 = vpop.f32.mrf.mxu0
        %v11570 = vpop.f32.mrf.mxu0
        %v11571 = vadd.f32 0.0, %v11570
        %v11572 = vpop.f32.mrf.mxu0
        %11573 = vmatprep.mubr.bf16.mxu0 0
        %11574 = vmatmul.mubr.bf16.gmra.mxu0 %v11291
        %v11575 = vpop.f32.mrf.mxu0
        %v11576 = vadd.f32 0.0, %v11575
        %v11577 = vpop.f32.mrf.mxu0
        %v11578 = vpop.f32.mrf.mxu0
        %v11579 = vpop.f32.mrf.mxu0
        %11580 = vmatprep.mubr.bf16.mxu0 0
        %11581 = vmatmul.mubr.bf16.gmra.mxu0 %v11299
        %v11582 = vpop.f32.mrf.mxu0
        %v11583 = vadd.f32 0.0, %v11582
        %v11584 = vpop.f32.mrf.mxu0
        %v11585 = vpop.f32.mrf.mxu0
        %v11586 = vadd.f32 0.0, %v11585
        %v11587 = vpop.f32.mrf.mxu0
        %11588 = vmatprep.mubr.bf16.mxu0 0
        %11589 = vmatmul.mubr.bf16.gmra.mxu0 %v11307
        %v11590 = vpop.f32.mrf.mxu0
        %v11591 = vpop.f32.mrf.mxu0
        %v11592 = vpop.f32.mrf.mxu0
        %v11593 = vadd.f32 0.0, %v11592
        %v11594 = vpop.f32.mrf.mxu0
        %11595 = vmatprep.mubr.bf16.mxu0 0
        %11596 = vmatmul.mubr.bf16.gmra.mxu0 %v11315
        %v11597 = vpop.f32.mrf.mxu0
        %v11598 = vadd.f32 0.0, %v11597
        %v11599 = vpop.f32.mrf.mxu0
        %v11600 = vpop.f32.mrf.mxu0
        %v11601 = vpop.f32.mrf.mxu0
        %11602 = vmatprep.mubr.bf16.mxu0 0
        %11603 = vmatmul.mubr.bf16.gmra.mxu0 %v11323
        %v11604 = vpop.f32.mrf.mxu0
        %v11605 = vadd.f32 0.0, %v11604
        %v11606 = vpop.f32.mrf.mxu0
        %v11607 = vpop.f32.mrf.mxu0
        %v11608 = vadd.f32 0.0, %v11607
        %v11609 = vpop.f32.mrf.mxu0
        %11610 = vmatprep.mubr.bf16.mxu0 0
        %11611 = vmatmul.mubr.bf16.gmra.mxu0 %v11331
        %v11612 = vpop.f32.mrf.mxu0
        %v11613 = vpop.f32.mrf.mxu0
        %v11614 = vpop.f32.mrf.mxu0
        %v11615 = vadd.f32 0.0, %v11614
        %v11616 = vpop.f32.mrf.mxu0
        %11617 = vmatprep.mubr.bf16.mxu0 0
        %11618 = vmatmul.mubr.bf16.gmra.mxu0 %v11339
        %v11619 = vpop.f32.mrf.mxu0
        %v11620 = vadd.f32 0.0, %v11619
        %v11621 = vpop.f32.mrf.mxu0
        %v11622 = vpop.f32.mrf.mxu0
        %v11623 = vpop.f32.mrf.mxu0
        %11624 = vmatprep.mubr.bf16.mxu0 0
        %11625 = vmatmul.mubr.bf16.gmra.mxu0 %v11347
        %v11626 = vpop.f32.mrf.mxu0
        %v11627 = vadd.f32 0.0, %v11626
        %v11628 = vpop.f32.mrf.mxu0
        %v11629 = vpop.f32.mrf.mxu0
        %v11630 = vadd.f32 0.0, %v11629
        %v11631 = vpop.f32.mrf.mxu0
        %11632 = vmatprep.mubr.bf16.mxu0 0
        %11633 = vmatmul.mubr.bf16.gmra.mxu0 %v11355
        %v11634 = vpop.f32.mrf.mxu0
        %v11635 = vpop.f32.mrf.mxu0
        %v11636 = vpop.f32.mrf.mxu0
        %v11637 = vadd.f32 0.0, %v11636
        %v11638 = vpop.f32.mrf.mxu0
        %11639 = vmatprep.mubr.bf16.mxu0 0
        %11640 = vmatmul.mubr.bf16.gmra.mxu0 %v11363
        %v11641 = vpop.f32.mrf.mxu0
        %v11642 = vadd.f32 0.0, %v11641
        %v11643 = vpop.f32.mrf.mxu0
        %v11644 = vpop.f32.mrf.mxu0
        %v11645 = vpop.f32.mrf.mxu0
        %11646 = vmatprep.mubr.bf16.mxu0 0
        %11647 = vmatmul.mubr.bf16.gmra.mxu0 %v11371
        %v11648 = vpop.f32.mrf.mxu0
        %v11649 = vadd.f32 0.0, %v11648
        %v11650 = vpop.f32.mrf.mxu0
        %v11651 = vpop.f32.mrf.mxu0
        %v11652 = vadd.f32 0.0, %v11651
        %v11653 = vpop.f32.mrf.mxu0
        %11654 = vmatprep.mubr.bf16.mxu0 0
        %11655 = vmatmul.mubr.bf16.gmra.mxu0 %v11379
        %v11656 = vpop.f32.mrf.mxu0
        %v11657 = vpop.f32.mrf.mxu0
        %v11658 = vpop.f32.mrf.mxu0
        %v11659 = vadd.f32 0.0, %v11658
        %v11660 = vpop.f32.mrf.mxu0
        %11661 = vmatprep.mubr.bf16.mxu0 0
        %11662 = vmatmul.mubr.bf16.gmra.mxu0 %v11387
        %v11663 = vpop.f32.mrf.mxu0
        %v11664 = vadd.f32 0.0, %v11663
        %v11665 = vpop.f32.mrf.mxu0
        %v11666 = vpop.f32.mrf.mxu0
        %v11667 = vpop.f32.mrf.mxu0
        %11668 = vdwg.mxu0
        %v11669 = vadd.f32 %v10971, %v11495
        %v11670 = vadd.f32 %v10972, %v11498
        %v11671 = vadd.f32 %v10973, %v11505
        %v11672 = vadd.f32 %v10974, %v11510
        %v11673 = vadd.f32 %v10975, %v11517
        %v11674 = vadd.f32 %v10976, %v11520
        %v11675 = vadd.f32 %v10977, %v11527
        %v11676 = vadd.f32 %v10978, %v11532
        %v11677 = vadd.f32 %v10979, %v11539
        %v11678 = vadd.f32 %v10980, %v11542
        %v11679 = vadd.f32 %v10981, %v11549
        %v11680 = vadd.f32 %v10982, %v11554
        %v11681 = vadd.f32 %v10983, %v11561
        %v11682 = vadd.f32 %v10984, %v11564
        %v11683 = vadd.f32 %v10985, %v11571
        %v11684 = vadd.f32 %v10986, %v11576
        %v11685 = vadd.f32 %v10987, %v11583
        %v11686 = vadd.f32 %v10988, %v11586
        %v11687 = vadd.f32 %v10989, %v11593
        %v11688 = vadd.f32 %v10990, %v11598
        %v11689 = vadd.f32 %v10991, %v11605
        %v11690 = vadd.f32 %v10992, %v11608
        %v11691 = vadd.f32 %v10993, %v11615
        %v11692 = vadd.f32 %v10994, %v11620
        %v11693 = vadd.f32 %v10995, %v11627
        %v11694 = vadd.f32 %v10996, %v11630
        %v11695 = vadd.f32 %v10997, %v11637
        %v11696 = vadd.f32 %v10998, %v11642
        %v11697 = vadd.f32 %v10999, %v11649
        %v11698 = vadd.f32 %v11000, %v11652
        %v11699 = vadd.f32 %v11001, %v11659
        %v11700 = vadd.f32 %v11002, %v11664
        %v11701 = vld [vmem:[#allocation2 + $0x10] sm:$0xf]
        %v11702 = vld [vmem:[#allocation2 + $0x14] sm:$0xf]
        %v11703 = vld [vmem:[#allocation2 + $0x1c] sm:$0xf]
        %v11704 = vld [vmem:[#allocation2 + $0x20] sm:$0xf]
        %v11705 = vld [vmem:[#allocation2 + $0x28] sm:$0xf]
        %v11706 = vld [vmem:[#allocation2 + $0x2c] sm:$0xf]
        %v11707 = vld [vmem:[#allocation2 + $0x34] sm:$0xf]
        %v11708 = vld [vmem:[#allocation2 + $0x38] sm:$0xf]
        %v11709 = vld [vmem:[#allocation2 + $0x40] sm:$0xf]
        %v11710 = vld [vmem:[#allocation2 + $0x44] sm:$0xf]
        %v11711 = vld [vmem:[#allocation2 + $0x4c] sm:$0xf]
        %v11712 = vld [vmem:[#allocation2 + $0x50] sm:$0xf]
        %v11713 = vld [vmem:[#allocation2 + $0x58] sm:$0xf]
        %v11714 = vld [vmem:[#allocation2 + $0x5c] sm:$0xf]
        %v11715 = vld [vmem:[#allocation2 + $0x64] sm:$0xf]
        %v11716 = vld [vmem:[#allocation2 + $0x68] sm:$0xf]
        %v11717 = vld [vmem:[#allocation2 + $0x70] sm:$0xf]
        %v11718 = vld [vmem:[#allocation2 + $0x74] sm:$0xf]
        %v11719 = vld [vmem:[#allocation2 + $0x7c] sm:$0xf]
        %v11720 = vld [vmem:[#allocation2 + $0x80] sm:$0xf]
        %v11721 = vld [vmem:[#allocation2 + $0x88] sm:$0xf]
        %v11722 = vld [vmem:[#allocation2 + $0x8c] sm:$0xf]
        %v11723 = vld [vmem:[#allocation2 + $0x94] sm:$0xf]
        %v11724 = vld [vmem:[#allocation2 + $0x98] sm:$0xf]
        %v11725 = vld [vmem:[#allocation2 + $0xa0] sm:$0xf]
        %v11726 = vld [vmem:[#allocation2 + $0xa4] sm:$0xf]
        %v11727 = vld [vmem:[#allocation2 + $0xac] sm:$0xf]
        %v11728 = vld [vmem:[#allocation2 + $0xb0] sm:$0xf]
        %v11729 = vld [vmem:[#allocation2 + $0xb8] sm:$0xf]
        %v11730 = vld [vmem:[#allocation2 + $0xbc] sm:$0xf]
        %v11731 = vld [vmem:[#allocation2 + $0xc4] sm:$0xf]
        %v11732 = vld [vmem:[#allocation2 + $0xc8] sm:$0xf]
        %v11733 = vunpack.c.l.bf16 %v11701
        %v11734 = vunpack.c.l.bf16 %v11702
        %v11735 = vunpack.c.l.bf16 %v11703
        %v11736 = vunpack.c.l.bf16 %v11704
        %v11737 = vunpack.c.l.bf16 %v11705
        %v11738 = vunpack.c.l.bf16 %v11706
        %v11739 = vunpack.c.l.bf16 %v11707
        %v11740 = vunpack.c.l.bf16 %v11708
        %v11741 = vunpack.c.l.bf16 %v11709
        %v11742 = vunpack.c.l.bf16 %v11710
        %v11743 = vunpack.c.l.bf16 %v11711
        %v11744 = vunpack.c.l.bf16 %v11712
        %v11745 = vunpack.c.l.bf16 %v11713
        %v11746 = vunpack.c.l.bf16 %v11714
        %v11747 = vunpack.c.l.bf16 %v11715
        %v11748 = vunpack.c.l.bf16 %v11716
        %v11749 = vunpack.c.l.bf16 %v11717
        %v11750 = vunpack.c.l.bf16 %v11718
        %v11751 = vunpack.c.l.bf16 %v11719
        %v11752 = vunpack.c.l.bf16 %v11720
        %v11753 = vunpack.c.l.bf16 %v11721
        %v11754 = vunpack.c.l.bf16 %v11722
        %v11755 = vunpack.c.l.bf16 %v11723
        %v11756 = vunpack.c.l.bf16 %v11724
        %v11757 = vunpack.c.l.bf16 %v11725
        %v11758 = vunpack.c.l.bf16 %v11726
        %v11759 = vunpack.c.l.bf16 %v11727
        %v11760 = vunpack.c.l.bf16 %v11728
        %v11761 = vunpack.c.l.bf16 %v11729
        %v11762 = vunpack.c.l.bf16 %v11730
        %v11763 = vunpack.c.l.bf16 %v11731
        %v11764 = vunpack.c.l.bf16 %v11732
        %v11765 = vld [vmem:[%s4] sm:$0x1]
        %v11767 = vlaneseq
        %v11768 = vshrl.u32 %v11767, 7
        %v11769 = vsub.s32 0, %v11768
        %v11770 = vrot.slane %v11765, %v11769
        %v11772 = vadd.f32 %v11669, %v11770
        %v11773 = vadd.f32 %v11670, %v11770
        %v11774 = vadd.f32 %v11671, %v11770
        %v11775 = vadd.f32 %v11672, %v11770
        %v11776 = vadd.f32 %v11673, %v11770
        %v11777 = vadd.f32 %v11674, %v11770
        %v11778 = vadd.f32 %v11675, %v11770
        %v11779 = vadd.f32 %v11676, %v11770
        %v11780 = vadd.f32 %v11677, %v11770
        %v11781 = vadd.f32 %v11678, %v11770
        %v11782 = vadd.f32 %v11679, %v11770
        %v11783 = vadd.f32 %v11680, %v11770
        %v11784 = vadd.f32 %v11681, %v11770
        %v11785 = vadd.f32 %v11682, %v11770
        %v11786 = vadd.f32 %v11683, %v11770
        %v11787 = vadd.f32 %v11684, %v11770
        %v11788 = vadd.f32 %v11685, %v11770
        %v11789 = vadd.f32 %v11686, %v11770
        %v11790 = vadd.f32 %v11687, %v11770
        %v11791 = vadd.f32 %v11688, %v11770
        %v11792 = vadd.f32 %v11689, %v11770
        %v11793 = vadd.f32 %v11690, %v11770
        %v11794 = vadd.f32 %v11691, %v11770
        %v11795 = vadd.f32 %v11692, %v11770
        %v11796 = vadd.f32 %v11693, %v11770
        %v11797 = vadd.f32 %v11694, %v11770
        %v11798 = vadd.f32 %v11695, %v11770
        %v11799 = vadd.f32 %v11696, %v11770
        %v11800 = vadd.f32 %v11697, %v11770
        %v11801 = vadd.f32 %v11698, %v11770
        %v11802 = vadd.f32 %v11699, %v11770
        %v11803 = vadd.f32 %v11700, %v11770
        %v11804 = vadd.f32 %v11772, %v11733
        %v11805 = vadd.f32 %v11773, %v11734
        %v11806 = vadd.f32 %v11774, %v11735
        %v11807 = vadd.f32 %v11775, %v11736
        %v11808 = vadd.f32 %v11776, %v11737
        %v11809 = vadd.f32 %v11777, %v11738
        %v11810 = vadd.f32 %v11778, %v11739
        %v11811 = vadd.f32 %v11779, %v11740
        %v11812 = vadd.f32 %v11780, %v11741
        %v11813 = vadd.f32 %v11781, %v11742
        %v11814 = vadd.f32 %v11782, %v11743
        %v11815 = vadd.f32 %v11783, %v11744
        %v11816 = vadd.f32 %v11784, %v11745
        %v11817 = vadd.f32 %v11785, %v11746
        %v11818 = vadd.f32 %v11786, %v11747
        %v11819 = vadd.f32 %v11787, %v11748
        %v11820 = vadd.f32 %v11788, %v11749
        %v11821 = vadd.f32 %v11789, %v11750
        %v11822 = vadd.f32 %v11790, %v11751
        %v11823 = vadd.f32 %v11791, %v11752
        %v11824 = vadd.f32 %v11792, %v11753
        %v11825 = vadd.f32 %v11793, %v11754
        %v11826 = vadd.f32 %v11794, %v11755
        %v11827 = vadd.f32 %v11795, %v11756
        %v11828 = vadd.f32 %v11796, %v11757
        %v11829 = vadd.f32 %v11797, %v11758
        %v11830 = vadd.f32 %v11798, %v11759
        %v11831 = vadd.f32 %v11799, %v11760
        %v11832 = vadd.f32 %v11800, %v11761
        %v11833 = vadd.f32 %v11801, %v11762
        %v11834 = vadd.f32 %v11802, %v11763
        %v11835 = vadd.f32 %v11803, %v11764
        %v11836 = vmax.f32 %v11804, 0.0
        %v11837 = vmax.f32 %v11805, 0.0
        %v11838 = vmax.f32 %v11806, 0.0
        %v11839 = vmax.f32 %v11807, 0.0
        %v11840 = vmax.f32 %v11808, 0.0
        %v11841 = vmax.f32 %v11809, 0.0
        %v11842 = vmax.f32 %v11810, 0.0
        %v11843 = vmax.f32 %v11811, 0.0
        %v11844 = vmax.f32 %v11812, 0.0
        %v11845 = vmax.f32 %v11813, 0.0
        %v11846 = vmax.f32 %v11814, 0.0
        %v11847 = vmax.f32 %v11815, 0.0
        %v11848 = vmax.f32 %v11816, 0.0
        %v11849 = vmax.f32 %v11817, 0.0
        %v11850 = vmax.f32 %v11818, 0.0
        %v11851 = vmax.f32 %v11819, 0.0
        %v11852 = vmax.f32 %v11820, 0.0
        %v11853 = vmax.f32 %v11821, 0.0
        %v11854 = vmax.f32 %v11822, 0.0
        %v11855 = vmax.f32 %v11823, 0.0
        %v11856 = vmax.f32 %v11824, 0.0
        %v11857 = vmax.f32 %v11825, 0.0
        %v11858 = vmax.f32 %v11826, 0.0
        %v11859 = vmax.f32 %v11827, 0.0
        %v11860 = vmax.f32 %v11828, 0.0
        %v11861 = vmax.f32 %v11829, 0.0
        %v11862 = vmax.f32 %v11830, 0.0
        %v11863 = vmax.f32 %v11831, 0.0
        %v11864 = vmax.f32 %v11832, 0.0
        %v11865 = vmax.f32 %v11833, 0.0
        %v11866 = vmax.f32 %v11834, 0.0
        %v11867 = vmax.f32 %v11835, 0.0
        %v11868 = vpack.c.bf16 %v11837, %v11836
        %v11869 = vpack.c.bf16 %v11839, %v11838
        %v11870 = vpack.c.bf16 %v11841, %v11840
        %v11871 = vpack.c.bf16 %v11843, %v11842
        %v11872 = vpack.c.bf16 %v11845, %v11844
        %v11873 = vpack.c.bf16 %v11847, %v11846
        %v11874 = vpack.c.bf16 %v11849, %v11848
        %v11875 = vpack.c.bf16 %v11851, %v11850
        %v11876 = vpack.c.bf16 %v11853, %v11852
        %v11877 = vpack.c.bf16 %v11855, %v11854
        %v11878 = vpack.c.bf16 %v11857, %v11856
        %v11879 = vpack.c.bf16 %v11859, %v11858
        %v11880 = vpack.c.bf16 %v11861, %v11860
        %v11881 = vpack.c.bf16 %v11863, %v11862
        %v11882 = vpack.c.bf16 %v11865, %v11864
        %v11883 = vpack.c.bf16 %v11867, %v11866
        %v11900 = vunpack.c.l.b16 %v11868
        %v11901 = vunpack.c.h.b16 %v11868
        %v11902 = vunpack.c.l.b16 %v11869
        %v11903 = vunpack.c.h.b16 %v11869
        %v11904 = vunpack.c.l.b16 %v11870
        %v11905 = vunpack.c.h.b16 %v11870
        %v11906 = vunpack.c.l.b16 %v11871
        %v11907 = vunpack.c.h.b16 %v11871
        %v11908 = vunpack.c.l.b16 %v11872
        %v11909 = vunpack.c.h.b16 %v11872
        %v11910 = vunpack.c.l.b16 %v11873
        %v11911 = vunpack.c.h.b16 %v11873
        %v11912 = vunpack.c.l.b16 %v11874
        %v11913 = vunpack.c.h.b16 %v11874
        %v11914 = vunpack.c.l.b16 %v11875
        %v11915 = vunpack.c.h.b16 %v11875
        %v11916 = vunpack.c.l.b16 %v11876
        %v11917 = vunpack.c.h.b16 %v11876
        %v11918 = vunpack.c.l.b16 %v11877
        %v11919 = vunpack.c.h.b16 %v11877
        %v11920 = vunpack.c.l.b16 %v11878
        %v11921 = vunpack.c.h.b16 %v11878
        %v11922 = vunpack.c.l.b16 %v11879
        %v11923 = vunpack.c.h.b16 %v11879
        %v11924 = vunpack.c.l.b16 %v11880
        %v11925 = vunpack.c.h.b16 %v11880
        %v11926 = vunpack.c.l.b16 %v11881
        %v11927 = vunpack.c.h.b16 %v11881
        %v11928 = vunpack.c.l.b16 %v11882
        %v11929 = vunpack.c.h.b16 %v11882
        %v11930 = vunpack.c.l.b16 %v11883
        %v11931 = vunpack.c.h.b16 %v11883
        %v11932 = vpack.c.b16 %v11900, %v11900
        %v11933 = vpack.c.b16 %v11901, %v11901
        %v11934 = vpack.c.b16 %v11902, %v11902
        %v11935 = vpack.c.b16 %v11903, %v11903
        %v11936 = vpack.c.b16 %v11904, %v11904
        %v11937 = vpack.c.b16 %v11905, %v11905
        %v11938 = vpack.c.b16 %v11906, %v11906
        %v11939 = vpack.c.b16 %v11907, %v11907
        %v11940 = vpack.c.b16 %v11908, %v11908
        %v11941 = vpack.c.b16 %v11909, %v11909
        %v11942 = vpack.c.b16 %v11910, %v11910
        %v11943 = vpack.c.b16 %v11911, %v11911
        %v11944 = vpack.c.b16 %v11912, %v11912
        %v11945 = vpack.c.b16 %v11913, %v11913
        %v11946 = vpack.c.b16 %v11914, %v11914
        %v11947 = vpack.c.b16 %v11915, %v11915
        %v11948 = vpack.c.b16 %v11916, %v11916
        %v11949 = vpack.c.b16 %v11917, %v11917
        %v11950 = vpack.c.b16 %v11918, %v11918
        %v11951 = vpack.c.b16 %v11919, %v11919
        %v11952 = vpack.c.b16 %v11920, %v11920
        %v11953 = vpack.c.b16 %v11921, %v11921
        %v11954 = vpack.c.b16 %v11922, %v11922
        %v11955 = vpack.c.b16 %v11923, %v11923
        %v11956 = vpack.c.b16 %v11924, %v11924
        %v11957 = vpack.c.b16 %v11925, %v11925
        %v11958 = vpack.c.b16 %v11926, %v11926
        %v11959 = vpack.c.b16 %v11927, %v11927
        %v11960 = vpack.c.b16 %v11928, %v11928
        %v11961 = vpack.c.b16 %v11929, %v11929
        %v11962 = vpack.c.b16 %v11930, %v11930
        %v11963 = vpack.c.b16 %v11931, %v11931
        %11996 = vst [vmem:[%s232] sm:$0xf] %v11932
        %11997 = vst [vmem:[%s232 + $0x4] sm:$0xf] %v11933
        %11998 = vst [vmem:[%s232 + $0x8] sm:$0xf] %v11934
        %11999 = vst [vmem:[%s232 + $0xc] sm:$0xf] %v11935
        %12000 = vst [vmem:[%s232 + $0x10] sm:$0xf] %v11936
        %12001 = vst [vmem:[%s232 + $0x14] sm:$0xf] %v11937
        %12002 = vst [vmem:[%s232 + $0x18] sm:$0xf] %v11938
        %12003 = vst [vmem:[%s232 + $0x1c] sm:$0xf] %v11939
        %12004 = vst [vmem:[%s232 + $0x20] sm:$0xf] %v11940
        %12005 = vst [vmem:[%s232 + $0x24] sm:$0xf] %v11941
        %12006 = vst [vmem:[%s232 + $0x28] sm:$0xf] %v11942
        %12007 = vst [vmem:[%s232 + $0x2c] sm:$0xf] %v11943
        %12008 = vst [vmem:[%s232 + $0x30] sm:$0xf] %v11944
        %12009 = vst [vmem:[%s232 + $0x34] sm:$0xf] %v11945
        %12010 = vst [vmem:[%s232 + $0x38] sm:$0xf] %v11946
        %12011 = vst [vmem:[%s232 + $0x3c] sm:$0xf] %v11947
        %12012 = vst [vmem:[%s232 + $0x40] sm:$0xf] %v11948
        %12013 = vst [vmem:[%s232 + $0x44] sm:$0xf] %v11949
        %12014 = vst [vmem:[%s232 + $0x48] sm:$0xf] %v11950
        %12015 = vst [vmem:[%s232 + $0x4c] sm:$0xf] %v11951
        %12016 = vst [vmem:[%s232 + $0x50] sm:$0xf] %v11952
        %12017 = vst [vmem:[%s232 + $0x54] sm:$0xf] %v11953
        %12018 = vst [vmem:[%s232 + $0x58] sm:$0xf] %v11954
        %12019 = vst [vmem:[%s232 + $0x5c] sm:$0xf] %v11955
        %12020 = vst [vmem:[%s232 + $0x60] sm:$0xf] %v11956
        %12021 = vst [vmem:[%s232 + $0x64] sm:$0xf] %v11957
        %12022 = vst [vmem:[%s232 + $0x68] sm:$0xf] %v11958
        %12023 = vst [vmem:[%s232 + $0x6c] sm:$0xf] %v11959
        %12024 = vst [vmem:[%s232 + $0x70] sm:$0xf] %v11960
        %12025 = vst [vmem:[%s232 + $0x74] sm:$0xf] %v11961
        %12026 = vst [vmem:[%s232 + $0x78] sm:$0xf] %v11962
        %12027 = vst [vmem:[%s232 + $0x7c] sm:$0xf] %v11963
        %s12028 = sand.u32 %s138, 1
        %s12029 = scalar_lea.sflag [#allocation6], %s12028
        %s12030 = sand.u32 %s138, 1
        %s12031 = smul.addr %s12030, 128
        %s12032 = scalar_lea.vmem [#allocation7], %s12031
        // Predicated region
        $region45: #{tpu_custom_call.1} parent=39 // pred_check
          %p12033 = pneg %p148
        $region46: #{tpu_custom_call.1} parent=39 // pred_check_branch
          %12035 = sbr.rel (%p12033) target = $region48
        $region47: #{tpu_custom_call.1} parent=39 // pred_region
          %s12037 = ssub.s32 2048, 2048
          %12038 = vsyncadd %s12029, %s12037
          %s12039 = smul.addr %s20, 32
          %s12040 = smul.addr %s12039, 64
          %s12041 = scalar_lea.hbm %s5, %s12040
          %s12042 = sshll.u32 %s12032, 4
          %s12043 = int_to_ptr.vmem [resolvable:$true] %s12042
          %12048 = dma.vmem_to_hbm [thread:$0]  %s12043, 2048, %s12041, %s12029, 64, 64, 4
        $region48: #{tpu_custom_call.1} parent=39 // pred_fallthru
          _
      $region40: #{tpu_custom_call.1} parent=5 // pred_fallthru
        _
      %p12049 = scmp.le.s32.totalorder 2, %s15
      // Predicated region
      $region49: #{tpu_custom_call.1} parent=5 // pred_check
        %p12050 = pneg %p12049
      $region50: #{tpu_custom_call.1} parent=5 // pred_check_branch
        %12052 = sbr.rel (%p12050) target = $region52
      $region51: #{tpu_custom_call.1} parent=5 // pred_region
        %s12053 = ssub.s32 %s15, 2
        // Predicated region
        $region53: #{tpu_custom_call.1} parent=51 // pred_check
          %p12054 = pneg %p154
        $region54: #{tpu_custom_call.1} parent=51 // pred_check_branch
          %12056 = sbr.rel (%p12054) target = $region56
        $region55: #{tpu_custom_call.1} parent=51 // pred_region
          %s12057 = sand.u32 %s139, 1
          %s12058 = scalar_lea.sflag [#allocation6], %s12057
          %s12059 = sand.u32 %s139, 1
          %s12060 = smul.addr %s12059, 128
          %s12061 = scalar_lea.vmem [#allocation7], %s12060
          %12062 = dma.done %s12058, 2048
        $region56: #{tpu_custom_call.1} parent=51 // pred_fallthru
          _
      $region52: #{tpu_custom_call.1} parent=5 // pred_fallthru
        _
    $region6: #{tpu_custom_call.1} parent=1 // loop_footer
      %s19 = sadd.s32 1, %s15
    $region7: #{tpu_custom_call.1} parent=1 // loop_footer_branch
      %14 = sbr.rel target = $region3
    $region8: #{tpu_custom_call.1} parent=1 // loop_exit
      _
    %12063 = vsyncpa [#allocation5], 1
    %s12064 = scalar_lea.sflag [#allocation5], 1
    %12065 = vsyncpa %s12064, 1
    %12066 = vsyncpa [#allocation6], 1
    %s12067 = scalar_lea.sflag [#allocation6], 1
    %12068 = vsyncpa %s12067, 1

</llo_original>
